<compile_context>
chip_gen: v7x
topology: tpu7x:2x2x1
jax: 0.10.0
libtpu: 0.0.40
codegen_flags: <defaults>
</compile_context>

<pallas_src>
import jax
import jax.numpy as jnp
from jax.experimental import pallas as pl
from jax.experimental.pallas import tpu as pltpu

# ---- static config (mirrors config.SIGMA / DEF_STEPS / T_START) -------------
C, H, W = 3, 32, 32
D = C * H * W                 # 3072 flattened image dim
HID = 128                     # hidden width of the synthetic flow model
NUM_CLASSES = 10
NUM_CLASSES_PAD = 128         # lane-dense padded classifier width
SIGMA = 2.5 / 10.0            # config.SIGMA / 10
T_START = 0.5
DEF_STEPS = 5                 # Euler steps over linspace(t_start, 1, def_steps)
DT = (1.0 - T_START) / (DEF_STEPS - 1)
MAX_TB = 128                  # max batch tile (fills MXU rows; multiple of 8 for f32)


def _round_up(x, m):
    return (x + m - 1) // m * m


def flowpure_kernel(x_ref, n_ref, w1_ref, b1_ref, w2s_ref, b2s_ref,
                    wc_ref, bc_ref, o_ref):
    # xt = t_start*x + (1-t_start)*(x + sigma*noise) == x + (1-t_start)*sigma*noise
    xt = x_ref[...] + (1.0 - T_START) * SIGMA * n_ref[...]        # f32 (TB, D)

    w1 = w1_ref[...]          # (D, HID)  bf16
    b1 = b1_ref[...]          # (1, HID)  f32
    w2s = w2s_ref[...]        # (HID, D)  bf16, pre-scaled by dt
    b2s = b2s_ref[...]        # (1, D)    f32,  pre-scaled by dt

    # Euler solver over t in linspace(t_start, 1, DEF_STEPS); static unrolled loop.
    # bf16 MXU matmuls with f32 accumulation; the xt carry stays f32.
    for i in range(DEF_STEPS - 1):
        t = T_START + DT * i
        b1t = b1 + t                                              # tiny (1, HID) add
        h = jnp.dot(xt.astype(jnp.bfloat16), w1,
                    preferred_element_type=jnp.float32) + b1t
        h = jnp.maximum(h, 0.0)
        # xt += dt * (h @ W2 + b2)  ==  xt += h @ (dt*W2) + dt*b2
        xt = xt + jnp.dot(h.astype(jnp.bfloat16), w2s,
                          preferred_element_type=jnp.float32) + b2s

    # Lane-dense (128-wide, zero-padded) classifier head.
    o_ref[...] = jnp.dot(xt.astype(jnp.bfloat16), wc_ref[...],
                         preferred_element_type=jnp.float32) + bc_ref[...]


def flowpure_forward(x_nchw, noise_nchw, params, max_tb=MAX_TB):
    """x_nchw, noise_nchw: (B, 3, 32, 32) f32. Returns logits (B, NUM_CLASSES) f32."""
    B = x_nchw.shape[0]
    w1, b1, w2, b2, wc, bc = params

    # Host-side weight prep: bf16 cast, dt folding, lane-dense classifier padding.
    w1_bf = w1.astype(jnp.bfloat16)
    b1_f = b1.reshape(1, HID).astype(jnp.float32)
    w2s = (DT * w2).astype(jnp.bfloat16)
    b2s = (DT * b2.reshape(1, D)).astype(jnp.float32)
    wc_pad = jnp.zeros((D, NUM_CLASSES_PAD), jnp.bfloat16)
    wc_pad = wc_pad.at[:, :NUM_CLASSES].set(wc.astype(jnp.bfloat16))
    bc_pad = jnp.zeros((1, NUM_CLASSES_PAD), jnp.float32)
    bc_pad = bc_pad.at[:, :NUM_CLASSES].set(
        bc.reshape(1, NUM_CLASSES).astype(jnp.float32))

    # Batch tiling: up to MAX_TB rows per tile, pad B so it divides evenly.
    tb = min(max_tb, _round_up(B, 8))
    bp = _round_up(B, tb)
    x_flat = x_nchw.reshape(B, D).astype(jnp.float32)
    n_flat = noise_nchw.reshape(B, D).astype(jnp.float32)
    if bp != B:
        x_flat = jnp.pad(x_flat, ((0, bp - B), (0, 0)))
        n_flat = jnp.pad(n_flat, ((0, bp - B), (0, 0)))

    grid = (bp // tb,)
    batched = lambda i: (i, 0)   # tile over batch
    rep = lambda i: (0, 0)       # weights: constant block index -> stays resident

    # Advisory cost estimate for XLA's scheduler around the custom call.
    flops = bp * ((DEF_STEPS - 1) * 2 * 2 * D * HID + 2 * D * NUM_CLASSES_PAD)
    bytes_accessed = ((x_flat.size + n_flat.size) * 4
                      + (w1_bf.size + w2s.size + wc_pad.size) * 2
                      + (b1_f.size + b2s.size + bc_pad.size) * 4
                      + bp * NUM_CLASSES_PAD * 4)

    logits_pad = pl.pallas_call(
        flowpure_kernel,
        out_shape=jax.ShapeDtypeStruct((bp, NUM_CLASSES_PAD), jnp.float32),
        grid=grid,
        in_specs=[
            pl.BlockSpec((tb, D), batched),                # x
            pl.BlockSpec((tb, D), batched),                # noise
            pl.BlockSpec((D, HID), rep),                   # W1 (bf16)
            pl.BlockSpec((1, HID), rep),                   # b1
            pl.BlockSpec((HID, D), rep),                   # dt*W2 (bf16)
            pl.BlockSpec((1, D), rep),                     # dt*b2
            pl.BlockSpec((D, NUM_CLASSES_PAD), rep),       # Wc padded (bf16)
            pl.BlockSpec((1, NUM_CLASSES_PAD), rep),       # bc padded
        ],
        out_specs=pl.BlockSpec((tb, NUM_CLASSES_PAD), batched),
        compiler_params=pltpu.CompilerParams(
            dimension_semantics=("parallel",)),
        cost_estimate=pl.CostEstimate(flops=flops, transcendentals=0,
                                      bytes_accessed=bytes_accessed),
    )(x_flat, n_flat, w1_bf, b1_f, w2s, b2s, wc_pad, bc_pad)

    # Drop batch padding and the zero-padded classifier lanes.
    return logits_pad[:B, :NUM_CLASSES]


if __name__ == "__main__":
    key = jax.random.PRNGKey(0)
    kx, kn, k1, k2, k3 = jax.random.split(key, 5)

    B = 16
    x = jax.random.uniform(kx, (B, C, H, W), jnp.float32)          # input images, NCHW
    # torch.randn_like(x) is supplied as a precomputed deterministic normal draw.
    # TODO(synk): on v5e, generate the noise in-kernel with pltpu.prng_seed +
    # pltpu.stateful_normal to drop this (B, D) input DMA entirely.
    noise = jax.random.normal(kn, (B, C, H, W), jnp.float32)

    # Deterministic synthetic parameters for the flow model and classifier.
    w1 = jax.random.normal(k1, (D, HID), jnp.float32) * 0.02
    b1 = jnp.zeros((1, HID), jnp.float32)
    w2 = jax.random.normal(k2, (HID, D), jnp.float32) * 0.02
    b2 = jnp.zeros((1, D), jnp.float32)
    wc = jax.random.normal(k3, (D, NUM_CLASSES), jnp.float32) * 0.02
    bc = jnp.zeros((1, NUM_CLASSES), jnp.float32)

    logits = flowpure_forward(x, noise, (w1, b1, w2, b2, wc, bc))
    jax.block_until_ready(logits)
    assert logits.shape == (B, NUM_CLASSES)
    print("KERNEL_OK")
</pallas_src>

<mosaic_0001>
module attributes {stable_mosaic.version = 11 : i64} {
  func.func @flowpure_kernel(%arg0: i32, %arg1: memref<16x3072xf32, #tpu.memory_space<vmem>>, %arg2: memref<16x3072xf32, #tpu.memory_space<vmem>>, %arg3: memref<3072x128xbf16, #tpu.memory_space<vmem>>, %arg4: memref<1x128xf32, #tpu.memory_space<vmem>>, %arg5: memref<128x3072xbf16, #tpu.memory_space<vmem>>, %arg6: memref<1x3072xf32, #tpu.memory_space<vmem>>, %arg7: memref<3072x128xbf16, #tpu.memory_space<vmem>>, %arg8: memref<1x128xf32, #tpu.memory_space<vmem>>, %arg9: memref<16x128xf32, #tpu.memory_space<vmem>>) attributes {dimension_semantics = [#tpu.dimension_semantics<parallel>], iteration_bounds = array<i64: 1>, scalar_prefetch = 0 : i64, scratch_operands = 0 : i64, tpu.core_type = #tpu.core_type<tc>, window_params = [{transform_indices = @transform_0, window_bounds = array<i64: 16, 3072>}, {transform_indices = @transform_1, window_bounds = array<i64: 16, 3072>}, {pipeline_mode = #tpu.pipeline_mode<synchronous>, transform_indices = @transform_2, window_bounds = array<i64: 3072, 128>}, {pipeline_mode = #tpu.pipeline_mode<synchronous>, transform_indices = @transform_3, window_bounds = array<i64: 1, 128>}, {pipeline_mode = #tpu.pipeline_mode<synchronous>, transform_indices = @transform_4, window_bounds = array<i64: 128, 3072>}, {pipeline_mode = #tpu.pipeline_mode<synchronous>, transform_indices = @transform_5, window_bounds = array<i64: 1, 3072>}, {pipeline_mode = #tpu.pipeline_mode<synchronous>, transform_indices = @transform_6, window_bounds = array<i64: 3072, 128>}, {pipeline_mode = #tpu.pipeline_mode<synchronous>, transform_indices = @transform_7, window_bounds = array<i64: 1, 128>}, {transform_indices = @transform_8, window_bounds = array<i64: 16, 128>}]} {
    %c0 = arith.constant 0 : index
    %c0_0 = arith.constant 0 : index
    %0 = vector.load %arg1[%c0, %c0_0] : memref<16x3072xf32, #tpu.memory_space<vmem>>, vector<16x3072xf32>
    %c0_1 = arith.constant 0 : index
    %c0_2 = arith.constant 0 : index
    %1 = vector.load %arg2[%c0_1, %c0_2] : memref<16x3072xf32, #tpu.memory_space<vmem>>, vector<16x3072xf32>
    %cst = arith.constant 1.250000e-01 : f32
    %2 = vector.broadcast %cst : f32 to vector<16x3072xf32>
    %3 = arith.mulf %2, %1 : vector<16x3072xf32>
    %4 = arith.addf %0, %3 : vector<16x3072xf32>
    %c0_3 = arith.constant 0 : index
    %c0_4 = arith.constant 0 : index
    %5 = vector.load %arg3[%c0_3, %c0_4] : memref<3072x128xbf16, #tpu.memory_space<vmem>>, vector<3072x128xbf16>
    %c0_5 = arith.constant 0 : index
    %c0_6 = arith.constant 0 : index
    %6 = vector.load %arg4[%c0_5, %c0_6] : memref<1x128xf32, #tpu.memory_space<vmem>>, vector<1x128xf32>
    %c0_7 = arith.constant 0 : index
    %c0_8 = arith.constant 0 : index
    %7 = vector.load %arg5[%c0_7, %c0_8] : memref<128x3072xbf16, #tpu.memory_space<vmem>>, vector<128x3072xbf16>
    %c0_9 = arith.constant 0 : index
    %c0_10 = arith.constant 0 : index
    %8 = vector.load %arg6[%c0_9, %c0_10] : memref<1x3072xf32, #tpu.memory_space<vmem>>, vector<1x3072xf32>
    %cst_11 = arith.constant 5.000000e-01 : f32
    %9 = vector.broadcast %cst_11 : f32 to vector<1x128xf32>
    %10 = arith.addf %6, %9 : vector<1x128xf32>
    %11 = arith.truncf %4 : vector<16x3072xf32> to vector<16x3072xbf16>
    %cst_12 = arith.constant dense<0.000000e+00> : vector<16x128xf32>
    %12 = tpu.matmul %11, %5, %cst_12 {dimension_numbers = #tpu.dot_dimension_numbers<[1], [0], [0], [1], [0, 0, 1, 1], [], []>} : vector<16x3072xbf16>, vector<3072x128xbf16>, vector<16x128xf32> -> vector<16x128xf32>
    %13 = vector.broadcast %10 : vector<1x128xf32> to vector<16x128xf32>
    %14 = arith.addf %12, %13 : vector<16x128xf32>
    %cst_13 = arith.constant 0.000000e+00 : f32
    %15 = vector.broadcast %cst_13 : f32 to vector<16x128xf32>
    %16 = arith.maximumf %14, %15 : vector<16x128xf32>
    %17 = arith.truncf %16 : vector<16x128xf32> to vector<16x128xbf16>
    %cst_14 = arith.constant dense<0.000000e+00> : vector<16x3072xf32>
    %18 = tpu.matmul %17, %7, %cst_14 {dimension_numbers = #tpu.dot_dimension_numbers<[1], [0], [0], [1], [0, 0, 1, 1], [], []>} : vector<16x128xbf16>, vector<128x3072xbf16>, vector<16x3072xf32> -> vector<16x3072xf32>
    %19 = arith.addf %4, %18 : vector<16x3072xf32>
    %20 = vector.broadcast %8 : vector<1x3072xf32> to vector<16x3072xf32>
    %21 = arith.addf %19, %20 : vector<16x3072xf32>
    %cst_15 = arith.constant 6.250000e-01 : f32
    %22 = vector.broadcast %cst_15 : f32 to vector<1x128xf32>
    %23 = arith.addf %6, %22 : vector<1x128xf32>
    %24 = arith.truncf %21 : vector<16x3072xf32> to vector<16x3072xbf16>
    %cst_16 = arith.constant dense<0.000000e+00> : vector<16x128xf32>
    %25 = tpu.matmul %24, %5, %cst_16 {dimension_numbers = #tpu.dot_dimension_numbers<[1], [0], [0], [1], [0, 0, 1, 1], [], []>} : vector<16x3072xbf16>, vector<3072x128xbf16>, vector<16x128xf32> -> vector<16x128xf32>
    %26 = vector.broadcast %23 : vector<1x128xf32> to vector<16x128xf32>
    %27 = arith.addf %25, %26 : vector<16x128xf32>
    %cst_17 = arith.constant 0.000000e+00 : f32
    %28 = vector.broadcast %cst_17 : f32 to vector<16x128xf32>
    %29 = arith.maximumf %27, %28 : vector<16x128xf32>
    %30 = arith.truncf %29 : vector<16x128xf32> to vector<16x128xbf16>
    %cst_18 = arith.constant dense<0.000000e+00> : vector<16x3072xf32>
    %31 = tpu.matmul %30, %7, %cst_18 {dimension_numbers = #tpu.dot_dimension_numbers<[1], [0], [0], [1], [0, 0, 1, 1], [], []>} : vector<16x128xbf16>, vector<128x3072xbf16>, vector<16x3072xf32> -> vector<16x3072xf32>
    %32 = arith.addf %21, %31 : vector<16x3072xf32>
    %33 = vector.broadcast %8 : vector<1x3072xf32> to vector<16x3072xf32>
    %34 = arith.addf %32, %33 : vector<16x3072xf32>
    %cst_19 = arith.constant 7.500000e-01 : f32
    %35 = vector.broadcast %cst_19 : f32 to vector<1x128xf32>
    %36 = arith.addf %6, %35 : vector<1x128xf32>
    %37 = arith.truncf %34 : vector<16x3072xf32> to vector<16x3072xbf16>
    %cst_20 = arith.constant dense<0.000000e+00> : vector<16x128xf32>
    %38 = tpu.matmul %37, %5, %cst_20 {dimension_numbers = #tpu.dot_dimension_numbers<[1], [0], [0], [1], [0, 0, 1, 1], [], []>} : vector<16x3072xbf16>, vector<3072x128xbf16>, vector<16x128xf32> -> vector<16x128xf32>
    %39 = vector.broadcast %36 : vector<1x128xf32> to vector<16x128xf32>
    %40 = arith.addf %38, %39 : vector<16x128xf32>
    %cst_21 = arith.constant 0.000000e+00 : f32
    %41 = vector.broadcast %cst_21 : f32 to vector<16x128xf32>
    %42 = arith.maximumf %40, %41 : vector<16x128xf32>
    %43 = arith.truncf %42 : vector<16x128xf32> to vector<16x128xbf16>
    %cst_22 = arith.constant dense<0.000000e+00> : vector<16x3072xf32>
    %44 = tpu.matmul %43, %7, %cst_22 {dimension_numbers = #tpu.dot_dimension_numbers<[1], [0], [0], [1], [0, 0, 1, 1], [], []>} : vector<16x128xbf16>, vector<128x3072xbf16>, vector<16x3072xf32> -> vector<16x3072xf32>
    %45 = arith.addf %34, %44 : vector<16x3072xf32>
    %46 = vector.broadcast %8 : vector<1x3072xf32> to vector<16x3072xf32>
    %47 = arith.addf %45, %46 : vector<16x3072xf32>
    %cst_23 = arith.constant 8.750000e-01 : f32
    %48 = vector.broadcast %cst_23 : f32 to vector<1x128xf32>
    %49 = arith.addf %6, %48 : vector<1x128xf32>
    %50 = arith.truncf %47 : vector<16x3072xf32> to vector<16x3072xbf16>
    %cst_24 = arith.constant dense<0.000000e+00> : vector<16x128xf32>
    %51 = tpu.matmul %50, %5, %cst_24 {dimension_numbers = #tpu.dot_dimension_numbers<[1], [0], [0], [1], [0, 0, 1, 1], [], []>} : vector<16x3072xbf16>, vector<3072x128xbf16>, vector<16x128xf32> -> vector<16x128xf32>
    %52 = vector.broadcast %49 : vector<1x128xf32> to vector<16x128xf32>
    %53 = arith.addf %51, %52 : vector<16x128xf32>
    %cst_25 = arith.constant 0.000000e+00 : f32
    %54 = vector.broadcast %cst_25 : f32 to vector<16x128xf32>
    %55 = arith.maximumf %53, %54 : vector<16x128xf32>
    %56 = arith.truncf %55 : vector<16x128xf32> to vector<16x128xbf16>
    %cst_26 = arith.constant dense<0.000000e+00> : vector<16x3072xf32>
    %57 = tpu.matmul %56, %7, %cst_26 {dimension_numbers = #tpu.dot_dimension_numbers<[1], [0], [0], [1], [0, 0, 1, 1], [], []>} : vector<16x128xbf16>, vector<128x3072xbf16>, vector<16x3072xf32> -> vector<16x3072xf32>
    %58 = arith.addf %47, %57 : vector<16x3072xf32>
    %59 = vector.broadcast %8 : vector<1x3072xf32> to vector<16x3072xf32>
    %60 = arith.addf %58, %59 : vector<16x3072xf32>
    %61 = arith.truncf %60 : vector<16x3072xf32> to vector<16x3072xbf16>
    %c0_27 = arith.constant 0 : index
    %c0_28 = arith.constant 0 : index
    %62 = vector.load %arg7[%c0_27, %c0_28] : memref<3072x128xbf16, #tpu.memory_space<vmem>>, vector<3072x128xbf16>
    %cst_29 = arith.constant dense<0.000000e+00> : vector<16x128xf32>
    %63 = tpu.matmul %61, %62, %cst_29 {dimension_numbers = #tpu.dot_dimension_numbers<[1], [0], [0], [1], [0, 0, 1, 1], [], []>} : vector<16x3072xbf16>, vector<3072x128xbf16>, vector<16x128xf32> -> vector<16x128xf32>
    %c0_30 = arith.constant 0 : index
    %c0_31 = arith.constant 0 : index
    %64 = vector.load %arg8[%c0_30, %c0_31] : memref<1x128xf32, #tpu.memory_space<vmem>>, vector<1x128xf32>
    %65 = vector.broadcast %64 : vector<1x128xf32> to vector<16x128xf32>
    %66 = arith.addf %63, %65 : vector<16x128xf32>
    %c0_32 = arith.constant 0 : index
    %c0_33 = arith.constant 0 : index
    %67 = vector.load %arg9[%c0_32, %c0_33] : memref<16x128xf32, #tpu.memory_space<vmem>>, vector<16x128xf32>
    tpu.vector_store %arg9[%c0_32, %c0_33], %66 {strides = array<i32>} : memref<16x128xf32, #tpu.memory_space<vmem>>, vector<16x128xf32>,
    return
  }
  func.func @transform_0(%arg0: i32) -> (i32, i32) {
    %c0_i32 = arith.constant 0 : i32
    %c0_i32_0 = arith.constant 0 : i32
    return %arg0, %c0_i32 : i32, i32
  }
  func.func @transform_1(%arg0: i32) -> (i32, i32) {
    %c0_i32 = arith.constant 0 : i32
    %c0_i32_0 = arith.constant 0 : i32
    return %arg0, %c0_i32 : i32, i32
  }
  func.func @transform_2(%arg0: i32) -> (i32, i32) {
    %c0_i32 = arith.constant 0 : i32
    %c0_i32_0 = arith.constant 0 : i32
    %c0_i32_1 = arith.constant 0 : i32
    return %c0_i32, %c0_i32_0 : i32, i32
  }
  func.func @transform_3(%arg0: i32) -> (i32, i32) {
    %c0_i32 = arith.constant 0 : i32
    %c0_i32_0 = arith.constant 0 : i32
    %c0_i32_1 = arith.constant 0 : i32
    return %c0_i32, %c0_i32_0 : i32, i32
  }
  func.func @transform_4(%arg0: i32) -> (i32, i32) {
    %c0_i32 = arith.constant 0 : i32
    %c0_i32_0 = arith.constant 0 : i32
    %c0_i32_1 = arith.constant 0 : i32
    return %c0_i32, %c0_i32_0 : i32, i32
  }
  func.func @transform_5(%arg0: i32) -> (i32, i32) {
    %c0_i32 = arith.constant 0 : i32
    %c0_i32_0 = arith.constant 0 : i32
    %c0_i32_1 = arith.constant 0 : i32
    return %c0_i32, %c0_i32_0 : i32, i32
  }
  func.func @transform_6(%arg0: i32) -> (i32, i32) {
    %c0_i32 = arith.constant 0 : i32
    %c0_i32_0 = arith.constant 0 : i32
    %c0_i32_1 = arith.constant 0 : i32
    return %c0_i32, %c0_i32_0 : i32, i32
  }
  func.func @transform_7(%arg0: i32) -> (i32, i32) {
    %c0_i32 = arith.constant 0 : i32
    %c0_i32_0 = arith.constant 0 : i32
    %c0_i32_1 = arith.constant 0 : i32
    return %c0_i32, %c0_i32_0 : i32, i32
  }
  func.func @transform_8(%arg0: i32) -> (i32, i32) {
    %c0_i32 = arith.constant 0 : i32
    %c0_i32_0 = arith.constant 0 : i32
    return %arg0, %c0_i32 : i32, i32
  }
}

</mosaic_0001>

<llo_original>
// kernel: tpu_custom_call.1
$region0: #{tpu_custom_call.1}
  #allocation0 [shape = 'u32[]', space=smem, size = 0x4, offset = 0x4, fixed_abs, tag = 'smem constant byte address 0x4 - core index']
  #allocation1 [shape = 'u32[144,128]{1,0:T(1,128)}', space=vmem, size = 0x12000, scoped, tag = 'internal scratch']
  %s0 = inlined_call_operand.hbm [shape: f32[16,3072], index: 0, kind: input, shape index: {}]
  %s1 = inlined_call_operand.hbm [shape: f32[16,3072], index: 1, kind: input, shape index: {}]
  %s2 = inlined_call_operand.hbm [shape: bf16[3072,128], index: 2, kind: input, shape index: {}]
  %s3 = inlined_call_operand.vmem [shape: f32[1,128], index: 3, kind: input, shape index: {}]
  %s4 = inlined_call_operand.hbm [shape: bf16[128,3072], index: 4, kind: input, shape index: {}]
  %s5 = inlined_call_operand.hbm [shape: f32[1,3072], index: 5, kind: input, shape index: {}]
  %s6 = inlined_call_operand.hbm [shape: bf16[3072,128], index: 6, kind: input, shape index: {}]
  %s7 = inlined_call_operand.vmem [shape: f32[1,128], index: 7, kind: input, shape index: {}]
  %s8 = inlined_call_operand.hbm [shape: f32[16,128], index: 8, kind: output, shape index: {}]
  %s9 = sld [smem:[#allocation0]]
  $region66: #{tpu_custom_call.1} parent=0
    _
  %s11 = ssub.s32 1, %s9
  %s12 = scalar_select 0, %s11, %s9
  $region1: #{tpu_custom_call.1} parent=0
    #allocation2 [shape = 'u8[196608]{0}', space=vmem, size = 0x30000, scoped, tag = 'input window, operand 0, single buffered']
    #allocation3 [shape = 's32[1]{0}', space=sflag, size = 0x4, scoped, tag = 'scoped memory for tpu_custom_call.1']
    #allocation4 [shape = 's32[1]{0}', space=sflag, size = 0x4, scoped, tag = 'scoped memory for tpu_custom_call.1']
    #allocation5 [shape = 'u8[196608]{0}', space=vmem, size = 0x30000, scoped, tag = 'input window, operand 1, single buffered']
    #allocation6 [shape = 's32[1]{0}', space=sflag, size = 0x4, scoped, tag = 'scoped memory for tpu_custom_call.1']
    #allocation7 [shape = 'u8[786432]{0}', space=vmem, size = 0xc0000, scoped, tag = 'input window, operand 2, single buffered']
    #allocation8 [shape = 'u8[786432]{0}', space=vmem, size = 0xc0000, scoped, tag = 'input window, operand 4, single buffered']
    #allocation9 [shape = 's32[1]{0}', space=sflag, size = 0x4, scoped, tag = 'scoped memory for tpu_custom_call.1']
    #allocation10 [shape = 'u8[12288]{0}', space=vmem, size = 0x3000, scoped, tag = 'input window, operand 5, single buffered']
    #allocation11 [shape = 'u8[786432]{0}', space=vmem, size = 0xc0000, scoped, tag = 'input window, operand 6, single buffered']
    #allocation12 [shape = 's32[1]{0}', space=sflag, size = 0x4, scoped, tag = 'scoped memory for tpu_custom_call.1']
    #allocation13 [shape = 'u8[8192]{0}', space=vmem, size = 0x2000, scoped, tag = 'output window, operand 0, single buffered']
    %13 = vsyncpa [#allocation3], 0
    %14 = vsyncpa [#allocation6], 0
    %15 = vsyncpa [#allocation9], 0
    %16 = vsyncpa [#allocation12], 0
    %17 = vsyncpa [#allocation4], 0
    // Predicated region
    $region2: #{tpu_custom_call.1} parent=1 // pred_check
      _
    $region3: #{tpu_custom_call.1} parent=1 // pred_check_branch
      %19 = sbr.rel (0) target = $region5
    $region4: #{tpu_custom_call.1} parent=1 // pred_region
      %s21 = ssub.s32 6144, 6144
      %22 = vsyncadd [#allocation3], %s21
      %s23 = sshll.u32 [#allocation2], 4
      %s24 = int_to_ptr.vmem [resolvable:$true] %s23
      %29 = dma.hbm_to_vmem [thread:$0]  %s0, 6144, %s24, [#allocation3], 3072, 3072, 192
    $region5: #{tpu_custom_call.1} parent=1 // pred_fallthru
      _
    // Predicated region
    $region6: #{tpu_custom_call.1} parent=1 // pred_check
      _
    $region7: #{tpu_custom_call.1} parent=1 // pred_check_branch
      %31 = sbr.rel (0) target = $region9
    $region8: #{tpu_custom_call.1} parent=1 // pred_region
      %s33 = ssub.s32 6144, 6144
      %34 = vsyncadd [#allocation6], %s33
      %s35 = sshll.u32 [#allocation5], 4
      %s36 = int_to_ptr.vmem [resolvable:$true] %s35
      %41 = dma.hbm_to_vmem [thread:$0]  %s1, 6144, %s36, [#allocation6], 3072, 3072, 192
    $region9: #{tpu_custom_call.1} parent=1 // pred_fallthru
      _
    // Predicated region
    $region10: #{tpu_custom_call.1} parent=1 // pred_check
      _
    $region11: #{tpu_custom_call.1} parent=1 // pred_check_branch
      %43 = sbr.rel (0) target = $region13
    $region12: #{tpu_custom_call.1} parent=1 // pred_region
      %s45 = ssub.s32 24576, 24576
      %46 = vsyncadd [#allocation6], %s45
      %s47 = sshll.u32 [#allocation7], 4
      %s48 = int_to_ptr.vmem [resolvable:$true] %s47
      %53 = dma.hbm_to_vmem [thread:$0]  %s2, 24576, %s48, [#allocation6], 64, 64, 4
    $region13: #{tpu_custom_call.1} parent=1 // pred_fallthru
      _
    // Predicated region
    $region14: #{tpu_custom_call.1} parent=1 // pred_check
      _
    $region15: #{tpu_custom_call.1} parent=1 // pred_check_branch
      %55 = sbr.rel (0) target = $region17
    $region16: #{tpu_custom_call.1} parent=1 // pred_region
      _
    $region17: #{tpu_custom_call.1} parent=1 // pred_fallthru
      _
    // Predicated region
    $region18: #{tpu_custom_call.1} parent=1 // pred_check
      _
    $region19: #{tpu_custom_call.1} parent=1 // pred_check_branch
      %57 = sbr.rel (0) target = $region21
    $region20: #{tpu_custom_call.1} parent=1 // pred_region
      %s59 = ssub.s32 24576, 24576
      %60 = vsyncadd [#allocation9], %s59
      %s61 = sshll.u32 [#allocation8], 4
      %s62 = int_to_ptr.vmem [resolvable:$true] %s61
      %67 = dma.hbm_to_vmem [thread:$0]  %s4, 24576, %s62, [#allocation9], 1536, 1536, 96
    $region21: #{tpu_custom_call.1} parent=1 // pred_fallthru
      _
    // Predicated region
    $region22: #{tpu_custom_call.1} parent=1 // pred_check
      _
    $region23: #{tpu_custom_call.1} parent=1 // pred_check_branch
      %69 = sbr.rel (0) target = $region25
    $region24: #{tpu_custom_call.1} parent=1 // pred_region
      %s71 = ssub.s32 384, 384
      %72 = vsyncadd [#allocation9], %s71
      %s74 = sshll.u32 [#allocation10], 4
      %s75 = int_to_ptr.vmem [resolvable:$true] %s74
      %77 = dma.hbm_to_vmem [thread:$0]  %s5, 384, %s75, [#allocation9]
    $region25: #{tpu_custom_call.1} parent=1 // pred_fallthru
      _
    // Predicated region
    $region26: #{tpu_custom_call.1} parent=1 // pred_check
      _
    $region27: #{tpu_custom_call.1} parent=1 // pred_check_branch
      %79 = sbr.rel (0) target = $region29
    $region28: #{tpu_custom_call.1} parent=1 // pred_region
      %s81 = ssub.s32 24576, 24576
      %82 = vsyncadd [#allocation12], %s81
      %s83 = sshll.u32 [#allocation11], 4
      %s84 = int_to_ptr.vmem [resolvable:$true] %s83
      %89 = dma.hbm_to_vmem [thread:$0]  %s6, 24576, %s84, [#allocation12], 64, 64, 4
    $region29: #{tpu_custom_call.1} parent=1 // pred_fallthru
      _
    // Predicated region
    $region30: #{tpu_custom_call.1} parent=1 // pred_check
      _
    $region31: #{tpu_custom_call.1} parent=1 // pred_check_branch
      %91 = sbr.rel (0) target = $region33
    $region32: #{tpu_custom_call.1} parent=1 // pred_region
      _
    $region33: #{tpu_custom_call.1} parent=1 // pred_fallthru
      _
    // Predicated region
    $region34: #{tpu_custom_call.1} parent=1 // pred_check
      _
    $region35: #{tpu_custom_call.1} parent=1 // pred_check_branch
      %93 = sbr.rel (0) target = $region37
    $region36: #{tpu_custom_call.1} parent=1 // pred_region
      %94 = dma.done [#allocation3], 6144
    $region37: #{tpu_custom_call.1} parent=1 // pred_fallthru
      _
    // Predicated region
    $region38: #{tpu_custom_call.1} parent=1 // pred_check
      _
    $region39: #{tpu_custom_call.1} parent=1 // pred_check_branch
      %96 = sbr.rel (0) target = $region41
    $region40: #{tpu_custom_call.1} parent=1 // pred_region
      %97 = dma.done [#allocation6], 6144
    $region41: #{tpu_custom_call.1} parent=1 // pred_fallthru
      _
    // Predicated region
    $region42: #{tpu_custom_call.1} parent=1 // pred_check
      _
    $region43: #{tpu_custom_call.1} parent=1 // pred_check_branch
      %99 = sbr.rel (0) target = $region45
    $region44: #{tpu_custom_call.1} parent=1 // pred_region
      %100 = dma.done [#allocation6], 24576
    $region45: #{tpu_custom_call.1} parent=1 // pred_fallthru
      _
    // Predicated region
    $region46: #{tpu_custom_call.1} parent=1 // pred_check
      _
    $region47: #{tpu_custom_call.1} parent=1 // pred_check_branch
      %102 = sbr.rel (0) target = $region49
    $region48: #{tpu_custom_call.1} parent=1 // pred_region
      %103 = dma.done [#allocation9], 24576
    $region49: #{tpu_custom_call.1} parent=1 // pred_fallthru
      _
    // Predicated region
    $region50: #{tpu_custom_call.1} parent=1 // pred_check
      _
    $region51: #{tpu_custom_call.1} parent=1 // pred_check_branch
      %105 = sbr.rel (0) target = $region53
    $region52: #{tpu_custom_call.1} parent=1 // pred_region
      %106 = dma.done [#allocation9], 384
    $region53: #{tpu_custom_call.1} parent=1 // pred_fallthru
      _
    // Predicated region
    $region54: #{tpu_custom_call.1} parent=1 // pred_check
      _
    $region55: #{tpu_custom_call.1} parent=1 // pred_check_branch
      %108 = sbr.rel (0) target = $region57
    $region56: #{tpu_custom_call.1} parent=1 // pred_region
      %109 = dma.done [#allocation12], 24576
    $region57: #{tpu_custom_call.1} parent=1 // pred_fallthru
      _
    %v111 = vld [vmem:[#allocation2] sm:$0xff]
    %v112 = vld [vmem:[#allocation2 + $0x8] sm:$0xff]
    %v113 = vld [vmem:[#allocation2 + $0x10] sm:$0xff]
    %v114 = vld [vmem:[#allocation2 + $0x18] sm:$0xff]
    %v115 = vld [vmem:[#allocation2 + $0x20] sm:$0xff]
    %v116 = vld [vmem:[#allocation2 + $0x28] sm:$0xff]
    %v117 = vld [vmem:[#allocation2 + $0x30] sm:$0xff]
    %v118 = vld [vmem:[#allocation2 + $0x38] sm:$0xff]
    %v119 = vld [vmem:[#allocation2 + $0x40] sm:$0xff]
    %v120 = vld [vmem:[#allocation2 + $0x48] sm:$0xff]
    %v121 = vld [vmem:[#allocation2 + $0x50] sm:$0xff]
    %v122 = vld [vmem:[#allocation2 + $0x58] sm:$0xff]
    %v123 = vld [vmem:[#allocation2 + $0x60] sm:$0xff]
    %v124 = vld [vmem:[#allocation2 + $0x68] sm:$0xff]
    %v125 = vld [vmem:[#allocation2 + $0x70] sm:$0xff]
    %v126 = vld [vmem:[#allocation2 + $0x78] sm:$0xff]
    %v127 = vld [vmem:[#allocation2 + $0x80] sm:$0xff]
    %v128 = vld [vmem:[#allocation2 + $0x88] sm:$0xff]
    %v129 = vld [vmem:[#allocation2 + $0x90] sm:$0xff]
    %v130 = vld [vmem:[#allocation2 + $0x98] sm:$0xff]
    %v131 = vld [vmem:[#allocation2 + $0xa0] sm:$0xff]
    %v132 = vld [vmem:[#allocation2 + $0xa8] sm:$0xff]
    %v133 = vld [vmem:[#allocation2 + $0xb0] sm:$0xff]
    %v134 = vld [vmem:[#allocation2 + $0xb8] sm:$0xff]
    %v135 = vld [vmem:[#allocation2 + $0xc0] sm:$0xff]
    %v136 = vld [vmem:[#allocation2 + $0xc8] sm:$0xff]
    %v137 = vld [vmem:[#allocation2 + $0xd0] sm:$0xff]
    %v138 = vld [vmem:[#allocation2 + $0xd8] sm:$0xff]
    %v139 = vld [vmem:[#allocation2 + $0xe0] sm:$0xff]
    %v140 = vld [vmem:[#allocation2 + $0xe8] sm:$0xff]
    %v141 = vld [vmem:[#allocation2 + $0xf0] sm:$0xff]
    %v142 = vld [vmem:[#allocation2 + $0xf8] sm:$0xff]
    %v143 = vld [vmem:[#allocation2 + $0x100] sm:$0xff]
    %v144 = vld [vmem:[#allocation2 + $0x108] sm:$0xff]
    %v145 = vld [vmem:[#allocation2 + $0x110] sm:$0xff]
    %v146 = vld [vmem:[#allocation2 + $0x118] sm:$0xff]
    %v147 = vld [vmem:[#allocation2 + $0x120] sm:$0xff]
    %v148 = vld [vmem:[#allocation2 + $0x128] sm:$0xff]
    %v149 = vld [vmem:[#allocation2 + $0x130] sm:$0xff]
    %v150 = vld [vmem:[#allocation2 + $0x138] sm:$0xff]
    %v151 = vld [vmem:[#allocation2 + $0x140] sm:$0xff]
    %v152 = vld [vmem:[#allocation2 + $0x148] sm:$0xff]
    %v153 = vld [vmem:[#allocation2 + $0x150] sm:$0xff]
    %v154 = vld [vmem:[#allocation2 + $0x158] sm:$0xff]
    %v155 = vld [vmem:[#allocation2 + $0x160] sm:$0xff]
    %v156 = vld [vmem:[#allocation2 + $0x168] sm:$0xff]
    %v157 = vld [vmem:[#allocation2 + $0x170] sm:$0xff]
    %v158 = vld [vmem:[#allocation2 + $0x178] sm:$0xff]
    %v159 = vld [vmem:[#allocation5] sm:$0xff]
    %v160 = vld [vmem:[#allocation5 + $0x8] sm:$0xff]
    %v161 = vld [vmem:[#allocation5 + $0x10] sm:$0xff]
    %v162 = vld [vmem:[#allocation5 + $0x18] sm:$0xff]
    %v163 = vld [vmem:[#allocation5 + $0x20] sm:$0xff]
    %v164 = vld [vmem:[#allocation5 + $0x28] sm:$0xff]
    %v165 = vld [vmem:[#allocation5 + $0x30] sm:$0xff]
    %v166 = vld [vmem:[#allocation5 + $0x38] sm:$0xff]
    %v167 = vld [vmem:[#allocation5 + $0x40] sm:$0xff]
    %v168 = vld [vmem:[#allocation5 + $0x48] sm:$0xff]
    %v169 = vld [vmem:[#allocation5 + $0x50] sm:$0xff]
    %v170 = vld [vmem:[#allocation5 + $0x58] sm:$0xff]
    %v171 = vld [vmem:[#allocation5 + $0x60] sm:$0xff]
    %v172 = vld [vmem:[#allocation5 + $0x68] sm:$0xff]
    %v173 = vld [vmem:[#allocation5 + $0x70] sm:$0xff]
    %v174 = vld [vmem:[#allocation5 + $0x78] sm:$0xff]
    %v175 = vld [vmem:[#allocation5 + $0x80] sm:$0xff]
    %v176 = vld [vmem:[#allocation5 + $0x88] sm:$0xff]
    %v177 = vld [vmem:[#allocation5 + $0x90] sm:$0xff]
    %v178 = vld [vmem:[#allocation5 + $0x98] sm:$0xff]
    %v179 = vld [vmem:[#allocation5 + $0xa0] sm:$0xff]
    %v180 = vld [vmem:[#allocation5 + $0xa8] sm:$0xff]
    %v181 = vld [vmem:[#allocation5 + $0xb0] sm:$0xff]
    %v182 = vld [vmem:[#allocation5 + $0xb8] sm:$0xff]
    %v183 = vld [vmem:[#allocation5 + $0xc0] sm:$0xff]
    %v184 = vld [vmem:[#allocation5 + $0xc8] sm:$0xff]
    %v185 = vld [vmem:[#allocation5 + $0xd0] sm:$0xff]
    %v186 = vld [vmem:[#allocation5 + $0xd8] sm:$0xff]
    %v187 = vld [vmem:[#allocation5 + $0xe0] sm:$0xff]
    %v188 = vld [vmem:[#allocation5 + $0xe8] sm:$0xff]
    %v189 = vld [vmem:[#allocation5 + $0xf0] sm:$0xff]
    %v190 = vld [vmem:[#allocation5 + $0xf8] sm:$0xff]
    %v191 = vld [vmem:[#allocation5 + $0x100] sm:$0xff]
    %v192 = vld [vmem:[#allocation5 + $0x108] sm:$0xff]
    %v193 = vld [vmem:[#allocation5 + $0x110] sm:$0xff]
    %v194 = vld [vmem:[#allocation5 + $0x118] sm:$0xff]
    %v195 = vld [vmem:[#allocation5 + $0x120] sm:$0xff]
    %v196 = vld [vmem:[#allocation5 + $0x128] sm:$0xff]
    %v197 = vld [vmem:[#allocation5 + $0x130] sm:$0xff]
    %v198 = vld [vmem:[#allocation5 + $0x138] sm:$0xff]
    %v199 = vld [vmem:[#allocation5 + $0x140] sm:$0xff]
    %v200 = vld [vmem:[#allocation5 + $0x148] sm:$0xff]
    %v201 = vld [vmem:[#allocation5 + $0x150] sm:$0xff]
    %v202 = vld [vmem:[#allocation5 + $0x158] sm:$0xff]
    %v203 = vld [vmem:[#allocation5 + $0x160] sm:$0xff]
    %v204 = vld [vmem:[#allocation5 + $0x168] sm:$0xff]
    %v205 = vld [vmem:[#allocation5 + $0x170] sm:$0xff]
    %v206 = vld [vmem:[#allocation5 + $0x178] sm:$0xff]
    %v207 = vmul.f32 %v159, 0.125
    %v208 = vmul.f32 %v160, 0.125
    %v209 = vmul.f32 %v161, 0.125
    %v210 = vmul.f32 %v162, 0.125
    %v211 = vmul.f32 %v163, 0.125
    %v212 = vmul.f32 %v164, 0.125
    %v213 = vmul.f32 %v165, 0.125
    %v214 = vmul.f32 %v166, 0.125
    %v215 = vmul.f32 %v167, 0.125
    %v216 = vmul.f32 %v168, 0.125
    %v217 = vmul.f32 %v169, 0.125
    %v218 = vmul.f32 %v170, 0.125
    %v219 = vmul.f32 %v171, 0.125
    %v220 = vmul.f32 %v172, 0.125
    %v221 = vmul.f32 %v173, 0.125
    %v222 = vmul.f32 %v174, 0.125
    %v223 = vmul.f32 %v175, 0.125
    %v224 = vmul.f32 %v176, 0.125
    %v225 = vmul.f32 %v177, 0.125
    %v226 = vmul.f32 %v178, 0.125
    %v227 = vmul.f32 %v179, 0.125
    %v228 = vmul.f32 %v180, 0.125
    %v229 = vmul.f32 %v181, 0.125
    %v230 = vmul.f32 %v182, 0.125
    %v231 = vmul.f32 %v183, 0.125
    %v232 = vmul.f32 %v184, 0.125
    %v233 = vmul.f32 %v185, 0.125
    %v234 = vmul.f32 %v186, 0.125
    %v235 = vmul.f32 %v187, 0.125
    %v236 = vmul.f32 %v188, 0.125
    %v237 = vmul.f32 %v189, 0.125
    %v238 = vmul.f32 %v190, 0.125
    %v239 = vmul.f32 %v191, 0.125
    %v240 = vmul.f32 %v192, 0.125
    %v241 = vmul.f32 %v193, 0.125
    %v242 = vmul.f32 %v194, 0.125
    %v243 = vmul.f32 %v195, 0.125
    %v244 = vmul.f32 %v196, 0.125
    %v245 = vmul.f32 %v197, 0.125
    %v246 = vmul.f32 %v198, 0.125
    %v247 = vmul.f32 %v199, 0.125
    %v248 = vmul.f32 %v200, 0.125
    %v249 = vmul.f32 %v201, 0.125
    %v250 = vmul.f32 %v202, 0.125
    %v251 = vmul.f32 %v203, 0.125
    %v252 = vmul.f32 %v204, 0.125
    %v253 = vmul.f32 %v205, 0.125
    %v254 = vmul.f32 %v206, 0.125
    %v255 = vadd.f32 %v111, %v207
    %v256 = vadd.f32 %v112, %v208
    %v257 = vadd.f32 %v113, %v209
    %v258 = vadd.f32 %v114, %v210
    %v259 = vadd.f32 %v115, %v211
    %v260 = vadd.f32 %v116, %v212
    %v261 = vadd.f32 %v117, %v213
    %v262 = vadd.f32 %v118, %v214
    %v263 = vadd.f32 %v119, %v215
    %v264 = vadd.f32 %v120, %v216
    %v265 = vadd.f32 %v121, %v217
    %v266 = vadd.f32 %v122, %v218
    %v267 = vadd.f32 %v123, %v219
    %v268 = vadd.f32 %v124, %v220
    %v269 = vadd.f32 %v125, %v221
    %v270 = vadd.f32 %v126, %v222
    %v271 = vadd.f32 %v127, %v223
    %v272 = vadd.f32 %v128, %v224
    %v273 = vadd.f32 %v129, %v225
    %v274 = vadd.f32 %v130, %v226
    %v275 = vadd.f32 %v131, %v227
    %v276 = vadd.f32 %v132, %v228
    %v277 = vadd.f32 %v133, %v229
    %v278 = vadd.f32 %v134, %v230
    %v279 = vadd.f32 %v135, %v231
    %v280 = vadd.f32 %v136, %v232
    %v281 = vadd.f32 %v137, %v233
    %v282 = vadd.f32 %v138, %v234
    %v283 = vadd.f32 %v139, %v235
    %v284 = vadd.f32 %v140, %v236
    %v285 = vadd.f32 %v141, %v237
    %v286 = vadd.f32 %v142, %v238
    %v287 = vadd.f32 %v143, %v239
    %v288 = vadd.f32 %v144, %v240
    %v289 = vadd.f32 %v145, %v241
    %v290 = vadd.f32 %v146, %v242
    %v291 = vadd.f32 %v147, %v243
    %v292 = vadd.f32 %v148, %v244
    %v293 = vadd.f32 %v149, %v245
    %v294 = vadd.f32 %v150, %v246
    %v295 = vadd.f32 %v151, %v247
    %v296 = vadd.f32 %v152, %v248
    %v297 = vadd.f32 %v153, %v249
    %v298 = vadd.f32 %v154, %v250
    %v299 = vadd.f32 %v155, %v251
    %v300 = vadd.f32 %v156, %v252
    %v301 = vadd.f32 %v157, %v253
    %v302 = vadd.f32 %v158, %v254
    %v303 = vld [vmem:[#allocation7] sm:$0xf]
    %v304 = vld [vmem:[#allocation7 + $0x4] sm:$0xf]
    %v305 = vld [vmem:[#allocation7 + $0x8] sm:$0xf]
    %v306 = vld [vmem:[#allocation7 + $0xc] sm:$0xf]
    %v307 = vld [vmem:[#allocation7 + $0x10] sm:$0xf]
    %v308 = vld [vmem:[#allocation7 + $0x14] sm:$0xf]
    %v309 = vld [vmem:[#allocation7 + $0x18] sm:$0xf]
    %v310 = vld [vmem:[#allocation7 + $0x1c] sm:$0xf]
    %v311 = vld [vmem:[#allocation7 + $0x20] sm:$0xf]
    %v312 = vld [vmem:[#allocation7 + $0x24] sm:$0xf]
    %v313 = vld [vmem:[#allocation7 + $0x28] sm:$0xf]
    %v314 = vld [vmem:[#allocation7 + $0x2c] sm:$0xf]
    %v315 = vld [vmem:[#allocation7 + $0x30] sm:$0xf]
    %v316 = vld [vmem:[#allocation7 + $0x34] sm:$0xf]
    %v317 = vld [vmem:[#allocation7 + $0x38] sm:$0xf]
    %v318 = vld [vmem:[#allocation7 + $0x3c] sm:$0xf]
    %v319 = vld [vmem:[#allocation7 + $0x40] sm:$0xf]
    %v320 = vld [vmem:[#allocation7 + $0x44] sm:$0xf]
    %v321 = vld [vmem:[#allocation7 + $0x48] sm:$0xf]
    %v322 = vld [vmem:[#allocation7 + $0x4c] sm:$0xf]
    %v323 = vld [vmem:[#allocation7 + $0x50] sm:$0xf]
    %v324 = vld [vmem:[#allocation7 + $0x54] sm:$0xf]
    %v325 = vld [vmem:[#allocation7 + $0x58] sm:$0xf]
    %v326 = vld [vmem:[#allocation7 + $0x5c] sm:$0xf]
    %v327 = vld [vmem:[#allocation7 + $0x60] sm:$0xf]
    %v328 = vld [vmem:[#allocation7 + $0x64] sm:$0xf]
    %v329 = vld [vmem:[#allocation7 + $0x68] sm:$0xf]
    %v330 = vld [vmem:[#allocation7 + $0x6c] sm:$0xf]
    %v331 = vld [vmem:[#allocation7 + $0x70] sm:$0xf]
    %v332 = vld [vmem:[#allocation7 + $0x74] sm:$0xf]
    %v333 = vld [vmem:[#allocation7 + $0x78] sm:$0xf]
    %v334 = vld [vmem:[#allocation7 + $0x7c] sm:$0xf]
    %v335 = vld [vmem:[#allocation7 + $0x80] sm:$0xf]
    %v336 = vld [vmem:[#allocation7 + $0x84] sm:$0xf]
    %v337 = vld [vmem:[#allocation7 + $0x88] sm:$0xf]
    %v338 = vld [vmem:[#allocation7 + $0x8c] sm:$0xf]
    %v339 = vld [vmem:[#allocation7 + $0x90] sm:$0xf]
    %v340 = vld [vmem:[#allocation7 + $0x94] sm:$0xf]
    %v341 = vld [vmem:[#allocation7 + $0x98] sm:$0xf]
    %v342 = vld [vmem:[#allocation7 + $0x9c] sm:$0xf]
    %v343 = vld [vmem:[#allocation7 + $0xa0] sm:$0xf]
    %v344 = vld [vmem:[#allocation7 + $0xa4] sm:$0xf]
    %v345 = vld [vmem:[#allocation7 + $0xa8] sm:$0xf]
    %v346 = vld [vmem:[#allocation7 + $0xac] sm:$0xf]
    %v347 = vld [vmem:[#allocation7 + $0xb0] sm:$0xf]
    %v348 = vld [vmem:[#allocation7 + $0xb4] sm:$0xf]
    %v349 = vld [vmem:[#allocation7 + $0xb8] sm:$0xf]
    %v350 = vld [vmem:[#allocation7 + $0xbc] sm:$0xf]
    %v351 = vld [vmem:[#allocation7 + $0xc0] sm:$0xf]
    %v352 = vld [vmem:[#allocation7 + $0xc4] sm:$0xf]
    %v353 = vld [vmem:[#allocation7 + $0xc8] sm:$0xf]
    %v354 = vld [vmem:[#allocation7 + $0xcc] sm:$0xf]
    %v355 = vld [vmem:[#allocation7 + $0xd0] sm:$0xf]
    %v356 = vld [vmem:[#allocation7 + $0xd4] sm:$0xf]
    %v357 = vld [vmem:[#allocation7 + $0xd8] sm:$0xf]
    %v358 = vld [vmem:[#allocation7 + $0xdc] sm:$0xf]
    %v359 = vld [vmem:[#allocation7 + $0xe0] sm:$0xf]
    %v360 = vld [vmem:[#allocation7 + $0xe4] sm:$0xf]
    %v361 = vld [vmem:[#allocation7 + $0xe8] sm:$0xf]
    %v362 = vld [vmem:[#allocation7 + $0xec] sm:$0xf]
    %v363 = vld [vmem:[#allocation7 + $0xf0] sm:$0xf]
    %v364 = vld [vmem:[#allocation7 + $0xf4] sm:$0xf]
    %v365 = vld [vmem:[#allocation7 + $0xf8] sm:$0xf]
    %v366 = vld [vmem:[#allocation7 + $0xfc] sm:$0xf]
    %v367 = vld [vmem:[#allocation7 + $0x100] sm:$0xf]
    %v368 = vld [vmem:[#allocation7 + $0x104] sm:$0xf]
    %v369 = vld [vmem:[#allocation7 + $0x108] sm:$0xf]
    %v370 = vld [vmem:[#allocation7 + $0x10c] sm:$0xf]
    %v371 = vld [vmem:[#allocation7 + $0x110] sm:$0xf]
    %v372 = vld [vmem:[#allocation7 + $0x114] sm:$0xf]
    %v373 = vld [vmem:[#allocation7 + $0x118] sm:$0xf]
    %v374 = vld [vmem:[#allocation7 + $0x11c] sm:$0xf]
    %v375 = vld [vmem:[#allocation7 + $0x120] sm:$0xf]
    %v376 = vld [vmem:[#allocation7 + $0x124] sm:$0xf]
    %v377 = vld [vmem:[#allocation7 + $0x128] sm:$0xf]
    %v378 = vld [vmem:[#allocation7 + $0x12c] sm:$0xf]
    %v379 = vld [vmem:[#allocation7 + $0x130] sm:$0xf]
    %v380 = vld [vmem:[#allocation7 + $0x134] sm:$0xf]
    %v381 = vld [vmem:[#allocation7 + $0x138] sm:$0xf]
    %v382 = vld [vmem:[#allocation7 + $0x13c] sm:$0xf]
    %v383 = vld [vmem:[#allocation7 + $0x140] sm:$0xf]
    %v384 = vld [vmem:[#allocation7 + $0x144] sm:$0xf]
    %v385 = vld [vmem:[#allocation7 + $0x148] sm:$0xf]
    %v386 = vld [vmem:[#allocation7 + $0x14c] sm:$0xf]
    %v387 = vld [vmem:[#allocation7 + $0x150] sm:$0xf]
    %v388 = vld [vmem:[#allocation7 + $0x154] sm:$0xf]
    %v389 = vld [vmem:[#allocation7 + $0x158] sm:$0xf]
    %v390 = vld [vmem:[#allocation7 + $0x15c] sm:$0xf]
    %v391 = vld [vmem:[#allocation7 + $0x160] sm:$0xf]
    %v392 = vld [vmem:[#allocation7 + $0x164] sm:$0xf]
    %v393 = vld [vmem:[#allocation7 + $0x168] sm:$0xf]
    %v394 = vld [vmem:[#allocation7 + $0x16c] sm:$0xf]
    %v395 = vld [vmem:[#allocation7 + $0x170] sm:$0xf]
    %v396 = vld [vmem:[#allocation7 + $0x174] sm:$0xf]
    %v397 = vld [vmem:[#allocation7 + $0x178] sm:$0xf]
    %v398 = vld [vmem:[#allocation7 + $0x17c] sm:$0xf]
    %v399 = vld [vmem:[#allocation7 + $0x180] sm:$0xf]
    %v400 = vld [vmem:[#allocation7 + $0x184] sm:$0xf]
    %v401 = vld [vmem:[#allocation7 + $0x188] sm:$0xf]
    %v402 = vld [vmem:[#allocation7 + $0x18c] sm:$0xf]
    %v403 = vld [vmem:[#allocation7 + $0x190] sm:$0xf]
    %v404 = vld [vmem:[#allocation7 + $0x194] sm:$0xf]
    %v405 = vld [vmem:[#allocation7 + $0x198] sm:$0xf]
    %v406 = vld [vmem:[#allocation7 + $0x19c] sm:$0xf]
    %v407 = vld [vmem:[#allocation7 + $0x1a0] sm:$0xf]
    %v408 = vld [vmem:[#allocation7 + $0x1a4] sm:$0xf]
    %v409 = vld [vmem:[#allocation7 + $0x1a8] sm:$0xf]
    %v410 = vld [vmem:[#allocation7 + $0x1ac] sm:$0xf]
    %v411 = vld [vmem:[#allocation7 + $0x1b0] sm:$0xf]
    %v412 = vld [vmem:[#allocation7 + $0x1b4] sm:$0xf]
    %v413 = vld [vmem:[#allocation7 + $0x1b8] sm:$0xf]
    %v414 = vld [vmem:[#allocation7 + $0x1bc] sm:$0xf]
    %v415 = vld [vmem:[#allocation7 + $0x1c0] sm:$0xf]
    %v416 = vld [vmem:[#allocation7 + $0x1c4] sm:$0xf]
    %v417 = vld [vmem:[#allocation7 + $0x1c8] sm:$0xf]
    %v418 = vld [vmem:[#allocation7 + $0x1cc] sm:$0xf]
    %v419 = vld [vmem:[#allocation7 + $0x1d0] sm:$0xf]
    %v420 = vld [vmem:[#allocation7 + $0x1d4] sm:$0xf]
    %v421 = vld [vmem:[#allocation7 + $0x1d8] sm:$0xf]
    %v422 = vld [vmem:[#allocation7 + $0x1dc] sm:$0xf]
    %v423 = vld [vmem:[#allocation7 + $0x1e0] sm:$0xf]
    %v424 = vld [vmem:[#allocation7 + $0x1e4] sm:$0xf]
    %v425 = vld [vmem:[#allocation7 + $0x1e8] sm:$0xf]
    %v426 = vld [vmem:[#allocation7 + $0x1ec] sm:$0xf]
    %v427 = vld [vmem:[#allocation7 + $0x1f0] sm:$0xf]
    %v428 = vld [vmem:[#allocation7 + $0x1f4] sm:$0xf]
    %v429 = vld [vmem:[#allocation7 + $0x1f8] sm:$0xf]
    %v430 = vld [vmem:[#allocation7 + $0x1fc] sm:$0xf]
    %v431 = vld [vmem:[#allocation7 + $0x200] sm:$0xf]
    %v432 = vld [vmem:[#allocation7 + $0x204] sm:$0xf]
    %v433 = vld [vmem:[#allocation7 + $0x208] sm:$0xf]
    %v434 = vld [vmem:[#allocation7 + $0x20c] sm:$0xf]
    %v435 = vld [vmem:[#allocation7 + $0x210] sm:$0xf]
    %v436 = vld [vmem:[#allocation7 + $0x214] sm:$0xf]
    %v437 = vld [vmem:[#allocation7 + $0x218] sm:$0xf]
    %v438 = vld [vmem:[#allocation7 + $0x21c] sm:$0xf]
    %v439 = vld [vmem:[#allocation7 + $0x220] sm:$0xf]
    %v440 = vld [vmem:[#allocation7 + $0x224] sm:$0xf]
    %v441 = vld [vmem:[#allocation7 + $0x228] sm:$0xf]
    %v442 = vld [vmem:[#allocation7 + $0x22c] sm:$0xf]
    %v443 = vld [vmem:[#allocation7 + $0x230] sm:$0xf]
    %v444 = vld [vmem:[#allocation7 + $0x234] sm:$0xf]
    %v445 = vld [vmem:[#allocation7 + $0x238] sm:$0xf]
    %v446 = vld [vmem:[#allocation7 + $0x23c] sm:$0xf]
    %v447 = vld [vmem:[#allocation7 + $0x240] sm:$0xf]
    %v448 = vld [vmem:[#allocation7 + $0x244] sm:$0xf]
    %v449 = vld [vmem:[#allocation7 + $0x248] sm:$0xf]
    %v450 = vld [vmem:[#allocation7 + $0x24c] sm:$0xf]
    %v451 = vld [vmem:[#allocation7 + $0x250] sm:$0xf]
    %v452 = vld [vmem:[#allocation7 + $0x254] sm:$0xf]
    %v453 = vld [vmem:[#allocation7 + $0x258] sm:$0xf]
    %v454 = vld [vmem:[#allocation7 + $0x25c] sm:$0xf]
    %v455 = vld [vmem:[#allocation7 + $0x260] sm:$0xf]
    %v456 = vld [vmem:[#allocation7 + $0x264] sm:$0xf]
    %v457 = vld [vmem:[#allocation7 + $0x268] sm:$0xf]
    %v458 = vld [vmem:[#allocation7 + $0x26c] sm:$0xf]
    %v459 = vld [vmem:[#allocation7 + $0x270] sm:$0xf]
    %v460 = vld [vmem:[#allocation7 + $0x274] sm:$0xf]
    %v461 = vld [vmem:[#allocation7 + $0x278] sm:$0xf]
    %v462 = vld [vmem:[#allocation7 + $0x27c] sm:$0xf]
    %v463 = vld [vmem:[#allocation7 + $0x280] sm:$0xf]
    %v464 = vld [vmem:[#allocation7 + $0x284] sm:$0xf]
    %v465 = vld [vmem:[#allocation7 + $0x288] sm:$0xf]
    %v466 = vld [vmem:[#allocation7 + $0x28c] sm:$0xf]
    %v467 = vld [vmem:[#allocation7 + $0x290] sm:$0xf]
    %v468 = vld [vmem:[#allocation7 + $0x294] sm:$0xf]
    %v469 = vld [vmem:[#allocation7 + $0x298] sm:$0xf]
    %v470 = vld [vmem:[#allocation7 + $0x29c] sm:$0xf]
    %v471 = vld [vmem:[#allocation7 + $0x2a0] sm:$0xf]
    %v472 = vld [vmem:[#allocation7 + $0x2a4] sm:$0xf]
    %v473 = vld [vmem:[#allocation7 + $0x2a8] sm:$0xf]
    %v474 = vld [vmem:[#allocation7 + $0x2ac] sm:$0xf]
    %v475 = vld [vmem:[#allocation7 + $0x2b0] sm:$0xf]
    %v476 = vld [vmem:[#allocation7 + $0x2b4] sm:$0xf]
    %v477 = vld [vmem:[#allocation7 + $0x2b8] sm:$0xf]
    %v478 = vld [vmem:[#allocation7 + $0x2bc] sm:$0xf]
    %v479 = vld [vmem:[#allocation7 + $0x2c0] sm:$0xf]
    %v480 = vld [vmem:[#allocation7 + $0x2c4] sm:$0xf]
    %v481 = vld [vmem:[#allocation7 + $0x2c8] sm:$0xf]
    %v482 = vld [vmem:[#allocation7 + $0x2cc] sm:$0xf]
    %v483 = vld [vmem:[#allocation7 + $0x2d0] sm:$0xf]
    %v484 = vld [vmem:[#allocation7 + $0x2d4] sm:$0xf]
    %v485 = vld [vmem:[#allocation7 + $0x2d8] sm:$0xf]
    %v486 = vld [vmem:[#allocation7 + $0x2dc] sm:$0xf]
    %v487 = vld [vmem:[#allocation7 + $0x2e0] sm:$0xf]
    %v488 = vld [vmem:[#allocation7 + $0x2e4] sm:$0xf]
    %v489 = vld [vmem:[#allocation7 + $0x2e8] sm:$0xf]
    %v490 = vld [vmem:[#allocation7 + $0x2ec] sm:$0xf]
    %v491 = vld [vmem:[#allocation7 + $0x2f0] sm:$0xf]
    %v492 = vld [vmem:[#allocation7 + $0x2f4] sm:$0xf]
    %v493 = vld [vmem:[#allocation7 + $0x2f8] sm:$0xf]
    %v494 = vld [vmem:[#allocation7 + $0x2fc] sm:$0xf]
    %v495 = vld [vmem:[#allocation7 + $0x300] sm:$0xf]
    %v496 = vld [vmem:[#allocation7 + $0x304] sm:$0xf]
    %v497 = vld [vmem:[#allocation7 + $0x308] sm:$0xf]
    %v498 = vld [vmem:[#allocation7 + $0x30c] sm:$0xf]
    %v499 = vld [vmem:[#allocation7 + $0x310] sm:$0xf]
    %v500 = vld [vmem:[#allocation7 + $0x314] sm:$0xf]
    %v501 = vld [vmem:[#allocation7 + $0x318] sm:$0xf]
    %v502 = vld [vmem:[#allocation7 + $0x31c] sm:$0xf]
    %v503 = vld [vmem:[#allocation7 + $0x320] sm:$0xf]
    %v504 = vld [vmem:[#allocation7 + $0x324] sm:$0xf]
    %v505 = vld [vmem:[#allocation7 + $0x328] sm:$0xf]
    %v506 = vld [vmem:[#allocation7 + $0x32c] sm:$0xf]
    %v507 = vld [vmem:[#allocation7 + $0x330] sm:$0xf]
    %v508 = vld [vmem:[#allocation7 + $0x334] sm:$0xf]
    %v509 = vld [vmem:[#allocation7 + $0x338] sm:$0xf]
    %v510 = vld [vmem:[#allocation7 + $0x33c] sm:$0xf]
    %v511 = vld [vmem:[#allocation7 + $0x340] sm:$0xf]
    %v512 = vld [vmem:[#allocation7 + $0x344] sm:$0xf]
    %v513 = vld [vmem:[#allocation7 + $0x348] sm:$0xf]
    %v514 = vld [vmem:[#allocation7 + $0x34c] sm:$0xf]
    %v515 = vld [vmem:[#allocation7 + $0x350] sm:$0xf]
    %v516 = vld [vmem:[#allocation7 + $0x354] sm:$0xf]
    %v517 = vld [vmem:[#allocation7 + $0x358] sm:$0xf]
    %v518 = vld [vmem:[#allocation7 + $0x35c] sm:$0xf]
    %v519 = vld [vmem:[#allocation7 + $0x360] sm:$0xf]
    %v520 = vld [vmem:[#allocation7 + $0x364] sm:$0xf]
    %v521 = vld [vmem:[#allocation7 + $0x368] sm:$0xf]
    %v522 = vld [vmem:[#allocation7 + $0x36c] sm:$0xf]
    %v523 = vld [vmem:[#allocation7 + $0x370] sm:$0xf]
    %v524 = vld [vmem:[#allocation7 + $0x374] sm:$0xf]
    %v525 = vld [vmem:[#allocation7 + $0x378] sm:$0xf]
    %v526 = vld [vmem:[#allocation7 + $0x37c] sm:$0xf]
    %v527 = vld [vmem:[#allocation7 + $0x380] sm:$0xf]
    %v528 = vld [vmem:[#allocation7 + $0x384] sm:$0xf]
    %v529 = vld [vmem:[#allocation7 + $0x388] sm:$0xf]
    %v530 = vld [vmem:[#allocation7 + $0x38c] sm:$0xf]
    %v531 = vld [vmem:[#allocation7 + $0x390] sm:$0xf]
    %v532 = vld [vmem:[#allocation7 + $0x394] sm:$0xf]
    %v533 = vld [vmem:[#allocation7 + $0x398] sm:$0xf]
    %v534 = vld [vmem:[#allocation7 + $0x39c] sm:$0xf]
    %v535 = vld [vmem:[#allocation7 + $0x3a0] sm:$0xf]
    %v536 = vld [vmem:[#allocation7 + $0x3a4] sm:$0xf]
    %v537 = vld [vmem:[#allocation7 + $0x3a8] sm:$0xf]
    %v538 = vld [vmem:[#allocation7 + $0x3ac] sm:$0xf]
    %v539 = vld [vmem:[#allocation7 + $0x3b0] sm:$0xf]
    %v540 = vld [vmem:[#allocation7 + $0x3b4] sm:$0xf]
    %v541 = vld [vmem:[#allocation7 + $0x3b8] sm:$0xf]
    %v542 = vld [vmem:[#allocation7 + $0x3bc] sm:$0xf]
    %v543 = vld [vmem:[#allocation7 + $0x3c0] sm:$0xf]
    %v544 = vld [vmem:[#allocation7 + $0x3c4] sm:$0xf]
    %v545 = vld [vmem:[#allocation7 + $0x3c8] sm:$0xf]
    %v546 = vld [vmem:[#allocation7 + $0x3cc] sm:$0xf]
    %v547 = vld [vmem:[#allocation7 + $0x3d0] sm:$0xf]
    %v548 = vld [vmem:[#allocation7 + $0x3d4] sm:$0xf]
    %v549 = vld [vmem:[#allocation7 + $0x3d8] sm:$0xf]
    %v550 = vld [vmem:[#allocation7 + $0x3dc] sm:$0xf]
    %v551 = vld [vmem:[#allocation7 + $0x3e0] sm:$0xf]
    %v552 = vld [vmem:[#allocation7 + $0x3e4] sm:$0xf]
    %v553 = vld [vmem:[#allocation7 + $0x3e8] sm:$0xf]
    %v554 = vld [vmem:[#allocation7 + $0x3ec] sm:$0xf]
    %v555 = vld [vmem:[#allocation7 + $0x3f0] sm:$0xf]
    %v556 = vld [vmem:[#allocation7 + $0x3f4] sm:$0xf]
    %v557 = vld [vmem:[#allocation7 + $0x3f8] sm:$0xf]
    %v558 = vld [vmem:[#allocation7 + $0x3fc] sm:$0xf]
    %v559 = vld [vmem:[#allocation7 + $0x400] sm:$0xf]
    %v560 = vld [vmem:[#allocation7 + $0x404] sm:$0xf]
    %v561 = vld [vmem:[#allocation7 + $0x408] sm:$0xf]
    %v562 = vld [vmem:[#allocation7 + $0x40c] sm:$0xf]
    %v563 = vld [vmem:[#allocation7 + $0x410] sm:$0xf]
    %v564 = vld [vmem:[#allocation7 + $0x414] sm:$0xf]
    %v565 = vld [vmem:[#allocation7 + $0x418] sm:$0xf]
    %v566 = vld [vmem:[#allocation7 + $0x41c] sm:$0xf]
    %v567 = vld [vmem:[#allocation7 + $0x420] sm:$0xf]
    %v568 = vld [vmem:[#allocation7 + $0x424] sm:$0xf]
    %v569 = vld [vmem:[#allocation7 + $0x428] sm:$0xf]
    %v570 = vld [vmem:[#allocation7 + $0x42c] sm:$0xf]
    %v571 = vld [vmem:[#allocation7 + $0x430] sm:$0xf]
    %v572 = vld [vmem:[#allocation7 + $0x434] sm:$0xf]
    %v573 = vld [vmem:[#allocation7 + $0x438] sm:$0xf]
    %v574 = vld [vmem:[#allocation7 + $0x43c] sm:$0xf]
    %v575 = vld [vmem:[#allocation7 + $0x440] sm:$0xf]
    %v576 = vld [vmem:[#allocation7 + $0x444] sm:$0xf]
    %v577 = vld [vmem:[#allocation7 + $0x448] sm:$0xf]
    %v578 = vld [vmem:[#allocation7 + $0x44c] sm:$0xf]
    %v579 = vld [vmem:[#allocation7 + $0x450] sm:$0xf]
    %v580 = vld [vmem:[#allocation7 + $0x454] sm:$0xf]
    %v581 = vld [vmem:[#allocation7 + $0x458] sm:$0xf]
    %v582 = vld [vmem:[#allocation7 + $0x45c] sm:$0xf]
    %v583 = vld [vmem:[#allocation7 + $0x460] sm:$0xf]
    %v584 = vld [vmem:[#allocation7 + $0x464] sm:$0xf]
    %v585 = vld [vmem:[#allocation7 + $0x468] sm:$0xf]
    %v586 = vld [vmem:[#allocation7 + $0x46c] sm:$0xf]
    %v587 = vld [vmem:[#allocation7 + $0x470] sm:$0xf]
    %v588 = vld [vmem:[#allocation7 + $0x474] sm:$0xf]
    %v589 = vld [vmem:[#allocation7 + $0x478] sm:$0xf]
    %v590 = vld [vmem:[#allocation7 + $0x47c] sm:$0xf]
    %v591 = vld [vmem:[#allocation7 + $0x480] sm:$0xf]
    %v592 = vld [vmem:[#allocation7 + $0x484] sm:$0xf]
    %v593 = vld [vmem:[#allocation7 + $0x488] sm:$0xf]
    %v594 = vld [vmem:[#allocation7 + $0x48c] sm:$0xf]
    %v595 = vld [vmem:[#allocation7 + $0x490] sm:$0xf]
    %v596 = vld [vmem:[#allocation7 + $0x494] sm:$0xf]
    %v597 = vld [vmem:[#allocation7 + $0x498] sm:$0xf]
    %v598 = vld [vmem:[#allocation7 + $0x49c] sm:$0xf]
    %v599 = vld [vmem:[#allocation7 + $0x4a0] sm:$0xf]
    %v600 = vld [vmem:[#allocation7 + $0x4a4] sm:$0xf]
    %v601 = vld [vmem:[#allocation7 + $0x4a8] sm:$0xf]
    %v602 = vld [vmem:[#allocation7 + $0x4ac] sm:$0xf]
    %v603 = vld [vmem:[#allocation7 + $0x4b0] sm:$0xf]
    %v604 = vld [vmem:[#allocation7 + $0x4b4] sm:$0xf]
    %v605 = vld [vmem:[#allocation7 + $0x4b8] sm:$0xf]
    %v606 = vld [vmem:[#allocation7 + $0x4bc] sm:$0xf]
    %v607 = vld [vmem:[#allocation7 + $0x4c0] sm:$0xf]
    %v608 = vld [vmem:[#allocation7 + $0x4c4] sm:$0xf]
    %v609 = vld [vmem:[#allocation7 + $0x4c8] sm:$0xf]
    %v610 = vld [vmem:[#allocation7 + $0x4cc] sm:$0xf]
    %v611 = vld [vmem:[#allocation7 + $0x4d0] sm:$0xf]
    %v612 = vld [vmem:[#allocation7 + $0x4d4] sm:$0xf]
    %v613 = vld [vmem:[#allocation7 + $0x4d8] sm:$0xf]
    %v614 = vld [vmem:[#allocation7 + $0x4dc] sm:$0xf]
    %v615 = vld [vmem:[#allocation7 + $0x4e0] sm:$0xf]
    %v616 = vld [vmem:[#allocation7 + $0x4e4] sm:$0xf]
    %v617 = vld [vmem:[#allocation7 + $0x4e8] sm:$0xf]
    %v618 = vld [vmem:[#allocation7 + $0x4ec] sm:$0xf]
    %v619 = vld [vmem:[#allocation7 + $0x4f0] sm:$0xf]
    %v620 = vld [vmem:[#allocation7 + $0x4f4] sm:$0xf]
    %v621 = vld [vmem:[#allocation7 + $0x4f8] sm:$0xf]
    %v622 = vld [vmem:[#allocation7 + $0x4fc] sm:$0xf]
    %v623 = vld [vmem:[#allocation7 + $0x500] sm:$0xf]
    %v624 = vld [vmem:[#allocation7 + $0x504] sm:$0xf]
    %v625 = vld [vmem:[#allocation7 + $0x508] sm:$0xf]
    %v626 = vld [vmem:[#allocation7 + $0x50c] sm:$0xf]
    %v627 = vld [vmem:[#allocation7 + $0x510] sm:$0xf]
    %v628 = vld [vmem:[#allocation7 + $0x514] sm:$0xf]
    %v629 = vld [vmem:[#allocation7 + $0x518] sm:$0xf]
    %v630 = vld [vmem:[#allocation7 + $0x51c] sm:$0xf]
    %v631 = vld [vmem:[#allocation7 + $0x520] sm:$0xf]
    %v632 = vld [vmem:[#allocation7 + $0x524] sm:$0xf]
    %v633 = vld [vmem:[#allocation7 + $0x528] sm:$0xf]
    %v634 = vld [vmem:[#allocation7 + $0x52c] sm:$0xf]
    %v635 = vld [vmem:[#allocation7 + $0x530] sm:$0xf]
    %v636 = vld [vmem:[#allocation7 + $0x534] sm:$0xf]
    %v637 = vld [vmem:[#allocation7 + $0x538] sm:$0xf]
    %v638 = vld [vmem:[#allocation7 + $0x53c] sm:$0xf]
    %v639 = vld [vmem:[#allocation7 + $0x540] sm:$0xf]
    %v640 = vld [vmem:[#allocation7 + $0x544] sm:$0xf]
    %v641 = vld [vmem:[#allocation7 + $0x548] sm:$0xf]
    %v642 = vld [vmem:[#allocation7 + $0x54c] sm:$0xf]
    %v643 = vld [vmem:[#allocation7 + $0x550] sm:$0xf]
    %v644 = vld [vmem:[#allocation7 + $0x554] sm:$0xf]
    %v645 = vld [vmem:[#allocation7 + $0x558] sm:$0xf]
    %v646 = vld [vmem:[#allocation7 + $0x55c] sm:$0xf]
    %v647 = vld [vmem:[#allocation7 + $0x560] sm:$0xf]
    %v648 = vld [vmem:[#allocation7 + $0x564] sm:$0xf]
    %v649 = vld [vmem:[#allocation7 + $0x568] sm:$0xf]
    %v650 = vld [vmem:[#allocation7 + $0x56c] sm:$0xf]
    %v651 = vld [vmem:[#allocation7 + $0x570] sm:$0xf]
    %v652 = vld [vmem:[#allocation7 + $0x574] sm:$0xf]
    %v653 = vld [vmem:[#allocation7 + $0x578] sm:$0xf]
    %v654 = vld [vmem:[#allocation7 + $0x57c] sm:$0xf]
    %v655 = vld [vmem:[#allocation7 + $0x580] sm:$0xf]
    %v656 = vld [vmem:[#allocation7 + $0x584] sm:$0xf]
    %v657 = vld [vmem:[#allocation7 + $0x588] sm:$0xf]
    %v658 = vld [vmem:[#allocation7 + $0x58c] sm:$0xf]
    %v659 = vld [vmem:[#allocation7 + $0x590] sm:$0xf]
    %v660 = vld [vmem:[#allocation7 + $0x594] sm:$0xf]
    %v661 = vld [vmem:[#allocation7 + $0x598] sm:$0xf]
    %v662 = vld [vmem:[#allocation7 + $0x59c] sm:$0xf]
    %v663 = vld [vmem:[#allocation7 + $0x5a0] sm:$0xf]
    %v664 = vld [vmem:[#allocation7 + $0x5a4] sm:$0xf]
    %v665 = vld [vmem:[#allocation7 + $0x5a8] sm:$0xf]
    %v666 = vld [vmem:[#allocation7 + $0x5ac] sm:$0xf]
    %v667 = vld [vmem:[#allocation7 + $0x5b0] sm:$0xf]
    %v668 = vld [vmem:[#allocation7 + $0x5b4] sm:$0xf]
    %v669 = vld [vmem:[#allocation7 + $0x5b8] sm:$0xf]
    %v670 = vld [vmem:[#allocation7 + $0x5bc] sm:$0xf]
    %v671 = vld [vmem:[#allocation7 + $0x5c0] sm:$0xf]
    %v672 = vld [vmem:[#allocation7 + $0x5c4] sm:$0xf]
    %v673 = vld [vmem:[#allocation7 + $0x5c8] sm:$0xf]
    %v674 = vld [vmem:[#allocation7 + $0x5cc] sm:$0xf]
    %v675 = vld [vmem:[#allocation7 + $0x5d0] sm:$0xf]
    %v676 = vld [vmem:[#allocation7 + $0x5d4] sm:$0xf]
    %v677 = vld [vmem:[#allocation7 + $0x5d8] sm:$0xf]
    %v678 = vld [vmem:[#allocation7 + $0x5dc] sm:$0xf]
    %v679 = vld [vmem:[#allocation7 + $0x5e0] sm:$0xf]
    %v680 = vld [vmem:[#allocation7 + $0x5e4] sm:$0xf]
    %v681 = vld [vmem:[#allocation7 + $0x5e8] sm:$0xf]
    %v682 = vld [vmem:[#allocation7 + $0x5ec] sm:$0xf]
    %v683 = vld [vmem:[#allocation7 + $0x5f0] sm:$0xf]
    %v684 = vld [vmem:[#allocation7 + $0x5f4] sm:$0xf]
    %v685 = vld [vmem:[#allocation7 + $0x5f8] sm:$0xf]
    %v686 = vld [vmem:[#allocation7 + $0x5fc] sm:$0xf]
    %v687 = vld [vmem:[%s3] sm:$0x1]
    %v688 = vld [vmem:[#allocation8] sm:$0xff]
    %v689 = vld [vmem:[#allocation8 + $0x8] sm:$0xff]
    %v690 = vld [vmem:[#allocation8 + $0x10] sm:$0xff]
    %v691 = vld [vmem:[#allocation8 + $0x18] sm:$0xff]
    %v692 = vld [vmem:[#allocation8 + $0x20] sm:$0xff]
    %v693 = vld [vmem:[#allocation8 + $0x28] sm:$0xff]
    %v694 = vld [vmem:[#allocation8 + $0x30] sm:$0xff]
    %v695 = vld [vmem:[#allocation8 + $0x38] sm:$0xff]
    %v696 = vld [vmem:[#allocation8 + $0x40] sm:$0xff]
    %v697 = vld [vmem:[#allocation8 + $0x48] sm:$0xff]
    %v698 = vld [vmem:[#allocation8 + $0x50] sm:$0xff]
    %v699 = vld [vmem:[#allocation8 + $0x58] sm:$0xff]
    %v700 = vld [vmem:[#allocation8 + $0x60] sm:$0xff]
    %v701 = vld [vmem:[#allocation8 + $0x68] sm:$0xff]
    %v702 = vld [vmem:[#allocation8 + $0x70] sm:$0xff]
    %v703 = vld [vmem:[#allocation8 + $0x78] sm:$0xff]
    %v704 = vld [vmem:[#allocation8 + $0x80] sm:$0xff]
    %v705 = vld [vmem:[#allocation8 + $0x88] sm:$0xff]
    %v706 = vld [vmem:[#allocation8 + $0x90] sm:$0xff]
    %v707 = vld [vmem:[#allocation8 + $0x98] sm:$0xff]
    %v708 = vld [vmem:[#allocation8 + $0xa0] sm:$0xff]
    %v709 = vld [vmem:[#allocation8 + $0xa8] sm:$0xff]
    %v710 = vld [vmem:[#allocation8 + $0xb0] sm:$0xff]
    %v711 = vld [vmem:[#allocation8 + $0xb8] sm:$0xff]
    %v712 = vld [vmem:[#allocation8 + $0xc0] sm:$0xff]
    %v713 = vld [vmem:[#allocation8 + $0xc8] sm:$0xff]
    %v714 = vld [vmem:[#allocation8 + $0xd0] sm:$0xff]
    %v715 = vld [vmem:[#allocation8 + $0xd8] sm:$0xff]
    %v716 = vld [vmem:[#allocation8 + $0xe0] sm:$0xff]
    %v717 = vld [vmem:[#allocation8 + $0xe8] sm:$0xff]
    %v718 = vld [vmem:[#allocation8 + $0xf0] sm:$0xff]
    %v719 = vld [vmem:[#allocation8 + $0xf8] sm:$0xff]
    %v720 = vld [vmem:[#allocation8 + $0x100] sm:$0xff]
    %v721 = vld [vmem:[#allocation8 + $0x108] sm:$0xff]
    %v722 = vld [vmem:[#allocation8 + $0x110] sm:$0xff]
    %v723 = vld [vmem:[#allocation8 + $0x118] sm:$0xff]
    %v724 = vld [vmem:[#allocation8 + $0x120] sm:$0xff]
    %v725 = vld [vmem:[#allocation8 + $0x128] sm:$0xff]
    %v726 = vld [vmem:[#allocation8 + $0x130] sm:$0xff]
    %v727 = vld [vmem:[#allocation8 + $0x138] sm:$0xff]
    %v728 = vld [vmem:[#allocation8 + $0x140] sm:$0xff]
    %v729 = vld [vmem:[#allocation8 + $0x148] sm:$0xff]
    %v730 = vld [vmem:[#allocation8 + $0x150] sm:$0xff]
    %v731 = vld [vmem:[#allocation8 + $0x158] sm:$0xff]
    %v732 = vld [vmem:[#allocation8 + $0x160] sm:$0xff]
    %v733 = vld [vmem:[#allocation8 + $0x168] sm:$0xff]
    %v734 = vld [vmem:[#allocation8 + $0x170] sm:$0xff]
    %v735 = vld [vmem:[#allocation8 + $0x178] sm:$0xff]
    %v736 = vld [vmem:[#allocation8 + $0x180] sm:$0xff]
    %v737 = vld [vmem:[#allocation8 + $0x188] sm:$0xff]
    %v738 = vld [vmem:[#allocation8 + $0x190] sm:$0xff]
    %v739 = vld [vmem:[#allocation8 + $0x198] sm:$0xff]
    %v740 = vld [vmem:[#allocation8 + $0x1a0] sm:$0xff]
    %v741 = vld [vmem:[#allocation8 + $0x1a8] sm:$0xff]
    %v742 = vld [vmem:[#allocation8 + $0x1b0] sm:$0xff]
    %v743 = vld [vmem:[#allocation8 + $0x1b8] sm:$0xff]
    %v744 = vld [vmem:[#allocation8 + $0x1c0] sm:$0xff]
    %v745 = vld [vmem:[#allocation8 + $0x1c8] sm:$0xff]
    %v746 = vld [vmem:[#allocation8 + $0x1d0] sm:$0xff]
    %v747 = vld [vmem:[#allocation8 + $0x1d8] sm:$0xff]
    %v748 = vld [vmem:[#allocation8 + $0x1e0] sm:$0xff]
    %v749 = vld [vmem:[#allocation8 + $0x1e8] sm:$0xff]
    %v750 = vld [vmem:[#allocation8 + $0x1f0] sm:$0xff]
    %v751 = vld [vmem:[#allocation8 + $0x1f8] sm:$0xff]
    %v752 = vld [vmem:[#allocation8 + $0x200] sm:$0xff]
    %v753 = vld [vmem:[#allocation8 + $0x208] sm:$0xff]
    %v754 = vld [vmem:[#allocation8 + $0x210] sm:$0xff]
    %v755 = vld [vmem:[#allocation8 + $0x218] sm:$0xff]
    %v756 = vld [vmem:[#allocation8 + $0x220] sm:$0xff]
    %v757 = vld [vmem:[#allocation8 + $0x228] sm:$0xff]
    %v758 = vld [vmem:[#allocation8 + $0x230] sm:$0xff]
    %v759 = vld [vmem:[#allocation8 + $0x238] sm:$0xff]
    %v760 = vld [vmem:[#allocation8 + $0x240] sm:$0xff]
    %v761 = vld [vmem:[#allocation8 + $0x248] sm:$0xff]
    %v762 = vld [vmem:[#allocation8 + $0x250] sm:$0xff]
    %v763 = vld [vmem:[#allocation8 + $0x258] sm:$0xff]
    %v764 = vld [vmem:[#allocation8 + $0x260] sm:$0xff]
    %v765 = vld [vmem:[#allocation8 + $0x268] sm:$0xff]
    %v766 = vld [vmem:[#allocation8 + $0x270] sm:$0xff]
    %v767 = vld [vmem:[#allocation8 + $0x278] sm:$0xff]
    %v768 = vld [vmem:[#allocation8 + $0x280] sm:$0xff]
    %v769 = vld [vmem:[#allocation8 + $0x288] sm:$0xff]
    %v770 = vld [vmem:[#allocation8 + $0x290] sm:$0xff]
    %v771 = vld [vmem:[#allocation8 + $0x298] sm:$0xff]
    %v772 = vld [vmem:[#allocation8 + $0x2a0] sm:$0xff]
    %v773 = vld [vmem:[#allocation8 + $0x2a8] sm:$0xff]
    %v774 = vld [vmem:[#allocation8 + $0x2b0] sm:$0xff]
    %v775 = vld [vmem:[#allocation8 + $0x2b8] sm:$0xff]
    %v776 = vld [vmem:[#allocation8 + $0x2c0] sm:$0xff]
    %v777 = vld [vmem:[#allocation8 + $0x2c8] sm:$0xff]
    %v778 = vld [vmem:[#allocation8 + $0x2d0] sm:$0xff]
    %v779 = vld [vmem:[#allocation8 + $0x2d8] sm:$0xff]
    %v780 = vld [vmem:[#allocation8 + $0x2e0] sm:$0xff]
    %v781 = vld [vmem:[#allocation8 + $0x2e8] sm:$0xff]
    %v782 = vld [vmem:[#allocation8 + $0x2f0] sm:$0xff]
    %v783 = vld [vmem:[#allocation8 + $0x2f8] sm:$0xff]
    %v784 = vld [vmem:[#allocation8 + $0x300] sm:$0xff]
    %v785 = vld [vmem:[#allocation8 + $0x308] sm:$0xff]
    %v786 = vld [vmem:[#allocation8 + $0x310] sm:$0xff]
    %v787 = vld [vmem:[#allocation8 + $0x318] sm:$0xff]
    %v788 = vld [vmem:[#allocation8 + $0x320] sm:$0xff]
    %v789 = vld [vmem:[#allocation8 + $0x328] sm:$0xff]
    %v790 = vld [vmem:[#allocation8 + $0x330] sm:$0xff]
    %v791 = vld [vmem:[#allocation8 + $0x338] sm:$0xff]
    %v792 = vld [vmem:[#allocation8 + $0x340] sm:$0xff]
    %v793 = vld [vmem:[#allocation8 + $0x348] sm:$0xff]
    %v794 = vld [vmem:[#allocation8 + $0x350] sm:$0xff]
    %v795 = vld [vmem:[#allocation8 + $0x358] sm:$0xff]
    %v796 = vld [vmem:[#allocation8 + $0x360] sm:$0xff]
    %v797 = vld [vmem:[#allocation8 + $0x368] sm:$0xff]
    %v798 = vld [vmem:[#allocation8 + $0x370] sm:$0xff]
    %v799 = vld [vmem:[#allocation8 + $0x378] sm:$0xff]
    %v800 = vld [vmem:[#allocation8 + $0x380] sm:$0xff]
    %v801 = vld [vmem:[#allocation8 + $0x388] sm:$0xff]
    %v802 = vld [vmem:[#allocation8 + $0x390] sm:$0xff]
    %v803 = vld [vmem:[#allocation8 + $0x398] sm:$0xff]
    %v804 = vld [vmem:[#allocation8 + $0x3a0] sm:$0xff]
    %v805 = vld [vmem:[#allocation8 + $0x3a8] sm:$0xff]
    %v806 = vld [vmem:[#allocation8 + $0x3b0] sm:$0xff]
    %v807 = vld [vmem:[#allocation8 + $0x3b8] sm:$0xff]
    %v808 = vld [vmem:[#allocation8 + $0x3c0] sm:$0xff]
    %v809 = vld [vmem:[#allocation8 + $0x3c8] sm:$0xff]
    %v810 = vld [vmem:[#allocation8 + $0x3d0] sm:$0xff]
    %v811 = vld [vmem:[#allocation8 + $0x3d8] sm:$0xff]
    %v812 = vld [vmem:[#allocation8 + $0x3e0] sm:$0xff]
    %v813 = vld [vmem:[#allocation8 + $0x3e8] sm:$0xff]
    %v814 = vld [vmem:[#allocation8 + $0x3f0] sm:$0xff]
    %v815 = vld [vmem:[#allocation8 + $0x3f8] sm:$0xff]
    %v816 = vld [vmem:[#allocation8 + $0x400] sm:$0xff]
    %v817 = vld [vmem:[#allocation8 + $0x408] sm:$0xff]
    %v818 = vld [vmem:[#allocation8 + $0x410] sm:$0xff]
    %v819 = vld [vmem:[#allocation8 + $0x418] sm:$0xff]
    %v820 = vld [vmem:[#allocation8 + $0x420] sm:$0xff]
    %v821 = vld [vmem:[#allocation8 + $0x428] sm:$0xff]
    %v822 = vld [vmem:[#allocation8 + $0x430] sm:$0xff]
    %v823 = vld [vmem:[#allocation8 + $0x438] sm:$0xff]
    %v824 = vld [vmem:[#allocation8 + $0x440] sm:$0xff]
    %v825 = vld [vmem:[#allocation8 + $0x448] sm:$0xff]
    %v826 = vld [vmem:[#allocation8 + $0x450] sm:$0xff]
    %v827 = vld [vmem:[#allocation8 + $0x458] sm:$0xff]
    %v828 = vld [vmem:[#allocation8 + $0x460] sm:$0xff]
    %v829 = vld [vmem:[#allocation8 + $0x468] sm:$0xff]
    %v830 = vld [vmem:[#allocation8 + $0x470] sm:$0xff]
    %v831 = vld [vmem:[#allocation8 + $0x478] sm:$0xff]
    %v832 = vld [vmem:[#allocation8 + $0x480] sm:$0xff]
    %v833 = vld [vmem:[#allocation8 + $0x488] sm:$0xff]
    %v834 = vld [vmem:[#allocation8 + $0x490] sm:$0xff]
    %v835 = vld [vmem:[#allocation8 + $0x498] sm:$0xff]
    %v836 = vld [vmem:[#allocation8 + $0x4a0] sm:$0xff]
    %v837 = vld [vmem:[#allocation8 + $0x4a8] sm:$0xff]
    %v838 = vld [vmem:[#allocation8 + $0x4b0] sm:$0xff]
    %v839 = vld [vmem:[#allocation8 + $0x4b8] sm:$0xff]
    %v840 = vld [vmem:[#allocation8 + $0x4c0] sm:$0xff]
    %v841 = vld [vmem:[#allocation8 + $0x4c8] sm:$0xff]
    %v842 = vld [vmem:[#allocation8 + $0x4d0] sm:$0xff]
    %v843 = vld [vmem:[#allocation8 + $0x4d8] sm:$0xff]
    %v844 = vld [vmem:[#allocation8 + $0x4e0] sm:$0xff]
    %v845 = vld [vmem:[#allocation8 + $0x4e8] sm:$0xff]
    %v846 = vld [vmem:[#allocation8 + $0x4f0] sm:$0xff]
    %v847 = vld [vmem:[#allocation8 + $0x4f8] sm:$0xff]
    %v848 = vld [vmem:[#allocation8 + $0x500] sm:$0xff]
    %v849 = vld [vmem:[#allocation8 + $0x508] sm:$0xff]
    %v850 = vld [vmem:[#allocation8 + $0x510] sm:$0xff]
    %v851 = vld [vmem:[#allocation8 + $0x518] sm:$0xff]
    %v852 = vld [vmem:[#allocation8 + $0x520] sm:$0xff]
    %v853 = vld [vmem:[#allocation8 + $0x528] sm:$0xff]
    %v854 = vld [vmem:[#allocation8 + $0x530] sm:$0xff]
    %v855 = vld [vmem:[#allocation8 + $0x538] sm:$0xff]
    %v856 = vld [vmem:[#allocation8 + $0x540] sm:$0xff]
    %v857 = vld [vmem:[#allocation8 + $0x548] sm:$0xff]
    %v858 = vld [vmem:[#allocation8 + $0x550] sm:$0xff]
    %v859 = vld [vmem:[#allocation8 + $0x558] sm:$0xff]
    %v860 = vld [vmem:[#allocation8 + $0x560] sm:$0xff]
    %v861 = vld [vmem:[#allocation8 + $0x568] sm:$0xff]
    %v862 = vld [vmem:[#allocation8 + $0x570] sm:$0xff]
    %v863 = vld [vmem:[#allocation8 + $0x578] sm:$0xff]
    %v864 = vld [vmem:[#allocation8 + $0x580] sm:$0xff]
    %v865 = vld [vmem:[#allocation8 + $0x588] sm:$0xff]
    %v866 = vld [vmem:[#allocation8 + $0x590] sm:$0xff]
    %v867 = vld [vmem:[#allocation8 + $0x598] sm:$0xff]
    %v868 = vld [vmem:[#allocation8 + $0x5a0] sm:$0xff]
    %v869 = vld [vmem:[#allocation8 + $0x5a8] sm:$0xff]
    %v870 = vld [vmem:[#allocation8 + $0x5b0] sm:$0xff]
    %v871 = vld [vmem:[#allocation8 + $0x5b8] sm:$0xff]
    %v872 = vld [vmem:[#allocation8 + $0x5c0] sm:$0xff]
    %v873 = vld [vmem:[#allocation8 + $0x5c8] sm:$0xff]
    %v874 = vld [vmem:[#allocation8 + $0x5d0] sm:$0xff]
    %v875 = vld [vmem:[#allocation8 + $0x5d8] sm:$0xff]
    %v876 = vld [vmem:[#allocation8 + $0x5e0] sm:$0xff]
    %v877 = vld [vmem:[#allocation8 + $0x5e8] sm:$0xff]
    %v878 = vld [vmem:[#allocation8 + $0x5f0] sm:$0xff]
    %v879 = vld [vmem:[#allocation8 + $0x5f8] sm:$0xff]
    %v880 = vld [vmem:[#allocation10] sm:$0xff]
    %v881 = vld [vmem:[#allocation10 + $0x8] sm:$0xff]
    %v882 = vld [vmem:[#allocation10 + $0x10] sm:$0xff]
    %v883 = vadd.f32 %v687, 0.5
    %v884 = vpack.c.bf16 %v279, %v255
    %v885 = vpack.c.bf16 %v280, %v256
    %v886 = vpack.c.bf16 %v281, %v257
    %v887 = vpack.c.bf16 %v282, %v258
    %v888 = vpack.c.bf16 %v283, %v259
    %v889 = vpack.c.bf16 %v284, %v260
    %v890 = vpack.c.bf16 %v285, %v261
    %v891 = vpack.c.bf16 %v286, %v262
    %v892 = vpack.c.bf16 %v287, %v263
    %v893 = vpack.c.bf16 %v288, %v264
    %v894 = vpack.c.bf16 %v289, %v265
    %v895 = vpack.c.bf16 %v290, %v266
    %v896 = vpack.c.bf16 %v291, %v267
    %v897 = vpack.c.bf16 %v292, %v268
    %v898 = vpack.c.bf16 %v293, %v269
    %v899 = vpack.c.bf16 %v294, %v270
    %v900 = vpack.c.bf16 %v295, %v271
    %v901 = vpack.c.bf16 %v296, %v272
    %v902 = vpack.c.bf16 %v297, %v273
    %v903 = vpack.c.bf16 %v298, %v274
    %v904 = vpack.c.bf16 %v299, %v275
    %v905 = vpack.c.bf16 %v300, %v276
    %v906 = vpack.c.bf16 %v301, %v277
    %v907 = vpack.c.bf16 %v302, %v278
    %v909 = vlaneseq
    %v910 = vshrl.u32 %v909, 7
    %v911 = vsub.s32 0, %v910
    %v912 = vrot.slane %v883, %v911
    %v1298 = vunpack.c.l.b16 %v303
    %v1299 = vunpack.c.l.b16 %v304
    %v1300 = vunpack.c.l.b16 %v305
    %v1301 = vunpack.c.l.b16 %v306
    %v1302 = vunpack.c.l.b16 %v307
    %v1303 = vunpack.c.l.b16 %v308
    %v1304 = vunpack.c.l.b16 %v309
    %v1305 = vunpack.c.l.b16 %v310
    %v1306 = vunpack.c.l.b16 %v311
    %v1307 = vunpack.c.l.b16 %v312
    %v1308 = vunpack.c.l.b16 %v313
    %v1309 = vunpack.c.l.b16 %v314
    %v1310 = vunpack.c.l.b16 %v315
    %v1311 = vunpack.c.l.b16 %v316
    %v1312 = vunpack.c.l.b16 %v317
    %v1313 = vunpack.c.l.b16 %v318
    %v1314 = vunpack.c.l.b16 %v319
    %v1315 = vunpack.c.l.b16 %v320
    %v1316 = vunpack.c.l.b16 %v321
    %v1317 = vunpack.c.l.b16 %v322
    %v1318 = vunpack.c.l.b16 %v323
    %v1319 = vunpack.c.l.b16 %v324
    %v1320 = vunpack.c.l.b16 %v325
    %v1321 = vunpack.c.l.b16 %v326
    %v1322 = vunpack.c.l.b16 %v327
    %v1323 = vunpack.c.l.b16 %v328
    %v1324 = vunpack.c.l.b16 %v329
    %v1325 = vunpack.c.l.b16 %v330
    %v1326 = vunpack.c.l.b16 %v331
    %v1327 = vunpack.c.l.b16 %v332
    %v1328 = vunpack.c.l.b16 %v333
    %v1329 = vunpack.c.l.b16 %v334
    %v1330 = vunpack.c.l.b16 %v335
    %v1331 = vunpack.c.l.b16 %v336
    %v1332 = vunpack.c.l.b16 %v337
    %v1333 = vunpack.c.l.b16 %v338
    %v1334 = vunpack.c.l.b16 %v339
    %v1335 = vunpack.c.l.b16 %v340
    %v1336 = vunpack.c.l.b16 %v341
    %v1337 = vunpack.c.l.b16 %v342
    %v1338 = vunpack.c.l.b16 %v343
    %v1339 = vunpack.c.l.b16 %v344
    %v1340 = vunpack.c.l.b16 %v345
    %v1341 = vunpack.c.l.b16 %v346
    %v1342 = vunpack.c.l.b16 %v347
    %v1343 = vunpack.c.l.b16 %v348
    %v1344 = vunpack.c.l.b16 %v349
    %v1345 = vunpack.c.l.b16 %v350
    %v1346 = vunpack.c.l.b16 %v351
    %v1347 = vunpack.c.l.b16 %v352
    %v1348 = vunpack.c.l.b16 %v353
    %v1349 = vunpack.c.l.b16 %v354
    %v1350 = vunpack.c.l.b16 %v355
    %v1351 = vunpack.c.l.b16 %v356
    %v1352 = vunpack.c.l.b16 %v357
    %v1353 = vunpack.c.l.b16 %v358
    %v1354 = vunpack.c.l.b16 %v359
    %v1355 = vunpack.c.l.b16 %v360
    %v1356 = vunpack.c.l.b16 %v361
    %v1357 = vunpack.c.l.b16 %v362
    %v1358 = vunpack.c.l.b16 %v363
    %v1359 = vunpack.c.l.b16 %v364
    %v1360 = vunpack.c.l.b16 %v365
    %v1361 = vunpack.c.l.b16 %v366
    %v1362 = vunpack.c.l.b16 %v367
    %v1363 = vunpack.c.l.b16 %v368
    %v1364 = vunpack.c.l.b16 %v369
    %v1365 = vunpack.c.l.b16 %v370
    %v1366 = vunpack.c.l.b16 %v371
    %v1367 = vunpack.c.l.b16 %v372
    %v1368 = vunpack.c.l.b16 %v373
    %v1369 = vunpack.c.l.b16 %v374
    %v1370 = vunpack.c.l.b16 %v375
    %v1371 = vunpack.c.l.b16 %v376
    %v1372 = vunpack.c.l.b16 %v377
    %v1373 = vunpack.c.l.b16 %v378
    %v1374 = vunpack.c.l.b16 %v379
    %v1375 = vunpack.c.l.b16 %v380
    %v1376 = vunpack.c.l.b16 %v381
    %v1377 = vunpack.c.l.b16 %v382
    %v1378 = vunpack.c.l.b16 %v383
    %v1379 = vunpack.c.l.b16 %v384
    %v1380 = vunpack.c.l.b16 %v385
    %v1381 = vunpack.c.l.b16 %v386
    %v1382 = vunpack.c.l.b16 %v387
    %v1383 = vunpack.c.l.b16 %v388
    %v1384 = vunpack.c.l.b16 %v389
    %v1385 = vunpack.c.l.b16 %v390
    %v1386 = vunpack.c.l.b16 %v391
    %v1387 = vunpack.c.l.b16 %v392
    %v1388 = vunpack.c.l.b16 %v393
    %v1389 = vunpack.c.l.b16 %v394
    %v1390 = vunpack.c.l.b16 %v395
    %v1391 = vunpack.c.l.b16 %v396
    %v1392 = vunpack.c.l.b16 %v397
    %v1393 = vunpack.c.l.b16 %v398
    %v1394 = vunpack.c.l.b16 %v399
    %v1395 = vunpack.c.l.b16 %v400
    %v1396 = vunpack.c.l.b16 %v401
    %v1397 = vunpack.c.l.b16 %v402
    %v1398 = vunpack.c.l.b16 %v403
    %v1399 = vunpack.c.l.b16 %v404
    %v1400 = vunpack.c.l.b16 %v405
    %v1401 = vunpack.c.l.b16 %v406
    %v1402 = vunpack.c.l.b16 %v407
    %v1403 = vunpack.c.l.b16 %v408
    %v1404 = vunpack.c.l.b16 %v409
    %v1405 = vunpack.c.l.b16 %v410
    %v1406 = vunpack.c.l.b16 %v411
    %v1407 = vunpack.c.l.b16 %v412
    %v1408 = vunpack.c.l.b16 %v413
    %v1409 = vunpack.c.l.b16 %v414
    %v1410 = vunpack.c.l.b16 %v415
    %v1411 = vunpack.c.l.b16 %v416
    %v1412 = vunpack.c.l.b16 %v417
    %v1413 = vunpack.c.l.b16 %v418
    %v1414 = vunpack.c.l.b16 %v419
    %v1415 = vunpack.c.l.b16 %v420
    %v1416 = vunpack.c.l.b16 %v421
    %v1417 = vunpack.c.l.b16 %v422
    %v1418 = vunpack.c.l.b16 %v423
    %v1419 = vunpack.c.l.b16 %v424
    %v1420 = vunpack.c.l.b16 %v425
    %v1421 = vunpack.c.l.b16 %v426
    %v1422 = vunpack.c.l.b16 %v427
    %v1423 = vunpack.c.l.b16 %v428
    %v1424 = vunpack.c.l.b16 %v429
    %v1425 = vunpack.c.l.b16 %v430
    %v1426 = vunpack.c.l.b16 %v431
    %v1427 = vunpack.c.l.b16 %v432
    %v1428 = vunpack.c.l.b16 %v433
    %v1429 = vunpack.c.l.b16 %v434
    %v1430 = vunpack.c.l.b16 %v435
    %v1431 = vunpack.c.l.b16 %v436
    %v1432 = vunpack.c.l.b16 %v437
    %v1433 = vunpack.c.l.b16 %v438
    %v1434 = vunpack.c.l.b16 %v439
    %v1435 = vunpack.c.l.b16 %v440
    %v1436 = vunpack.c.l.b16 %v441
    %v1437 = vunpack.c.l.b16 %v442
    %v1438 = vunpack.c.l.b16 %v443
    %v1439 = vunpack.c.l.b16 %v444
    %v1440 = vunpack.c.l.b16 %v445
    %v1441 = vunpack.c.l.b16 %v446
    %v1442 = vunpack.c.l.b16 %v447
    %v1443 = vunpack.c.l.b16 %v448
    %v1444 = vunpack.c.l.b16 %v449
    %v1445 = vunpack.c.l.b16 %v450
    %v1446 = vunpack.c.l.b16 %v451
    %v1447 = vunpack.c.l.b16 %v452
    %v1448 = vunpack.c.l.b16 %v453
    %v1449 = vunpack.c.l.b16 %v454
    %v1450 = vunpack.c.l.b16 %v455
    %v1451 = vunpack.c.l.b16 %v456
    %v1452 = vunpack.c.l.b16 %v457
    %v1453 = vunpack.c.l.b16 %v458
    %v1454 = vunpack.c.l.b16 %v459
    %v1455 = vunpack.c.l.b16 %v460
    %v1456 = vunpack.c.l.b16 %v461
    %v1457 = vunpack.c.l.b16 %v462
    %v1458 = vunpack.c.l.b16 %v463
    %v1459 = vunpack.c.l.b16 %v464
    %v1460 = vunpack.c.l.b16 %v465
    %v1461 = vunpack.c.l.b16 %v466
    %v1462 = vunpack.c.l.b16 %v467
    %v1463 = vunpack.c.l.b16 %v468
    %v1464 = vunpack.c.l.b16 %v469
    %v1465 = vunpack.c.l.b16 %v470
    %v1466 = vunpack.c.l.b16 %v471
    %v1467 = vunpack.c.l.b16 %v472
    %v1468 = vunpack.c.l.b16 %v473
    %v1469 = vunpack.c.l.b16 %v474
    %v1470 = vunpack.c.l.b16 %v475
    %v1471 = vunpack.c.l.b16 %v476
    %v1472 = vunpack.c.l.b16 %v477
    %v1473 = vunpack.c.l.b16 %v478
    %v1474 = vunpack.c.l.b16 %v479
    %v1475 = vunpack.c.l.b16 %v480
    %v1476 = vunpack.c.l.b16 %v481
    %v1477 = vunpack.c.l.b16 %v482
    %v1478 = vunpack.c.l.b16 %v483
    %v1479 = vunpack.c.l.b16 %v484
    %v1480 = vunpack.c.l.b16 %v485
    %v1481 = vunpack.c.l.b16 %v486
    %v1482 = vunpack.c.l.b16 %v487
    %v1483 = vunpack.c.l.b16 %v488
    %v1484 = vunpack.c.l.b16 %v489
    %v1485 = vunpack.c.l.b16 %v490
    %v1486 = vunpack.c.l.b16 %v491
    %v1487 = vunpack.c.l.b16 %v492
    %v1488 = vunpack.c.l.b16 %v493
    %v1489 = vunpack.c.l.b16 %v494
    %v1490 = vunpack.c.l.b16 %v495
    %v1491 = vunpack.c.l.b16 %v496
    %v1492 = vunpack.c.l.b16 %v497
    %v1493 = vunpack.c.l.b16 %v498
    %v1494 = vunpack.c.l.b16 %v499
    %v1495 = vunpack.c.l.b16 %v500
    %v1496 = vunpack.c.l.b16 %v501
    %v1497 = vunpack.c.l.b16 %v502
    %v1498 = vunpack.c.l.b16 %v503
    %v1499 = vunpack.c.l.b16 %v504
    %v1500 = vunpack.c.l.b16 %v505
    %v1501 = vunpack.c.l.b16 %v506
    %v1502 = vunpack.c.l.b16 %v507
    %v1503 = vunpack.c.l.b16 %v508
    %v1504 = vunpack.c.l.b16 %v509
    %v1505 = vunpack.c.l.b16 %v510
    %v1506 = vunpack.c.l.b16 %v511
    %v1507 = vunpack.c.l.b16 %v512
    %v1508 = vunpack.c.l.b16 %v513
    %v1509 = vunpack.c.l.b16 %v514
    %v1510 = vunpack.c.l.b16 %v515
    %v1511 = vunpack.c.l.b16 %v516
    %v1512 = vunpack.c.l.b16 %v517
    %v1513 = vunpack.c.l.b16 %v518
    %v1514 = vunpack.c.l.b16 %v519
    %v1515 = vunpack.c.l.b16 %v520
    %v1516 = vunpack.c.l.b16 %v521
    %v1517 = vunpack.c.l.b16 %v522
    %v1518 = vunpack.c.l.b16 %v523
    %v1519 = vunpack.c.l.b16 %v524
    %v1520 = vunpack.c.l.b16 %v525
    %v1521 = vunpack.c.l.b16 %v526
    %v1522 = vunpack.c.l.b16 %v527
    %v1523 = vunpack.c.l.b16 %v528
    %v1524 = vunpack.c.l.b16 %v529
    %v1525 = vunpack.c.l.b16 %v530
    %v1526 = vunpack.c.l.b16 %v531
    %v1527 = vunpack.c.l.b16 %v532
    %v1528 = vunpack.c.l.b16 %v533
    %v1529 = vunpack.c.l.b16 %v534
    %v1530 = vunpack.c.l.b16 %v535
    %v1531 = vunpack.c.l.b16 %v536
    %v1532 = vunpack.c.l.b16 %v537
    %v1533 = vunpack.c.l.b16 %v538
    %v1534 = vunpack.c.l.b16 %v539
    %v1535 = vunpack.c.l.b16 %v540
    %v1536 = vunpack.c.l.b16 %v541
    %v1537 = vunpack.c.l.b16 %v542
    %v1538 = vunpack.c.l.b16 %v543
    %v1539 = vunpack.c.l.b16 %v544
    %v1540 = vunpack.c.l.b16 %v545
    %v1541 = vunpack.c.l.b16 %v546
    %v1542 = vunpack.c.l.b16 %v547
    %v1543 = vunpack.c.l.b16 %v548
    %v1544 = vunpack.c.l.b16 %v549
    %v1545 = vunpack.c.l.b16 %v550
    %v1546 = vunpack.c.l.b16 %v551
    %v1547 = vunpack.c.l.b16 %v552
    %v1548 = vunpack.c.l.b16 %v553
    %v1549 = vunpack.c.l.b16 %v554
    %v1550 = vunpack.c.l.b16 %v555
    %v1551 = vunpack.c.l.b16 %v556
    %v1552 = vunpack.c.l.b16 %v557
    %v1553 = vunpack.c.l.b16 %v558
    %v1554 = vunpack.c.l.b16 %v559
    %v1555 = vunpack.c.l.b16 %v560
    %v1556 = vunpack.c.l.b16 %v561
    %v1557 = vunpack.c.l.b16 %v562
    %v1558 = vunpack.c.l.b16 %v563
    %v1559 = vunpack.c.l.b16 %v564
    %v1560 = vunpack.c.l.b16 %v565
    %v1561 = vunpack.c.l.b16 %v566
    %v1562 = vunpack.c.l.b16 %v567
    %v1563 = vunpack.c.l.b16 %v568
    %v1564 = vunpack.c.l.b16 %v569
    %v1565 = vunpack.c.l.b16 %v570
    %v1566 = vunpack.c.l.b16 %v571
    %v1567 = vunpack.c.l.b16 %v572
    %v1568 = vunpack.c.l.b16 %v573
    %v1569 = vunpack.c.l.b16 %v574
    %v1570 = vunpack.c.l.b16 %v575
    %v1571 = vunpack.c.l.b16 %v576
    %v1572 = vunpack.c.l.b16 %v577
    %v1573 = vunpack.c.l.b16 %v578
    %v1574 = vunpack.c.l.b16 %v579
    %v1575 = vunpack.c.l.b16 %v580
    %v1576 = vunpack.c.l.b16 %v581
    %v1577 = vunpack.c.l.b16 %v582
    %v1578 = vunpack.c.l.b16 %v583
    %v1579 = vunpack.c.l.b16 %v584
    %v1580 = vunpack.c.l.b16 %v585
    %v1581 = vunpack.c.l.b16 %v586
    %v1582 = vunpack.c.l.b16 %v587
    %v1583 = vunpack.c.l.b16 %v588
    %v1584 = vunpack.c.l.b16 %v589
    %v1585 = vunpack.c.l.b16 %v590
    %v1586 = vunpack.c.l.b16 %v591
    %v1587 = vunpack.c.l.b16 %v592
    %v1588 = vunpack.c.l.b16 %v593
    %v1589 = vunpack.c.l.b16 %v594
    %v1590 = vunpack.c.l.b16 %v595
    %v1591 = vunpack.c.l.b16 %v596
    %v1592 = vunpack.c.l.b16 %v597
    %v1593 = vunpack.c.l.b16 %v598
    %v1594 = vunpack.c.l.b16 %v599
    %v1595 = vunpack.c.l.b16 %v600
    %v1596 = vunpack.c.l.b16 %v601
    %v1597 = vunpack.c.l.b16 %v602
    %v1598 = vunpack.c.l.b16 %v603
    %v1599 = vunpack.c.l.b16 %v604
    %v1600 = vunpack.c.l.b16 %v605
    %v1601 = vunpack.c.l.b16 %v606
    %v1602 = vunpack.c.l.b16 %v607
    %v1603 = vunpack.c.l.b16 %v608
    %v1604 = vunpack.c.l.b16 %v609
    %v1605 = vunpack.c.l.b16 %v610
    %v1606 = vunpack.c.l.b16 %v611
    %v1607 = vunpack.c.l.b16 %v612
    %v1608 = vunpack.c.l.b16 %v613
    %v1609 = vunpack.c.l.b16 %v614
    %v1610 = vunpack.c.l.b16 %v615
    %v1611 = vunpack.c.l.b16 %v616
    %v1612 = vunpack.c.l.b16 %v617
    %v1613 = vunpack.c.l.b16 %v618
    %v1614 = vunpack.c.l.b16 %v619
    %v1615 = vunpack.c.l.b16 %v620
    %v1616 = vunpack.c.l.b16 %v621
    %v1617 = vunpack.c.l.b16 %v622
    %v1618 = vunpack.c.l.b16 %v623
    %v1619 = vunpack.c.l.b16 %v624
    %v1620 = vunpack.c.l.b16 %v625
    %v1621 = vunpack.c.l.b16 %v626
    %v1622 = vunpack.c.l.b16 %v627
    %v1623 = vunpack.c.l.b16 %v628
    %v1624 = vunpack.c.l.b16 %v629
    %v1625 = vunpack.c.l.b16 %v630
    %v1626 = vunpack.c.l.b16 %v631
    %v1627 = vunpack.c.l.b16 %v632
    %v1628 = vunpack.c.l.b16 %v633
    %v1629 = vunpack.c.l.b16 %v634
    %v1630 = vunpack.c.l.b16 %v635
    %v1631 = vunpack.c.l.b16 %v636
    %v1632 = vunpack.c.l.b16 %v637
    %v1633 = vunpack.c.l.b16 %v638
    %v1634 = vunpack.c.l.b16 %v639
    %v1635 = vunpack.c.l.b16 %v640
    %v1636 = vunpack.c.l.b16 %v641
    %v1637 = vunpack.c.l.b16 %v642
    %v1638 = vunpack.c.l.b16 %v643
    %v1639 = vunpack.c.l.b16 %v644
    %v1640 = vunpack.c.l.b16 %v645
    %v1641 = vunpack.c.l.b16 %v646
    %v1642 = vunpack.c.l.b16 %v647
    %v1643 = vunpack.c.l.b16 %v648
    %v1644 = vunpack.c.l.b16 %v649
    %v1645 = vunpack.c.l.b16 %v650
    %v1646 = vunpack.c.l.b16 %v651
    %v1647 = vunpack.c.l.b16 %v652
    %v1648 = vunpack.c.l.b16 %v653
    %v1649 = vunpack.c.l.b16 %v654
    %v1650 = vunpack.c.l.b16 %v655
    %v1651 = vunpack.c.l.b16 %v656
    %v1652 = vunpack.c.l.b16 %v657
    %v1653 = vunpack.c.l.b16 %v658
    %v1654 = vunpack.c.l.b16 %v659
    %v1655 = vunpack.c.l.b16 %v660
    %v1656 = vunpack.c.l.b16 %v661
    %v1657 = vunpack.c.l.b16 %v662
    %v1658 = vunpack.c.l.b16 %v663
    %v1659 = vunpack.c.l.b16 %v664
    %v1660 = vunpack.c.l.b16 %v665
    %v1661 = vunpack.c.l.b16 %v666
    %v1662 = vunpack.c.l.b16 %v667
    %v1663 = vunpack.c.l.b16 %v668
    %v1664 = vunpack.c.l.b16 %v669
    %v1665 = vunpack.c.l.b16 %v670
    %v1666 = vunpack.c.l.b16 %v671
    %v1667 = vunpack.c.l.b16 %v672
    %v1668 = vunpack.c.l.b16 %v673
    %v1669 = vunpack.c.l.b16 %v674
    %v1670 = vunpack.c.l.b16 %v675
    %v1671 = vunpack.c.l.b16 %v676
    %v1672 = vunpack.c.l.b16 %v677
    %v1673 = vunpack.c.l.b16 %v678
    %v1674 = vunpack.c.l.b16 %v679
    %v1675 = vunpack.c.l.b16 %v680
    %v1676 = vunpack.c.l.b16 %v681
    %v1677 = vunpack.c.l.b16 %v682
    %v1678 = vunpack.c.l.b16 %v683
    %v1679 = vunpack.c.l.b16 %v684
    %v1680 = vunpack.c.l.b16 %v685
    %v1681 = vunpack.c.l.b16 %v686
    %v1682 = vpack.c.b16 %v1299, %v1298
    %v1683 = vpack.c.b16 %v1301, %v1300
    %v1684 = vpack.c.b16 %v1303, %v1302
    %v1685 = vpack.c.b16 %v1305, %v1304
    %v1686 = vpack.c.b16 %v1307, %v1306
    %v1687 = vpack.c.b16 %v1309, %v1308
    %v1688 = vpack.c.b16 %v1311, %v1310
    %v1689 = vpack.c.b16 %v1313, %v1312
    %v1690 = vpack.c.b16 %v1315, %v1314
    %v1691 = vpack.c.b16 %v1317, %v1316
    %v1692 = vpack.c.b16 %v1319, %v1318
    %v1693 = vpack.c.b16 %v1321, %v1320
    %v1694 = vpack.c.b16 %v1323, %v1322
    %v1695 = vpack.c.b16 %v1325, %v1324
    %v1696 = vpack.c.b16 %v1327, %v1326
    %v1697 = vpack.c.b16 %v1329, %v1328
    %v1698 = vpack.c.b16 %v1331, %v1330
    %v1699 = vpack.c.b16 %v1333, %v1332
    %v1700 = vpack.c.b16 %v1335, %v1334
    %v1701 = vpack.c.b16 %v1337, %v1336
    %v1702 = vpack.c.b16 %v1339, %v1338
    %v1703 = vpack.c.b16 %v1341, %v1340
    %v1704 = vpack.c.b16 %v1343, %v1342
    %v1705 = vpack.c.b16 %v1345, %v1344
    %v1706 = vpack.c.b16 %v1347, %v1346
    %v1707 = vpack.c.b16 %v1349, %v1348
    %v1708 = vpack.c.b16 %v1351, %v1350
    %v1709 = vpack.c.b16 %v1353, %v1352
    %v1710 = vpack.c.b16 %v1355, %v1354
    %v1711 = vpack.c.b16 %v1357, %v1356
    %v1712 = vpack.c.b16 %v1359, %v1358
    %v1713 = vpack.c.b16 %v1361, %v1360
    %v1714 = vpack.c.b16 %v1363, %v1362
    %v1715 = vpack.c.b16 %v1365, %v1364
    %v1716 = vpack.c.b16 %v1367, %v1366
    %v1717 = vpack.c.b16 %v1369, %v1368
    %v1718 = vpack.c.b16 %v1371, %v1370
    %v1719 = vpack.c.b16 %v1373, %v1372
    %v1720 = vpack.c.b16 %v1375, %v1374
    %v1721 = vpack.c.b16 %v1377, %v1376
    %v1722 = vpack.c.b16 %v1379, %v1378
    %v1723 = vpack.c.b16 %v1381, %v1380
    %v1724 = vpack.c.b16 %v1383, %v1382
    %v1725 = vpack.c.b16 %v1385, %v1384
    %v1726 = vpack.c.b16 %v1387, %v1386
    %v1727 = vpack.c.b16 %v1389, %v1388
    %v1728 = vpack.c.b16 %v1391, %v1390
    %v1729 = vpack.c.b16 %v1393, %v1392
    %v1730 = vpack.c.b16 %v1395, %v1394
    %v1731 = vpack.c.b16 %v1397, %v1396
    %v1732 = vpack.c.b16 %v1399, %v1398
    %v1733 = vpack.c.b16 %v1401, %v1400
    %v1734 = vpack.c.b16 %v1403, %v1402
    %v1735 = vpack.c.b16 %v1405, %v1404
    %v1736 = vpack.c.b16 %v1407, %v1406
    %v1737 = vpack.c.b16 %v1409, %v1408
    %v1738 = vpack.c.b16 %v1411, %v1410
    %v1739 = vpack.c.b16 %v1413, %v1412
    %v1740 = vpack.c.b16 %v1415, %v1414
    %v1741 = vpack.c.b16 %v1417, %v1416
    %v1742 = vpack.c.b16 %v1419, %v1418
    %v1743 = vpack.c.b16 %v1421, %v1420
    %v1744 = vpack.c.b16 %v1423, %v1422
    %v1745 = vpack.c.b16 %v1425, %v1424
    %v1746 = vpack.c.b16 %v1427, %v1426
    %v1747 = vpack.c.b16 %v1429, %v1428
    %v1748 = vpack.c.b16 %v1431, %v1430
    %v1749 = vpack.c.b16 %v1433, %v1432
    %v1750 = vpack.c.b16 %v1435, %v1434
    %v1751 = vpack.c.b16 %v1437, %v1436
    %v1752 = vpack.c.b16 %v1439, %v1438
    %v1753 = vpack.c.b16 %v1441, %v1440
    %v1754 = vpack.c.b16 %v1443, %v1442
    %v1755 = vpack.c.b16 %v1445, %v1444
    %v1756 = vpack.c.b16 %v1447, %v1446
    %v1757 = vpack.c.b16 %v1449, %v1448
    %v1758 = vpack.c.b16 %v1451, %v1450
    %v1759 = vpack.c.b16 %v1453, %v1452
    %v1760 = vpack.c.b16 %v1455, %v1454
    %v1761 = vpack.c.b16 %v1457, %v1456
    %v1762 = vpack.c.b16 %v1459, %v1458
    %v1763 = vpack.c.b16 %v1461, %v1460
    %v1764 = vpack.c.b16 %v1463, %v1462
    %v1765 = vpack.c.b16 %v1465, %v1464
    %v1766 = vpack.c.b16 %v1467, %v1466
    %v1767 = vpack.c.b16 %v1469, %v1468
    %v1768 = vpack.c.b16 %v1471, %v1470
    %v1769 = vpack.c.b16 %v1473, %v1472
    %v1770 = vpack.c.b16 %v1475, %v1474
    %v1771 = vpack.c.b16 %v1477, %v1476
    %v1772 = vpack.c.b16 %v1479, %v1478
    %v1773 = vpack.c.b16 %v1481, %v1480
    %v1774 = vpack.c.b16 %v1483, %v1482
    %v1775 = vpack.c.b16 %v1485, %v1484
    %v1776 = vpack.c.b16 %v1487, %v1486
    %v1777 = vpack.c.b16 %v1489, %v1488
    %v1778 = vpack.c.b16 %v1491, %v1490
    %v1779 = vpack.c.b16 %v1493, %v1492
    %v1780 = vpack.c.b16 %v1495, %v1494
    %v1781 = vpack.c.b16 %v1497, %v1496
    %v1782 = vpack.c.b16 %v1499, %v1498
    %v1783 = vpack.c.b16 %v1501, %v1500
    %v1784 = vpack.c.b16 %v1503, %v1502
    %v1785 = vpack.c.b16 %v1505, %v1504
    %v1786 = vpack.c.b16 %v1507, %v1506
    %v1787 = vpack.c.b16 %v1509, %v1508
    %v1788 = vpack.c.b16 %v1511, %v1510
    %v1789 = vpack.c.b16 %v1513, %v1512
    %v1790 = vpack.c.b16 %v1515, %v1514
    %v1791 = vpack.c.b16 %v1517, %v1516
    %v1792 = vpack.c.b16 %v1519, %v1518
    %v1793 = vpack.c.b16 %v1521, %v1520
    %v1794 = vpack.c.b16 %v1523, %v1522
    %v1795 = vpack.c.b16 %v1525, %v1524
    %v1796 = vpack.c.b16 %v1527, %v1526
    %v1797 = vpack.c.b16 %v1529, %v1528
    %v1798 = vpack.c.b16 %v1531, %v1530
    %v1799 = vpack.c.b16 %v1533, %v1532
    %v1800 = vpack.c.b16 %v1535, %v1534
    %v1801 = vpack.c.b16 %v1537, %v1536
    %v1802 = vpack.c.b16 %v1539, %v1538
    %v1803 = vpack.c.b16 %v1541, %v1540
    %v1804 = vpack.c.b16 %v1543, %v1542
    %v1805 = vpack.c.b16 %v1545, %v1544
    %v1806 = vpack.c.b16 %v1547, %v1546
    %v1807 = vpack.c.b16 %v1549, %v1548
    %v1808 = vpack.c.b16 %v1551, %v1550
    %v1809 = vpack.c.b16 %v1553, %v1552
    %v1810 = vpack.c.b16 %v1555, %v1554
    %v1811 = vpack.c.b16 %v1557, %v1556
    %v1812 = vpack.c.b16 %v1559, %v1558
    %v1813 = vpack.c.b16 %v1561, %v1560
    %v1814 = vpack.c.b16 %v1563, %v1562
    %v1815 = vpack.c.b16 %v1565, %v1564
    %v1816 = vpack.c.b16 %v1567, %v1566
    %v1817 = vpack.c.b16 %v1569, %v1568
    %v1818 = vpack.c.b16 %v1571, %v1570
    %v1819 = vpack.c.b16 %v1573, %v1572
    %v1820 = vpack.c.b16 %v1575, %v1574
    %v1821 = vpack.c.b16 %v1577, %v1576
    %v1822 = vpack.c.b16 %v1579, %v1578
    %v1823 = vpack.c.b16 %v1581, %v1580
    %v1824 = vpack.c.b16 %v1583, %v1582
    %v1825 = vpack.c.b16 %v1585, %v1584
    %v1826 = vpack.c.b16 %v1587, %v1586
    %v1827 = vpack.c.b16 %v1589, %v1588
    %v1828 = vpack.c.b16 %v1591, %v1590
    %v1829 = vpack.c.b16 %v1593, %v1592
    %v1830 = vpack.c.b16 %v1595, %v1594
    %v1831 = vpack.c.b16 %v1597, %v1596
    %v1832 = vpack.c.b16 %v1599, %v1598
    %v1833 = vpack.c.b16 %v1601, %v1600
    %v1834 = vpack.c.b16 %v1603, %v1602
    %v1835 = vpack.c.b16 %v1605, %v1604
    %v1836 = vpack.c.b16 %v1607, %v1606
    %v1837 = vpack.c.b16 %v1609, %v1608
    %v1838 = vpack.c.b16 %v1611, %v1610
    %v1839 = vpack.c.b16 %v1613, %v1612
    %v1840 = vpack.c.b16 %v1615, %v1614
    %v1841 = vpack.c.b16 %v1617, %v1616
    %v1842 = vpack.c.b16 %v1619, %v1618
    %v1843 = vpack.c.b16 %v1621, %v1620
    %v1844 = vpack.c.b16 %v1623, %v1622
    %v1845 = vpack.c.b16 %v1625, %v1624
    %v1846 = vpack.c.b16 %v1627, %v1626
    %v1847 = vpack.c.b16 %v1629, %v1628
    %v1848 = vpack.c.b16 %v1631, %v1630
    %v1849 = vpack.c.b16 %v1633, %v1632
    %v1850 = vpack.c.b16 %v1635, %v1634
    %v1851 = vpack.c.b16 %v1637, %v1636
    %v1852 = vpack.c.b16 %v1639, %v1638
    %v1853 = vpack.c.b16 %v1641, %v1640
    %v1854 = vpack.c.b16 %v1643, %v1642
    %v1855 = vpack.c.b16 %v1645, %v1644
    %v1856 = vpack.c.b16 %v1647, %v1646
    %v1857 = vpack.c.b16 %v1649, %v1648
    %v1858 = vpack.c.b16 %v1651, %v1650
    %v1859 = vpack.c.b16 %v1653, %v1652
    %v1860 = vpack.c.b16 %v1655, %v1654
    %v1861 = vpack.c.b16 %v1657, %v1656
    %v1862 = vpack.c.b16 %v1659, %v1658
    %v1863 = vpack.c.b16 %v1661, %v1660
    %v1864 = vpack.c.b16 %v1663, %v1662
    %v1865 = vpack.c.b16 %v1665, %v1664
    %v1866 = vpack.c.b16 %v1667, %v1666
    %v1867 = vpack.c.b16 %v1669, %v1668
    %v1868 = vpack.c.b16 %v1671, %v1670
    %v1869 = vpack.c.b16 %v1673, %v1672
    %v1870 = vpack.c.b16 %v1675, %v1674
    %v1871 = vpack.c.b16 %v1677, %v1676
    %v1872 = vpack.c.b16 %v1679, %v1678
    %v1873 = vpack.c.b16 %v1681, %v1680
    %2066 = vmatprep.subr.bf16.mxu0 0
    %2067 = vmatpush1.bf16.msra.mxu0 %v1682
    %2068 = vmatprep.subr.bf16.mxu0 0
    %2069 = vmatpush1.bf16.msra.mxu0 %v1683
    %2070 = vmatprep.subr.bf16.mxu0 0
    %2071 = vmatpush1.bf16.msra.mxu0 %v1684
    %2072 = vmatprep.subr.bf16.mxu0 0
    %2073 = vmatpush1.bf16.msra.mxu0 %v1685
    %2074 = vmatprep.subr.bf16.mxu0 0
    %2075 = vmatpush1.bf16.msra.mxu0 %v1686
    %2076 = vmatprep.subr.bf16.mxu0 0
    %2077 = vmatpush1.bf16.msra.mxu0 %v1687
    %2078 = vmatprep.subr.bf16.mxu0 0
    %2079 = vmatpush1.bf16.msra.mxu0 %v1688
    %2080 = vmatprep.subr.bf16.mxu0 0
    %2081 = vmatpush1.bf16.msra.mxu0 %v1689
    %2082 = vmatprep.subr.bf16.mxu0 0
    %2083 = vmatpush1.bf16.msra.mxu0 %v1690
    %2084 = vmatprep.subr.bf16.mxu0 0
    %2085 = vmatpush1.bf16.msra.mxu0 %v1691
    %2086 = vmatprep.subr.bf16.mxu0 0
    %2087 = vmatpush1.bf16.msra.mxu0 %v1692
    %2088 = vmatprep.subr.bf16.mxu0 0
    %2089 = vmatpush1.bf16.msra.mxu0 %v1693
    %2090 = vmatprep.subr.bf16.mxu0 0
    %2091 = vmatpush1.bf16.msra.mxu0 %v1694
    %2092 = vmatprep.subr.bf16.mxu0 0
    %2093 = vmatpush1.bf16.msra.mxu0 %v1695
    %2094 = vmatprep.subr.bf16.mxu0 0
    %2095 = vmatpush1.bf16.msra.mxu0 %v1696
    %2096 = vmatprep.subr.bf16.mxu0 0
    %2097 = vmatpush1.bf16.msra.mxu0 %v1697
    %2098 = vmatprep.mubr.bf16.mxu0 %v885
    %2099 = vmatmul.mubr.bf16.gmra.mrb[0].mxu0 %v884
    %v2100 = vpop.f32.mrb[0].mxu0
    %v2101 = vadd.f32 %v912, %v2100
    %v2102 = vpop.f32.mrb[0].mxu0
    %v2103 = vpop.f32.mrb[0].mxu0
    %v2104 = vadd.f32 %v912, %v2103
    %v2105 = vpop.f32.mrb[0].mxu0
    %2106 = vdwg.mxu0
    %2107 = vmatprep.subr.bf16.mxu0 0
    %2108 = vmatpush1.bf16.msra.mxu0 %v1698
    %2109 = vmatprep.subr.bf16.mxu0 0
    %2110 = vmatpush1.bf16.msra.mxu0 %v1699
    %2111 = vmatprep.subr.bf16.mxu0 0
    %2112 = vmatpush1.bf16.msra.mxu0 %v1700
    %2113 = vmatprep.subr.bf16.mxu0 0
    %2114 = vmatpush1.bf16.msra.mxu0 %v1701
    %2115 = vmatprep.subr.bf16.mxu0 0
    %2116 = vmatpush1.bf16.msra.mxu0 %v1702
    %2117 = vmatprep.subr.bf16.mxu0 0
    %2118 = vmatpush1.bf16.msra.mxu0 %v1703
    %2119 = vmatprep.subr.bf16.mxu0 0
    %2120 = vmatpush1.bf16.msra.mxu0 %v1704
    %2121 = vmatprep.subr.bf16.mxu0 0
    %2122 = vmatpush1.bf16.msra.mxu0 %v1705
    %2123 = vmatprep.subr.bf16.mxu0 0
    %2124 = vmatpush1.bf16.msra.mxu0 %v1706
    %2125 = vmatprep.subr.bf16.mxu0 0
    %2126 = vmatpush1.bf16.msra.mxu0 %v1707
    %2127 = vmatprep.subr.bf16.mxu0 0
    %2128 = vmatpush1.bf16.msra.mxu0 %v1708
    %2129 = vmatprep.subr.bf16.mxu0 0
    %2130 = vmatpush1.bf16.msra.mxu0 %v1709
    %2131 = vmatprep.subr.bf16.mxu0 0
    %2132 = vmatpush1.bf16.msra.mxu0 %v1710
    %2133 = vmatprep.subr.bf16.mxu0 0
    %2134 = vmatpush1.bf16.msra.mxu0 %v1711
    %2135 = vmatprep.subr.bf16.mxu0 0
    %2136 = vmatpush1.bf16.msra.mxu0 %v1712
    %2137 = vmatprep.subr.bf16.mxu0 0
    %2138 = vmatpush1.bf16.msra.mxu0 %v1713
    %2139 = vmatprep.mubr.bf16.mxu0 %v887
    %2140 = vmatmul.mubr.bf16.gmra.mrb[0].mxu0 %v886
    %v2141 = vpop.f32.mrb[0].mxu0
    %v2142 = vadd.f32 %v2101, %v2141
    %v2143 = vpop.f32.mrb[0].mxu0
    %v2144 = vpop.f32.mrb[0].mxu0
    %v2145 = vadd.f32 %v2104, %v2144
    %v2146 = vpop.f32.mrb[0].mxu0
    %2147 = vdwg.mxu0
    %2148 = vmatprep.subr.bf16.mxu0 0
    %2149 = vmatpush1.bf16.msra.mxu0 %v1714
    %2150 = vmatprep.subr.bf16.mxu0 0
    %2151 = vmatpush1.bf16.msra.mxu0 %v1715
    %2152 = vmatprep.subr.bf16.mxu0 0
    %2153 = vmatpush1.bf16.msra.mxu0 %v1716
    %2154 = vmatprep.subr.bf16.mxu0 0
    %2155 = vmatpush1.bf16.msra.mxu0 %v1717
    %2156 = vmatprep.subr.bf16.mxu0 0
    %2157 = vmatpush1.bf16.msra.mxu0 %v1718
    %2158 = vmatprep.subr.bf16.mxu0 0
    %2159 = vmatpush1.bf16.msra.mxu0 %v1719
    %2160 = vmatprep.subr.bf16.mxu0 0
    %2161 = vmatpush1.bf16.msra.mxu0 %v1720
    %2162 = vmatprep.subr.bf16.mxu0 0
    %2163 = vmatpush1.bf16.msra.mxu0 %v1721
    %2164 = vmatprep.subr.bf16.mxu0 0
    %2165 = vmatpush1.bf16.msra.mxu0 %v1722
    %2166 = vmatprep.subr.bf16.mxu0 0
    %2167 = vmatpush1.bf16.msra.mxu0 %v1723
    %2168 = vmatprep.subr.bf16.mxu0 0
    %2169 = vmatpush1.bf16.msra.mxu0 %v1724
    %2170 = vmatprep.subr.bf16.mxu0 0
    %2171 = vmatpush1.bf16.msra.mxu0 %v1725
    %2172 = vmatprep.subr.bf16.mxu0 0
    %2173 = vmatpush1.bf16.msra.mxu0 %v1726
    %2174 = vmatprep.subr.bf16.mxu0 0
    %2175 = vmatpush1.bf16.msra.mxu0 %v1727
    %2176 = vmatprep.subr.bf16.mxu0 0
    %2177 = vmatpush1.bf16.msra.mxu0 %v1728
    %2178 = vmatprep.subr.bf16.mxu0 0
    %2179 = vmatpush1.bf16.msra.mxu0 %v1729
    %2180 = vmatprep.mubr.bf16.mxu0 %v889
    %2181 = vmatmul.mubr.bf16.gmra.mrb[0].mxu0 %v888
    %v2182 = vpop.f32.mrb[0].mxu0
    %v2183 = vadd.f32 %v2142, %v2182
    %v2184 = vpop.f32.mrb[0].mxu0
    %v2185 = vpop.f32.mrb[0].mxu0
    %v2186 = vadd.f32 %v2145, %v2185
    %v2187 = vpop.f32.mrb[0].mxu0
    %2188 = vdwg.mxu0
    %2189 = vmatprep.subr.bf16.mxu0 0
    %2190 = vmatpush1.bf16.msra.mxu0 %v1730
    %2191 = vmatprep.subr.bf16.mxu0 0
    %2192 = vmatpush1.bf16.msra.mxu0 %v1731
    %2193 = vmatprep.subr.bf16.mxu0 0
    %2194 = vmatpush1.bf16.msra.mxu0 %v1732
    %2195 = vmatprep.subr.bf16.mxu0 0
    %2196 = vmatpush1.bf16.msra.mxu0 %v1733
    %2197 = vmatprep.subr.bf16.mxu0 0
    %2198 = vmatpush1.bf16.msra.mxu0 %v1734
    %2199 = vmatprep.subr.bf16.mxu0 0
    %2200 = vmatpush1.bf16.msra.mxu0 %v1735
    %2201 = vmatprep.subr.bf16.mxu0 0
    %2202 = vmatpush1.bf16.msra.mxu0 %v1736
    %2203 = vmatprep.subr.bf16.mxu0 0
    %2204 = vmatpush1.bf16.msra.mxu0 %v1737
    %2205 = vmatprep.subr.bf16.mxu0 0
    %2206 = vmatpush1.bf16.msra.mxu0 %v1738
    %2207 = vmatprep.subr.bf16.mxu0 0
    %2208 = vmatpush1.bf16.msra.mxu0 %v1739
    %2209 = vmatprep.subr.bf16.mxu0 0
    %2210 = vmatpush1.bf16.msra.mxu0 %v1740
    %2211 = vmatprep.subr.bf16.mxu0 0
    %2212 = vmatpush1.bf16.msra.mxu0 %v1741
    %2213 = vmatprep.subr.bf16.mxu0 0
    %2214 = vmatpush1.bf16.msra.mxu0 %v1742
    %2215 = vmatprep.subr.bf16.mxu0 0
    %2216 = vmatpush1.bf16.msra.mxu0 %v1743
    %2217 = vmatprep.subr.bf16.mxu0 0
    %2218 = vmatpush1.bf16.msra.mxu0 %v1744
    %2219 = vmatprep.subr.bf16.mxu0 0
    %2220 = vmatpush1.bf16.msra.mxu0 %v1745
    %2221 = vmatprep.mubr.bf16.mxu0 %v891
    %2222 = vmatmul.mubr.bf16.gmra.mrb[0].mxu0 %v890
    %v2223 = vpop.f32.mrb[0].mxu0
    %v2224 = vadd.f32 %v2183, %v2223
    %v2225 = vpop.f32.mrb[0].mxu0
    %v2226 = vpop.f32.mrb[0].mxu0
    %v2227 = vadd.f32 %v2186, %v2226
    %v2228 = vpop.f32.mrb[0].mxu0
    %2229 = vdwg.mxu0
    %2230 = vmatprep.subr.bf16.mxu0 0
    %2231 = vmatpush1.bf16.msra.mxu0 %v1746
    %2232 = vmatprep.subr.bf16.mxu0 0
    %2233 = vmatpush1.bf16.msra.mxu0 %v1747
    %2234 = vmatprep.subr.bf16.mxu0 0
    %2235 = vmatpush1.bf16.msra.mxu0 %v1748
    %2236 = vmatprep.subr.bf16.mxu0 0
    %2237 = vmatpush1.bf16.msra.mxu0 %v1749
    %2238 = vmatprep.subr.bf16.mxu0 0
    %2239 = vmatpush1.bf16.msra.mxu0 %v1750
    %2240 = vmatprep.subr.bf16.mxu0 0
    %2241 = vmatpush1.bf16.msra.mxu0 %v1751
    %2242 = vmatprep.subr.bf16.mxu0 0
    %2243 = vmatpush1.bf16.msra.mxu0 %v1752
    %2244 = vmatprep.subr.bf16.mxu0 0
    %2245 = vmatpush1.bf16.msra.mxu0 %v1753
    %2246 = vmatprep.subr.bf16.mxu0 0
    %2247 = vmatpush1.bf16.msra.mxu0 %v1754
    %2248 = vmatprep.subr.bf16.mxu0 0
    %2249 = vmatpush1.bf16.msra.mxu0 %v1755
    %2250 = vmatprep.subr.bf16.mxu0 0
    %2251 = vmatpush1.bf16.msra.mxu0 %v1756
    %2252 = vmatprep.subr.bf16.mxu0 0
    %2253 = vmatpush1.bf16.msra.mxu0 %v1757
    %2254 = vmatprep.subr.bf16.mxu0 0
    %2255 = vmatpush1.bf16.msra.mxu0 %v1758
    %2256 = vmatprep.subr.bf16.mxu0 0
    %2257 = vmatpush1.bf16.msra.mxu0 %v1759
    %2258 = vmatprep.subr.bf16.mxu0 0
    %2259 = vmatpush1.bf16.msra.mxu0 %v1760
    %2260 = vmatprep.subr.bf16.mxu0 0
    %2261 = vmatpush1.bf16.msra.mxu0 %v1761
    %2262 = vmatprep.mubr.bf16.mxu0 %v893
    %2263 = vmatmul.mubr.bf16.gmra.mrb[0].mxu0 %v892
    %v2264 = vpop.f32.mrb[0].mxu0
    %v2265 = vadd.f32 %v2224, %v2264
    %v2266 = vpop.f32.mrb[0].mxu0
    %v2267 = vpop.f32.mrb[0].mxu0
    %v2268 = vadd.f32 %v2227, %v2267
    %v2269 = vpop.f32.mrb[0].mxu0
    %2270 = vdwg.mxu0
    %2271 = vmatprep.subr.bf16.mxu0 0
    %2272 = vmatpush1.bf16.msra.mxu0 %v1762
    %2273 = vmatprep.subr.bf16.mxu0 0
    %2274 = vmatpush1.bf16.msra.mxu0 %v1763
    %2275 = vmatprep.subr.bf16.mxu0 0
    %2276 = vmatpush1.bf16.msra.mxu0 %v1764
    %2277 = vmatprep.subr.bf16.mxu0 0
    %2278 = vmatpush1.bf16.msra.mxu0 %v1765
    %2279 = vmatprep.subr.bf16.mxu0 0
    %2280 = vmatpush1.bf16.msra.mxu0 %v1766
    %2281 = vmatprep.subr.bf16.mxu0 0
    %2282 = vmatpush1.bf16.msra.mxu0 %v1767
    %2283 = vmatprep.subr.bf16.mxu0 0
    %2284 = vmatpush1.bf16.msra.mxu0 %v1768
    %2285 = vmatprep.subr.bf16.mxu0 0
    %2286 = vmatpush1.bf16.msra.mxu0 %v1769
    %2287 = vmatprep.subr.bf16.mxu0 0
    %2288 = vmatpush1.bf16.msra.mxu0 %v1770
    %2289 = vmatprep.subr.bf16.mxu0 0
    %2290 = vmatpush1.bf16.msra.mxu0 %v1771
    %2291 = vmatprep.subr.bf16.mxu0 0
    %2292 = vmatpush1.bf16.msra.mxu0 %v1772
    %2293 = vmatprep.subr.bf16.mxu0 0
    %2294 = vmatpush1.bf16.msra.mxu0 %v1773
    %2295 = vmatprep.subr.bf16.mxu0 0
    %2296 = vmatpush1.bf16.msra.mxu0 %v1774
    %2297 = vmatprep.subr.bf16.mxu0 0
    %2298 = vmatpush1.bf16.msra.mxu0 %v1775
    %2299 = vmatprep.subr.bf16.mxu0 0
    %2300 = vmatpush1.bf16.msra.mxu0 %v1776
    %2301 = vmatprep.subr.bf16.mxu0 0
    %2302 = vmatpush1.bf16.msra.mxu0 %v1777
    %2303 = vmatprep.mubr.bf16.mxu0 %v895
    %2304 = vmatmul.mubr.bf16.gmra.mrb[0].mxu0 %v894
    %v2305 = vpop.f32.mrb[0].mxu0
    %v2306 = vadd.f32 %v2265, %v2305
    %v2307 = vpop.f32.mrb[0].mxu0
    %v2308 = vpop.f32.mrb[0].mxu0
    %v2309 = vadd.f32 %v2268, %v2308
    %v2310 = vpop.f32.mrb[0].mxu0
    %2311 = vdwg.mxu0
    %2312 = vmatprep.subr.bf16.mxu0 0
    %2313 = vmatpush1.bf16.msra.mxu0 %v1778
    %2314 = vmatprep.subr.bf16.mxu0 0
    %2315 = vmatpush1.bf16.msra.mxu0 %v1779
    %2316 = vmatprep.subr.bf16.mxu0 0
    %2317 = vmatpush1.bf16.msra.mxu0 %v1780
    %2318 = vmatprep.subr.bf16.mxu0 0
    %2319 = vmatpush1.bf16.msra.mxu0 %v1781
    %2320 = vmatprep.subr.bf16.mxu0 0
    %2321 = vmatpush1.bf16.msra.mxu0 %v1782
    %2322 = vmatprep.subr.bf16.mxu0 0
    %2323 = vmatpush1.bf16.msra.mxu0 %v1783
    %2324 = vmatprep.subr.bf16.mxu0 0
    %2325 = vmatpush1.bf16.msra.mxu0 %v1784
    %2326 = vmatprep.subr.bf16.mxu0 0
    %2327 = vmatpush1.bf16.msra.mxu0 %v1785
    %2328 = vmatprep.subr.bf16.mxu0 0
    %2329 = vmatpush1.bf16.msra.mxu0 %v1786
    %2330 = vmatprep.subr.bf16.mxu0 0
    %2331 = vmatpush1.bf16.msra.mxu0 %v1787
    %2332 = vmatprep.subr.bf16.mxu0 0
    %2333 = vmatpush1.bf16.msra.mxu0 %v1788
    %2334 = vmatprep.subr.bf16.mxu0 0
    %2335 = vmatpush1.bf16.msra.mxu0 %v1789
    %2336 = vmatprep.subr.bf16.mxu0 0
    %2337 = vmatpush1.bf16.msra.mxu0 %v1790
    %2338 = vmatprep.subr.bf16.mxu0 0
    %2339 = vmatpush1.bf16.msra.mxu0 %v1791
    %2340 = vmatprep.subr.bf16.mxu0 0
    %2341 = vmatpush1.bf16.msra.mxu0 %v1792
    %2342 = vmatprep.subr.bf16.mxu0 0
    %2343 = vmatpush1.bf16.msra.mxu0 %v1793
    %2344 = vmatprep.mubr.bf16.mxu0 %v897
    %2345 = vmatmul.mubr.bf16.gmra.mrb[0].mxu0 %v896
    %v2346 = vpop.f32.mrb[0].mxu0
    %v2347 = vadd.f32 %v2306, %v2346
    %v2348 = vpop.f32.mrb[0].mxu0
    %v2349 = vpop.f32.mrb[0].mxu0
    %v2350 = vadd.f32 %v2309, %v2349
    %v2351 = vpop.f32.mrb[0].mxu0
    %2352 = vdwg.mxu0
    %2353 = vmatprep.subr.bf16.mxu0 0
    %2354 = vmatpush1.bf16.msra.mxu0 %v1794
    %2355 = vmatprep.subr.bf16.mxu0 0
    %2356 = vmatpush1.bf16.msra.mxu0 %v1795
    %2357 = vmatprep.subr.bf16.mxu0 0
    %2358 = vmatpush1.bf16.msra.mxu0 %v1796
    %2359 = vmatprep.subr.bf16.mxu0 0
    %2360 = vmatpush1.bf16.msra.mxu0 %v1797
    %2361 = vmatprep.subr.bf16.mxu0 0
    %2362 = vmatpush1.bf16.msra.mxu0 %v1798
    %2363 = vmatprep.subr.bf16.mxu0 0
    %2364 = vmatpush1.bf16.msra.mxu0 %v1799
    %2365 = vmatprep.subr.bf16.mxu0 0
    %2366 = vmatpush1.bf16.msra.mxu0 %v1800
    %2367 = vmatprep.subr.bf16.mxu0 0
    %2368 = vmatpush1.bf16.msra.mxu0 %v1801
    %2369 = vmatprep.subr.bf16.mxu0 0
    %2370 = vmatpush1.bf16.msra.mxu0 %v1802
    %2371 = vmatprep.subr.bf16.mxu0 0
    %2372 = vmatpush1.bf16.msra.mxu0 %v1803
    %2373 = vmatprep.subr.bf16.mxu0 0
    %2374 = vmatpush1.bf16.msra.mxu0 %v1804
    %2375 = vmatprep.subr.bf16.mxu0 0
    %2376 = vmatpush1.bf16.msra.mxu0 %v1805
    %2377 = vmatprep.subr.bf16.mxu0 0
    %2378 = vmatpush1.bf16.msra.mxu0 %v1806
    %2379 = vmatprep.subr.bf16.mxu0 0
    %2380 = vmatpush1.bf16.msra.mxu0 %v1807
    %2381 = vmatprep.subr.bf16.mxu0 0
    %2382 = vmatpush1.bf16.msra.mxu0 %v1808
    %2383 = vmatprep.subr.bf16.mxu0 0
    %2384 = vmatpush1.bf16.msra.mxu0 %v1809
    %2385 = vmatprep.mubr.bf16.mxu0 %v899
    %2386 = vmatmul.mubr.bf16.gmra.mrb[0].mxu0 %v898
    %v2387 = vpop.f32.mrb[0].mxu0
    %v2388 = vadd.f32 %v2347, %v2387
    %v2389 = vpop.f32.mrb[0].mxu0
    %v2390 = vpop.f32.mrb[0].mxu0
    %v2391 = vadd.f32 %v2350, %v2390
    %v2392 = vpop.f32.mrb[0].mxu0
    %2393 = vdwg.mxu0
    %2394 = vmatprep.subr.bf16.mxu0 0
    %2395 = vmatpush1.bf16.msra.mxu0 %v1810
    %2396 = vmatprep.subr.bf16.mxu0 0
    %2397 = vmatpush1.bf16.msra.mxu0 %v1811
    %2398 = vmatprep.subr.bf16.mxu0 0
    %2399 = vmatpush1.bf16.msra.mxu0 %v1812
    %2400 = vmatprep.subr.bf16.mxu0 0
    %2401 = vmatpush1.bf16.msra.mxu0 %v1813
    %2402 = vmatprep.subr.bf16.mxu0 0
    %2403 = vmatpush1.bf16.msra.mxu0 %v1814
    %2404 = vmatprep.subr.bf16.mxu0 0
    %2405 = vmatpush1.bf16.msra.mxu0 %v1815
    %2406 = vmatprep.subr.bf16.mxu0 0
    %2407 = vmatpush1.bf16.msra.mxu0 %v1816
    %2408 = vmatprep.subr.bf16.mxu0 0
    %2409 = vmatpush1.bf16.msra.mxu0 %v1817
    %2410 = vmatprep.subr.bf16.mxu0 0
    %2411 = vmatpush1.bf16.msra.mxu0 %v1818
    %2412 = vmatprep.subr.bf16.mxu0 0
    %2413 = vmatpush1.bf16.msra.mxu0 %v1819
    %2414 = vmatprep.subr.bf16.mxu0 0
    %2415 = vmatpush1.bf16.msra.mxu0 %v1820
    %2416 = vmatprep.subr.bf16.mxu0 0
    %2417 = vmatpush1.bf16.msra.mxu0 %v1821
    %2418 = vmatprep.subr.bf16.mxu0 0
    %2419 = vmatpush1.bf16.msra.mxu0 %v1822
    %2420 = vmatprep.subr.bf16.mxu0 0
    %2421 = vmatpush1.bf16.msra.mxu0 %v1823
    %2422 = vmatprep.subr.bf16.mxu0 0
    %2423 = vmatpush1.bf16.msra.mxu0 %v1824
    %2424 = vmatprep.subr.bf16.mxu0 0
    %2425 = vmatpush1.bf16.msra.mxu0 %v1825
    %2426 = vmatprep.mubr.bf16.mxu0 %v901
    %2427 = vmatmul.mubr.bf16.gmra.mrb[0].mxu0 %v900
    %v2428 = vpop.f32.mrb[0].mxu0
    %v2429 = vadd.f32 %v2388, %v2428
    %v2430 = vpop.f32.mrb[0].mxu0
    %v2431 = vpop.f32.mrb[0].mxu0
    %v2432 = vadd.f32 %v2391, %v2431
    %v2433 = vpop.f32.mrb[0].mxu0
    %2434 = vdwg.mxu0
    %2435 = vmatprep.subr.bf16.mxu0 0
    %2436 = vmatpush1.bf16.msra.mxu0 %v1826
    %2437 = vmatprep.subr.bf16.mxu0 0
    %2438 = vmatpush1.bf16.msra.mxu0 %v1827
    %2439 = vmatprep.subr.bf16.mxu0 0
    %2440 = vmatpush1.bf16.msra.mxu0 %v1828
    %2441 = vmatprep.subr.bf16.mxu0 0
    %2442 = vmatpush1.bf16.msra.mxu0 %v1829
    %2443 = vmatprep.subr.bf16.mxu0 0
    %2444 = vmatpush1.bf16.msra.mxu0 %v1830
    %2445 = vmatprep.subr.bf16.mxu0 0
    %2446 = vmatpush1.bf16.msra.mxu0 %v1831
    %2447 = vmatprep.subr.bf16.mxu0 0
    %2448 = vmatpush1.bf16.msra.mxu0 %v1832
    %2449 = vmatprep.subr.bf16.mxu0 0
    %2450 = vmatpush1.bf16.msra.mxu0 %v1833
    %2451 = vmatprep.subr.bf16.mxu0 0
    %2452 = vmatpush1.bf16.msra.mxu0 %v1834
    %2453 = vmatprep.subr.bf16.mxu0 0
    %2454 = vmatpush1.bf16.msra.mxu0 %v1835
    %2455 = vmatprep.subr.bf16.mxu0 0
    %2456 = vmatpush1.bf16.msra.mxu0 %v1836
    %2457 = vmatprep.subr.bf16.mxu0 0
    %2458 = vmatpush1.bf16.msra.mxu0 %v1837
    %2459 = vmatprep.subr.bf16.mxu0 0
    %2460 = vmatpush1.bf16.msra.mxu0 %v1838
    %2461 = vmatprep.subr.bf16.mxu0 0
    %2462 = vmatpush1.bf16.msra.mxu0 %v1839
    %2463 = vmatprep.subr.bf16.mxu0 0
    %2464 = vmatpush1.bf16.msra.mxu0 %v1840
    %2465 = vmatprep.subr.bf16.mxu0 0
    %2466 = vmatpush1.bf16.msra.mxu0 %v1841
    %2467 = vmatprep.mubr.bf16.mxu0 %v903
    %2468 = vmatmul.mubr.bf16.gmra.mrb[0].mxu0 %v902
    %v2469 = vpop.f32.mrb[0].mxu0
    %v2470 = vadd.f32 %v2429, %v2469
    %v2471 = vpop.f32.mrb[0].mxu0
    %v2472 = vpop.f32.mrb[0].mxu0
    %v2473 = vadd.f32 %v2432, %v2472
    %v2474 = vpop.f32.mrb[0].mxu0
    %2475 = vdwg.mxu0
    %2476 = vmatprep.subr.bf16.mxu0 0
    %2477 = vmatpush1.bf16.msra.mxu0 %v1842
    %2478 = vmatprep.subr.bf16.mxu0 0
    %2479 = vmatpush1.bf16.msra.mxu0 %v1843
    %2480 = vmatprep.subr.bf16.mxu0 0
    %2481 = vmatpush1.bf16.msra.mxu0 %v1844
    %2482 = vmatprep.subr.bf16.mxu0 0
    %2483 = vmatpush1.bf16.msra.mxu0 %v1845
    %2484 = vmatprep.subr.bf16.mxu0 0
    %2485 = vmatpush1.bf16.msra.mxu0 %v1846
    %2486 = vmatprep.subr.bf16.mxu0 0
    %2487 = vmatpush1.bf16.msra.mxu0 %v1847
    %2488 = vmatprep.subr.bf16.mxu0 0
    %2489 = vmatpush1.bf16.msra.mxu0 %v1848
    %2490 = vmatprep.subr.bf16.mxu0 0
    %2491 = vmatpush1.bf16.msra.mxu0 %v1849
    %2492 = vmatprep.subr.bf16.mxu0 0
    %2493 = vmatpush1.bf16.msra.mxu0 %v1850
    %2494 = vmatprep.subr.bf16.mxu0 0
    %2495 = vmatpush1.bf16.msra.mxu0 %v1851
    %2496 = vmatprep.subr.bf16.mxu0 0
    %2497 = vmatpush1.bf16.msra.mxu0 %v1852
    %2498 = vmatprep.subr.bf16.mxu0 0
    %2499 = vmatpush1.bf16.msra.mxu0 %v1853
    %2500 = vmatprep.subr.bf16.mxu0 0
    %2501 = vmatpush1.bf16.msra.mxu0 %v1854
    %2502 = vmatprep.subr.bf16.mxu0 0
    %2503 = vmatpush1.bf16.msra.mxu0 %v1855
    %2504 = vmatprep.subr.bf16.mxu0 0
    %2505 = vmatpush1.bf16.msra.mxu0 %v1856
    %2506 = vmatprep.subr.bf16.mxu0 0
    %2507 = vmatpush1.bf16.msra.mxu0 %v1857
    %2508 = vmatprep.mubr.bf16.mxu0 %v905
    %2509 = vmatmul.mubr.bf16.gmra.mrb[0].mxu0 %v904
    %v2510 = vpop.f32.mrb[0].mxu0
    %v2511 = vadd.f32 %v2470, %v2510
    %v2512 = vpop.f32.mrb[0].mxu0
    %v2513 = vpop.f32.mrb[0].mxu0
    %v2514 = vadd.f32 %v2473, %v2513
    %v2515 = vpop.f32.mrb[0].mxu0
    %2516 = vdwg.mxu0
    %2517 = vmatprep.subr.bf16.mxu0 0
    %2518 = vmatpush1.bf16.msra.mxu0 %v1858
    %2519 = vmatprep.subr.bf16.mxu0 0
    %2520 = vmatpush1.bf16.msra.mxu0 %v1859
    %2521 = vmatprep.subr.bf16.mxu0 0
    %2522 = vmatpush1.bf16.msra.mxu0 %v1860
    %2523 = vmatprep.subr.bf16.mxu0 0
    %2524 = vmatpush1.bf16.msra.mxu0 %v1861
    %2525 = vmatprep.subr.bf16.mxu0 0
    %2526 = vmatpush1.bf16.msra.mxu0 %v1862
    %2527 = vmatprep.subr.bf16.mxu0 0
    %2528 = vmatpush1.bf16.msra.mxu0 %v1863
    %2529 = vmatprep.subr.bf16.mxu0 0
    %2530 = vmatpush1.bf16.msra.mxu0 %v1864
    %2531 = vmatprep.subr.bf16.mxu0 0
    %2532 = vmatpush1.bf16.msra.mxu0 %v1865
    %2533 = vmatprep.subr.bf16.mxu0 0
    %2534 = vmatpush1.bf16.msra.mxu0 %v1866
    %2535 = vmatprep.subr.bf16.mxu0 0
    %2536 = vmatpush1.bf16.msra.mxu0 %v1867
    %2537 = vmatprep.subr.bf16.mxu0 0
    %2538 = vmatpush1.bf16.msra.mxu0 %v1868
    %2539 = vmatprep.subr.bf16.mxu0 0
    %2540 = vmatpush1.bf16.msra.mxu0 %v1869
    %2541 = vmatprep.subr.bf16.mxu0 0
    %2542 = vmatpush1.bf16.msra.mxu0 %v1870
    %2543 = vmatprep.subr.bf16.mxu0 0
    %2544 = vmatpush1.bf16.msra.mxu0 %v1871
    %2545 = vmatprep.subr.bf16.mxu0 0
    %2546 = vmatpush1.bf16.msra.mxu0 %v1872
    %2547 = vmatprep.subr.bf16.mxu0 0
    %2548 = vmatpush1.bf16.msra.mxu0 %v1873
    %2549 = vmatprep.mubr.bf16.mxu0 %v907
    %2550 = vmatmul.mubr.bf16.gmra.mrb[0].mxu0 %v906
    %v2551 = vpop.f32.mrb[0].mxu0
    %v2552 = vadd.f32 %v2511, %v2551
    %v2553 = vpop.f32.mrb[0].mxu0
    %v2554 = vpop.f32.mrb[0].mxu0
    %v2555 = vadd.f32 %v2514, %v2554
    %v2556 = vpop.f32.mrb[0].mxu0
    %2557 = vdwg.mxu0
    %v2558 = vmax.f32 %v2552, 0.0
    %v2559 = vmax.f32 %v2555, 0.0
    %v2560 = vpack.c.bf16 %v2559, %v2558
    %v2753 = vunpack.c.l.b16 %v688
    %v2754 = vunpack.c.h.b16 %v688
    %v2755 = vunpack.c.l.b16 %v689
    %v2756 = vunpack.c.h.b16 %v689
    %v2757 = vunpack.c.l.b16 %v690
    %v2758 = vunpack.c.h.b16 %v690
    %v2759 = vunpack.c.l.b16 %v691
    %v2760 = vunpack.c.h.b16 %v691
    %v2761 = vunpack.c.l.b16 %v692
    %v2762 = vunpack.c.h.b16 %v692
    %v2763 = vunpack.c.l.b16 %v693
    %v2764 = vunpack.c.h.b16 %v693
    %v2765 = vunpack.c.l.b16 %v694
    %v2766 = vunpack.c.h.b16 %v694
    %v2767 = vunpack.c.l.b16 %v695
    %v2768 = vunpack.c.h.b16 %v695
    %v2769 = vunpack.c.l.b16 %v696
    %v2770 = vunpack.c.h.b16 %v696
    %v2771 = vunpack.c.l.b16 %v697
    %v2772 = vunpack.c.h.b16 %v697
    %v2773 = vunpack.c.l.b16 %v698
    %v2774 = vunpack.c.h.b16 %v698
    %v2775 = vunpack.c.l.b16 %v699
    %v2776 = vunpack.c.h.b16 %v699
    %v2777 = vunpack.c.l.b16 %v700
    %v2778 = vunpack.c.h.b16 %v700
    %v2779 = vunpack.c.l.b16 %v701
    %v2780 = vunpack.c.h.b16 %v701
    %v2781 = vunpack.c.l.b16 %v702
    %v2782 = vunpack.c.h.b16 %v702
    %v2783 = vunpack.c.l.b16 %v703
    %v2784 = vunpack.c.h.b16 %v703
    %v2785 = vunpack.c.l.b16 %v704
    %v2786 = vunpack.c.h.b16 %v704
    %v2787 = vunpack.c.l.b16 %v705
    %v2788 = vunpack.c.h.b16 %v705
    %v2789 = vunpack.c.l.b16 %v706
    %v2790 = vunpack.c.h.b16 %v706
    %v2791 = vunpack.c.l.b16 %v707
    %v2792 = vunpack.c.h.b16 %v707
    %v2793 = vunpack.c.l.b16 %v708
    %v2794 = vunpack.c.h.b16 %v708
    %v2795 = vunpack.c.l.b16 %v709
    %v2796 = vunpack.c.h.b16 %v709
    %v2797 = vunpack.c.l.b16 %v710
    %v2798 = vunpack.c.h.b16 %v710
    %v2799 = vunpack.c.l.b16 %v711
    %v2800 = vunpack.c.h.b16 %v711
    %v2801 = vunpack.c.l.b16 %v712
    %v2802 = vunpack.c.h.b16 %v712
    %v2803 = vunpack.c.l.b16 %v713
    %v2804 = vunpack.c.h.b16 %v713
    %v2805 = vunpack.c.l.b16 %v714
    %v2806 = vunpack.c.h.b16 %v714
    %v2807 = vunpack.c.l.b16 %v715
    %v2808 = vunpack.c.h.b16 %v715
    %v2809 = vunpack.c.l.b16 %v716
    %v2810 = vunpack.c.h.b16 %v716
    %v2811 = vunpack.c.l.b16 %v717
    %v2812 = vunpack.c.h.b16 %v717
    %v2813 = vunpack.c.l.b16 %v718
    %v2814 = vunpack.c.h.b16 %v718
    %v2815 = vunpack.c.l.b16 %v719
    %v2816 = vunpack.c.h.b16 %v719
    %v2817 = vunpack.c.l.b16 %v720
    %v2818 = vunpack.c.h.b16 %v720
    %v2819 = vunpack.c.l.b16 %v721
    %v2820 = vunpack.c.h.b16 %v721
    %v2821 = vunpack.c.l.b16 %v722
    %v2822 = vunpack.c.h.b16 %v722
    %v2823 = vunpack.c.l.b16 %v723
    %v2824 = vunpack.c.h.b16 %v723
    %v2825 = vunpack.c.l.b16 %v724
    %v2826 = vunpack.c.h.b16 %v724
    %v2827 = vunpack.c.l.b16 %v725
    %v2828 = vunpack.c.h.b16 %v725
    %v2829 = vunpack.c.l.b16 %v726
    %v2830 = vunpack.c.h.b16 %v726
    %v2831 = vunpack.c.l.b16 %v727
    %v2832 = vunpack.c.h.b16 %v727
    %v2833 = vunpack.c.l.b16 %v728
    %v2834 = vunpack.c.h.b16 %v728
    %v2835 = vunpack.c.l.b16 %v729
    %v2836 = vunpack.c.h.b16 %v729
    %v2837 = vunpack.c.l.b16 %v730
    %v2838 = vunpack.c.h.b16 %v730
    %v2839 = vunpack.c.l.b16 %v731
    %v2840 = vunpack.c.h.b16 %v731
    %v2841 = vunpack.c.l.b16 %v732
    %v2842 = vunpack.c.h.b16 %v732
    %v2843 = vunpack.c.l.b16 %v733
    %v2844 = vunpack.c.h.b16 %v733
    %v2845 = vunpack.c.l.b16 %v734
    %v2846 = vunpack.c.h.b16 %v734
    %v2847 = vunpack.c.l.b16 %v735
    %v2848 = vunpack.c.h.b16 %v735
    %v2849 = vunpack.c.l.b16 %v736
    %v2850 = vunpack.c.h.b16 %v736
    %v2851 = vunpack.c.l.b16 %v737
    %v2852 = vunpack.c.h.b16 %v737
    %v2853 = vunpack.c.l.b16 %v738
    %v2854 = vunpack.c.h.b16 %v738
    %v2855 = vunpack.c.l.b16 %v739
    %v2856 = vunpack.c.h.b16 %v739
    %v2857 = vunpack.c.l.b16 %v740
    %v2858 = vunpack.c.h.b16 %v740
    %v2859 = vunpack.c.l.b16 %v741
    %v2860 = vunpack.c.h.b16 %v741
    %v2861 = vunpack.c.l.b16 %v742
    %v2862 = vunpack.c.h.b16 %v742
    %v2863 = vunpack.c.l.b16 %v743
    %v2864 = vunpack.c.h.b16 %v743
    %v2865 = vunpack.c.l.b16 %v744
    %v2866 = vunpack.c.h.b16 %v744
    %v2867 = vunpack.c.l.b16 %v745
    %v2868 = vunpack.c.h.b16 %v745
    %v2869 = vunpack.c.l.b16 %v746
    %v2870 = vunpack.c.h.b16 %v746
    %v2871 = vunpack.c.l.b16 %v747
    %v2872 = vunpack.c.h.b16 %v747
    %v2873 = vunpack.c.l.b16 %v748
    %v2874 = vunpack.c.h.b16 %v748
    %v2875 = vunpack.c.l.b16 %v749
    %v2876 = vunpack.c.h.b16 %v749
    %v2877 = vunpack.c.l.b16 %v750
    %v2878 = vunpack.c.h.b16 %v750
    %v2879 = vunpack.c.l.b16 %v751
    %v2880 = vunpack.c.h.b16 %v751
    %v2881 = vunpack.c.l.b16 %v752
    %v2882 = vunpack.c.h.b16 %v752
    %v2883 = vunpack.c.l.b16 %v753
    %v2884 = vunpack.c.h.b16 %v753
    %v2885 = vunpack.c.l.b16 %v754
    %v2886 = vunpack.c.h.b16 %v754
    %v2887 = vunpack.c.l.b16 %v755
    %v2888 = vunpack.c.h.b16 %v755
    %v2889 = vunpack.c.l.b16 %v756
    %v2890 = vunpack.c.h.b16 %v756
    %v2891 = vunpack.c.l.b16 %v757
    %v2892 = vunpack.c.h.b16 %v757
    %v2893 = vunpack.c.l.b16 %v758
    %v2894 = vunpack.c.h.b16 %v758
    %v2895 = vunpack.c.l.b16 %v759
    %v2896 = vunpack.c.h.b16 %v759
    %v2897 = vunpack.c.l.b16 %v760
    %v2898 = vunpack.c.h.b16 %v760
    %v2899 = vunpack.c.l.b16 %v761
    %v2900 = vunpack.c.h.b16 %v761
    %v2901 = vunpack.c.l.b16 %v762
    %v2902 = vunpack.c.h.b16 %v762
    %v2903 = vunpack.c.l.b16 %v763
    %v2904 = vunpack.c.h.b16 %v763
    %v2905 = vunpack.c.l.b16 %v764
    %v2906 = vunpack.c.h.b16 %v764
    %v2907 = vunpack.c.l.b16 %v765
    %v2908 = vunpack.c.h.b16 %v765
    %v2909 = vunpack.c.l.b16 %v766
    %v2910 = vunpack.c.h.b16 %v766
    %v2911 = vunpack.c.l.b16 %v767
    %v2912 = vunpack.c.h.b16 %v767
    %v2913 = vunpack.c.l.b16 %v768
    %v2914 = vunpack.c.h.b16 %v768
    %v2915 = vunpack.c.l.b16 %v769
    %v2916 = vunpack.c.h.b16 %v769
    %v2917 = vunpack.c.l.b16 %v770
    %v2918 = vunpack.c.h.b16 %v770
    %v2919 = vunpack.c.l.b16 %v771
    %v2920 = vunpack.c.h.b16 %v771
    %v2921 = vunpack.c.l.b16 %v772
    %v2922 = vunpack.c.h.b16 %v772
    %v2923 = vunpack.c.l.b16 %v773
    %v2924 = vunpack.c.h.b16 %v773
    %v2925 = vunpack.c.l.b16 %v774
    %v2926 = vunpack.c.h.b16 %v774
    %v2927 = vunpack.c.l.b16 %v775
    %v2928 = vunpack.c.h.b16 %v775
    %v2929 = vunpack.c.l.b16 %v776
    %v2930 = vunpack.c.h.b16 %v776
    %v2931 = vunpack.c.l.b16 %v777
    %v2932 = vunpack.c.h.b16 %v777
    %v2933 = vunpack.c.l.b16 %v778
    %v2934 = vunpack.c.h.b16 %v778
    %v2935 = vunpack.c.l.b16 %v779
    %v2936 = vunpack.c.h.b16 %v779
    %v2937 = vunpack.c.l.b16 %v780
    %v2938 = vunpack.c.h.b16 %v780
    %v2939 = vunpack.c.l.b16 %v781
    %v2940 = vunpack.c.h.b16 %v781
    %v2941 = vunpack.c.l.b16 %v782
    %v2942 = vunpack.c.h.b16 %v782
    %v2943 = vunpack.c.l.b16 %v783
    %v2944 = vunpack.c.h.b16 %v783
    %v2945 = vunpack.c.l.b16 %v784
    %v2946 = vunpack.c.h.b16 %v784
    %v2947 = vunpack.c.l.b16 %v785
    %v2948 = vunpack.c.h.b16 %v785
    %v2949 = vunpack.c.l.b16 %v786
    %v2950 = vunpack.c.h.b16 %v786
    %v2951 = vunpack.c.l.b16 %v787
    %v2952 = vunpack.c.h.b16 %v787
    %v2953 = vunpack.c.l.b16 %v788
    %v2954 = vunpack.c.h.b16 %v788
    %v2955 = vunpack.c.l.b16 %v789
    %v2956 = vunpack.c.h.b16 %v789
    %v2957 = vunpack.c.l.b16 %v790
    %v2958 = vunpack.c.h.b16 %v790
    %v2959 = vunpack.c.l.b16 %v791
    %v2960 = vunpack.c.h.b16 %v791
    %v2961 = vunpack.c.l.b16 %v792
    %v2962 = vunpack.c.h.b16 %v792
    %v2963 = vunpack.c.l.b16 %v793
    %v2964 = vunpack.c.h.b16 %v793
    %v2965 = vunpack.c.l.b16 %v794
    %v2966 = vunpack.c.h.b16 %v794
    %v2967 = vunpack.c.l.b16 %v795
    %v2968 = vunpack.c.h.b16 %v795
    %v2969 = vunpack.c.l.b16 %v796
    %v2970 = vunpack.c.h.b16 %v796
    %v2971 = vunpack.c.l.b16 %v797
    %v2972 = vunpack.c.h.b16 %v797
    %v2973 = vunpack.c.l.b16 %v798
    %v2974 = vunpack.c.h.b16 %v798
    %v2975 = vunpack.c.l.b16 %v799
    %v2976 = vunpack.c.h.b16 %v799
    %v2977 = vunpack.c.l.b16 %v800
    %v2978 = vunpack.c.h.b16 %v800
    %v2979 = vunpack.c.l.b16 %v801
    %v2980 = vunpack.c.h.b16 %v801
    %v2981 = vunpack.c.l.b16 %v802
    %v2982 = vunpack.c.h.b16 %v802
    %v2983 = vunpack.c.l.b16 %v803
    %v2984 = vunpack.c.h.b16 %v803
    %v2985 = vunpack.c.l.b16 %v804
    %v2986 = vunpack.c.h.b16 %v804
    %v2987 = vunpack.c.l.b16 %v805
    %v2988 = vunpack.c.h.b16 %v805
    %v2989 = vunpack.c.l.b16 %v806
    %v2990 = vunpack.c.h.b16 %v806
    %v2991 = vunpack.c.l.b16 %v807
    %v2992 = vunpack.c.h.b16 %v807
    %v2993 = vunpack.c.l.b16 %v808
    %v2994 = vunpack.c.h.b16 %v808
    %v2995 = vunpack.c.l.b16 %v809
    %v2996 = vunpack.c.h.b16 %v809
    %v2997 = vunpack.c.l.b16 %v810
    %v2998 = vunpack.c.h.b16 %v810
    %v2999 = vunpack.c.l.b16 %v811
    %v3000 = vunpack.c.h.b16 %v811
    %v3001 = vunpack.c.l.b16 %v812
    %v3002 = vunpack.c.h.b16 %v812
    %v3003 = vunpack.c.l.b16 %v813
    %v3004 = vunpack.c.h.b16 %v813
    %v3005 = vunpack.c.l.b16 %v814
    %v3006 = vunpack.c.h.b16 %v814
    %v3007 = vunpack.c.l.b16 %v815
    %v3008 = vunpack.c.h.b16 %v815
    %v3009 = vunpack.c.l.b16 %v816
    %v3010 = vunpack.c.h.b16 %v816
    %v3011 = vunpack.c.l.b16 %v817
    %v3012 = vunpack.c.h.b16 %v817
    %v3013 = vunpack.c.l.b16 %v818
    %v3014 = vunpack.c.h.b16 %v818
    %v3015 = vunpack.c.l.b16 %v819
    %v3016 = vunpack.c.h.b16 %v819
    %v3017 = vunpack.c.l.b16 %v820
    %v3018 = vunpack.c.h.b16 %v820
    %v3019 = vunpack.c.l.b16 %v821
    %v3020 = vunpack.c.h.b16 %v821
    %v3021 = vunpack.c.l.b16 %v822
    %v3022 = vunpack.c.h.b16 %v822
    %v3023 = vunpack.c.l.b16 %v823
    %v3024 = vunpack.c.h.b16 %v823
    %v3025 = vunpack.c.l.b16 %v824
    %v3026 = vunpack.c.h.b16 %v824
    %v3027 = vunpack.c.l.b16 %v825
    %v3028 = vunpack.c.h.b16 %v825
    %v3029 = vunpack.c.l.b16 %v826
    %v3030 = vunpack.c.h.b16 %v826
    %v3031 = vunpack.c.l.b16 %v827
    %v3032 = vunpack.c.h.b16 %v827
    %v3033 = vunpack.c.l.b16 %v828
    %v3034 = vunpack.c.h.b16 %v828
    %v3035 = vunpack.c.l.b16 %v829
    %v3036 = vunpack.c.h.b16 %v829
    %v3037 = vunpack.c.l.b16 %v830
    %v3038 = vunpack.c.h.b16 %v830
    %v3039 = vunpack.c.l.b16 %v831
    %v3040 = vunpack.c.h.b16 %v831
    %v3041 = vunpack.c.l.b16 %v832
    %v3042 = vunpack.c.h.b16 %v832
    %v3043 = vunpack.c.l.b16 %v833
    %v3044 = vunpack.c.h.b16 %v833
    %v3045 = vunpack.c.l.b16 %v834
    %v3046 = vunpack.c.h.b16 %v834
    %v3047 = vunpack.c.l.b16 %v835
    %v3048 = vunpack.c.h.b16 %v835
    %v3049 = vunpack.c.l.b16 %v836
    %v3050 = vunpack.c.h.b16 %v836
    %v3051 = vunpack.c.l.b16 %v837
    %v3052 = vunpack.c.h.b16 %v837
    %v3053 = vunpack.c.l.b16 %v838
    %v3054 = vunpack.c.h.b16 %v838
    %v3055 = vunpack.c.l.b16 %v839
    %v3056 = vunpack.c.h.b16 %v839
    %v3057 = vunpack.c.l.b16 %v840
    %v3058 = vunpack.c.h.b16 %v840
    %v3059 = vunpack.c.l.b16 %v841
    %v3060 = vunpack.c.h.b16 %v841
    %v3061 = vunpack.c.l.b16 %v842
    %v3062 = vunpack.c.h.b16 %v842
    %v3063 = vunpack.c.l.b16 %v843
    %v3064 = vunpack.c.h.b16 %v843
    %v3065 = vunpack.c.l.b16 %v844
    %v3066 = vunpack.c.h.b16 %v844
    %v3067 = vunpack.c.l.b16 %v845
    %v3068 = vunpack.c.h.b16 %v845
    %v3069 = vunpack.c.l.b16 %v846
    %v3070 = vunpack.c.h.b16 %v846
    %v3071 = vunpack.c.l.b16 %v847
    %v3072 = vunpack.c.h.b16 %v847
    %v3073 = vunpack.c.l.b16 %v848
    %v3074 = vunpack.c.h.b16 %v848
    %v3075 = vunpack.c.l.b16 %v849
    %v3076 = vunpack.c.h.b16 %v849
    %v3077 = vunpack.c.l.b16 %v850
    %v3078 = vunpack.c.h.b16 %v850
    %v3079 = vunpack.c.l.b16 %v851
    %v3080 = vunpack.c.h.b16 %v851
    %v3081 = vunpack.c.l.b16 %v852
    %v3082 = vunpack.c.h.b16 %v852
    %v3083 = vunpack.c.l.b16 %v853
    %v3084 = vunpack.c.h.b16 %v853
    %v3085 = vunpack.c.l.b16 %v854
    %v3086 = vunpack.c.h.b16 %v854
    %v3087 = vunpack.c.l.b16 %v855
    %v3088 = vunpack.c.h.b16 %v855
    %v3089 = vunpack.c.l.b16 %v856
    %v3090 = vunpack.c.h.b16 %v856
    %v3091 = vunpack.c.l.b16 %v857
    %v3092 = vunpack.c.h.b16 %v857
    %v3093 = vunpack.c.l.b16 %v858
    %v3094 = vunpack.c.h.b16 %v858
    %v3095 = vunpack.c.l.b16 %v859
    %v3096 = vunpack.c.h.b16 %v859
    %v3097 = vunpack.c.l.b16 %v860
    %v3098 = vunpack.c.h.b16 %v860
    %v3099 = vunpack.c.l.b16 %v861
    %v3100 = vunpack.c.h.b16 %v861
    %v3101 = vunpack.c.l.b16 %v862
    %v3102 = vunpack.c.h.b16 %v862
    %v3103 = vunpack.c.l.b16 %v863
    %v3104 = vunpack.c.h.b16 %v863
    %v3105 = vunpack.c.l.b16 %v864
    %v3106 = vunpack.c.h.b16 %v864
    %v3107 = vunpack.c.l.b16 %v865
    %v3108 = vunpack.c.h.b16 %v865
    %v3109 = vunpack.c.l.b16 %v866
    %v3110 = vunpack.c.h.b16 %v866
    %v3111 = vunpack.c.l.b16 %v867
    %v3112 = vunpack.c.h.b16 %v867
    %v3113 = vunpack.c.l.b16 %v868
    %v3114 = vunpack.c.h.b16 %v868
    %v3115 = vunpack.c.l.b16 %v869
    %v3116 = vunpack.c.h.b16 %v869
    %v3117 = vunpack.c.l.b16 %v870
    %v3118 = vunpack.c.h.b16 %v870
    %v3119 = vunpack.c.l.b16 %v871
    %v3120 = vunpack.c.h.b16 %v871
    %v3121 = vunpack.c.l.b16 %v872
    %v3122 = vunpack.c.h.b16 %v872
    %v3123 = vunpack.c.l.b16 %v873
    %v3124 = vunpack.c.h.b16 %v873
    %v3125 = vunpack.c.l.b16 %v874
    %v3126 = vunpack.c.h.b16 %v874
    %v3127 = vunpack.c.l.b16 %v875
    %v3128 = vunpack.c.h.b16 %v875
    %v3129 = vunpack.c.l.b16 %v876
    %v3130 = vunpack.c.h.b16 %v876
    %v3131 = vunpack.c.l.b16 %v877
    %v3132 = vunpack.c.h.b16 %v877
    %v3133 = vunpack.c.l.b16 %v878
    %v3134 = vunpack.c.h.b16 %v878
    %v3135 = vunpack.c.l.b16 %v879
    %v3136 = vunpack.c.h.b16 %v879
    %v3137 = vpack.c.b16 %v2777, %v2753
    %v3138 = vpack.c.b16 %v2778, %v2754
    %v3139 = vpack.c.b16 %v2779, %v2755
    %v3140 = vpack.c.b16 %v2780, %v2756
    %v3141 = vpack.c.b16 %v2781, %v2757
    %v3142 = vpack.c.b16 %v2782, %v2758
    %v3143 = vpack.c.b16 %v2783, %v2759
    %v3144 = vpack.c.b16 %v2784, %v2760
    %v3145 = vpack.c.b16 %v2785, %v2761
    %v3146 = vpack.c.b16 %v2786, %v2762
    %v3147 = vpack.c.b16 %v2787, %v2763
    %v3148 = vpack.c.b16 %v2788, %v2764
    %v3149 = vpack.c.b16 %v2789, %v2765
    %v3150 = vpack.c.b16 %v2790, %v2766
    %v3151 = vpack.c.b16 %v2791, %v2767
    %v3152 = vpack.c.b16 %v2792, %v2768
    %v3153 = vpack.c.b16 %v2793, %v2769
    %v3154 = vpack.c.b16 %v2794, %v2770
    %v3155 = vpack.c.b16 %v2795, %v2771
    %v3156 = vpack.c.b16 %v2796, %v2772
    %v3157 = vpack.c.b16 %v2797, %v2773
    %v3158 = vpack.c.b16 %v2798, %v2774
    %v3159 = vpack.c.b16 %v2799, %v2775
    %v3160 = vpack.c.b16 %v2800, %v2776
    %v3161 = vpack.c.b16 %v2825, %v2801
    %v3162 = vpack.c.b16 %v2826, %v2802
    %v3163 = vpack.c.b16 %v2827, %v2803
    %v3164 = vpack.c.b16 %v2828, %v2804
    %v3165 = vpack.c.b16 %v2829, %v2805
    %v3166 = vpack.c.b16 %v2830, %v2806
    %v3167 = vpack.c.b16 %v2831, %v2807
    %v3168 = vpack.c.b16 %v2832, %v2808
    %v3169 = vpack.c.b16 %v2833, %v2809
    %v3170 = vpack.c.b16 %v2834, %v2810
    %v3171 = vpack.c.b16 %v2835, %v2811
    %v3172 = vpack.c.b16 %v2836, %v2812
    %v3173 = vpack.c.b16 %v2837, %v2813
    %v3174 = vpack.c.b16 %v2838, %v2814
    %v3175 = vpack.c.b16 %v2839, %v2815
    %v3176 = vpack.c.b16 %v2840, %v2816
    %v3177 = vpack.c.b16 %v2841, %v2817
    %v3178 = vpack.c.b16 %v2842, %v2818
    %v3179 = vpack.c.b16 %v2843, %v2819
    %v3180 = vpack.c.b16 %v2844, %v2820
    %v3181 = vpack.c.b16 %v2845, %v2821
    %v3182 = vpack.c.b16 %v2846, %v2822
    %v3183 = vpack.c.b16 %v2847, %v2823
    %v3184 = vpack.c.b16 %v2848, %v2824
    %v3185 = vpack.c.b16 %v2873, %v2849
    %v3186 = vpack.c.b16 %v2874, %v2850
    %v3187 = vpack.c.b16 %v2875, %v2851
    %v3188 = vpack.c.b16 %v2876, %v2852
    %v3189 = vpack.c.b16 %v2877, %v2853
    %v3190 = vpack.c.b16 %v2878, %v2854
    %v3191 = vpack.c.b16 %v2879, %v2855
    %v3192 = vpack.c.b16 %v2880, %v2856
    %v3193 = vpack.c.b16 %v2881, %v2857
    %v3194 = vpack.c.b16 %v2882, %v2858
    %v3195 = vpack.c.b16 %v2883, %v2859
    %v3196 = vpack.c.b16 %v2884, %v2860
    %v3197 = vpack.c.b16 %v2885, %v2861
    %v3198 = vpack.c.b16 %v2886, %v2862
    %v3199 = vpack.c.b16 %v2887, %v2863
    %v3200 = vpack.c.b16 %v2888, %v2864
    %v3201 = vpack.c.b16 %v2889, %v2865
    %v3202 = vpack.c.b16 %v2890, %v2866
    %v3203 = vpack.c.b16 %v2891, %v2867
    %v3204 = vpack.c.b16 %v2892, %v2868
    %v3205 = vpack.c.b16 %v2893, %v2869
    %v3206 = vpack.c.b16 %v2894, %v2870
    %v3207 = vpack.c.b16 %v2895, %v2871
    %v3208 = vpack.c.b16 %v2896, %v2872
    %v3209 = vpack.c.b16 %v2921, %v2897
    %v3210 = vpack.c.b16 %v2922, %v2898
    %v3211 = vpack.c.b16 %v2923, %v2899
    %v3212 = vpack.c.b16 %v2924, %v2900
    %v3213 = vpack.c.b16 %v2925, %v2901
    %v3214 = vpack.c.b16 %v2926, %v2902
    %v3215 = vpack.c.b16 %v2927, %v2903
    %v3216 = vpack.c.b16 %v2928, %v2904
    %v3217 = vpack.c.b16 %v2929, %v2905
    %v3218 = vpack.c.b16 %v2930, %v2906
    %v3219 = vpack.c.b16 %v2931, %v2907
    %v3220 = vpack.c.b16 %v2932, %v2908
    %v3221 = vpack.c.b16 %v2933, %v2909
    %v3222 = vpack.c.b16 %v2934, %v2910
    %v3223 = vpack.c.b16 %v2935, %v2911
    %v3224 = vpack.c.b16 %v2936, %v2912
    %v3225 = vpack.c.b16 %v2937, %v2913
    %v3226 = vpack.c.b16 %v2938, %v2914
    %v3227 = vpack.c.b16 %v2939, %v2915
    %v3228 = vpack.c.b16 %v2940, %v2916
    %v3229 = vpack.c.b16 %v2941, %v2917
    %v3230 = vpack.c.b16 %v2942, %v2918
    %v3231 = vpack.c.b16 %v2943, %v2919
    %v3232 = vpack.c.b16 %v2944, %v2920
    %v3233 = vpack.c.b16 %v2969, %v2945
    %v3234 = vpack.c.b16 %v2970, %v2946
    %v3235 = vpack.c.b16 %v2971, %v2947
    %v3236 = vpack.c.b16 %v2972, %v2948
    %v3237 = vpack.c.b16 %v2973, %v2949
    %v3238 = vpack.c.b16 %v2974, %v2950
    %v3239 = vpack.c.b16 %v2975, %v2951
    %v3240 = vpack.c.b16 %v2976, %v2952
    %v3241 = vpack.c.b16 %v2977, %v2953
    %v3242 = vpack.c.b16 %v2978, %v2954
    %v3243 = vpack.c.b16 %v2979, %v2955
    %v3244 = vpack.c.b16 %v2980, %v2956
    %v3245 = vpack.c.b16 %v2981, %v2957
    %v3246 = vpack.c.b16 %v2982, %v2958
    %v3247 = vpack.c.b16 %v2983, %v2959
    %v3248 = vpack.c.b16 %v2984, %v2960
    %v3249 = vpack.c.b16 %v2985, %v2961
    %v3250 = vpack.c.b16 %v2986, %v2962
    %v3251 = vpack.c.b16 %v2987, %v2963
    %v3252 = vpack.c.b16 %v2988, %v2964
    %v3253 = vpack.c.b16 %v2989, %v2965
    %v3254 = vpack.c.b16 %v2990, %v2966
    %v3255 = vpack.c.b16 %v2991, %v2967
    %v3256 = vpack.c.b16 %v2992, %v2968
    %v3257 = vpack.c.b16 %v3017, %v2993
    %v3258 = vpack.c.b16 %v3018, %v2994
    %v3259 = vpack.c.b16 %v3019, %v2995
    %v3260 = vpack.c.b16 %v3020, %v2996
    %v3261 = vpack.c.b16 %v3021, %v2997
    %v3262 = vpack.c.b16 %v3022, %v2998
    %v3263 = vpack.c.b16 %v3023, %v2999
    %v3264 = vpack.c.b16 %v3024, %v3000
    %v3265 = vpack.c.b16 %v3025, %v3001
    %v3266 = vpack.c.b16 %v3026, %v3002
    %v3267 = vpack.c.b16 %v3027, %v3003
    %v3268 = vpack.c.b16 %v3028, %v3004
    %v3269 = vpack.c.b16 %v3029, %v3005
    %v3270 = vpack.c.b16 %v3030, %v3006
    %v3271 = vpack.c.b16 %v3031, %v3007
    %v3272 = vpack.c.b16 %v3032, %v3008
    %v3273 = vpack.c.b16 %v3033, %v3009
    %v3274 = vpack.c.b16 %v3034, %v3010
    %v3275 = vpack.c.b16 %v3035, %v3011
    %v3276 = vpack.c.b16 %v3036, %v3012
    %v3277 = vpack.c.b16 %v3037, %v3013
    %v3278 = vpack.c.b16 %v3038, %v3014
    %v3279 = vpack.c.b16 %v3039, %v3015
    %v3280 = vpack.c.b16 %v3040, %v3016
    %v3281 = vpack.c.b16 %v3065, %v3041
    %v3282 = vpack.c.b16 %v3066, %v3042
    %v3283 = vpack.c.b16 %v3067, %v3043
    %v3284 = vpack.c.b16 %v3068, %v3044
    %v3285 = vpack.c.b16 %v3069, %v3045
    %v3286 = vpack.c.b16 %v3070, %v3046
    %v3287 = vpack.c.b16 %v3071, %v3047
    %v3288 = vpack.c.b16 %v3072, %v3048
    %v3289 = vpack.c.b16 %v3073, %v3049
    %v3290 = vpack.c.b16 %v3074, %v3050
    %v3291 = vpack.c.b16 %v3075, %v3051
    %v3292 = vpack.c.b16 %v3076, %v3052
    %v3293 = vpack.c.b16 %v3077, %v3053
    %v3294 = vpack.c.b16 %v3078, %v3054
    %v3295 = vpack.c.b16 %v3079, %v3055
    %v3296 = vpack.c.b16 %v3080, %v3056
    %v3297 = vpack.c.b16 %v3081, %v3057
    %v3298 = vpack.c.b16 %v3082, %v3058
    %v3299 = vpack.c.b16 %v3083, %v3059
    %v3300 = vpack.c.b16 %v3084, %v3060
    %v3301 = vpack.c.b16 %v3085, %v3061
    %v3302 = vpack.c.b16 %v3086, %v3062
    %v3303 = vpack.c.b16 %v3087, %v3063
    %v3304 = vpack.c.b16 %v3088, %v3064
    %v3305 = vpack.c.b16 %v3113, %v3089
    %v3306 = vpack.c.b16 %v3114, %v3090
    %v3307 = vpack.c.b16 %v3115, %v3091
    %v3308 = vpack.c.b16 %v3116, %v3092
    %v3309 = vpack.c.b16 %v3117, %v3093
    %v3310 = vpack.c.b16 %v3118, %v3094
    %v3311 = vpack.c.b16 %v3119, %v3095
    %v3312 = vpack.c.b16 %v3120, %v3096
    %v3313 = vpack.c.b16 %v3121, %v3097
    %v3314 = vpack.c.b16 %v3122, %v3098
    %v3315 = vpack.c.b16 %v3123, %v3099
    %v3316 = vpack.c.b16 %v3124, %v3100
    %v3317 = vpack.c.b16 %v3125, %v3101
    %v3318 = vpack.c.b16 %v3126, %v3102
    %v3319 = vpack.c.b16 %v3127, %v3103
    %v3320 = vpack.c.b16 %v3128, %v3104
    %v3321 = vpack.c.b16 %v3129, %v3105
    %v3322 = vpack.c.b16 %v3130, %v3106
    %v3323 = vpack.c.b16 %v3131, %v3107
    %v3324 = vpack.c.b16 %v3132, %v3108
    %v3325 = vpack.c.b16 %v3133, %v3109
    %v3326 = vpack.c.b16 %v3134, %v3110
    %v3327 = vpack.c.b16 %v3135, %v3111
    %v3328 = vpack.c.b16 %v3136, %v3112
    %3521 = vmatprep.subr.bf16.mxu0 %v3138
    %3522 = vmatpush1.bf16.msra.mxu0 %v3137
    %3523 = vmatprep.subr.bf16.mxu0 %v3162
    %3524 = vmatpush1.bf16.msra.mxu0 %v3161
    %3525 = vmatprep.subr.bf16.mxu0 %v3186
    %3526 = vmatpush1.bf16.msra.mxu0 %v3185
    %3527 = vmatprep.subr.bf16.mxu0 %v3210
    %3528 = vmatpush1.bf16.msra.mxu0 %v3209
    %3529 = vmatprep.subr.bf16.mxu0 %v3234
    %3530 = vmatpush1.bf16.msra.mxu0 %v3233
    %3531 = vmatprep.subr.bf16.mxu0 %v3258
    %3532 = vmatpush1.bf16.msra.mxu0 %v3257
    %3533 = vmatprep.subr.bf16.mxu0 %v3282
    %3534 = vmatpush1.bf16.msra.mxu0 %v3281
    %3535 = vmatprep.subr.bf16.mxu0 %v3306
    %3536 = vmatpush1.bf16.msra.mxu0 %v3305
    %3537 = vmatprep.subr.bf16.mxu0 0
    %3538 = vmatpush1.bf16.msra.mxu0 0
    %3539 = vmatprep.subr.bf16.mxu0 0
    %3540 = vmatpush1.bf16.msra.mxu0 0
    %3541 = vmatprep.subr.bf16.mxu0 0
    %3542 = vmatpush1.bf16.msra.mxu0 0
    %3543 = vmatprep.subr.bf16.mxu0 0
    %3544 = vmatpush1.bf16.msra.mxu0 0
    %3545 = vmatprep.subr.bf16.mxu0 0
    %3546 = vmatpush1.bf16.msra.mxu0 0
    %3547 = vmatprep.subr.bf16.mxu0 0
    %3548 = vmatpush1.bf16.msra.mxu0 0
    %3549 = vmatprep.subr.bf16.mxu0 0
    %3550 = vmatpush1.bf16.msra.mxu0 0
    %3551 = vmatprep.subr.bf16.mxu0 0
    %3552 = vmatpush1.bf16.msra.mxu0 0
    %3553 = vmatprep.mubr.bf16.mxu0 0
    %3554 = vmatmul.mubr.bf16.gmra.mrb[0].mxu0 %v2560
    %v3555 = vpop.f32.mrb[0].mxu0
    %v3556 = vadd.f32 0.0, %v3555
    %v3557 = vpop.f32.mrb[0].mxu0
    %v3558 = vadd.f32 0.0, %v3557
    %v3559 = vpop.f32.mrb[0].mxu0
    %v3560 = vadd.f32 0.0, %v3559
    %v3561 = vpop.f32.mrb[0].mxu0
    %v3562 = vadd.f32 0.0, %v3561
    %3563 = vdwg.mxu0
    %3564 = vmatprep.subr.bf16.mxu0 %v3140
    %3565 = vmatpush1.bf16.msra.mxu0 %v3139
    %3566 = vmatprep.subr.bf16.mxu0 %v3164
    %3567 = vmatpush1.bf16.msra.mxu0 %v3163
    %3568 = vmatprep.subr.bf16.mxu0 %v3188
    %3569 = vmatpush1.bf16.msra.mxu0 %v3187
    %3570 = vmatprep.subr.bf16.mxu0 %v3212
    %3571 = vmatpush1.bf16.msra.mxu0 %v3211
    %3572 = vmatprep.subr.bf16.mxu0 %v3236
    %3573 = vmatpush1.bf16.msra.mxu0 %v3235
    %3574 = vmatprep.subr.bf16.mxu0 %v3260
    %3575 = vmatpush1.bf16.msra.mxu0 %v3259
    %3576 = vmatprep.subr.bf16.mxu0 %v3284
    %3577 = vmatpush1.bf16.msra.mxu0 %v3283
    %3578 = vmatprep.subr.bf16.mxu0 %v3308
    %3579 = vmatpush1.bf16.msra.mxu0 %v3307
    %3580 = vmatprep.subr.bf16.mxu0 0
    %3581 = vmatpush1.bf16.msra.mxu0 0
    %3582 = vmatprep.subr.bf16.mxu0 0
    %3583 = vmatpush1.bf16.msra.mxu0 0
    %3584 = vmatprep.subr.bf16.mxu0 0
    %3585 = vmatpush1.bf16.msra.mxu0 0
    %3586 = vmatprep.subr.bf16.mxu0 0
    %3587 = vmatpush1.bf16.msra.mxu0 0
    %3588 = vmatprep.subr.bf16.mxu0 0
    %3589 = vmatpush1.bf16.msra.mxu0 0
    %3590 = vmatprep.subr.bf16.mxu0 0
    %3591 = vmatpush1.bf16.msra.mxu0 0
    %3592 = vmatprep.subr.bf16.mxu0 0
    %3593 = vmatpush1.bf16.msra.mxu0 0
    %3594 = vmatprep.subr.bf16.mxu0 0
    %3595 = vmatpush1.bf16.msra.mxu0 0
    %3596 = vmatprep.mubr.bf16.mxu0 0
    %3597 = vmatmul.mubr.bf16.gmra.mrb[0].mxu0 %v2560
    %v3598 = vpop.f32.mrb[0].mxu0
    %v3599 = vadd.f32 0.0, %v3598
    %v3600 = vpop.f32.mrb[0].mxu0
    %v3601 = vadd.f32 0.0, %v3600
    %v3602 = vpop.f32.mrb[0].mxu0
    %v3603 = vadd.f32 0.0, %v3602
    %v3604 = vpop.f32.mrb[0].mxu0
    %v3605 = vadd.f32 0.0, %v3604
    %3606 = vdwg.mxu0
    %3607 = vmatprep.subr.bf16.mxu0 %v3142
    %3608 = vmatpush1.bf16.msra.mxu0 %v3141
    %3609 = vmatprep.subr.bf16.mxu0 %v3166
    %3610 = vmatpush1.bf16.msra.mxu0 %v3165
    %3611 = vmatprep.subr.bf16.mxu0 %v3190
    %3612 = vmatpush1.bf16.msra.mxu0 %v3189
    %3613 = vmatprep.subr.bf16.mxu0 %v3214
    %3614 = vmatpush1.bf16.msra.mxu0 %v3213
    %3615 = vmatprep.subr.bf16.mxu0 %v3238
    %3616 = vmatpush1.bf16.msra.mxu0 %v3237
    %3617 = vmatprep.subr.bf16.mxu0 %v3262
    %3618 = vmatpush1.bf16.msra.mxu0 %v3261
    %3619 = vmatprep.subr.bf16.mxu0 %v3286
    %3620 = vmatpush1.bf16.msra.mxu0 %v3285
    %3621 = vmatprep.subr.bf16.mxu0 %v3310
    %3622 = vmatpush1.bf16.msra.mxu0 %v3309
    %3623 = vmatprep.subr.bf16.mxu0 0
    %3624 = vmatpush1.bf16.msra.mxu0 0
    %3625 = vmatprep.subr.bf16.mxu0 0
    %3626 = vmatpush1.bf16.msra.mxu0 0
    %3627 = vmatprep.subr.bf16.mxu0 0
    %3628 = vmatpush1.bf16.msra.mxu0 0
    %3629 = vmatprep.subr.bf16.mxu0 0
    %3630 = vmatpush1.bf16.msra.mxu0 0
    %3631 = vmatprep.subr.bf16.mxu0 0
    %3632 = vmatpush1.bf16.msra.mxu0 0
    %3633 = vmatprep.subr.bf16.mxu0 0
    %3634 = vmatpush1.bf16.msra.mxu0 0
    %3635 = vmatprep.subr.bf16.mxu0 0
    %3636 = vmatpush1.bf16.msra.mxu0 0
    %3637 = vmatprep.subr.bf16.mxu0 0
    %3638 = vmatpush1.bf16.msra.mxu0 0
    %3639 = vmatprep.mubr.bf16.mxu0 0
    %3640 = vmatmul.mubr.bf16.gmra.mrb[0].mxu0 %v2560
    %v3641 = vpop.f32.mrb[0].mxu0
    %v3642 = vadd.f32 0.0, %v3641
    %v3643 = vpop.f32.mrb[0].mxu0
    %v3644 = vadd.f32 0.0, %v3643
    %v3645 = vpop.f32.mrb[0].mxu0
    %v3646 = vadd.f32 0.0, %v3645
    %v3647 = vpop.f32.mrb[0].mxu0
    %v3648 = vadd.f32 0.0, %v3647
    %3649 = vdwg.mxu0
    %3650 = vmatprep.subr.bf16.mxu0 %v3144
    %3651 = vmatpush1.bf16.msra.mxu0 %v3143
    %3652 = vmatprep.subr.bf16.mxu0 %v3168
    %3653 = vmatpush1.bf16.msra.mxu0 %v3167
    %3654 = vmatprep.subr.bf16.mxu0 %v3192
    %3655 = vmatpush1.bf16.msra.mxu0 %v3191
    %3656 = vmatprep.subr.bf16.mxu0 %v3216
    %3657 = vmatpush1.bf16.msra.mxu0 %v3215
    %3658 = vmatprep.subr.bf16.mxu0 %v3240
    %3659 = vmatpush1.bf16.msra.mxu0 %v3239
    %3660 = vmatprep.subr.bf16.mxu0 %v3264
    %3661 = vmatpush1.bf16.msra.mxu0 %v3263
    %3662 = vmatprep.subr.bf16.mxu0 %v3288
    %3663 = vmatpush1.bf16.msra.mxu0 %v3287
    %3664 = vmatprep.subr.bf16.mxu0 %v3312
    %3665 = vmatpush1.bf16.msra.mxu0 %v3311
    %3666 = vmatprep.subr.bf16.mxu0 0
    %3667 = vmatpush1.bf16.msra.mxu0 0
    %3668 = vmatprep.subr.bf16.mxu0 0
    %3669 = vmatpush1.bf16.msra.mxu0 0
    %3670 = vmatprep.subr.bf16.mxu0 0
    %3671 = vmatpush1.bf16.msra.mxu0 0
    %3672 = vmatprep.subr.bf16.mxu0 0
    %3673 = vmatpush1.bf16.msra.mxu0 0
    %3674 = vmatprep.subr.bf16.mxu0 0
    %3675 = vmatpush1.bf16.msra.mxu0 0
    %3676 = vmatprep.subr.bf16.mxu0 0
    %3677 = vmatpush1.bf16.msra.mxu0 0
    %3678 = vmatprep.subr.bf16.mxu0 0
    %3679 = vmatpush1.bf16.msra.mxu0 0
    %3680 = vmatprep.subr.bf16.mxu0 0
    %3681 = vmatpush1.bf16.msra.mxu0 0
    %3682 = vmatprep.mubr.bf16.mxu0 0
    %3683 = vmatmul.mubr.bf16.gmra.mrb[0].mxu0 %v2560
    %v3684 = vpop.f32.mrb[0].mxu0
    %v3685 = vadd.f32 0.0, %v3684
    %v3686 = vpop.f32.mrb[0].mxu0
    %v3687 = vadd.f32 0.0, %v3686
    %v3688 = vpop.f32.mrb[0].mxu0
    %v3689 = vadd.f32 0.0, %v3688
    %v3690 = vpop.f32.mrb[0].mxu0
    %v3691 = vadd.f32 0.0, %v3690
    %3692 = vdwg.mxu0
    %3693 = vmatprep.subr.bf16.mxu0 %v3146
    %3694 = vmatpush1.bf16.msra.mxu0 %v3145
    %3695 = vmatprep.subr.bf16.mxu0 %v3170
    %3696 = vmatpush1.bf16.msra.mxu0 %v3169
    %3697 = vmatprep.subr.bf16.mxu0 %v3194
    %3698 = vmatpush1.bf16.msra.mxu0 %v3193
    %3699 = vmatprep.subr.bf16.mxu0 %v3218
    %3700 = vmatpush1.bf16.msra.mxu0 %v3217
    %3701 = vmatprep.subr.bf16.mxu0 %v3242
    %3702 = vmatpush1.bf16.msra.mxu0 %v3241
    %3703 = vmatprep.subr.bf16.mxu0 %v3266
    %3704 = vmatpush1.bf16.msra.mxu0 %v3265
    %3705 = vmatprep.subr.bf16.mxu0 %v3290
    %3706 = vmatpush1.bf16.msra.mxu0 %v3289
    %3707 = vmatprep.subr.bf16.mxu0 %v3314
    %3708 = vmatpush1.bf16.msra.mxu0 %v3313
    %3709 = vmatprep.subr.bf16.mxu0 0
    %3710 = vmatpush1.bf16.msra.mxu0 0
    %3711 = vmatprep.subr.bf16.mxu0 0
    %3712 = vmatpush1.bf16.msra.mxu0 0
    %3713 = vmatprep.subr.bf16.mxu0 0
    %3714 = vmatpush1.bf16.msra.mxu0 0
    %3715 = vmatprep.subr.bf16.mxu0 0
    %3716 = vmatpush1.bf16.msra.mxu0 0
    %3717 = vmatprep.subr.bf16.mxu0 0
    %3718 = vmatpush1.bf16.msra.mxu0 0
    %3719 = vmatprep.subr.bf16.mxu0 0
    %3720 = vmatpush1.bf16.msra.mxu0 0
    %3721 = vmatprep.subr.bf16.mxu0 0
    %3722 = vmatpush1.bf16.msra.mxu0 0
    %3723 = vmatprep.subr.bf16.mxu0 0
    %3724 = vmatpush1.bf16.msra.mxu0 0
    %3725 = vmatprep.mubr.bf16.mxu0 0
    %3726 = vmatmul.mubr.bf16.gmra.mrb[0].mxu0 %v2560
    %v3727 = vpop.f32.mrb[0].mxu0
    %v3728 = vadd.f32 0.0, %v3727
    %v3729 = vpop.f32.mrb[0].mxu0
    %v3730 = vadd.f32 0.0, %v3729
    %v3731 = vpop.f32.mrb[0].mxu0
    %v3732 = vadd.f32 0.0, %v3731
    %v3733 = vpop.f32.mrb[0].mxu0
    %v3734 = vadd.f32 0.0, %v3733
    %3735 = vdwg.mxu0
    %3736 = vmatprep.subr.bf16.mxu0 %v3148
    %3737 = vmatpush1.bf16.msra.mxu0 %v3147
    %3738 = vmatprep.subr.bf16.mxu0 %v3172
    %3739 = vmatpush1.bf16.msra.mxu0 %v3171
    %3740 = vmatprep.subr.bf16.mxu0 %v3196
    %3741 = vmatpush1.bf16.msra.mxu0 %v3195
    %3742 = vmatprep.subr.bf16.mxu0 %v3220
    %3743 = vmatpush1.bf16.msra.mxu0 %v3219
    %3744 = vmatprep.subr.bf16.mxu0 %v3244
    %3745 = vmatpush1.bf16.msra.mxu0 %v3243
    %3746 = vmatprep.subr.bf16.mxu0 %v3268
    %3747 = vmatpush1.bf16.msra.mxu0 %v3267
    %3748 = vmatprep.subr.bf16.mxu0 %v3292
    %3749 = vmatpush1.bf16.msra.mxu0 %v3291
    %3750 = vmatprep.subr.bf16.mxu0 %v3316
    %3751 = vmatpush1.bf16.msra.mxu0 %v3315
    %3752 = vmatprep.subr.bf16.mxu0 0
    %3753 = vmatpush1.bf16.msra.mxu0 0
    %3754 = vmatprep.subr.bf16.mxu0 0
    %3755 = vmatpush1.bf16.msra.mxu0 0
    %3756 = vmatprep.subr.bf16.mxu0 0
    %3757 = vmatpush1.bf16.msra.mxu0 0
    %3758 = vmatprep.subr.bf16.mxu0 0
    %3759 = vmatpush1.bf16.msra.mxu0 0
    %3760 = vmatprep.subr.bf16.mxu0 0
    %3761 = vmatpush1.bf16.msra.mxu0 0
    %3762 = vmatprep.subr.bf16.mxu0 0
    %3763 = vmatpush1.bf16.msra.mxu0 0
    %3764 = vmatprep.subr.bf16.mxu0 0
    %3765 = vmatpush1.bf16.msra.mxu0 0
    %3766 = vmatprep.subr.bf16.mxu0 0
    %3767 = vmatpush1.bf16.msra.mxu0 0
    %3768 = vmatprep.mubr.bf16.mxu0 0
    %3769 = vmatmul.mubr.bf16.gmra.mrb[0].mxu0 %v2560
    %v3770 = vpop.f32.mrb[0].mxu0
    %v3771 = vadd.f32 0.0, %v3770
    %v3772 = vpop.f32.mrb[0].mxu0
    %v3773 = vadd.f32 0.0, %v3772
    %v3774 = vpop.f32.mrb[0].mxu0
    %v3775 = vadd.f32 0.0, %v3774
    %v3776 = vpop.f32.mrb[0].mxu0
    %v3777 = vadd.f32 0.0, %v3776
    %3778 = vdwg.mxu0
    %3779 = vmatprep.subr.bf16.mxu0 %v3150
    %3780 = vmatpush1.bf16.msra.mxu0 %v3149
    %3781 = vmatprep.subr.bf16.mxu0 %v3174
    %3782 = vmatpush1.bf16.msra.mxu0 %v3173
    %3783 = vmatprep.subr.bf16.mxu0 %v3198
    %3784 = vmatpush1.bf16.msra.mxu0 %v3197
    %3785 = vmatprep.subr.bf16.mxu0 %v3222
    %3786 = vmatpush1.bf16.msra.mxu0 %v3221
    %3787 = vmatprep.subr.bf16.mxu0 %v3246
    %3788 = vmatpush1.bf16.msra.mxu0 %v3245
    %3789 = vmatprep.subr.bf16.mxu0 %v3270
    %3790 = vmatpush1.bf16.msra.mxu0 %v3269
    %3791 = vmatprep.subr.bf16.mxu0 %v3294
    %3792 = vmatpush1.bf16.msra.mxu0 %v3293
    %3793 = vmatprep.subr.bf16.mxu0 %v3318
    %3794 = vmatpush1.bf16.msra.mxu0 %v3317
    %3795 = vmatprep.subr.bf16.mxu0 0
    %3796 = vmatpush1.bf16.msra.mxu0 0
    %3797 = vmatprep.subr.bf16.mxu0 0
    %3798 = vmatpush1.bf16.msra.mxu0 0
    %3799 = vmatprep.subr.bf16.mxu0 0
    %3800 = vmatpush1.bf16.msra.mxu0 0
    %3801 = vmatprep.subr.bf16.mxu0 0
    %3802 = vmatpush1.bf16.msra.mxu0 0
    %3803 = vmatprep.subr.bf16.mxu0 0
    %3804 = vmatpush1.bf16.msra.mxu0 0
    %3805 = vmatprep.subr.bf16.mxu0 0
    %3806 = vmatpush1.bf16.msra.mxu0 0
    %3807 = vmatprep.subr.bf16.mxu0 0
    %3808 = vmatpush1.bf16.msra.mxu0 0
    %3809 = vmatprep.subr.bf16.mxu0 0
    %3810 = vmatpush1.bf16.msra.mxu0 0
    %3811 = vmatprep.mubr.bf16.mxu0 0
    %3812 = vmatmul.mubr.bf16.gmra.mrb[0].mxu0 %v2560
    %v3813 = vpop.f32.mrb[0].mxu0
    %v3814 = vadd.f32 0.0, %v3813
    %v3815 = vpop.f32.mrb[0].mxu0
    %v3816 = vadd.f32 0.0, %v3815
    %v3817 = vpop.f32.mrb[0].mxu0
    %v3818 = vadd.f32 0.0, %v3817
    %v3819 = vpop.f32.mrb[0].mxu0
    %v3820 = vadd.f32 0.0, %v3819
    %3821 = vdwg.mxu0
    %3822 = vmatprep.subr.bf16.mxu0 %v3152
    %3823 = vmatpush1.bf16.msra.mxu0 %v3151
    %3824 = vmatprep.subr.bf16.mxu0 %v3176
    %3825 = vmatpush1.bf16.msra.mxu0 %v3175
    %3826 = vmatprep.subr.bf16.mxu0 %v3200
    %3827 = vmatpush1.bf16.msra.mxu0 %v3199
    %3828 = vmatprep.subr.bf16.mxu0 %v3224
    %3829 = vmatpush1.bf16.msra.mxu0 %v3223
    %3830 = vmatprep.subr.bf16.mxu0 %v3248
    %3831 = vmatpush1.bf16.msra.mxu0 %v3247
    %3832 = vmatprep.subr.bf16.mxu0 %v3272
    %3833 = vmatpush1.bf16.msra.mxu0 %v3271
    %3834 = vmatprep.subr.bf16.mxu0 %v3296
    %3835 = vmatpush1.bf16.msra.mxu0 %v3295
    %3836 = vmatprep.subr.bf16.mxu0 %v3320
    %3837 = vmatpush1.bf16.msra.mxu0 %v3319
    %3838 = vmatprep.subr.bf16.mxu0 0
    %3839 = vmatpush1.bf16.msra.mxu0 0
    %3840 = vmatprep.subr.bf16.mxu0 0
    %3841 = vmatpush1.bf16.msra.mxu0 0
    %3842 = vmatprep.subr.bf16.mxu0 0
    %3843 = vmatpush1.bf16.msra.mxu0 0
    %3844 = vmatprep.subr.bf16.mxu0 0
    %3845 = vmatpush1.bf16.msra.mxu0 0
    %3846 = vmatprep.subr.bf16.mxu0 0
    %3847 = vmatpush1.bf16.msra.mxu0 0
    %3848 = vmatprep.subr.bf16.mxu0 0
    %3849 = vmatpush1.bf16.msra.mxu0 0
    %3850 = vmatprep.subr.bf16.mxu0 0
    %3851 = vmatpush1.bf16.msra.mxu0 0
    %3852 = vmatprep.subr.bf16.mxu0 0
    %3853 = vmatpush1.bf16.msra.mxu0 0
    %3854 = vmatprep.mubr.bf16.mxu0 0
    %3855 = vmatmul.mubr.bf16.gmra.mrb[0].mxu0 %v2560
    %v3856 = vpop.f32.mrb[0].mxu0
    %v3857 = vadd.f32 0.0, %v3856
    %v3858 = vpop.f32.mrb[0].mxu0
    %v3859 = vadd.f32 0.0, %v3858
    %v3860 = vpop.f32.mrb[0].mxu0
    %v3861 = vadd.f32 0.0, %v3860
    %v3862 = vpop.f32.mrb[0].mxu0
    %v3863 = vadd.f32 0.0, %v3862
    %3864 = vdwg.mxu0
    %3865 = vmatprep.subr.bf16.mxu0 %v3154
    %3866 = vmatpush1.bf16.msra.mxu0 %v3153
    %3867 = vmatprep.subr.bf16.mxu0 %v3178
    %3868 = vmatpush1.bf16.msra.mxu0 %v3177
    %3869 = vmatprep.subr.bf16.mxu0 %v3202
    %3870 = vmatpush1.bf16.msra.mxu0 %v3201
    %3871 = vmatprep.subr.bf16.mxu0 %v3226
    %3872 = vmatpush1.bf16.msra.mxu0 %v3225
    %3873 = vmatprep.subr.bf16.mxu0 %v3250
    %3874 = vmatpush1.bf16.msra.mxu0 %v3249
    %3875 = vmatprep.subr.bf16.mxu0 %v3274
    %3876 = vmatpush1.bf16.msra.mxu0 %v3273
    %3877 = vmatprep.subr.bf16.mxu0 %v3298
    %3878 = vmatpush1.bf16.msra.mxu0 %v3297
    %3879 = vmatprep.subr.bf16.mxu0 %v3322
    %3880 = vmatpush1.bf16.msra.mxu0 %v3321
    %3881 = vmatprep.subr.bf16.mxu0 0
    %3882 = vmatpush1.bf16.msra.mxu0 0
    %3883 = vmatprep.subr.bf16.mxu0 0
    %3884 = vmatpush1.bf16.msra.mxu0 0
    %3885 = vmatprep.subr.bf16.mxu0 0
    %3886 = vmatpush1.bf16.msra.mxu0 0
    %3887 = vmatprep.subr.bf16.mxu0 0
    %3888 = vmatpush1.bf16.msra.mxu0 0
    %3889 = vmatprep.subr.bf16.mxu0 0
    %3890 = vmatpush1.bf16.msra.mxu0 0
    %3891 = vmatprep.subr.bf16.mxu0 0
    %3892 = vmatpush1.bf16.msra.mxu0 0
    %3893 = vmatprep.subr.bf16.mxu0 0
    %3894 = vmatpush1.bf16.msra.mxu0 0
    %3895 = vmatprep.subr.bf16.mxu0 0
    %3896 = vmatpush1.bf16.msra.mxu0 0
    %3897 = vmatprep.mubr.bf16.mxu0 0
    %3898 = vmatmul.mubr.bf16.gmra.mrb[0].mxu0 %v2560
    %v3899 = vpop.f32.mrb[0].mxu0
    %v3900 = vadd.f32 0.0, %v3899
    %v3901 = vpop.f32.mrb[0].mxu0
    %v3902 = vadd.f32 0.0, %v3901
    %v3903 = vpop.f32.mrb[0].mxu0
    %v3904 = vadd.f32 0.0, %v3903
    %v3905 = vpop.f32.mrb[0].mxu0
    %v3906 = vadd.f32 0.0, %v3905
    %3907 = vdwg.mxu0
    %3908 = vmatprep.subr.bf16.mxu0 %v3156
    %3909 = vmatpush1.bf16.msra.mxu0 %v3155
    %3910 = vmatprep.subr.bf16.mxu0 %v3180
    %3911 = vmatpush1.bf16.msra.mxu0 %v3179
    %3912 = vmatprep.subr.bf16.mxu0 %v3204
    %3913 = vmatpush1.bf16.msra.mxu0 %v3203
    %3914 = vmatprep.subr.bf16.mxu0 %v3228
    %3915 = vmatpush1.bf16.msra.mxu0 %v3227
    %3916 = vmatprep.subr.bf16.mxu0 %v3252
    %3917 = vmatpush1.bf16.msra.mxu0 %v3251
    %3918 = vmatprep.subr.bf16.mxu0 %v3276
    %3919 = vmatpush1.bf16.msra.mxu0 %v3275
    %3920 = vmatprep.subr.bf16.mxu0 %v3300
    %3921 = vmatpush1.bf16.msra.mxu0 %v3299
    %3922 = vmatprep.subr.bf16.mxu0 %v3324
    %3923 = vmatpush1.bf16.msra.mxu0 %v3323
    %3924 = vmatprep.subr.bf16.mxu0 0
    %3925 = vmatpush1.bf16.msra.mxu0 0
    %3926 = vmatprep.subr.bf16.mxu0 0
    %3927 = vmatpush1.bf16.msra.mxu0 0
    %3928 = vmatprep.subr.bf16.mxu0 0
    %3929 = vmatpush1.bf16.msra.mxu0 0
    %3930 = vmatprep.subr.bf16.mxu0 0
    %3931 = vmatpush1.bf16.msra.mxu0 0
    %3932 = vmatprep.subr.bf16.mxu0 0
    %3933 = vmatpush1.bf16.msra.mxu0 0
    %3934 = vmatprep.subr.bf16.mxu0 0
    %3935 = vmatpush1.bf16.msra.mxu0 0
    %3936 = vmatprep.subr.bf16.mxu0 0
    %3937 = vmatpush1.bf16.msra.mxu0 0
    %3938 = vmatprep.subr.bf16.mxu0 0
    %3939 = vmatpush1.bf16.msra.mxu0 0
    %3940 = vmatprep.mubr.bf16.mxu0 0
    %3941 = vmatmul.mubr.bf16.gmra.mrb[0].mxu0 %v2560
    %v3942 = vpop.f32.mrb[0].mxu0
    %v3943 = vadd.f32 0.0, %v3942
    %v3944 = vpop.f32.mrb[0].mxu0
    %v3945 = vadd.f32 0.0, %v3944
    %v3946 = vpop.f32.mrb[0].mxu0
    %v3947 = vadd.f32 0.0, %v3946
    %v3948 = vpop.f32.mrb[0].mxu0
    %v3949 = vadd.f32 0.0, %v3948
    %3950 = vdwg.mxu0
    %3951 = vmatprep.subr.bf16.mxu0 %v3158
    %3952 = vmatpush1.bf16.msra.mxu0 %v3157
    %3953 = vmatprep.subr.bf16.mxu0 %v3182
    %3954 = vmatpush1.bf16.msra.mxu0 %v3181
    %3955 = vmatprep.subr.bf16.mxu0 %v3206
    %3956 = vmatpush1.bf16.msra.mxu0 %v3205
    %3957 = vmatprep.subr.bf16.mxu0 %v3230
    %3958 = vmatpush1.bf16.msra.mxu0 %v3229
    %3959 = vmatprep.subr.bf16.mxu0 %v3254
    %3960 = vmatpush1.bf16.msra.mxu0 %v3253
    %3961 = vmatprep.subr.bf16.mxu0 %v3278
    %3962 = vmatpush1.bf16.msra.mxu0 %v3277
    %3963 = vmatprep.subr.bf16.mxu0 %v3302
    %3964 = vmatpush1.bf16.msra.mxu0 %v3301
    %3965 = vmatprep.subr.bf16.mxu0 %v3326
    %3966 = vmatpush1.bf16.msra.mxu0 %v3325
    %3967 = vmatprep.subr.bf16.mxu0 0
    %3968 = vmatpush1.bf16.msra.mxu0 0
    %3969 = vmatprep.subr.bf16.mxu0 0
    %3970 = vmatpush1.bf16.msra.mxu0 0
    %3971 = vmatprep.subr.bf16.mxu0 0
    %3972 = vmatpush1.bf16.msra.mxu0 0
    %3973 = vmatprep.subr.bf16.mxu0 0
    %3974 = vmatpush1.bf16.msra.mxu0 0
    %3975 = vmatprep.subr.bf16.mxu0 0
    %3976 = vmatpush1.bf16.msra.mxu0 0
    %3977 = vmatprep.subr.bf16.mxu0 0
    %3978 = vmatpush1.bf16.msra.mxu0 0
    %3979 = vmatprep.subr.bf16.mxu0 0
    %3980 = vmatpush1.bf16.msra.mxu0 0
    %3981 = vmatprep.subr.bf16.mxu0 0
    %3982 = vmatpush1.bf16.msra.mxu0 0
    %3983 = vmatprep.mubr.bf16.mxu0 0
    %3984 = vmatmul.mubr.bf16.gmra.mrb[0].mxu0 %v2560
    %v3985 = vpop.f32.mrb[0].mxu0
    %v3986 = vadd.f32 0.0, %v3985
    %v3987 = vpop.f32.mrb[0].mxu0
    %v3988 = vadd.f32 0.0, %v3987
    %v3989 = vpop.f32.mrb[0].mxu0
    %v3990 = vadd.f32 0.0, %v3989
    %v3991 = vpop.f32.mrb[0].mxu0
    %v3992 = vadd.f32 0.0, %v3991
    %3993 = vdwg.mxu0
    %3994 = vmatprep.subr.bf16.mxu0 %v3160
    %3995 = vmatpush1.bf16.msra.mxu0 %v3159
    %3996 = vmatprep.subr.bf16.mxu0 %v3184
    %3997 = vmatpush1.bf16.msra.mxu0 %v3183
    %3998 = vmatprep.subr.bf16.mxu0 %v3208
    %3999 = vmatpush1.bf16.msra.mxu0 %v3207
    %4000 = vmatprep.subr.bf16.mxu0 %v3232
    %4001 = vmatpush1.bf16.msra.mxu0 %v3231
    %4002 = vmatprep.subr.bf16.mxu0 %v3256
    %4003 = vmatpush1.bf16.msra.mxu0 %v3255
    %4004 = vmatprep.subr.bf16.mxu0 %v3280
    %4005 = vmatpush1.bf16.msra.mxu0 %v3279
    %4006 = vmatprep.subr.bf16.mxu0 %v3304
    %4007 = vmatpush1.bf16.msra.mxu0 %v3303
    %4008 = vmatprep.subr.bf16.mxu0 %v3328
    %4009 = vmatpush1.bf16.msra.mxu0 %v3327
    %4010 = vmatprep.subr.bf16.mxu0 0
    %4011 = vmatpush1.bf16.msra.mxu0 0
    %4012 = vmatprep.subr.bf16.mxu0 0
    %4013 = vmatpush1.bf16.msra.mxu0 0
    %4014 = vmatprep.subr.bf16.mxu0 0
    %4015 = vmatpush1.bf16.msra.mxu0 0
    %4016 = vmatprep.subr.bf16.mxu0 0
    %4017 = vmatpush1.bf16.msra.mxu0 0
    %4018 = vmatprep.subr.bf16.mxu0 0
    %4019 = vmatpush1.bf16.msra.mxu0 0
    %4020 = vmatprep.subr.bf16.mxu0 0
    %4021 = vmatpush1.bf16.msra.mxu0 0
    %4022 = vmatprep.subr.bf16.mxu0 0
    %4023 = vmatpush1.bf16.msra.mxu0 0
    %4024 = vmatprep.subr.bf16.mxu0 0
    %4025 = vmatpush1.bf16.msra.mxu0 0
    %4026 = vmatprep.mubr.bf16.mxu0 0
    %4027 = vmatmul.mubr.bf16.gmra.mrb[0].mxu0 %v2560
    %v4028 = vpop.f32.mrb[0].mxu0
    %v4029 = vadd.f32 0.0, %v4028
    %v4030 = vpop.f32.mrb[0].mxu0
    %v4031 = vadd.f32 0.0, %v4030
    %v4032 = vpop.f32.mrb[0].mxu0
    %v4033 = vadd.f32 0.0, %v4032
    %v4034 = vpop.f32.mrb[0].mxu0
    %v4035 = vadd.f32 0.0, %v4034
    %4036 = vdwg.mxu0
    %v4037 = vadd.f32 %v255, %v3556
    %v4038 = vadd.f32 %v256, %v3558
    %v4039 = vadd.f32 %v257, %v3599
    %v4040 = vadd.f32 %v258, %v3601
    %v4041 = vadd.f32 %v259, %v3642
    %v4042 = vadd.f32 %v260, %v3644
    %v4043 = vadd.f32 %v261, %v3685
    %v4044 = vadd.f32 %v262, %v3687
    %v4045 = vadd.f32 %v263, %v3728
    %v4046 = vadd.f32 %v264, %v3730
    %v4047 = vadd.f32 %v265, %v3771
    %v4048 = vadd.f32 %v266, %v3773
    %v4049 = vadd.f32 %v267, %v3814
    %v4050 = vadd.f32 %v268, %v3816
    %v4051 = vadd.f32 %v269, %v3857
    %v4052 = vadd.f32 %v270, %v3859
    %v4053 = vadd.f32 %v271, %v3900
    %v4054 = vadd.f32 %v272, %v3902
    %v4055 = vadd.f32 %v273, %v3943
    %v4056 = vadd.f32 %v274, %v3945
    %v4057 = vadd.f32 %v275, %v3986
    %v4058 = vadd.f32 %v276, %v3988
    %v4059 = vadd.f32 %v277, %v4029
    %v4060 = vadd.f32 %v278, %v4031
    %v4061 = vadd.f32 %v279, %v3560
    %v4062 = vadd.f32 %v280, %v3562
    %v4063 = vadd.f32 %v281, %v3603
    %v4064 = vadd.f32 %v282, %v3605
    %v4065 = vadd.f32 %v283, %v3646
    %v4066 = vadd.f32 %v284, %v3648
    %v4067 = vadd.f32 %v285, %v3689
    %v4068 = vadd.f32 %v286, %v3691
    %v4069 = vadd.f32 %v287, %v3732
    %v4070 = vadd.f32 %v288, %v3734
    %v4071 = vadd.f32 %v289, %v3775
    %v4072 = vadd.f32 %v290, %v3777
    %v4073 = vadd.f32 %v291, %v3818
    %v4074 = vadd.f32 %v292, %v3820
    %v4075 = vadd.f32 %v293, %v3861
    %v4076 = vadd.f32 %v294, %v3863
    %v4077 = vadd.f32 %v295, %v3904
    %v4078 = vadd.f32 %v296, %v3906
    %v4079 = vadd.f32 %v297, %v3947
    %v4080 = vadd.f32 %v298, %v3949
    %v4081 = vadd.f32 %v299, %v3990
    %v4082 = vadd.f32 %v300, %v3992
    %v4083 = vadd.f32 %v301, %v4033
    %v4084 = vadd.f32 %v302, %v4035
    %v4088 = vlaneseq
    %v4089 = vshrl.u32 %v4088, 7
    %v4090 = vsub.s32 0, %v4089
    %v4091 = vrot.slane %v880, %v4090
    %v4092 = vlaneseq
    %v4093 = vshrl.u32 %v4092, 7
    %v4094 = vsub.s32 1, %v4093
    %v4095 = vrot.slane %v880, %v4094
    %v4096 = vlaneseq
    %v4097 = vshrl.u32 %v4096, 7
    %v4098 = vsub.s32 2, %v4097
    %v4099 = vrot.slane %v880, %v4098
    %v4100 = vlaneseq
    %v4101 = vshrl.u32 %v4100, 7
    %v4102 = vsub.s32 3, %v4101
    %v4103 = vrot.slane %v880, %v4102
    %v4104 = vlaneseq
    %v4105 = vshrl.u32 %v4104, 7
    %v4106 = vsub.s32 4, %v4105
    %v4107 = vrot.slane %v880, %v4106
    %v4108 = vlaneseq
    %v4109 = vshrl.u32 %v4108, 7
    %v4110 = vsub.s32 5, %v4109
    %v4111 = vrot.slane %v880, %v4110
    %v4112 = vlaneseq
    %v4113 = vshrl.u32 %v4112, 7
    %v4114 = vsub.s32 6, %v4113
    %v4115 = vrot.slane %v880, %v4114
    %v4116 = vlaneseq
    %v4117 = vshrl.u32 %v4116, 7
    %v4118 = vsub.s32 7, %v4117
    %v4119 = vrot.slane %v880, %v4118
    %v4120 = vlaneseq
    %v4121 = vshrl.u32 %v4120, 7
    %v4122 = vsub.s32 0, %v4121
    %v4123 = vrot.slane %v881, %v4122
    %v4124 = vlaneseq
    %v4125 = vshrl.u32 %v4124, 7
    %v4126 = vsub.s32 1, %v4125
    %v4127 = vrot.slane %v881, %v4126
    %v4128 = vlaneseq
    %v4129 = vshrl.u32 %v4128, 7
    %v4130 = vsub.s32 2, %v4129
    %v4131 = vrot.slane %v881, %v4130
    %v4132 = vlaneseq
    %v4133 = vshrl.u32 %v4132, 7
    %v4134 = vsub.s32 3, %v4133
    %v4135 = vrot.slane %v881, %v4134
    %v4136 = vlaneseq
    %v4137 = vshrl.u32 %v4136, 7
    %v4138 = vsub.s32 4, %v4137
    %v4139 = vrot.slane %v881, %v4138
    %v4140 = vlaneseq
    %v4141 = vshrl.u32 %v4140, 7
    %v4142 = vsub.s32 5, %v4141
    %v4143 = vrot.slane %v881, %v4142
    %v4144 = vlaneseq
    %v4145 = vshrl.u32 %v4144, 7
    %v4146 = vsub.s32 6, %v4145
    %v4147 = vrot.slane %v881, %v4146
    %v4148 = vlaneseq
    %v4149 = vshrl.u32 %v4148, 7
    %v4150 = vsub.s32 7, %v4149
    %v4151 = vrot.slane %v881, %v4150
    %v4152 = vlaneseq
    %v4153 = vshrl.u32 %v4152, 7
    %v4154 = vsub.s32 0, %v4153
    %v4155 = vrot.slane %v882, %v4154
    %v4156 = vlaneseq
    %v4157 = vshrl.u32 %v4156, 7
    %v4158 = vsub.s32 1, %v4157
    %v4159 = vrot.slane %v882, %v4158
    %v4160 = vlaneseq
    %v4161 = vshrl.u32 %v4160, 7
    %v4162 = vsub.s32 2, %v4161
    %v4163 = vrot.slane %v882, %v4162
    %v4164 = vlaneseq
    %v4165 = vshrl.u32 %v4164, 7
    %v4166 = vsub.s32 3, %v4165
    %v4167 = vrot.slane %v882, %v4166
    %v4168 = vlaneseq
    %v4169 = vshrl.u32 %v4168, 7
    %v4170 = vsub.s32 4, %v4169
    %v4171 = vrot.slane %v882, %v4170
    %v4172 = vlaneseq
    %v4173 = vshrl.u32 %v4172, 7
    %v4174 = vsub.s32 5, %v4173
    %v4175 = vrot.slane %v882, %v4174
    %v4176 = vlaneseq
    %v4177 = vshrl.u32 %v4176, 7
    %v4178 = vsub.s32 6, %v4177
    %v4179 = vrot.slane %v882, %v4178
    %v4180 = vlaneseq
    %v4181 = vshrl.u32 %v4180, 7
    %v4182 = vsub.s32 7, %v4181
    %v4183 = vrot.slane %v882, %v4182
    %v4208 = vadd.f32 %v4037, %v4091
    %v4209 = vadd.f32 %v4038, %v4095
    %v4210 = vadd.f32 %v4039, %v4099
    %v4211 = vadd.f32 %v4040, %v4103
    %v4212 = vadd.f32 %v4041, %v4107
    %v4213 = vadd.f32 %v4042, %v4111
    %v4214 = vadd.f32 %v4043, %v4115
    %v4215 = vadd.f32 %v4044, %v4119
    %v4216 = vadd.f32 %v4045, %v4123
    %v4217 = vadd.f32 %v4046, %v4127
    %v4218 = vadd.f32 %v4047, %v4131
    %v4219 = vadd.f32 %v4048, %v4135
    %v4220 = vadd.f32 %v4049, %v4139
    %v4221 = vadd.f32 %v4050, %v4143
    %v4222 = vadd.f32 %v4051, %v4147
    %v4223 = vadd.f32 %v4052, %v4151
    %v4224 = vadd.f32 %v4053, %v4155
    %v4225 = vadd.f32 %v4054, %v4159
    %v4226 = vadd.f32 %v4055, %v4163
    %v4227 = vadd.f32 %v4056, %v4167
    %v4228 = vadd.f32 %v4057, %v4171
    %v4229 = vadd.f32 %v4058, %v4175
    %v4230 = vadd.f32 %v4059, %v4179
    %v4231 = vadd.f32 %v4060, %v4183
    %v4232 = vadd.f32 %v4061, %v4091
    %v4233 = vadd.f32 %v4062, %v4095
    %v4234 = vadd.f32 %v4063, %v4099
    %v4235 = vadd.f32 %v4064, %v4103
    %v4236 = vadd.f32 %v4065, %v4107
    %v4237 = vadd.f32 %v4066, %v4111
    %v4238 = vadd.f32 %v4067, %v4115
    %v4239 = vadd.f32 %v4068, %v4119
    %v4240 = vadd.f32 %v4069, %v4123
    %v4241 = vadd.f32 %v4070, %v4127
    %v4242 = vadd.f32 %v4071, %v4131
    %v4243 = vadd.f32 %v4072, %v4135
    %v4244 = vadd.f32 %v4073, %v4139
    %v4245 = vadd.f32 %v4074, %v4143
    %v4246 = vadd.f32 %v4075, %v4147
    %v4247 = vadd.f32 %v4076, %v4151
    %v4248 = vadd.f32 %v4077, %v4155
    %v4249 = vadd.f32 %v4078, %v4159
    %v4250 = vadd.f32 %v4079, %v4163
    %v4251 = vadd.f32 %v4080, %v4167
    %v4252 = vadd.f32 %v4081, %v4171
    %v4253 = vadd.f32 %v4082, %v4175
    %v4254 = vadd.f32 %v4083, %v4179
    %v4255 = vadd.f32 %v4084, %v4183
    %v4256 = vadd.f32 %v687, 0.625
    %v4257 = vpack.c.bf16 %v4232, %v4208
    %v4258 = vpack.c.bf16 %v4233, %v4209
    %v4259 = vpack.c.bf16 %v4234, %v4210
    %v4260 = vpack.c.bf16 %v4235, %v4211
    %v4261 = vpack.c.bf16 %v4236, %v4212
    %v4262 = vpack.c.bf16 %v4237, %v4213
    %v4263 = vpack.c.bf16 %v4238, %v4214
    %v4264 = vpack.c.bf16 %v4239, %v4215
    %v4265 = vpack.c.bf16 %v4240, %v4216
    %v4266 = vpack.c.bf16 %v4241, %v4217
    %v4267 = vpack.c.bf16 %v4242, %v4218
    %v4268 = vpack.c.bf16 %v4243, %v4219
    %v4269 = vpack.c.bf16 %v4244, %v4220
    %v4270 = vpack.c.bf16 %v4245, %v4221
    %v4271 = vpack.c.bf16 %v4246, %v4222
    %v4272 = vpack.c.bf16 %v4247, %v4223
    %v4273 = vpack.c.bf16 %v4248, %v4224
    %v4274 = vpack.c.bf16 %v4249, %v4225
    %v4275 = vpack.c.bf16 %v4250, %v4226
    %v4276 = vpack.c.bf16 %v4251, %v4227
    %v4277 = vpack.c.bf16 %v4252, %v4228
    %v4278 = vpack.c.bf16 %v4253, %v4229
    %v4279 = vpack.c.bf16 %v4254, %v4230
    %v4280 = vpack.c.bf16 %v4255, %v4231
    %v4282 = vlaneseq
    %v4283 = vshrl.u32 %v4282, 7
    %v4284 = vsub.s32 0, %v4283
    %v4285 = vrot.slane %v4256, %v4284
    %4287 = vmatprep.subr.bf16.mxu0 0
    %4288 = vmatpush1.bf16.msra.mxu0 %v1682
    %4289 = vmatprep.subr.bf16.mxu0 0
    %4290 = vmatpush1.bf16.msra.mxu0 %v1683
    %4291 = vmatprep.subr.bf16.mxu0 0
    %4292 = vmatpush1.bf16.msra.mxu0 %v1684
    %4293 = vmatprep.subr.bf16.mxu0 0
    %4294 = vmatpush1.bf16.msra.mxu0 %v1685
    %4295 = vmatprep.subr.bf16.mxu0 0
    %4296 = vmatpush1.bf16.msra.mxu0 %v1686
    %4297 = vmatprep.subr.bf16.mxu0 0
    %4298 = vmatpush1.bf16.msra.mxu0 %v1687
    %4299 = vmatprep.subr.bf16.mxu0 0
    %4300 = vmatpush1.bf16.msra.mxu0 %v1688
    %4301 = vmatprep.subr.bf16.mxu0 0
    %4302 = vmatpush1.bf16.msra.mxu0 %v1689
    %4303 = vmatprep.subr.bf16.mxu0 0
    %4304 = vmatpush1.bf16.msra.mxu0 %v1690
    %4305 = vmatprep.subr.bf16.mxu0 0
    %4306 = vmatpush1.bf16.msra.mxu0 %v1691
    %4307 = vmatprep.subr.bf16.mxu0 0
    %4308 = vmatpush1.bf16.msra.mxu0 %v1692
    %4309 = vmatprep.subr.bf16.mxu0 0
    %4310 = vmatpush1.bf16.msra.mxu0 %v1693
    %4311 = vmatprep.subr.bf16.mxu0 0
    %4312 = vmatpush1.bf16.msra.mxu0 %v1694
    %4313 = vmatprep.subr.bf16.mxu0 0
    %4314 = vmatpush1.bf16.msra.mxu0 %v1695
    %4315 = vmatprep.subr.bf16.mxu0 0
    %4316 = vmatpush1.bf16.msra.mxu0 %v1696
    %4317 = vmatprep.subr.bf16.mxu0 0
    %4318 = vmatpush1.bf16.msra.mxu0 %v1697
    %4319 = vmatprep.mubr.bf16.mxu0 %v4258
    %4320 = vmatmul.mubr.bf16.gmra.mrb[0].mxu0 %v4257
    %v4321 = vpop.f32.mrb[0].mxu0
    %v4322 = vadd.f32 %v4285, %v4321
    %v4323 = vpop.f32.mrb[0].mxu0
    %v4324 = vpop.f32.mrb[0].mxu0
    %v4325 = vadd.f32 %v4285, %v4324
    %v4326 = vpop.f32.mrb[0].mxu0
    %4327 = vdwg.mxu0
    %4328 = vmatprep.subr.bf16.mxu0 0
    %4329 = vmatpush1.bf16.msra.mxu0 %v1698
    %4330 = vmatprep.subr.bf16.mxu0 0
    %4331 = vmatpush1.bf16.msra.mxu0 %v1699
    %4332 = vmatprep.subr.bf16.mxu0 0
    %4333 = vmatpush1.bf16.msra.mxu0 %v1700
    %4334 = vmatprep.subr.bf16.mxu0 0
    %4335 = vmatpush1.bf16.msra.mxu0 %v1701
    %4336 = vmatprep.subr.bf16.mxu0 0
    %4337 = vmatpush1.bf16.msra.mxu0 %v1702
    %4338 = vmatprep.subr.bf16.mxu0 0
    %4339 = vmatpush1.bf16.msra.mxu0 %v1703
    %4340 = vmatprep.subr.bf16.mxu0 0
    %4341 = vmatpush1.bf16.msra.mxu0 %v1704
    %4342 = vmatprep.subr.bf16.mxu0 0
    %4343 = vmatpush1.bf16.msra.mxu0 %v1705
    %4344 = vmatprep.subr.bf16.mxu0 0
    %4345 = vmatpush1.bf16.msra.mxu0 %v1706
    %4346 = vmatprep.subr.bf16.mxu0 0
    %4347 = vmatpush1.bf16.msra.mxu0 %v1707
    %4348 = vmatprep.subr.bf16.mxu0 0
    %4349 = vmatpush1.bf16.msra.mxu0 %v1708
    %4350 = vmatprep.subr.bf16.mxu0 0
    %4351 = vmatpush1.bf16.msra.mxu0 %v1709
    %4352 = vmatprep.subr.bf16.mxu0 0
    %4353 = vmatpush1.bf16.msra.mxu0 %v1710
    %4354 = vmatprep.subr.bf16.mxu0 0
    %4355 = vmatpush1.bf16.msra.mxu0 %v1711
    %4356 = vmatprep.subr.bf16.mxu0 0
    %4357 = vmatpush1.bf16.msra.mxu0 %v1712
    %4358 = vmatprep.subr.bf16.mxu0 0
    %4359 = vmatpush1.bf16.msra.mxu0 %v1713
    %4360 = vmatprep.mubr.bf16.mxu0 %v4260
    %4361 = vmatmul.mubr.bf16.gmra.mrb[0].mxu0 %v4259
    %v4362 = vpop.f32.mrb[0].mxu0
    %v4363 = vadd.f32 %v4322, %v4362
    %v4364 = vpop.f32.mrb[0].mxu0
    %v4365 = vpop.f32.mrb[0].mxu0
    %v4366 = vadd.f32 %v4325, %v4365
    %v4367 = vpop.f32.mrb[0].mxu0
    %4368 = vdwg.mxu0
    %4369 = vmatprep.subr.bf16.mxu0 0
    %4370 = vmatpush1.bf16.msra.mxu0 %v1714
    %4371 = vmatprep.subr.bf16.mxu0 0
    %4372 = vmatpush1.bf16.msra.mxu0 %v1715
    %4373 = vmatprep.subr.bf16.mxu0 0
    %4374 = vmatpush1.bf16.msra.mxu0 %v1716
    %4375 = vmatprep.subr.bf16.mxu0 0
    %4376 = vmatpush1.bf16.msra.mxu0 %v1717
    %4377 = vmatprep.subr.bf16.mxu0 0
    %4378 = vmatpush1.bf16.msra.mxu0 %v1718
    %4379 = vmatprep.subr.bf16.mxu0 0
    %4380 = vmatpush1.bf16.msra.mxu0 %v1719
    %4381 = vmatprep.subr.bf16.mxu0 0
    %4382 = vmatpush1.bf16.msra.mxu0 %v1720
    %4383 = vmatprep.subr.bf16.mxu0 0
    %4384 = vmatpush1.bf16.msra.mxu0 %v1721
    %4385 = vmatprep.subr.bf16.mxu0 0
    %4386 = vmatpush1.bf16.msra.mxu0 %v1722
    %4387 = vmatprep.subr.bf16.mxu0 0
    %4388 = vmatpush1.bf16.msra.mxu0 %v1723
    %4389 = vmatprep.subr.bf16.mxu0 0
    %4390 = vmatpush1.bf16.msra.mxu0 %v1724
    %4391 = vmatprep.subr.bf16.mxu0 0
    %4392 = vmatpush1.bf16.msra.mxu0 %v1725
    %4393 = vmatprep.subr.bf16.mxu0 0
    %4394 = vmatpush1.bf16.msra.mxu0 %v1726
    %4395 = vmatprep.subr.bf16.mxu0 0
    %4396 = vmatpush1.bf16.msra.mxu0 %v1727
    %4397 = vmatprep.subr.bf16.mxu0 0
    %4398 = vmatpush1.bf16.msra.mxu0 %v1728
    %4399 = vmatprep.subr.bf16.mxu0 0
    %4400 = vmatpush1.bf16.msra.mxu0 %v1729
    %4401 = vmatprep.mubr.bf16.mxu0 %v4262
    %4402 = vmatmul.mubr.bf16.gmra.mrb[0].mxu0 %v4261
    %v4403 = vpop.f32.mrb[0].mxu0
    %v4404 = vadd.f32 %v4363, %v4403
    %v4405 = vpop.f32.mrb[0].mxu0
    %v4406 = vpop.f32.mrb[0].mxu0
    %v4407 = vadd.f32 %v4366, %v4406
    %v4408 = vpop.f32.mrb[0].mxu0
    %4409 = vdwg.mxu0
    %4410 = vmatprep.subr.bf16.mxu0 0
    %4411 = vmatpush1.bf16.msra.mxu0 %v1730
    %4412 = vmatprep.subr.bf16.mxu0 0
    %4413 = vmatpush1.bf16.msra.mxu0 %v1731
    %4414 = vmatprep.subr.bf16.mxu0 0
    %4415 = vmatpush1.bf16.msra.mxu0 %v1732
    %4416 = vmatprep.subr.bf16.mxu0 0
    %4417 = vmatpush1.bf16.msra.mxu0 %v1733
    %4418 = vmatprep.subr.bf16.mxu0 0
    %4419 = vmatpush1.bf16.msra.mxu0 %v1734
    %4420 = vmatprep.subr.bf16.mxu0 0
    %4421 = vmatpush1.bf16.msra.mxu0 %v1735
    %4422 = vmatprep.subr.bf16.mxu0 0
    %4423 = vmatpush1.bf16.msra.mxu0 %v1736
    %4424 = vmatprep.subr.bf16.mxu0 0
    %4425 = vmatpush1.bf16.msra.mxu0 %v1737
    %4426 = vmatprep.subr.bf16.mxu0 0
    %4427 = vmatpush1.bf16.msra.mxu0 %v1738
    %4428 = vmatprep.subr.bf16.mxu0 0
    %4429 = vmatpush1.bf16.msra.mxu0 %v1739
    %4430 = vmatprep.subr.bf16.mxu0 0
    %4431 = vmatpush1.bf16.msra.mxu0 %v1740
    %4432 = vmatprep.subr.bf16.mxu0 0
    %4433 = vmatpush1.bf16.msra.mxu0 %v1741
    %4434 = vmatprep.subr.bf16.mxu0 0
    %4435 = vmatpush1.bf16.msra.mxu0 %v1742
    %4436 = vmatprep.subr.bf16.mxu0 0
    %4437 = vmatpush1.bf16.msra.mxu0 %v1743
    %4438 = vmatprep.subr.bf16.mxu0 0
    %4439 = vmatpush1.bf16.msra.mxu0 %v1744
    %4440 = vmatprep.subr.bf16.mxu0 0
    %4441 = vmatpush1.bf16.msra.mxu0 %v1745
    %4442 = vmatprep.mubr.bf16.mxu0 %v4264
    %4443 = vmatmul.mubr.bf16.gmra.mrb[0].mxu0 %v4263
    %v4444 = vpop.f32.mrb[0].mxu0
    %v4445 = vadd.f32 %v4404, %v4444
    %v4446 = vpop.f32.mrb[0].mxu0
    %v4447 = vpop.f32.mrb[0].mxu0
    %v4448 = vadd.f32 %v4407, %v4447
    %v4449 = vpop.f32.mrb[0].mxu0
    %4450 = vdwg.mxu0
    %4451 = vmatprep.subr.bf16.mxu0 0
    %4452 = vmatpush1.bf16.msra.mxu0 %v1746
    %4453 = vmatprep.subr.bf16.mxu0 0
    %4454 = vmatpush1.bf16.msra.mxu0 %v1747
    %4455 = vmatprep.subr.bf16.mxu0 0
    %4456 = vmatpush1.bf16.msra.mxu0 %v1748
    %4457 = vmatprep.subr.bf16.mxu0 0
    %4458 = vmatpush1.bf16.msra.mxu0 %v1749
    %4459 = vmatprep.subr.bf16.mxu0 0
    %4460 = vmatpush1.bf16.msra.mxu0 %v1750
    %4461 = vmatprep.subr.bf16.mxu0 0
    %4462 = vmatpush1.bf16.msra.mxu0 %v1751
    %4463 = vmatprep.subr.bf16.mxu0 0
    %4464 = vmatpush1.bf16.msra.mxu0 %v1752
    %4465 = vmatprep.subr.bf16.mxu0 0
    %4466 = vmatpush1.bf16.msra.mxu0 %v1753
    %4467 = vmatprep.subr.bf16.mxu0 0
    %4468 = vmatpush1.bf16.msra.mxu0 %v1754
    %4469 = vmatprep.subr.bf16.mxu0 0
    %4470 = vmatpush1.bf16.msra.mxu0 %v1755
    %4471 = vmatprep.subr.bf16.mxu0 0
    %4472 = vmatpush1.bf16.msra.mxu0 %v1756
    %4473 = vmatprep.subr.bf16.mxu0 0
    %4474 = vmatpush1.bf16.msra.mxu0 %v1757
    %4475 = vmatprep.subr.bf16.mxu0 0
    %4476 = vmatpush1.bf16.msra.mxu0 %v1758
    %4477 = vmatprep.subr.bf16.mxu0 0
    %4478 = vmatpush1.bf16.msra.mxu0 %v1759
    %4479 = vmatprep.subr.bf16.mxu0 0
    %4480 = vmatpush1.bf16.msra.mxu0 %v1760
    %4481 = vmatprep.subr.bf16.mxu0 0
    %4482 = vmatpush1.bf16.msra.mxu0 %v1761
    %4483 = vmatprep.mubr.bf16.mxu0 %v4266
    %4484 = vmatmul.mubr.bf16.gmra.mrb[0].mxu0 %v4265
    %v4485 = vpop.f32.mrb[0].mxu0
    %v4486 = vadd.f32 %v4445, %v4485
    %v4487 = vpop.f32.mrb[0].mxu0
    %v4488 = vpop.f32.mrb[0].mxu0
    %v4489 = vadd.f32 %v4448, %v4488
    %v4490 = vpop.f32.mrb[0].mxu0
    %4491 = vdwg.mxu0
    %4492 = vmatprep.subr.bf16.mxu0 0
    %4493 = vmatpush1.bf16.msra.mxu0 %v1762
    %4494 = vmatprep.subr.bf16.mxu0 0
    %4495 = vmatpush1.bf16.msra.mxu0 %v1763
    %4496 = vmatprep.subr.bf16.mxu0 0
    %4497 = vmatpush1.bf16.msra.mxu0 %v1764
    %4498 = vmatprep.subr.bf16.mxu0 0
    %4499 = vmatpush1.bf16.msra.mxu0 %v1765
    %4500 = vmatprep.subr.bf16.mxu0 0
    %4501 = vmatpush1.bf16.msra.mxu0 %v1766
    %4502 = vmatprep.subr.bf16.mxu0 0
    %4503 = vmatpush1.bf16.msra.mxu0 %v1767
    %4504 = vmatprep.subr.bf16.mxu0 0
    %4505 = vmatpush1.bf16.msra.mxu0 %v1768
    %4506 = vmatprep.subr.bf16.mxu0 0
    %4507 = vmatpush1.bf16.msra.mxu0 %v1769
    %4508 = vmatprep.subr.bf16.mxu0 0
    %4509 = vmatpush1.bf16.msra.mxu0 %v1770
    %4510 = vmatprep.subr.bf16.mxu0 0
    %4511 = vmatpush1.bf16.msra.mxu0 %v1771
    %4512 = vmatprep.subr.bf16.mxu0 0
    %4513 = vmatpush1.bf16.msra.mxu0 %v1772
    %4514 = vmatprep.subr.bf16.mxu0 0
    %4515 = vmatpush1.bf16.msra.mxu0 %v1773
    %4516 = vmatprep.subr.bf16.mxu0 0
    %4517 = vmatpush1.bf16.msra.mxu0 %v1774
    %4518 = vmatprep.subr.bf16.mxu0 0
    %4519 = vmatpush1.bf16.msra.mxu0 %v1775
    %4520 = vmatprep.subr.bf16.mxu0 0
    %4521 = vmatpush1.bf16.msra.mxu0 %v1776
    %4522 = vmatprep.subr.bf16.mxu0 0
    %4523 = vmatpush1.bf16.msra.mxu0 %v1777
    %4524 = vmatprep.mubr.bf16.mxu0 %v4268
    %4525 = vmatmul.mubr.bf16.gmra.mrb[0].mxu0 %v4267
    %v4526 = vpop.f32.mrb[0].mxu0
    %v4527 = vadd.f32 %v4486, %v4526
    %v4528 = vpop.f32.mrb[0].mxu0
    %v4529 = vpop.f32.mrb[0].mxu0
    %v4530 = vadd.f32 %v4489, %v4529
    %v4531 = vpop.f32.mrb[0].mxu0
    %4532 = vdwg.mxu0
    %4533 = vmatprep.subr.bf16.mxu0 0
    %4534 = vmatpush1.bf16.msra.mxu0 %v1778
    %4535 = vmatprep.subr.bf16.mxu0 0
    %4536 = vmatpush1.bf16.msra.mxu0 %v1779
    %4537 = vmatprep.subr.bf16.mxu0 0
    %4538 = vmatpush1.bf16.msra.mxu0 %v1780
    %4539 = vmatprep.subr.bf16.mxu0 0
    %4540 = vmatpush1.bf16.msra.mxu0 %v1781
    %4541 = vmatprep.subr.bf16.mxu0 0
    %4542 = vmatpush1.bf16.msra.mxu0 %v1782
    %4543 = vmatprep.subr.bf16.mxu0 0
    %4544 = vmatpush1.bf16.msra.mxu0 %v1783
    %4545 = vmatprep.subr.bf16.mxu0 0
    %4546 = vmatpush1.bf16.msra.mxu0 %v1784
    %4547 = vmatprep.subr.bf16.mxu0 0
    %4548 = vmatpush1.bf16.msra.mxu0 %v1785
    %4549 = vmatprep.subr.bf16.mxu0 0
    %4550 = vmatpush1.bf16.msra.mxu0 %v1786
    %4551 = vmatprep.subr.bf16.mxu0 0
    %4552 = vmatpush1.bf16.msra.mxu0 %v1787
    %4553 = vmatprep.subr.bf16.mxu0 0
    %4554 = vmatpush1.bf16.msra.mxu0 %v1788
    %4555 = vmatprep.subr.bf16.mxu0 0
    %4556 = vmatpush1.bf16.msra.mxu0 %v1789
    %4557 = vmatprep.subr.bf16.mxu0 0
    %4558 = vmatpush1.bf16.msra.mxu0 %v1790
    %4559 = vmatprep.subr.bf16.mxu0 0
    %4560 = vmatpush1.bf16.msra.mxu0 %v1791
    %4561 = vmatprep.subr.bf16.mxu0 0
    %4562 = vmatpush1.bf16.msra.mxu0 %v1792
    %4563 = vmatprep.subr.bf16.mxu0 0
    %4564 = vmatpush1.bf16.msra.mxu0 %v1793
    %4565 = vmatprep.mubr.bf16.mxu0 %v4270
    %4566 = vmatmul.mubr.bf16.gmra.mrb[0].mxu0 %v4269
    %v4567 = vpop.f32.mrb[0].mxu0
    %v4568 = vadd.f32 %v4527, %v4567
    %v4569 = vpop.f32.mrb[0].mxu0
    %v4570 = vpop.f32.mrb[0].mxu0
    %v4571 = vadd.f32 %v4530, %v4570
    %v4572 = vpop.f32.mrb[0].mxu0
    %4573 = vdwg.mxu0
    %4574 = vmatprep.subr.bf16.mxu0 0
    %4575 = vmatpush1.bf16.msra.mxu0 %v1794
    %4576 = vmatprep.subr.bf16.mxu0 0
    %4577 = vmatpush1.bf16.msra.mxu0 %v1795
    %4578 = vmatprep.subr.bf16.mxu0 0
    %4579 = vmatpush1.bf16.msra.mxu0 %v1796
    %4580 = vmatprep.subr.bf16.mxu0 0
    %4581 = vmatpush1.bf16.msra.mxu0 %v1797
    %4582 = vmatprep.subr.bf16.mxu0 0
    %4583 = vmatpush1.bf16.msra.mxu0 %v1798
    %4584 = vmatprep.subr.bf16.mxu0 0
    %4585 = vmatpush1.bf16.msra.mxu0 %v1799
    %4586 = vmatprep.subr.bf16.mxu0 0
    %4587 = vmatpush1.bf16.msra.mxu0 %v1800
    %4588 = vmatprep.subr.bf16.mxu0 0
    %4589 = vmatpush1.bf16.msra.mxu0 %v1801
    %4590 = vmatprep.subr.bf16.mxu0 0
    %4591 = vmatpush1.bf16.msra.mxu0 %v1802
    %4592 = vmatprep.subr.bf16.mxu0 0
    %4593 = vmatpush1.bf16.msra.mxu0 %v1803
    %4594 = vmatprep.subr.bf16.mxu0 0
    %4595 = vmatpush1.bf16.msra.mxu0 %v1804
    %4596 = vmatprep.subr.bf16.mxu0 0
    %4597 = vmatpush1.bf16.msra.mxu0 %v1805
    %4598 = vmatprep.subr.bf16.mxu0 0
    %4599 = vmatpush1.bf16.msra.mxu0 %v1806
    %4600 = vmatprep.subr.bf16.mxu0 0
    %4601 = vmatpush1.bf16.msra.mxu0 %v1807
    %4602 = vmatprep.subr.bf16.mxu0 0
    %4603 = vmatpush1.bf16.msra.mxu0 %v1808
    %4604 = vmatprep.subr.bf16.mxu0 0
    %4605 = vmatpush1.bf16.msra.mxu0 %v1809
    %4606 = vmatprep.mubr.bf16.mxu0 %v4272
    %4607 = vmatmul.mubr.bf16.gmra.mrb[0].mxu0 %v4271
    %v4608 = vpop.f32.mrb[0].mxu0
    %v4609 = vadd.f32 %v4568, %v4608
    %v4610 = vpop.f32.mrb[0].mxu0
    %v4611 = vpop.f32.mrb[0].mxu0
    %v4612 = vadd.f32 %v4571, %v4611
    %v4613 = vpop.f32.mrb[0].mxu0
    %4614 = vdwg.mxu0
    %4615 = vmatprep.subr.bf16.mxu0 0
    %4616 = vmatpush1.bf16.msra.mxu0 %v1810
    %4617 = vmatprep.subr.bf16.mxu0 0
    %4618 = vmatpush1.bf16.msra.mxu0 %v1811
    %4619 = vmatprep.subr.bf16.mxu0 0
    %4620 = vmatpush1.bf16.msra.mxu0 %v1812
    %4621 = vmatprep.subr.bf16.mxu0 0
    %4622 = vmatpush1.bf16.msra.mxu0 %v1813
    %4623 = vmatprep.subr.bf16.mxu0 0
    %4624 = vmatpush1.bf16.msra.mxu0 %v1814
    %4625 = vmatprep.subr.bf16.mxu0 0
    %4626 = vmatpush1.bf16.msra.mxu0 %v1815
    %4627 = vmatprep.subr.bf16.mxu0 0
    %4628 = vmatpush1.bf16.msra.mxu0 %v1816
    %4629 = vmatprep.subr.bf16.mxu0 0
    %4630 = vmatpush1.bf16.msra.mxu0 %v1817
    %4631 = vmatprep.subr.bf16.mxu0 0
    %4632 = vmatpush1.bf16.msra.mxu0 %v1818
    %4633 = vmatprep.subr.bf16.mxu0 0
    %4634 = vmatpush1.bf16.msra.mxu0 %v1819
    %4635 = vmatprep.subr.bf16.mxu0 0
    %4636 = vmatpush1.bf16.msra.mxu0 %v1820
    %4637 = vmatprep.subr.bf16.mxu0 0
    %4638 = vmatpush1.bf16.msra.mxu0 %v1821
    %4639 = vmatprep.subr.bf16.mxu0 0
    %4640 = vmatpush1.bf16.msra.mxu0 %v1822
    %4641 = vmatprep.subr.bf16.mxu0 0
    %4642 = vmatpush1.bf16.msra.mxu0 %v1823
    %4643 = vmatprep.subr.bf16.mxu0 0
    %4644 = vmatpush1.bf16.msra.mxu0 %v1824
    %4645 = vmatprep.subr.bf16.mxu0 0
    %4646 = vmatpush1.bf16.msra.mxu0 %v1825
    %4647 = vmatprep.mubr.bf16.mxu0 %v4274
    %4648 = vmatmul.mubr.bf16.gmra.mrb[0].mxu0 %v4273
    %v4649 = vpop.f32.mrb[0].mxu0
    %v4650 = vadd.f32 %v4609, %v4649
    %v4651 = vpop.f32.mrb[0].mxu0
    %v4652 = vpop.f32.mrb[0].mxu0
    %v4653 = vadd.f32 %v4612, %v4652
    %v4654 = vpop.f32.mrb[0].mxu0
    %4655 = vdwg.mxu0
    %4656 = vmatprep.subr.bf16.mxu0 0
    %4657 = vmatpush1.bf16.msra.mxu0 %v1826
    %4658 = vmatprep.subr.bf16.mxu0 0
    %4659 = vmatpush1.bf16.msra.mxu0 %v1827
    %4660 = vmatprep.subr.bf16.mxu0 0
    %4661 = vmatpush1.bf16.msra.mxu0 %v1828
    %4662 = vmatprep.subr.bf16.mxu0 0
    %4663 = vmatpush1.bf16.msra.mxu0 %v1829
    %4664 = vmatprep.subr.bf16.mxu0 0
    %4665 = vmatpush1.bf16.msra.mxu0 %v1830
    %4666 = vmatprep.subr.bf16.mxu0 0
    %4667 = vmatpush1.bf16.msra.mxu0 %v1831
    %4668 = vmatprep.subr.bf16.mxu0 0
    %4669 = vmatpush1.bf16.msra.mxu0 %v1832
    %4670 = vmatprep.subr.bf16.mxu0 0
    %4671 = vmatpush1.bf16.msra.mxu0 %v1833
    %4672 = vmatprep.subr.bf16.mxu0 0
    %4673 = vmatpush1.bf16.msra.mxu0 %v1834
    %4674 = vmatprep.subr.bf16.mxu0 0
    %4675 = vmatpush1.bf16.msra.mxu0 %v1835
    %4676 = vmatprep.subr.bf16.mxu0 0
    %4677 = vmatpush1.bf16.msra.mxu0 %v1836
    %4678 = vmatprep.subr.bf16.mxu0 0
    %4679 = vmatpush1.bf16.msra.mxu0 %v1837
    %4680 = vmatprep.subr.bf16.mxu0 0
    %4681 = vmatpush1.bf16.msra.mxu0 %v1838
    %4682 = vmatprep.subr.bf16.mxu0 0
    %4683 = vmatpush1.bf16.msra.mxu0 %v1839
    %4684 = vmatprep.subr.bf16.mxu0 0
    %4685 = vmatpush1.bf16.msra.mxu0 %v1840
    %4686 = vmatprep.subr.bf16.mxu0 0
    %4687 = vmatpush1.bf16.msra.mxu0 %v1841
    %4688 = vmatprep.mubr.bf16.mxu0 %v4276
    %4689 = vmatmul.mubr.bf16.gmra.mrb[0].mxu0 %v4275
    %v4690 = vpop.f32.mrb[0].mxu0
    %v4691 = vadd.f32 %v4650, %v4690
    %v4692 = vpop.f32.mrb[0].mxu0
    %v4693 = vpop.f32.mrb[0].mxu0
    %v4694 = vadd.f32 %v4653, %v4693
    %v4695 = vpop.f32.mrb[0].mxu0
    %4696 = vdwg.mxu0
    %4697 = vmatprep.subr.bf16.mxu0 0
    %4698 = vmatpush1.bf16.msra.mxu0 %v1842
    %4699 = vmatprep.subr.bf16.mxu0 0
    %4700 = vmatpush1.bf16.msra.mxu0 %v1843
    %4701 = vmatprep.subr.bf16.mxu0 0
    %4702 = vmatpush1.bf16.msra.mxu0 %v1844
    %4703 = vmatprep.subr.bf16.mxu0 0
    %4704 = vmatpush1.bf16.msra.mxu0 %v1845
    %4705 = vmatprep.subr.bf16.mxu0 0
    %4706 = vmatpush1.bf16.msra.mxu0 %v1846
    %4707 = vmatprep.subr.bf16.mxu0 0
    %4708 = vmatpush1.bf16.msra.mxu0 %v1847
    %4709 = vmatprep.subr.bf16.mxu0 0
    %4710 = vmatpush1.bf16.msra.mxu0 %v1848
    %4711 = vmatprep.subr.bf16.mxu0 0
    %4712 = vmatpush1.bf16.msra.mxu0 %v1849
    %4713 = vmatprep.subr.bf16.mxu0 0
    %4714 = vmatpush1.bf16.msra.mxu0 %v1850
    %4715 = vmatprep.subr.bf16.mxu0 0
    %4716 = vmatpush1.bf16.msra.mxu0 %v1851
    %4717 = vmatprep.subr.bf16.mxu0 0
    %4718 = vmatpush1.bf16.msra.mxu0 %v1852
    %4719 = vmatprep.subr.bf16.mxu0 0
    %4720 = vmatpush1.bf16.msra.mxu0 %v1853
    %4721 = vmatprep.subr.bf16.mxu0 0
    %4722 = vmatpush1.bf16.msra.mxu0 %v1854
    %4723 = vmatprep.subr.bf16.mxu0 0
    %4724 = vmatpush1.bf16.msra.mxu0 %v1855
    %4725 = vmatprep.subr.bf16.mxu0 0
    %4726 = vmatpush1.bf16.msra.mxu0 %v1856
    %4727 = vmatprep.subr.bf16.mxu0 0
    %4728 = vmatpush1.bf16.msra.mxu0 %v1857
    %4729 = vmatprep.mubr.bf16.mxu0 %v4278
    %4730 = vmatmul.mubr.bf16.gmra.mrb[0].mxu0 %v4277
    %v4731 = vpop.f32.mrb[0].mxu0
    %v4732 = vadd.f32 %v4691, %v4731
    %v4733 = vpop.f32.mrb[0].mxu0
    %v4734 = vpop.f32.mrb[0].mxu0
    %v4735 = vadd.f32 %v4694, %v4734
    %v4736 = vpop.f32.mrb[0].mxu0
    %4737 = vdwg.mxu0
    %4738 = vmatprep.subr.bf16.mxu0 0
    %4739 = vmatpush1.bf16.msra.mxu0 %v1858
    %4740 = vmatprep.subr.bf16.mxu0 0
    %4741 = vmatpush1.bf16.msra.mxu0 %v1859
    %4742 = vmatprep.subr.bf16.mxu0 0
    %4743 = vmatpush1.bf16.msra.mxu0 %v1860
    %4744 = vmatprep.subr.bf16.mxu0 0
    %4745 = vmatpush1.bf16.msra.mxu0 %v1861
    %4746 = vmatprep.subr.bf16.mxu0 0
    %4747 = vmatpush1.bf16.msra.mxu0 %v1862
    %4748 = vmatprep.subr.bf16.mxu0 0
    %4749 = vmatpush1.bf16.msra.mxu0 %v1863
    %4750 = vmatprep.subr.bf16.mxu0 0
    %4751 = vmatpush1.bf16.msra.mxu0 %v1864
    %4752 = vmatprep.subr.bf16.mxu0 0
    %4753 = vmatpush1.bf16.msra.mxu0 %v1865
    %4754 = vmatprep.subr.bf16.mxu0 0
    %4755 = vmatpush1.bf16.msra.mxu0 %v1866
    %4756 = vmatprep.subr.bf16.mxu0 0
    %4757 = vmatpush1.bf16.msra.mxu0 %v1867
    %4758 = vmatprep.subr.bf16.mxu0 0
    %4759 = vmatpush1.bf16.msra.mxu0 %v1868
    %4760 = vmatprep.subr.bf16.mxu0 0
    %4761 = vmatpush1.bf16.msra.mxu0 %v1869
    %4762 = vmatprep.subr.bf16.mxu0 0
    %4763 = vmatpush1.bf16.msra.mxu0 %v1870
    %4764 = vmatprep.subr.bf16.mxu0 0
    %4765 = vmatpush1.bf16.msra.mxu0 %v1871
    %4766 = vmatprep.subr.bf16.mxu0 0
    %4767 = vmatpush1.bf16.msra.mxu0 %v1872
    %4768 = vmatprep.subr.bf16.mxu0 0
    %4769 = vmatpush1.bf16.msra.mxu0 %v1873
    %4770 = vmatprep.mubr.bf16.mxu0 %v4280
    %4771 = vmatmul.mubr.bf16.gmra.mrb[0].mxu0 %v4279
    %v4772 = vpop.f32.mrb[0].mxu0
    %v4773 = vadd.f32 %v4732, %v4772
    %v4774 = vpop.f32.mrb[0].mxu0
    %v4775 = vpop.f32.mrb[0].mxu0
    %v4776 = vadd.f32 %v4735, %v4775
    %v4777 = vpop.f32.mrb[0].mxu0
    %4778 = vdwg.mxu0
    %v4779 = vmax.f32 %v4773, 0.0
    %v4780 = vmax.f32 %v4776, 0.0
    %v4781 = vpack.c.bf16 %v4780, %v4779
    %4782 = vmatprep.subr.bf16.mxu0 %v3138
    %4783 = vmatpush1.bf16.msra.mxu0 %v3137
    %4784 = vmatprep.subr.bf16.mxu0 %v3162
    %4785 = vmatpush1.bf16.msra.mxu0 %v3161
    %4786 = vmatprep.subr.bf16.mxu0 %v3186
    %4787 = vmatpush1.bf16.msra.mxu0 %v3185
    %4788 = vmatprep.subr.bf16.mxu0 %v3210
    %4789 = vmatpush1.bf16.msra.mxu0 %v3209
    %4790 = vmatprep.subr.bf16.mxu0 %v3234
    %4791 = vmatpush1.bf16.msra.mxu0 %v3233
    %4792 = vmatprep.subr.bf16.mxu0 %v3258
    %4793 = vmatpush1.bf16.msra.mxu0 %v3257
    %4794 = vmatprep.subr.bf16.mxu0 %v3282
    %4795 = vmatpush1.bf16.msra.mxu0 %v3281
    %4796 = vmatprep.subr.bf16.mxu0 %v3306
    %4797 = vmatpush1.bf16.msra.mxu0 %v3305
    %4798 = vmatprep.subr.bf16.mxu0 0
    %4799 = vmatpush1.bf16.msra.mxu0 0
    %4800 = vmatprep.subr.bf16.mxu0 0
    %4801 = vmatpush1.bf16.msra.mxu0 0
    %4802 = vmatprep.subr.bf16.mxu0 0
    %4803 = vmatpush1.bf16.msra.mxu0 0
    %4804 = vmatprep.subr.bf16.mxu0 0
    %4805 = vmatpush1.bf16.msra.mxu0 0
    %4806 = vmatprep.subr.bf16.mxu0 0
    %4807 = vmatpush1.bf16.msra.mxu0 0
    %4808 = vmatprep.subr.bf16.mxu0 0
    %4809 = vmatpush1.bf16.msra.mxu0 0
    %4810 = vmatprep.subr.bf16.mxu0 0
    %4811 = vmatpush1.bf16.msra.mxu0 0
    %4812 = vmatprep.subr.bf16.mxu0 0
    %4813 = vmatpush1.bf16.msra.mxu0 0
    %4814 = vmatprep.mubr.bf16.mxu0 0
    %4815 = vmatmul.mubr.bf16.gmra.mrb[0].mxu0 %v4781
    %v4816 = vpop.f32.mrb[0].mxu0
    %v4817 = vadd.f32 0.0, %v4816
    %v4818 = vpop.f32.mrb[0].mxu0
    %v4819 = vadd.f32 0.0, %v4818
    %v4820 = vpop.f32.mrb[0].mxu0
    %v4821 = vadd.f32 0.0, %v4820
    %v4822 = vpop.f32.mrb[0].mxu0
    %v4823 = vadd.f32 0.0, %v4822
    %4824 = vdwg.mxu0
    %4825 = vmatprep.subr.bf16.mxu0 %v3140
    %4826 = vmatpush1.bf16.msra.mxu0 %v3139
    %4827 = vmatprep.subr.bf16.mxu0 %v3164
    %4828 = vmatpush1.bf16.msra.mxu0 %v3163
    %4829 = vmatprep.subr.bf16.mxu0 %v3188
    %4830 = vmatpush1.bf16.msra.mxu0 %v3187
    %4831 = vmatprep.subr.bf16.mxu0 %v3212
    %4832 = vmatpush1.bf16.msra.mxu0 %v3211
    %4833 = vmatprep.subr.bf16.mxu0 %v3236
    %4834 = vmatpush1.bf16.msra.mxu0 %v3235
    %4835 = vmatprep.subr.bf16.mxu0 %v3260
    %4836 = vmatpush1.bf16.msra.mxu0 %v3259
    %4837 = vmatprep.subr.bf16.mxu0 %v3284
    %4838 = vmatpush1.bf16.msra.mxu0 %v3283
    %4839 = vmatprep.subr.bf16.mxu0 %v3308
    %4840 = vmatpush1.bf16.msra.mxu0 %v3307
    %4841 = vmatprep.subr.bf16.mxu0 0
    %4842 = vmatpush1.bf16.msra.mxu0 0
    %4843 = vmatprep.subr.bf16.mxu0 0
    %4844 = vmatpush1.bf16.msra.mxu0 0
    %4845 = vmatprep.subr.bf16.mxu0 0
    %4846 = vmatpush1.bf16.msra.mxu0 0
    %4847 = vmatprep.subr.bf16.mxu0 0
    %4848 = vmatpush1.bf16.msra.mxu0 0
    %4849 = vmatprep.subr.bf16.mxu0 0
    %4850 = vmatpush1.bf16.msra.mxu0 0
    %4851 = vmatprep.subr.bf16.mxu0 0
    %4852 = vmatpush1.bf16.msra.mxu0 0
    %4853 = vmatprep.subr.bf16.mxu0 0
    %4854 = vmatpush1.bf16.msra.mxu0 0
    %4855 = vmatprep.subr.bf16.mxu0 0
    %4856 = vmatpush1.bf16.msra.mxu0 0
    %4857 = vmatprep.mubr.bf16.mxu0 0
    %4858 = vmatmul.mubr.bf16.gmra.mrb[0].mxu0 %v4781
    %v4859 = vpop.f32.mrb[0].mxu0
    %v4860 = vadd.f32 0.0, %v4859
    %v4861 = vpop.f32.mrb[0].mxu0
    %v4862 = vadd.f32 0.0, %v4861
    %v4863 = vpop.f32.mrb[0].mxu0
    %v4864 = vadd.f32 0.0, %v4863
    %v4865 = vpop.f32.mrb[0].mxu0
    %v4866 = vadd.f32 0.0, %v4865
    %4867 = vdwg.mxu0
    %4868 = vmatprep.subr.bf16.mxu0 %v3142
    %4869 = vmatpush1.bf16.msra.mxu0 %v3141
    %4870 = vmatprep.subr.bf16.mxu0 %v3166
    %4871 = vmatpush1.bf16.msra.mxu0 %v3165
    %4872 = vmatprep.subr.bf16.mxu0 %v3190
    %4873 = vmatpush1.bf16.msra.mxu0 %v3189
    %4874 = vmatprep.subr.bf16.mxu0 %v3214
    %4875 = vmatpush1.bf16.msra.mxu0 %v3213
    %4876 = vmatprep.subr.bf16.mxu0 %v3238
    %4877 = vmatpush1.bf16.msra.mxu0 %v3237
    %4878 = vmatprep.subr.bf16.mxu0 %v3262
    %4879 = vmatpush1.bf16.msra.mxu0 %v3261
    %4880 = vmatprep.subr.bf16.mxu0 %v3286
    %4881 = vmatpush1.bf16.msra.mxu0 %v3285
    %4882 = vmatprep.subr.bf16.mxu0 %v3310
    %4883 = vmatpush1.bf16.msra.mxu0 %v3309
    %4884 = vmatprep.subr.bf16.mxu0 0
    %4885 = vmatpush1.bf16.msra.mxu0 0
    %4886 = vmatprep.subr.bf16.mxu0 0
    %4887 = vmatpush1.bf16.msra.mxu0 0
    %4888 = vmatprep.subr.bf16.mxu0 0
    %4889 = vmatpush1.bf16.msra.mxu0 0
    %4890 = vmatprep.subr.bf16.mxu0 0
    %4891 = vmatpush1.bf16.msra.mxu0 0
    %4892 = vmatprep.subr.bf16.mxu0 0
    %4893 = vmatpush1.bf16.msra.mxu0 0
    %4894 = vmatprep.subr.bf16.mxu0 0
    %4895 = vmatpush1.bf16.msra.mxu0 0
    %4896 = vmatprep.subr.bf16.mxu0 0
    %4897 = vmatpush1.bf16.msra.mxu0 0
    %4898 = vmatprep.subr.bf16.mxu0 0
    %4899 = vmatpush1.bf16.msra.mxu0 0
    %4900 = vmatprep.mubr.bf16.mxu0 0
    %4901 = vmatmul.mubr.bf16.gmra.mrb[0].mxu0 %v4781
    %v4902 = vpop.f32.mrb[0].mxu0
    %v4903 = vadd.f32 0.0, %v4902
    %v4904 = vpop.f32.mrb[0].mxu0
    %v4905 = vadd.f32 0.0, %v4904
    %v4906 = vpop.f32.mrb[0].mxu0
    %v4907 = vadd.f32 0.0, %v4906
    %v4908 = vpop.f32.mrb[0].mxu0
    %v4909 = vadd.f32 0.0, %v4908
    %4910 = vdwg.mxu0
    %4911 = vmatprep.subr.bf16.mxu0 %v3144
    %4912 = vmatpush1.bf16.msra.mxu0 %v3143
    %4913 = vmatprep.subr.bf16.mxu0 %v3168
    %4914 = vmatpush1.bf16.msra.mxu0 %v3167
    %4915 = vmatprep.subr.bf16.mxu0 %v3192
    %4916 = vmatpush1.bf16.msra.mxu0 %v3191
    %4917 = vmatprep.subr.bf16.mxu0 %v3216
    %4918 = vmatpush1.bf16.msra.mxu0 %v3215
    %4919 = vmatprep.subr.bf16.mxu0 %v3240
    %4920 = vmatpush1.bf16.msra.mxu0 %v3239
    %4921 = vmatprep.subr.bf16.mxu0 %v3264
    %4922 = vmatpush1.bf16.msra.mxu0 %v3263
    %4923 = vmatprep.subr.bf16.mxu0 %v3288
    %4924 = vmatpush1.bf16.msra.mxu0 %v3287
    %4925 = vmatprep.subr.bf16.mxu0 %v3312
    %4926 = vmatpush1.bf16.msra.mxu0 %v3311
    %4927 = vmatprep.subr.bf16.mxu0 0
    %4928 = vmatpush1.bf16.msra.mxu0 0
    %4929 = vmatprep.subr.bf16.mxu0 0
    %4930 = vmatpush1.bf16.msra.mxu0 0
    %4931 = vmatprep.subr.bf16.mxu0 0
    %4932 = vmatpush1.bf16.msra.mxu0 0
    %4933 = vmatprep.subr.bf16.mxu0 0
    %4934 = vmatpush1.bf16.msra.mxu0 0
    %4935 = vmatprep.subr.bf16.mxu0 0
    %4936 = vmatpush1.bf16.msra.mxu0 0
    %4937 = vmatprep.subr.bf16.mxu0 0
    %4938 = vmatpush1.bf16.msra.mxu0 0
    %4939 = vmatprep.subr.bf16.mxu0 0
    %4940 = vmatpush1.bf16.msra.mxu0 0
    %4941 = vmatprep.subr.bf16.mxu0 0
    %4942 = vmatpush1.bf16.msra.mxu0 0
    %4943 = vmatprep.mubr.bf16.mxu0 0
    %4944 = vmatmul.mubr.bf16.gmra.mrb[0].mxu0 %v4781
    %v4945 = vpop.f32.mrb[0].mxu0
    %v4946 = vadd.f32 0.0, %v4945
    %v4947 = vpop.f32.mrb[0].mxu0
    %v4948 = vadd.f32 0.0, %v4947
    %v4949 = vpop.f32.mrb[0].mxu0
    %v4950 = vadd.f32 0.0, %v4949
    %v4951 = vpop.f32.mrb[0].mxu0
    %v4952 = vadd.f32 0.0, %v4951
    %4953 = vdwg.mxu0
    %4954 = vmatprep.subr.bf16.mxu0 %v3146
    %4955 = vmatpush1.bf16.msra.mxu0 %v3145
    %4956 = vmatprep.subr.bf16.mxu0 %v3170
    %4957 = vmatpush1.bf16.msra.mxu0 %v3169
    %4958 = vmatprep.subr.bf16.mxu0 %v3194
    %4959 = vmatpush1.bf16.msra.mxu0 %v3193
    %4960 = vmatprep.subr.bf16.mxu0 %v3218
    %4961 = vmatpush1.bf16.msra.mxu0 %v3217
    %4962 = vmatprep.subr.bf16.mxu0 %v3242
    %4963 = vmatpush1.bf16.msra.mxu0 %v3241
    %4964 = vmatprep.subr.bf16.mxu0 %v3266
    %4965 = vmatpush1.bf16.msra.mxu0 %v3265
    %4966 = vmatprep.subr.bf16.mxu0 %v3290
    %4967 = vmatpush1.bf16.msra.mxu0 %v3289
    %4968 = vmatprep.subr.bf16.mxu0 %v3314
    %4969 = vmatpush1.bf16.msra.mxu0 %v3313
    %4970 = vmatprep.subr.bf16.mxu0 0
    %4971 = vmatpush1.bf16.msra.mxu0 0
    %4972 = vmatprep.subr.bf16.mxu0 0
    %4973 = vmatpush1.bf16.msra.mxu0 0
    %4974 = vmatprep.subr.bf16.mxu0 0
    %4975 = vmatpush1.bf16.msra.mxu0 0
    %4976 = vmatprep.subr.bf16.mxu0 0
    %4977 = vmatpush1.bf16.msra.mxu0 0
    %4978 = vmatprep.subr.bf16.mxu0 0
    %4979 = vmatpush1.bf16.msra.mxu0 0
    %4980 = vmatprep.subr.bf16.mxu0 0
    %4981 = vmatpush1.bf16.msra.mxu0 0
    %4982 = vmatprep.subr.bf16.mxu0 0
    %4983 = vmatpush1.bf16.msra.mxu0 0
    %4984 = vmatprep.subr.bf16.mxu0 0
    %4985 = vmatpush1.bf16.msra.mxu0 0
    %4986 = vmatprep.mubr.bf16.mxu0 0
    %4987 = vmatmul.mubr.bf16.gmra.mrb[0].mxu0 %v4781
    %v4988 = vpop.f32.mrb[0].mxu0
    %v4989 = vadd.f32 0.0, %v4988
    %v4990 = vpop.f32.mrb[0].mxu0
    %v4991 = vadd.f32 0.0, %v4990
    %v4992 = vpop.f32.mrb[0].mxu0
    %v4993 = vadd.f32 0.0, %v4992
    %v4994 = vpop.f32.mrb[0].mxu0
    %v4995 = vadd.f32 0.0, %v4994
    %4996 = vdwg.mxu0
    %4997 = vmatprep.subr.bf16.mxu0 %v3148
    %4998 = vmatpush1.bf16.msra.mxu0 %v3147
    %4999 = vmatprep.subr.bf16.mxu0 %v3172
    %5000 = vmatpush1.bf16.msra.mxu0 %v3171
    %5001 = vmatprep.subr.bf16.mxu0 %v3196
    %5002 = vmatpush1.bf16.msra.mxu0 %v3195
    %5003 = vmatprep.subr.bf16.mxu0 %v3220
    %5004 = vmatpush1.bf16.msra.mxu0 %v3219
    %5005 = vmatprep.subr.bf16.mxu0 %v3244
    %5006 = vmatpush1.bf16.msra.mxu0 %v3243
    %5007 = vmatprep.subr.bf16.mxu0 %v3268
    %5008 = vmatpush1.bf16.msra.mxu0 %v3267
    %5009 = vmatprep.subr.bf16.mxu0 %v3292
    %5010 = vmatpush1.bf16.msra.mxu0 %v3291
    %5011 = vmatprep.subr.bf16.mxu0 %v3316
    %5012 = vmatpush1.bf16.msra.mxu0 %v3315
    %5013 = vmatprep.subr.bf16.mxu0 0
    %5014 = vmatpush1.bf16.msra.mxu0 0
    %5015 = vmatprep.subr.bf16.mxu0 0
    %5016 = vmatpush1.bf16.msra.mxu0 0
    %5017 = vmatprep.subr.bf16.mxu0 0
    %5018 = vmatpush1.bf16.msra.mxu0 0
    %5019 = vmatprep.subr.bf16.mxu0 0
    %5020 = vmatpush1.bf16.msra.mxu0 0
    %5021 = vmatprep.subr.bf16.mxu0 0
    %5022 = vmatpush1.bf16.msra.mxu0 0
    %5023 = vmatprep.subr.bf16.mxu0 0
    %5024 = vmatpush1.bf16.msra.mxu0 0
    %5025 = vmatprep.subr.bf16.mxu0 0
    %5026 = vmatpush1.bf16.msra.mxu0 0
    %5027 = vmatprep.subr.bf16.mxu0 0
    %5028 = vmatpush1.bf16.msra.mxu0 0
    %5029 = vmatprep.mubr.bf16.mxu0 0
    %5030 = vmatmul.mubr.bf16.gmra.mrb[0].mxu0 %v4781
    %v5031 = vpop.f32.mrb[0].mxu0
    %v5032 = vadd.f32 0.0, %v5031
    %v5033 = vpop.f32.mrb[0].mxu0
    %v5034 = vadd.f32 0.0, %v5033
    %v5035 = vpop.f32.mrb[0].mxu0
    %v5036 = vadd.f32 0.0, %v5035
    %v5037 = vpop.f32.mrb[0].mxu0
    %v5038 = vadd.f32 0.0, %v5037
    %5039 = vdwg.mxu0
    %5040 = vmatprep.subr.bf16.mxu0 %v3150
    %5041 = vmatpush1.bf16.msra.mxu0 %v3149
    %5042 = vmatprep.subr.bf16.mxu0 %v3174
    %5043 = vmatpush1.bf16.msra.mxu0 %v3173
    %5044 = vmatprep.subr.bf16.mxu0 %v3198
    %5045 = vmatpush1.bf16.msra.mxu0 %v3197
    %5046 = vmatprep.subr.bf16.mxu0 %v3222
    %5047 = vmatpush1.bf16.msra.mxu0 %v3221
    %5048 = vmatprep.subr.bf16.mxu0 %v3246
    %5049 = vmatpush1.bf16.msra.mxu0 %v3245
    %5050 = vmatprep.subr.bf16.mxu0 %v3270
    %5051 = vmatpush1.bf16.msra.mxu0 %v3269
    %5052 = vmatprep.subr.bf16.mxu0 %v3294
    %5053 = vmatpush1.bf16.msra.mxu0 %v3293
    %5054 = vmatprep.subr.bf16.mxu0 %v3318
    %5055 = vmatpush1.bf16.msra.mxu0 %v3317
    %5056 = vmatprep.subr.bf16.mxu0 0
    %5057 = vmatpush1.bf16.msra.mxu0 0
    %5058 = vmatprep.subr.bf16.mxu0 0
    %5059 = vmatpush1.bf16.msra.mxu0 0
    %5060 = vmatprep.subr.bf16.mxu0 0
    %5061 = vmatpush1.bf16.msra.mxu0 0
    %5062 = vmatprep.subr.bf16.mxu0 0
    %5063 = vmatpush1.bf16.msra.mxu0 0
    %5064 = vmatprep.subr.bf16.mxu0 0
    %5065 = vmatpush1.bf16.msra.mxu0 0
    %5066 = vmatprep.subr.bf16.mxu0 0
    %5067 = vmatpush1.bf16.msra.mxu0 0
    %5068 = vmatprep.subr.bf16.mxu0 0
    %5069 = vmatpush1.bf16.msra.mxu0 0
    %5070 = vmatprep.subr.bf16.mxu0 0
    %5071 = vmatpush1.bf16.msra.mxu0 0
    %5072 = vmatprep.mubr.bf16.mxu0 0
    %5073 = vmatmul.mubr.bf16.gmra.mrb[0].mxu0 %v4781
    %v5074 = vpop.f32.mrb[0].mxu0
    %v5075 = vadd.f32 0.0, %v5074
    %v5076 = vpop.f32.mrb[0].mxu0
    %v5077 = vadd.f32 0.0, %v5076
    %v5078 = vpop.f32.mrb[0].mxu0
    %v5079 = vadd.f32 0.0, %v5078
    %v5080 = vpop.f32.mrb[0].mxu0
    %v5081 = vadd.f32 0.0, %v5080
    %5082 = vdwg.mxu0
    %5083 = vmatprep.subr.bf16.mxu0 %v3152
    %5084 = vmatpush1.bf16.msra.mxu0 %v3151
    %5085 = vmatprep.subr.bf16.mxu0 %v3176
    %5086 = vmatpush1.bf16.msra.mxu0 %v3175
    %5087 = vmatprep.subr.bf16.mxu0 %v3200
    %5088 = vmatpush1.bf16.msra.mxu0 %v3199
    %5089 = vmatprep.subr.bf16.mxu0 %v3224
    %5090 = vmatpush1.bf16.msra.mxu0 %v3223
    %5091 = vmatprep.subr.bf16.mxu0 %v3248
    %5092 = vmatpush1.bf16.msra.mxu0 %v3247
    %5093 = vmatprep.subr.bf16.mxu0 %v3272
    %5094 = vmatpush1.bf16.msra.mxu0 %v3271
    %5095 = vmatprep.subr.bf16.mxu0 %v3296
    %5096 = vmatpush1.bf16.msra.mxu0 %v3295
    %5097 = vmatprep.subr.bf16.mxu0 %v3320
    %5098 = vmatpush1.bf16.msra.mxu0 %v3319
    %5099 = vmatprep.subr.bf16.mxu0 0
    %5100 = vmatpush1.bf16.msra.mxu0 0
    %5101 = vmatprep.subr.bf16.mxu0 0
    %5102 = vmatpush1.bf16.msra.mxu0 0
    %5103 = vmatprep.subr.bf16.mxu0 0
    %5104 = vmatpush1.bf16.msra.mxu0 0
    %5105 = vmatprep.subr.bf16.mxu0 0
    %5106 = vmatpush1.bf16.msra.mxu0 0
    %5107 = vmatprep.subr.bf16.mxu0 0
    %5108 = vmatpush1.bf16.msra.mxu0 0
    %5109 = vmatprep.subr.bf16.mxu0 0
    %5110 = vmatpush1.bf16.msra.mxu0 0
    %5111 = vmatprep.subr.bf16.mxu0 0
    %5112 = vmatpush1.bf16.msra.mxu0 0
    %5113 = vmatprep.subr.bf16.mxu0 0
    %5114 = vmatpush1.bf16.msra.mxu0 0
    %5115 = vmatprep.mubr.bf16.mxu0 0
    %5116 = vmatmul.mubr.bf16.gmra.mrb[0].mxu0 %v4781
    %v5117 = vpop.f32.mrb[0].mxu0
    %v5118 = vadd.f32 0.0, %v5117
    %v5119 = vpop.f32.mrb[0].mxu0
    %v5120 = vadd.f32 0.0, %v5119
    %v5121 = vpop.f32.mrb[0].mxu0
    %v5122 = vadd.f32 0.0, %v5121
    %v5123 = vpop.f32.mrb[0].mxu0
    %v5124 = vadd.f32 0.0, %v5123
    %5125 = vdwg.mxu0
    %5126 = vmatprep.subr.bf16.mxu0 %v3154
    %5127 = vmatpush1.bf16.msra.mxu0 %v3153
    %5128 = vmatprep.subr.bf16.mxu0 %v3178
    %5129 = vmatpush1.bf16.msra.mxu0 %v3177
    %5130 = vmatprep.subr.bf16.mxu0 %v3202
    %5131 = vmatpush1.bf16.msra.mxu0 %v3201
    %5132 = vmatprep.subr.bf16.mxu0 %v3226
    %5133 = vmatpush1.bf16.msra.mxu0 %v3225
    %5134 = vmatprep.subr.bf16.mxu0 %v3250
    %5135 = vmatpush1.bf16.msra.mxu0 %v3249
    %5136 = vmatprep.subr.bf16.mxu0 %v3274
    %5137 = vmatpush1.bf16.msra.mxu0 %v3273
    %5138 = vmatprep.subr.bf16.mxu0 %v3298
    %5139 = vmatpush1.bf16.msra.mxu0 %v3297
    %5140 = vmatprep.subr.bf16.mxu0 %v3322
    %5141 = vmatpush1.bf16.msra.mxu0 %v3321
    %5142 = vmatprep.subr.bf16.mxu0 0
    %5143 = vmatpush1.bf16.msra.mxu0 0
    %5144 = vmatprep.subr.bf16.mxu0 0
    %5145 = vmatpush1.bf16.msra.mxu0 0
    %5146 = vmatprep.subr.bf16.mxu0 0
    %5147 = vmatpush1.bf16.msra.mxu0 0
    %5148 = vmatprep.subr.bf16.mxu0 0
    %5149 = vmatpush1.bf16.msra.mxu0 0
    %5150 = vmatprep.subr.bf16.mxu0 0
    %5151 = vmatpush1.bf16.msra.mxu0 0
    %5152 = vmatprep.subr.bf16.mxu0 0
    %5153 = vmatpush1.bf16.msra.mxu0 0
    %5154 = vmatprep.subr.bf16.mxu0 0
    %5155 = vmatpush1.bf16.msra.mxu0 0
    %5156 = vmatprep.subr.bf16.mxu0 0
    %5157 = vmatpush1.bf16.msra.mxu0 0
    %5158 = vmatprep.mubr.bf16.mxu0 0
    %5159 = vmatmul.mubr.bf16.gmra.mrb[0].mxu0 %v4781
    %v5160 = vpop.f32.mrb[0].mxu0
    %v5161 = vadd.f32 0.0, %v5160
    %v5162 = vpop.f32.mrb[0].mxu0
    %v5163 = vadd.f32 0.0, %v5162
    %v5164 = vpop.f32.mrb[0].mxu0
    %v5165 = vadd.f32 0.0, %v5164
    %v5166 = vpop.f32.mrb[0].mxu0
    %v5167 = vadd.f32 0.0, %v5166
    %5168 = vdwg.mxu0
    %5169 = vmatprep.subr.bf16.mxu0 %v3156
    %5170 = vmatpush1.bf16.msra.mxu0 %v3155
    %5171 = vmatprep.subr.bf16.mxu0 %v3180
    %5172 = vmatpush1.bf16.msra.mxu0 %v3179
    %5173 = vmatprep.subr.bf16.mxu0 %v3204
    %5174 = vmatpush1.bf16.msra.mxu0 %v3203
    %5175 = vmatprep.subr.bf16.mxu0 %v3228
    %5176 = vmatpush1.bf16.msra.mxu0 %v3227
    %5177 = vmatprep.subr.bf16.mxu0 %v3252
    %5178 = vmatpush1.bf16.msra.mxu0 %v3251
    %5179 = vmatprep.subr.bf16.mxu0 %v3276
    %5180 = vmatpush1.bf16.msra.mxu0 %v3275
    %5181 = vmatprep.subr.bf16.mxu0 %v3300
    %5182 = vmatpush1.bf16.msra.mxu0 %v3299
    %5183 = vmatprep.subr.bf16.mxu0 %v3324
    %5184 = vmatpush1.bf16.msra.mxu0 %v3323
    %5185 = vmatprep.subr.bf16.mxu0 0
    %5186 = vmatpush1.bf16.msra.mxu0 0
    %5187 = vmatprep.subr.bf16.mxu0 0
    %5188 = vmatpush1.bf16.msra.mxu0 0
    %5189 = vmatprep.subr.bf16.mxu0 0
    %5190 = vmatpush1.bf16.msra.mxu0 0
    %5191 = vmatprep.subr.bf16.mxu0 0
    %5192 = vmatpush1.bf16.msra.mxu0 0
    %5193 = vmatprep.subr.bf16.mxu0 0
    %5194 = vmatpush1.bf16.msra.mxu0 0
    %5195 = vmatprep.subr.bf16.mxu0 0
    %5196 = vmatpush1.bf16.msra.mxu0 0
    %5197 = vmatprep.subr.bf16.mxu0 0
    %5198 = vmatpush1.bf16.msra.mxu0 0
    %5199 = vmatprep.subr.bf16.mxu0 0
    %5200 = vmatpush1.bf16.msra.mxu0 0
    %5201 = vmatprep.mubr.bf16.mxu0 0
    %5202 = vmatmul.mubr.bf16.gmra.mrb[0].mxu0 %v4781
    %v5203 = vpop.f32.mrb[0].mxu0
    %v5204 = vadd.f32 0.0, %v5203
    %v5205 = vpop.f32.mrb[0].mxu0
    %v5206 = vadd.f32 0.0, %v5205
    %v5207 = vpop.f32.mrb[0].mxu0
    %v5208 = vadd.f32 0.0, %v5207
    %v5209 = vpop.f32.mrb[0].mxu0
    %v5210 = vadd.f32 0.0, %v5209
    %5211 = vdwg.mxu0
    %5212 = vmatprep.subr.bf16.mxu0 %v3158
    %5213 = vmatpush1.bf16.msra.mxu0 %v3157
    %5214 = vmatprep.subr.bf16.mxu0 %v3182
    %5215 = vmatpush1.bf16.msra.mxu0 %v3181
    %5216 = vmatprep.subr.bf16.mxu0 %v3206
    %5217 = vmatpush1.bf16.msra.mxu0 %v3205
    %5218 = vmatprep.subr.bf16.mxu0 %v3230
    %5219 = vmatpush1.bf16.msra.mxu0 %v3229
    %5220 = vmatprep.subr.bf16.mxu0 %v3254
    %5221 = vmatpush1.bf16.msra.mxu0 %v3253
    %5222 = vmatprep.subr.bf16.mxu0 %v3278
    %5223 = vmatpush1.bf16.msra.mxu0 %v3277
    %5224 = vmatprep.subr.bf16.mxu0 %v3302
    %5225 = vmatpush1.bf16.msra.mxu0 %v3301
    %5226 = vmatprep.subr.bf16.mxu0 %v3326
    %5227 = vmatpush1.bf16.msra.mxu0 %v3325
    %5228 = vmatprep.subr.bf16.mxu0 0
    %5229 = vmatpush1.bf16.msra.mxu0 0
    %5230 = vmatprep.subr.bf16.mxu0 0
    %5231 = vmatpush1.bf16.msra.mxu0 0
    %5232 = vmatprep.subr.bf16.mxu0 0
    %5233 = vmatpush1.bf16.msra.mxu0 0
    %5234 = vmatprep.subr.bf16.mxu0 0
    %5235 = vmatpush1.bf16.msra.mxu0 0
    %5236 = vmatprep.subr.bf16.mxu0 0
    %5237 = vmatpush1.bf16.msra.mxu0 0
    %5238 = vmatprep.subr.bf16.mxu0 0
    %5239 = vmatpush1.bf16.msra.mxu0 0
    %5240 = vmatprep.subr.bf16.mxu0 0
    %5241 = vmatpush1.bf16.msra.mxu0 0
    %5242 = vmatprep.subr.bf16.mxu0 0
    %5243 = vmatpush1.bf16.msra.mxu0 0
    %5244 = vmatprep.mubr.bf16.mxu0 0
    %5245 = vmatmul.mubr.bf16.gmra.mrb[0].mxu0 %v4781
    %v5246 = vpop.f32.mrb[0].mxu0
    %v5247 = vadd.f32 0.0, %v5246
    %v5248 = vpop.f32.mrb[0].mxu0
    %v5249 = vadd.f32 0.0, %v5248
    %v5250 = vpop.f32.mrb[0].mxu0
    %v5251 = vadd.f32 0.0, %v5250
    %v5252 = vpop.f32.mrb[0].mxu0
    %v5253 = vadd.f32 0.0, %v5252
    %5254 = vdwg.mxu0
    %5255 = vmatprep.subr.bf16.mxu0 %v3160
    %5256 = vmatpush1.bf16.msra.mxu0 %v3159
    %5257 = vmatprep.subr.bf16.mxu0 %v3184
    %5258 = vmatpush1.bf16.msra.mxu0 %v3183
    %5259 = vmatprep.subr.bf16.mxu0 %v3208
    %5260 = vmatpush1.bf16.msra.mxu0 %v3207
    %5261 = vmatprep.subr.bf16.mxu0 %v3232
    %5262 = vmatpush1.bf16.msra.mxu0 %v3231
    %5263 = vmatprep.subr.bf16.mxu0 %v3256
    %5264 = vmatpush1.bf16.msra.mxu0 %v3255
    %5265 = vmatprep.subr.bf16.mxu0 %v3280
    %5266 = vmatpush1.bf16.msra.mxu0 %v3279
    %5267 = vmatprep.subr.bf16.mxu0 %v3304
    %5268 = vmatpush1.bf16.msra.mxu0 %v3303
    %5269 = vmatprep.subr.bf16.mxu0 %v3328
    %5270 = vmatpush1.bf16.msra.mxu0 %v3327
    %5271 = vmatprep.subr.bf16.mxu0 0
    %5272 = vmatpush1.bf16.msra.mxu0 0
    %5273 = vmatprep.subr.bf16.mxu0 0
    %5274 = vmatpush1.bf16.msra.mxu0 0
    %5275 = vmatprep.subr.bf16.mxu0 0
    %5276 = vmatpush1.bf16.msra.mxu0 0
    %5277 = vmatprep.subr.bf16.mxu0 0
    %5278 = vmatpush1.bf16.msra.mxu0 0
    %5279 = vmatprep.subr.bf16.mxu0 0
    %5280 = vmatpush1.bf16.msra.mxu0 0
    %5281 = vmatprep.subr.bf16.mxu0 0
    %5282 = vmatpush1.bf16.msra.mxu0 0
    %5283 = vmatprep.subr.bf16.mxu0 0
    %5284 = vmatpush1.bf16.msra.mxu0 0
    %5285 = vmatprep.subr.bf16.mxu0 0
    %5286 = vmatpush1.bf16.msra.mxu0 0
    %5287 = vmatprep.mubr.bf16.mxu0 0
    %5288 = vmatmul.mubr.bf16.gmra.mrb[0].mxu0 %v4781
    %v5289 = vpop.f32.mrb[0].mxu0
    %v5290 = vadd.f32 0.0, %v5289
    %v5291 = vpop.f32.mrb[0].mxu0
    %v5292 = vadd.f32 0.0, %v5291
    %v5293 = vpop.f32.mrb[0].mxu0
    %v5294 = vadd.f32 0.0, %v5293
    %v5295 = vpop.f32.mrb[0].mxu0
    %v5296 = vadd.f32 0.0, %v5295
    %5297 = vdwg.mxu0
    %v5298 = vadd.f32 %v4208, %v4817
    %v5299 = vadd.f32 %v4209, %v4819
    %v5300 = vadd.f32 %v4210, %v4860
    %v5301 = vadd.f32 %v4211, %v4862
    %v5302 = vadd.f32 %v4212, %v4903
    %v5303 = vadd.f32 %v4213, %v4905
    %v5304 = vadd.f32 %v4214, %v4946
    %v5305 = vadd.f32 %v4215, %v4948
    %v5306 = vadd.f32 %v4216, %v4989
    %v5307 = vadd.f32 %v4217, %v4991
    %v5308 = vadd.f32 %v4218, %v5032
    %v5309 = vadd.f32 %v4219, %v5034
    %v5310 = vadd.f32 %v4220, %v5075
    %v5311 = vadd.f32 %v4221, %v5077
    %v5312 = vadd.f32 %v4222, %v5118
    %v5313 = vadd.f32 %v4223, %v5120
    %v5314 = vadd.f32 %v4224, %v5161
    %v5315 = vadd.f32 %v4225, %v5163
    %v5316 = vadd.f32 %v4226, %v5204
    %v5317 = vadd.f32 %v4227, %v5206
    %v5318 = vadd.f32 %v4228, %v5247
    %v5319 = vadd.f32 %v4229, %v5249
    %v5320 = vadd.f32 %v4230, %v5290
    %v5321 = vadd.f32 %v4231, %v5292
    %v5322 = vadd.f32 %v4232, %v4821
    %v5323 = vadd.f32 %v4233, %v4823
    %v5324 = vadd.f32 %v4234, %v4864
    %v5325 = vadd.f32 %v4235, %v4866
    %v5326 = vadd.f32 %v4236, %v4907
    %v5327 = vadd.f32 %v4237, %v4909
    %v5328 = vadd.f32 %v4238, %v4950
    %v5329 = vadd.f32 %v4239, %v4952
    %v5330 = vadd.f32 %v4240, %v4993
    %v5331 = vadd.f32 %v4241, %v4995
    %v5332 = vadd.f32 %v4242, %v5036
    %v5333 = vadd.f32 %v4243, %v5038
    %v5334 = vadd.f32 %v4244, %v5079
    %v5335 = vadd.f32 %v4245, %v5081
    %v5336 = vadd.f32 %v4246, %v5122
    %v5337 = vadd.f32 %v4247, %v5124
    %v5338 = vadd.f32 %v4248, %v5165
    %v5339 = vadd.f32 %v4249, %v5167
    %v5340 = vadd.f32 %v4250, %v5208
    %v5341 = vadd.f32 %v4251, %v5210
    %v5342 = vadd.f32 %v4252, %v5251
    %v5343 = vadd.f32 %v4253, %v5253
    %v5344 = vadd.f32 %v4254, %v5294
    %v5345 = vadd.f32 %v4255, %v5296
    %v5346 = vadd.f32 %v5298, %v4091
    %v5347 = vadd.f32 %v5299, %v4095
    %v5348 = vadd.f32 %v5300, %v4099
    %v5349 = vadd.f32 %v5301, %v4103
    %v5350 = vadd.f32 %v5302, %v4107
    %v5351 = vadd.f32 %v5303, %v4111
    %v5352 = vadd.f32 %v5304, %v4115
    %v5353 = vadd.f32 %v5305, %v4119
    %v5354 = vadd.f32 %v5306, %v4123
    %v5355 = vadd.f32 %v5307, %v4127
    %v5356 = vadd.f32 %v5308, %v4131
    %v5357 = vadd.f32 %v5309, %v4135
    %v5358 = vadd.f32 %v5310, %v4139
    %v5359 = vadd.f32 %v5311, %v4143
    %v5360 = vadd.f32 %v5312, %v4147
    %v5361 = vadd.f32 %v5313, %v4151
    %v5362 = vadd.f32 %v5314, %v4155
    %v5363 = vadd.f32 %v5315, %v4159
    %v5364 = vadd.f32 %v5316, %v4163
    %v5365 = vadd.f32 %v5317, %v4167
    %v5366 = vadd.f32 %v5318, %v4171
    %v5367 = vadd.f32 %v5319, %v4175
    %v5368 = vadd.f32 %v5320, %v4179
    %v5369 = vadd.f32 %v5321, %v4183
    %v5370 = vadd.f32 %v5322, %v4091
    %v5371 = vadd.f32 %v5323, %v4095
    %v5372 = vadd.f32 %v5324, %v4099
    %v5373 = vadd.f32 %v5325, %v4103
    %v5374 = vadd.f32 %v5326, %v4107
    %v5375 = vadd.f32 %v5327, %v4111
    %v5376 = vadd.f32 %v5328, %v4115
    %v5377 = vadd.f32 %v5329, %v4119
    %v5378 = vadd.f32 %v5330, %v4123
    %v5379 = vadd.f32 %v5331, %v4127
    %v5380 = vadd.f32 %v5332, %v4131
    %v5381 = vadd.f32 %v5333, %v4135
    %v5382 = vadd.f32 %v5334, %v4139
    %v5383 = vadd.f32 %v5335, %v4143
    %v5384 = vadd.f32 %v5336, %v4147
    %v5385 = vadd.f32 %v5337, %v4151
    %v5386 = vadd.f32 %v5338, %v4155
    %v5387 = vadd.f32 %v5339, %v4159
    %v5388 = vadd.f32 %v5340, %v4163
    %v5389 = vadd.f32 %v5341, %v4167
    %v5390 = vadd.f32 %v5342, %v4171
    %v5391 = vadd.f32 %v5343, %v4175
    %v5392 = vadd.f32 %v5344, %v4179
    %v5393 = vadd.f32 %v5345, %v4183
    %v5394 = vadd.f32 %v687, 0.75
    %v5395 = vpack.c.bf16 %v5370, %v5346
    %v5396 = vpack.c.bf16 %v5371, %v5347
    %v5397 = vpack.c.bf16 %v5372, %v5348
    %v5398 = vpack.c.bf16 %v5373, %v5349
    %v5399 = vpack.c.bf16 %v5374, %v5350
    %v5400 = vpack.c.bf16 %v5375, %v5351
    %v5401 = vpack.c.bf16 %v5376, %v5352
    %v5402 = vpack.c.bf16 %v5377, %v5353
    %v5403 = vpack.c.bf16 %v5378, %v5354
    %v5404 = vpack.c.bf16 %v5379, %v5355
    %v5405 = vpack.c.bf16 %v5380, %v5356
    %v5406 = vpack.c.bf16 %v5381, %v5357
    %v5407 = vpack.c.bf16 %v5382, %v5358
    %v5408 = vpack.c.bf16 %v5383, %v5359
    %v5409 = vpack.c.bf16 %v5384, %v5360
    %v5410 = vpack.c.bf16 %v5385, %v5361
    %v5411 = vpack.c.bf16 %v5386, %v5362
    %v5412 = vpack.c.bf16 %v5387, %v5363
    %v5413 = vpack.c.bf16 %v5388, %v5364
    %v5414 = vpack.c.bf16 %v5389, %v5365
    %v5415 = vpack.c.bf16 %v5390, %v5366
    %v5416 = vpack.c.bf16 %v5391, %v5367
    %v5417 = vpack.c.bf16 %v5392, %v5368
    %v5418 = vpack.c.bf16 %v5393, %v5369
    %v5420 = vlaneseq
    %v5421 = vshrl.u32 %v5420, 7
    %v5422 = vsub.s32 0, %v5421
    %v5423 = vrot.slane %v5394, %v5422
    %5425 = vmatprep.subr.bf16.mxu0 0
    %5426 = vmatpush1.bf16.msra.mxu0 %v1682
    %5427 = vmatprep.subr.bf16.mxu0 0
    %5428 = vmatpush1.bf16.msra.mxu0 %v1683
    %5429 = vmatprep.subr.bf16.mxu0 0
    %5430 = vmatpush1.bf16.msra.mxu0 %v1684
    %5431 = vmatprep.subr.bf16.mxu0 0
    %5432 = vmatpush1.bf16.msra.mxu0 %v1685
    %5433 = vmatprep.subr.bf16.mxu0 0
    %5434 = vmatpush1.bf16.msra.mxu0 %v1686
    %5435 = vmatprep.subr.bf16.mxu0 0
    %5436 = vmatpush1.bf16.msra.mxu0 %v1687
    %5437 = vmatprep.subr.bf16.mxu0 0
    %5438 = vmatpush1.bf16.msra.mxu0 %v1688
    %5439 = vmatprep.subr.bf16.mxu0 0
    %5440 = vmatpush1.bf16.msra.mxu0 %v1689
    %5441 = vmatprep.subr.bf16.mxu0 0
    %5442 = vmatpush1.bf16.msra.mxu0 %v1690
    %5443 = vmatprep.subr.bf16.mxu0 0
    %5444 = vmatpush1.bf16.msra.mxu0 %v1691
    %5445 = vmatprep.subr.bf16.mxu0 0
    %5446 = vmatpush1.bf16.msra.mxu0 %v1692
    %5447 = vmatprep.subr.bf16.mxu0 0
    %5448 = vmatpush1.bf16.msra.mxu0 %v1693
    %5449 = vmatprep.subr.bf16.mxu0 0
    %5450 = vmatpush1.bf16.msra.mxu0 %v1694
    %5451 = vmatprep.subr.bf16.mxu0 0
    %5452 = vmatpush1.bf16.msra.mxu0 %v1695
    %5453 = vmatprep.subr.bf16.mxu0 0
    %5454 = vmatpush1.bf16.msra.mxu0 %v1696
    %5455 = vmatprep.subr.bf16.mxu0 0
    %5456 = vmatpush1.bf16.msra.mxu0 %v1697
    %5457 = vmatprep.mubr.bf16.mxu0 %v5396
    %5458 = vmatmul.mubr.bf16.gmra.mrb[0].mxu0 %v5395
    %v5459 = vpop.f32.mrb[0].mxu0
    %v5460 = vadd.f32 %v5423, %v5459
    %v5461 = vpop.f32.mrb[0].mxu0
    %v5462 = vpop.f32.mrb[0].mxu0
    %v5463 = vadd.f32 %v5423, %v5462
    %v5464 = vpop.f32.mrb[0].mxu0
    %5465 = vdwg.mxu0
    %5466 = vmatprep.subr.bf16.mxu0 0
    %5467 = vmatpush1.bf16.msra.mxu0 %v1698
    %5468 = vmatprep.subr.bf16.mxu0 0
    %5469 = vmatpush1.bf16.msra.mxu0 %v1699
    %5470 = vmatprep.subr.bf16.mxu0 0
    %5471 = vmatpush1.bf16.msra.mxu0 %v1700
    %5472 = vmatprep.subr.bf16.mxu0 0
    %5473 = vmatpush1.bf16.msra.mxu0 %v1701
    %5474 = vmatprep.subr.bf16.mxu0 0
    %5475 = vmatpush1.bf16.msra.mxu0 %v1702
    %5476 = vmatprep.subr.bf16.mxu0 0
    %5477 = vmatpush1.bf16.msra.mxu0 %v1703
    %5478 = vmatprep.subr.bf16.mxu0 0
    %5479 = vmatpush1.bf16.msra.mxu0 %v1704
    %5480 = vmatprep.subr.bf16.mxu0 0
    %5481 = vmatpush1.bf16.msra.mxu0 %v1705
    %5482 = vmatprep.subr.bf16.mxu0 0
    %5483 = vmatpush1.bf16.msra.mxu0 %v1706
    %5484 = vmatprep.subr.bf16.mxu0 0
    %5485 = vmatpush1.bf16.msra.mxu0 %v1707
    %5486 = vmatprep.subr.bf16.mxu0 0
    %5487 = vmatpush1.bf16.msra.mxu0 %v1708
    %5488 = vmatprep.subr.bf16.mxu0 0
    %5489 = vmatpush1.bf16.msra.mxu0 %v1709
    %5490 = vmatprep.subr.bf16.mxu0 0
    %5491 = vmatpush1.bf16.msra.mxu0 %v1710
    %5492 = vmatprep.subr.bf16.mxu0 0
    %5493 = vmatpush1.bf16.msra.mxu0 %v1711
    %5494 = vmatprep.subr.bf16.mxu0 0
    %5495 = vmatpush1.bf16.msra.mxu0 %v1712
    %5496 = vmatprep.subr.bf16.mxu0 0
    %5497 = vmatpush1.bf16.msra.mxu0 %v1713
    %5498 = vmatprep.mubr.bf16.mxu0 %v5398
    %5499 = vmatmul.mubr.bf16.gmra.mrb[0].mxu0 %v5397
    %v5500 = vpop.f32.mrb[0].mxu0
    %v5501 = vadd.f32 %v5460, %v5500
    %v5502 = vpop.f32.mrb[0].mxu0
    %v5503 = vpop.f32.mrb[0].mxu0
    %v5504 = vadd.f32 %v5463, %v5503
    %v5505 = vpop.f32.mrb[0].mxu0
    %5506 = vdwg.mxu0
    %5507 = vmatprep.subr.bf16.mxu0 0
    %5508 = vmatpush1.bf16.msra.mxu0 %v1714
    %5509 = vmatprep.subr.bf16.mxu0 0
    %5510 = vmatpush1.bf16.msra.mxu0 %v1715
    %5511 = vmatprep.subr.bf16.mxu0 0
    %5512 = vmatpush1.bf16.msra.mxu0 %v1716
    %5513 = vmatprep.subr.bf16.mxu0 0
    %5514 = vmatpush1.bf16.msra.mxu0 %v1717
    %5515 = vmatprep.subr.bf16.mxu0 0
    %5516 = vmatpush1.bf16.msra.mxu0 %v1718
    %5517 = vmatprep.subr.bf16.mxu0 0
    %5518 = vmatpush1.bf16.msra.mxu0 %v1719
    %5519 = vmatprep.subr.bf16.mxu0 0
    %5520 = vmatpush1.bf16.msra.mxu0 %v1720
    %5521 = vmatprep.subr.bf16.mxu0 0
    %5522 = vmatpush1.bf16.msra.mxu0 %v1721
    %5523 = vmatprep.subr.bf16.mxu0 0
    %5524 = vmatpush1.bf16.msra.mxu0 %v1722
    %5525 = vmatprep.subr.bf16.mxu0 0
    %5526 = vmatpush1.bf16.msra.mxu0 %v1723
    %5527 = vmatprep.subr.bf16.mxu0 0
    %5528 = vmatpush1.bf16.msra.mxu0 %v1724
    %5529 = vmatprep.subr.bf16.mxu0 0
    %5530 = vmatpush1.bf16.msra.mxu0 %v1725
    %5531 = vmatprep.subr.bf16.mxu0 0
    %5532 = vmatpush1.bf16.msra.mxu0 %v1726
    %5533 = vmatprep.subr.bf16.mxu0 0
    %5534 = vmatpush1.bf16.msra.mxu0 %v1727
    %5535 = vmatprep.subr.bf16.mxu0 0
    %5536 = vmatpush1.bf16.msra.mxu0 %v1728
    %5537 = vmatprep.subr.bf16.mxu0 0
    %5538 = vmatpush1.bf16.msra.mxu0 %v1729
    %5539 = vmatprep.mubr.bf16.mxu0 %v5400
    %5540 = vmatmul.mubr.bf16.gmra.mrb[0].mxu0 %v5399
    %v5541 = vpop.f32.mrb[0].mxu0
    %v5542 = vadd.f32 %v5501, %v5541
    %v5543 = vpop.f32.mrb[0].mxu0
    %v5544 = vpop.f32.mrb[0].mxu0
    %v5545 = vadd.f32 %v5504, %v5544
    %v5546 = vpop.f32.mrb[0].mxu0
    %5547 = vdwg.mxu0
    %5548 = vmatprep.subr.bf16.mxu0 0
    %5549 = vmatpush1.bf16.msra.mxu0 %v1730
    %5550 = vmatprep.subr.bf16.mxu0 0
    %5551 = vmatpush1.bf16.msra.mxu0 %v1731
    %5552 = vmatprep.subr.bf16.mxu0 0
    %5553 = vmatpush1.bf16.msra.mxu0 %v1732
    %5554 = vmatprep.subr.bf16.mxu0 0
    %5555 = vmatpush1.bf16.msra.mxu0 %v1733
    %5556 = vmatprep.subr.bf16.mxu0 0
    %5557 = vmatpush1.bf16.msra.mxu0 %v1734
    %5558 = vmatprep.subr.bf16.mxu0 0
    %5559 = vmatpush1.bf16.msra.mxu0 %v1735
    %5560 = vmatprep.subr.bf16.mxu0 0
    %5561 = vmatpush1.bf16.msra.mxu0 %v1736
    %5562 = vmatprep.subr.bf16.mxu0 0
    %5563 = vmatpush1.bf16.msra.mxu0 %v1737
    %5564 = vmatprep.subr.bf16.mxu0 0
    %5565 = vmatpush1.bf16.msra.mxu0 %v1738
    %5566 = vmatprep.subr.bf16.mxu0 0
    %5567 = vmatpush1.bf16.msra.mxu0 %v1739
    %5568 = vmatprep.subr.bf16.mxu0 0
    %5569 = vmatpush1.bf16.msra.mxu0 %v1740
    %5570 = vmatprep.subr.bf16.mxu0 0
    %5571 = vmatpush1.bf16.msra.mxu0 %v1741
    %5572 = vmatprep.subr.bf16.mxu0 0
    %5573 = vmatpush1.bf16.msra.mxu0 %v1742
    %5574 = vmatprep.subr.bf16.mxu0 0
    %5575 = vmatpush1.bf16.msra.mxu0 %v1743
    %5576 = vmatprep.subr.bf16.mxu0 0
    %5577 = vmatpush1.bf16.msra.mxu0 %v1744
    %5578 = vmatprep.subr.bf16.mxu0 0
    %5579 = vmatpush1.bf16.msra.mxu0 %v1745
    %5580 = vmatprep.mubr.bf16.mxu0 %v5402
    %5581 = vmatmul.mubr.bf16.gmra.mrb[0].mxu0 %v5401
    %v5582 = vpop.f32.mrb[0].mxu0
    %v5583 = vadd.f32 %v5542, %v5582
    %v5584 = vpop.f32.mrb[0].mxu0
    %v5585 = vpop.f32.mrb[0].mxu0
    %v5586 = vadd.f32 %v5545, %v5585
    %v5587 = vpop.f32.mrb[0].mxu0
    %5588 = vdwg.mxu0
    %5589 = vmatprep.subr.bf16.mxu0 0
    %5590 = vmatpush1.bf16.msra.mxu0 %v1746
    %5591 = vmatprep.subr.bf16.mxu0 0
    %5592 = vmatpush1.bf16.msra.mxu0 %v1747
    %5593 = vmatprep.subr.bf16.mxu0 0
    %5594 = vmatpush1.bf16.msra.mxu0 %v1748
    %5595 = vmatprep.subr.bf16.mxu0 0
    %5596 = vmatpush1.bf16.msra.mxu0 %v1749
    %5597 = vmatprep.subr.bf16.mxu0 0
    %5598 = vmatpush1.bf16.msra.mxu0 %v1750
    %5599 = vmatprep.subr.bf16.mxu0 0
    %5600 = vmatpush1.bf16.msra.mxu0 %v1751
    %5601 = vmatprep.subr.bf16.mxu0 0
    %5602 = vmatpush1.bf16.msra.mxu0 %v1752
    %5603 = vmatprep.subr.bf16.mxu0 0
    %5604 = vmatpush1.bf16.msra.mxu0 %v1753
    %5605 = vmatprep.subr.bf16.mxu0 0
    %5606 = vmatpush1.bf16.msra.mxu0 %v1754
    %5607 = vmatprep.subr.bf16.mxu0 0
    %5608 = vmatpush1.bf16.msra.mxu0 %v1755
    %5609 = vmatprep.subr.bf16.mxu0 0
    %5610 = vmatpush1.bf16.msra.mxu0 %v1756
    %5611 = vmatprep.subr.bf16.mxu0 0
    %5612 = vmatpush1.bf16.msra.mxu0 %v1757
    %5613 = vmatprep.subr.bf16.mxu0 0
    %5614 = vmatpush1.bf16.msra.mxu0 %v1758
    %5615 = vmatprep.subr.bf16.mxu0 0
    %5616 = vmatpush1.bf16.msra.mxu0 %v1759
    %5617 = vmatprep.subr.bf16.mxu0 0
    %5618 = vmatpush1.bf16.msra.mxu0 %v1760
    %5619 = vmatprep.subr.bf16.mxu0 0
    %5620 = vmatpush1.bf16.msra.mxu0 %v1761
    %5621 = vmatprep.mubr.bf16.mxu0 %v5404
    %5622 = vmatmul.mubr.bf16.gmra.mrb[0].mxu0 %v5403
    %v5623 = vpop.f32.mrb[0].mxu0
    %v5624 = vadd.f32 %v5583, %v5623
    %v5625 = vpop.f32.mrb[0].mxu0
    %v5626 = vpop.f32.mrb[0].mxu0
    %v5627 = vadd.f32 %v5586, %v5626
    %v5628 = vpop.f32.mrb[0].mxu0
    %5629 = vdwg.mxu0
    %5630 = vmatprep.subr.bf16.mxu0 0
    %5631 = vmatpush1.bf16.msra.mxu0 %v1762
    %5632 = vmatprep.subr.bf16.mxu0 0
    %5633 = vmatpush1.bf16.msra.mxu0 %v1763
    %5634 = vmatprep.subr.bf16.mxu0 0
    %5635 = vmatpush1.bf16.msra.mxu0 %v1764
    %5636 = vmatprep.subr.bf16.mxu0 0
    %5637 = vmatpush1.bf16.msra.mxu0 %v1765
    %5638 = vmatprep.subr.bf16.mxu0 0
    %5639 = vmatpush1.bf16.msra.mxu0 %v1766
    %5640 = vmatprep.subr.bf16.mxu0 0
    %5641 = vmatpush1.bf16.msra.mxu0 %v1767
    %5642 = vmatprep.subr.bf16.mxu0 0
    %5643 = vmatpush1.bf16.msra.mxu0 %v1768
    %5644 = vmatprep.subr.bf16.mxu0 0
    %5645 = vmatpush1.bf16.msra.mxu0 %v1769
    %5646 = vmatprep.subr.bf16.mxu0 0
    %5647 = vmatpush1.bf16.msra.mxu0 %v1770
    %5648 = vmatprep.subr.bf16.mxu0 0
    %5649 = vmatpush1.bf16.msra.mxu0 %v1771
    %5650 = vmatprep.subr.bf16.mxu0 0
    %5651 = vmatpush1.bf16.msra.mxu0 %v1772
    %5652 = vmatprep.subr.bf16.mxu0 0
    %5653 = vmatpush1.bf16.msra.mxu0 %v1773
    %5654 = vmatprep.subr.bf16.mxu0 0
    %5655 = vmatpush1.bf16.msra.mxu0 %v1774
    %5656 = vmatprep.subr.bf16.mxu0 0
    %5657 = vmatpush1.bf16.msra.mxu0 %v1775
    %5658 = vmatprep.subr.bf16.mxu0 0
    %5659 = vmatpush1.bf16.msra.mxu0 %v1776
    %5660 = vmatprep.subr.bf16.mxu0 0
    %5661 = vmatpush1.bf16.msra.mxu0 %v1777
    %5662 = vmatprep.mubr.bf16.mxu0 %v5406
    %5663 = vmatmul.mubr.bf16.gmra.mrb[0].mxu0 %v5405
    %v5664 = vpop.f32.mrb[0].mxu0
    %v5665 = vadd.f32 %v5624, %v5664
    %v5666 = vpop.f32.mrb[0].mxu0
    %v5667 = vpop.f32.mrb[0].mxu0
    %v5668 = vadd.f32 %v5627, %v5667
    %v5669 = vpop.f32.mrb[0].mxu0
    %5670 = vdwg.mxu0
    %5671 = vmatprep.subr.bf16.mxu0 0
    %5672 = vmatpush1.bf16.msra.mxu0 %v1778
    %5673 = vmatprep.subr.bf16.mxu0 0
    %5674 = vmatpush1.bf16.msra.mxu0 %v1779
    %5675 = vmatprep.subr.bf16.mxu0 0
    %5676 = vmatpush1.bf16.msra.mxu0 %v1780
    %5677 = vmatprep.subr.bf16.mxu0 0
    %5678 = vmatpush1.bf16.msra.mxu0 %v1781
    %5679 = vmatprep.subr.bf16.mxu0 0
    %5680 = vmatpush1.bf16.msra.mxu0 %v1782
    %5681 = vmatprep.subr.bf16.mxu0 0
    %5682 = vmatpush1.bf16.msra.mxu0 %v1783
    %5683 = vmatprep.subr.bf16.mxu0 0
    %5684 = vmatpush1.bf16.msra.mxu0 %v1784
    %5685 = vmatprep.subr.bf16.mxu0 0
    %5686 = vmatpush1.bf16.msra.mxu0 %v1785
    %5687 = vmatprep.subr.bf16.mxu0 0
    %5688 = vmatpush1.bf16.msra.mxu0 %v1786
    %5689 = vmatprep.subr.bf16.mxu0 0
    %5690 = vmatpush1.bf16.msra.mxu0 %v1787
    %5691 = vmatprep.subr.bf16.mxu0 0
    %5692 = vmatpush1.bf16.msra.mxu0 %v1788
    %5693 = vmatprep.subr.bf16.mxu0 0
    %5694 = vmatpush1.bf16.msra.mxu0 %v1789
    %5695 = vmatprep.subr.bf16.mxu0 0
    %5696 = vmatpush1.bf16.msra.mxu0 %v1790
    %5697 = vmatprep.subr.bf16.mxu0 0
    %5698 = vmatpush1.bf16.msra.mxu0 %v1791
    %5699 = vmatprep.subr.bf16.mxu0 0
    %5700 = vmatpush1.bf16.msra.mxu0 %v1792
    %5701 = vmatprep.subr.bf16.mxu0 0
    %5702 = vmatpush1.bf16.msra.mxu0 %v1793
    %5703 = vmatprep.mubr.bf16.mxu0 %v5408
    %5704 = vmatmul.mubr.bf16.gmra.mrb[0].mxu0 %v5407
    %v5705 = vpop.f32.mrb[0].mxu0
    %v5706 = vadd.f32 %v5665, %v5705
    %v5707 = vpop.f32.mrb[0].mxu0
    %v5708 = vpop.f32.mrb[0].mxu0
    %v5709 = vadd.f32 %v5668, %v5708
    %v5710 = vpop.f32.mrb[0].mxu0
    %5711 = vdwg.mxu0
    %5712 = vmatprep.subr.bf16.mxu0 0
    %5713 = vmatpush1.bf16.msra.mxu0 %v1794
    %5714 = vmatprep.subr.bf16.mxu0 0
    %5715 = vmatpush1.bf16.msra.mxu0 %v1795
    %5716 = vmatprep.subr.bf16.mxu0 0
    %5717 = vmatpush1.bf16.msra.mxu0 %v1796
    %5718 = vmatprep.subr.bf16.mxu0 0
    %5719 = vmatpush1.bf16.msra.mxu0 %v1797
    %5720 = vmatprep.subr.bf16.mxu0 0
    %5721 = vmatpush1.bf16.msra.mxu0 %v1798
    %5722 = vmatprep.subr.bf16.mxu0 0
    %5723 = vmatpush1.bf16.msra.mxu0 %v1799
    %5724 = vmatprep.subr.bf16.mxu0 0
    %5725 = vmatpush1.bf16.msra.mxu0 %v1800
    %5726 = vmatprep.subr.bf16.mxu0 0
    %5727 = vmatpush1.bf16.msra.mxu0 %v1801
    %5728 = vmatprep.subr.bf16.mxu0 0
    %5729 = vmatpush1.bf16.msra.mxu0 %v1802
    %5730 = vmatprep.subr.bf16.mxu0 0
    %5731 = vmatpush1.bf16.msra.mxu0 %v1803
    %5732 = vmatprep.subr.bf16.mxu0 0
    %5733 = vmatpush1.bf16.msra.mxu0 %v1804
    %5734 = vmatprep.subr.bf16.mxu0 0
    %5735 = vmatpush1.bf16.msra.mxu0 %v1805
    %5736 = vmatprep.subr.bf16.mxu0 0
    %5737 = vmatpush1.bf16.msra.mxu0 %v1806
    %5738 = vmatprep.subr.bf16.mxu0 0
    %5739 = vmatpush1.bf16.msra.mxu0 %v1807
    %5740 = vmatprep.subr.bf16.mxu0 0
    %5741 = vmatpush1.bf16.msra.mxu0 %v1808
    %5742 = vmatprep.subr.bf16.mxu0 0
    %5743 = vmatpush1.bf16.msra.mxu0 %v1809
    %5744 = vmatprep.mubr.bf16.mxu0 %v5410
    %5745 = vmatmul.mubr.bf16.gmra.mrb[0].mxu0 %v5409
    %v5746 = vpop.f32.mrb[0].mxu0
    %v5747 = vadd.f32 %v5706, %v5746
    %v5748 = vpop.f32.mrb[0].mxu0
    %v5749 = vpop.f32.mrb[0].mxu0
    %v5750 = vadd.f32 %v5709, %v5749
    %v5751 = vpop.f32.mrb[0].mxu0
    %5752 = vdwg.mxu0
    %5753 = vmatprep.subr.bf16.mxu0 0
    %5754 = vmatpush1.bf16.msra.mxu0 %v1810
    %5755 = vmatprep.subr.bf16.mxu0 0
    %5756 = vmatpush1.bf16.msra.mxu0 %v1811
    %5757 = vmatprep.subr.bf16.mxu0 0
    %5758 = vmatpush1.bf16.msra.mxu0 %v1812
    %5759 = vmatprep.subr.bf16.mxu0 0
    %5760 = vmatpush1.bf16.msra.mxu0 %v1813
    %5761 = vmatprep.subr.bf16.mxu0 0
    %5762 = vmatpush1.bf16.msra.mxu0 %v1814
    %5763 = vmatprep.subr.bf16.mxu0 0
    %5764 = vmatpush1.bf16.msra.mxu0 %v1815
    %5765 = vmatprep.subr.bf16.mxu0 0
    %5766 = vmatpush1.bf16.msra.mxu0 %v1816
    %5767 = vmatprep.subr.bf16.mxu0 0
    %5768 = vmatpush1.bf16.msra.mxu0 %v1817
    %5769 = vmatprep.subr.bf16.mxu0 0
    %5770 = vmatpush1.bf16.msra.mxu0 %v1818
    %5771 = vmatprep.subr.bf16.mxu0 0
    %5772 = vmatpush1.bf16.msra.mxu0 %v1819
    %5773 = vmatprep.subr.bf16.mxu0 0
    %5774 = vmatpush1.bf16.msra.mxu0 %v1820
    %5775 = vmatprep.subr.bf16.mxu0 0
    %5776 = vmatpush1.bf16.msra.mxu0 %v1821
    %5777 = vmatprep.subr.bf16.mxu0 0
    %5778 = vmatpush1.bf16.msra.mxu0 %v1822
    %5779 = vmatprep.subr.bf16.mxu0 0
    %5780 = vmatpush1.bf16.msra.mxu0 %v1823
    %5781 = vmatprep.subr.bf16.mxu0 0
    %5782 = vmatpush1.bf16.msra.mxu0 %v1824
    %5783 = vmatprep.subr.bf16.mxu0 0
    %5784 = vmatpush1.bf16.msra.mxu0 %v1825
    %5785 = vmatprep.mubr.bf16.mxu0 %v5412
    %5786 = vmatmul.mubr.bf16.gmra.mrb[0].mxu0 %v5411
    %v5787 = vpop.f32.mrb[0].mxu0
    %v5788 = vadd.f32 %v5747, %v5787
    %v5789 = vpop.f32.mrb[0].mxu0
    %v5790 = vpop.f32.mrb[0].mxu0
    %v5791 = vadd.f32 %v5750, %v5790
    %v5792 = vpop.f32.mrb[0].mxu0
    %5793 = vdwg.mxu0
    %5794 = vmatprep.subr.bf16.mxu0 0
    %5795 = vmatpush1.bf16.msra.mxu0 %v1826
    %5796 = vmatprep.subr.bf16.mxu0 0
    %5797 = vmatpush1.bf16.msra.mxu0 %v1827
    %5798 = vmatprep.subr.bf16.mxu0 0
    %5799 = vmatpush1.bf16.msra.mxu0 %v1828
    %5800 = vmatprep.subr.bf16.mxu0 0
    %5801 = vmatpush1.bf16.msra.mxu0 %v1829
    %5802 = vmatprep.subr.bf16.mxu0 0
    %5803 = vmatpush1.bf16.msra.mxu0 %v1830
    %5804 = vmatprep.subr.bf16.mxu0 0
    %5805 = vmatpush1.bf16.msra.mxu0 %v1831
    %5806 = vmatprep.subr.bf16.mxu0 0
    %5807 = vmatpush1.bf16.msra.mxu0 %v1832
    %5808 = vmatprep.subr.bf16.mxu0 0
    %5809 = vmatpush1.bf16.msra.mxu0 %v1833
    %5810 = vmatprep.subr.bf16.mxu0 0
    %5811 = vmatpush1.bf16.msra.mxu0 %v1834
    %5812 = vmatprep.subr.bf16.mxu0 0
    %5813 = vmatpush1.bf16.msra.mxu0 %v1835
    %5814 = vmatprep.subr.bf16.mxu0 0
    %5815 = vmatpush1.bf16.msra.mxu0 %v1836
    %5816 = vmatprep.subr.bf16.mxu0 0
    %5817 = vmatpush1.bf16.msra.mxu0 %v1837
    %5818 = vmatprep.subr.bf16.mxu0 0
    %5819 = vmatpush1.bf16.msra.mxu0 %v1838
    %5820 = vmatprep.subr.bf16.mxu0 0
    %5821 = vmatpush1.bf16.msra.mxu0 %v1839
    %5822 = vmatprep.subr.bf16.mxu0 0
    %5823 = vmatpush1.bf16.msra.mxu0 %v1840
    %5824 = vmatprep.subr.bf16.mxu0 0
    %5825 = vmatpush1.bf16.msra.mxu0 %v1841
    %5826 = vmatprep.mubr.bf16.mxu0 %v5414
    %5827 = vmatmul.mubr.bf16.gmra.mrb[0].mxu0 %v5413
    %v5828 = vpop.f32.mrb[0].mxu0
    %v5829 = vadd.f32 %v5788, %v5828
    %v5830 = vpop.f32.mrb[0].mxu0
    %v5831 = vpop.f32.mrb[0].mxu0
    %v5832 = vadd.f32 %v5791, %v5831
    %v5833 = vpop.f32.mrb[0].mxu0
    %5834 = vdwg.mxu0
    %5835 = vmatprep.subr.bf16.mxu0 0
    %5836 = vmatpush1.bf16.msra.mxu0 %v1842
    %5837 = vmatprep.subr.bf16.mxu0 0
    %5838 = vmatpush1.bf16.msra.mxu0 %v1843
    %5839 = vmatprep.subr.bf16.mxu0 0
    %5840 = vmatpush1.bf16.msra.mxu0 %v1844
    %5841 = vmatprep.subr.bf16.mxu0 0
    %5842 = vmatpush1.bf16.msra.mxu0 %v1845
    %5843 = vmatprep.subr.bf16.mxu0 0
    %5844 = vmatpush1.bf16.msra.mxu0 %v1846
    %5845 = vmatprep.subr.bf16.mxu0 0
    %5846 = vmatpush1.bf16.msra.mxu0 %v1847
    %5847 = vmatprep.subr.bf16.mxu0 0
    %5848 = vmatpush1.bf16.msra.mxu0 %v1848
    %5849 = vmatprep.subr.bf16.mxu0 0
    %5850 = vmatpush1.bf16.msra.mxu0 %v1849
    %5851 = vmatprep.subr.bf16.mxu0 0
    %5852 = vmatpush1.bf16.msra.mxu0 %v1850
    %5853 = vmatprep.subr.bf16.mxu0 0
    %5854 = vmatpush1.bf16.msra.mxu0 %v1851
    %5855 = vmatprep.subr.bf16.mxu0 0
    %5856 = vmatpush1.bf16.msra.mxu0 %v1852
    %5857 = vmatprep.subr.bf16.mxu0 0
    %5858 = vmatpush1.bf16.msra.mxu0 %v1853
    %5859 = vmatprep.subr.bf16.mxu0 0
    %5860 = vmatpush1.bf16.msra.mxu0 %v1854
    %5861 = vmatprep.subr.bf16.mxu0 0
    %5862 = vmatpush1.bf16.msra.mxu0 %v1855
    %5863 = vmatprep.subr.bf16.mxu0 0
    %5864 = vmatpush1.bf16.msra.mxu0 %v1856
    %5865 = vmatprep.subr.bf16.mxu0 0
    %5866 = vmatpush1.bf16.msra.mxu0 %v1857
    %5867 = vmatprep.mubr.bf16.mxu0 %v5416
    %5868 = vmatmul.mubr.bf16.gmra.mrb[0].mxu0 %v5415
    %v5869 = vpop.f32.mrb[0].mxu0
    %v5870 = vadd.f32 %v5829, %v5869
    %v5871 = vpop.f32.mrb[0].mxu0
    %v5872 = vpop.f32.mrb[0].mxu0
    %v5873 = vadd.f32 %v5832, %v5872
    %v5874 = vpop.f32.mrb[0].mxu0
    %5875 = vdwg.mxu0
    %5876 = vmatprep.subr.bf16.mxu0 0
    %5877 = vmatpush1.bf16.msra.mxu0 %v1858
    %5878 = vmatprep.subr.bf16.mxu0 0
    %5879 = vmatpush1.bf16.msra.mxu0 %v1859
    %5880 = vmatprep.subr.bf16.mxu0 0
    %5881 = vmatpush1.bf16.msra.mxu0 %v1860
    %5882 = vmatprep.subr.bf16.mxu0 0
    %5883 = vmatpush1.bf16.msra.mxu0 %v1861
    %5884 = vmatprep.subr.bf16.mxu0 0
    %5885 = vmatpush1.bf16.msra.mxu0 %v1862
    %5886 = vmatprep.subr.bf16.mxu0 0
    %5887 = vmatpush1.bf16.msra.mxu0 %v1863
    %5888 = vmatprep.subr.bf16.mxu0 0
    %5889 = vmatpush1.bf16.msra.mxu0 %v1864
    %5890 = vmatprep.subr.bf16.mxu0 0
    %5891 = vmatpush1.bf16.msra.mxu0 %v1865
    %5892 = vmatprep.subr.bf16.mxu0 0
    %5893 = vmatpush1.bf16.msra.mxu0 %v1866
    %5894 = vmatprep.subr.bf16.mxu0 0
    %5895 = vmatpush1.bf16.msra.mxu0 %v1867
    %5896 = vmatprep.subr.bf16.mxu0 0
    %5897 = vmatpush1.bf16.msra.mxu0 %v1868
    %5898 = vmatprep.subr.bf16.mxu0 0
    %5899 = vmatpush1.bf16.msra.mxu0 %v1869
    %5900 = vmatprep.subr.bf16.mxu0 0
    %5901 = vmatpush1.bf16.msra.mxu0 %v1870
    %5902 = vmatprep.subr.bf16.mxu0 0
    %5903 = vmatpush1.bf16.msra.mxu0 %v1871
    %5904 = vmatprep.subr.bf16.mxu0 0
    %5905 = vmatpush1.bf16.msra.mxu0 %v1872
    %5906 = vmatprep.subr.bf16.mxu0 0
    %5907 = vmatpush1.bf16.msra.mxu0 %v1873
    %5908 = vmatprep.mubr.bf16.mxu0 %v5418
    %5909 = vmatmul.mubr.bf16.gmra.mrb[0].mxu0 %v5417
    %v5910 = vpop.f32.mrb[0].mxu0
    %v5911 = vadd.f32 %v5870, %v5910
    %v5912 = vpop.f32.mrb[0].mxu0
    %v5913 = vpop.f32.mrb[0].mxu0
    %v5914 = vadd.f32 %v5873, %v5913
    %v5915 = vpop.f32.mrb[0].mxu0
    %5916 = vdwg.mxu0
    %v5917 = vmax.f32 %v5911, 0.0
    %v5918 = vmax.f32 %v5914, 0.0
    %v5919 = vpack.c.bf16 %v5918, %v5917
    %5920 = vmatprep.subr.bf16.mxu0 %v3138
    %5921 = vmatpush1.bf16.msra.mxu0 %v3137
    %5922 = vmatprep.subr.bf16.mxu0 %v3162
    %5923 = vmatpush1.bf16.msra.mxu0 %v3161
    %5924 = vmatprep.subr.bf16.mxu0 %v3186
    %5925 = vmatpush1.bf16.msra.mxu0 %v3185
    %5926 = vmatprep.subr.bf16.mxu0 %v3210
    %5927 = vmatpush1.bf16.msra.mxu0 %v3209
    %5928 = vmatprep.subr.bf16.mxu0 %v3234
    %5929 = vmatpush1.bf16.msra.mxu0 %v3233
    %5930 = vmatprep.subr.bf16.mxu0 %v3258
    %5931 = vmatpush1.bf16.msra.mxu0 %v3257
    %5932 = vmatprep.subr.bf16.mxu0 %v3282
    %5933 = vmatpush1.bf16.msra.mxu0 %v3281
    %5934 = vmatprep.subr.bf16.mxu0 %v3306
    %5935 = vmatpush1.bf16.msra.mxu0 %v3305
    %5936 = vmatprep.subr.bf16.mxu0 0
    %5937 = vmatpush1.bf16.msra.mxu0 0
    %5938 = vmatprep.subr.bf16.mxu0 0
    %5939 = vmatpush1.bf16.msra.mxu0 0
    %5940 = vmatprep.subr.bf16.mxu0 0
    %5941 = vmatpush1.bf16.msra.mxu0 0
    %5942 = vmatprep.subr.bf16.mxu0 0
    %5943 = vmatpush1.bf16.msra.mxu0 0
    %5944 = vmatprep.subr.bf16.mxu0 0
    %5945 = vmatpush1.bf16.msra.mxu0 0
    %5946 = vmatprep.subr.bf16.mxu0 0
    %5947 = vmatpush1.bf16.msra.mxu0 0
    %5948 = vmatprep.subr.bf16.mxu0 0
    %5949 = vmatpush1.bf16.msra.mxu0 0
    %5950 = vmatprep.subr.bf16.mxu0 0
    %5951 = vmatpush1.bf16.msra.mxu0 0
    %5952 = vmatprep.mubr.bf16.mxu0 0
    %5953 = vmatmul.mubr.bf16.gmra.mrb[0].mxu0 %v5919
    %v5954 = vpop.f32.mrb[0].mxu0
    %v5955 = vadd.f32 0.0, %v5954
    %v5956 = vpop.f32.mrb[0].mxu0
    %v5957 = vadd.f32 0.0, %v5956
    %v5958 = vpop.f32.mrb[0].mxu0
    %v5959 = vadd.f32 0.0, %v5958
    %v5960 = vpop.f32.mrb[0].mxu0
    %v5961 = vadd.f32 0.0, %v5960
    %5962 = vdwg.mxu0
    %5963 = vmatprep.subr.bf16.mxu0 %v3140
    %5964 = vmatpush1.bf16.msra.mxu0 %v3139
    %5965 = vmatprep.subr.bf16.mxu0 %v3164
    %5966 = vmatpush1.bf16.msra.mxu0 %v3163
    %5967 = vmatprep.subr.bf16.mxu0 %v3188
    %5968 = vmatpush1.bf16.msra.mxu0 %v3187
    %5969 = vmatprep.subr.bf16.mxu0 %v3212
    %5970 = vmatpush1.bf16.msra.mxu0 %v3211
    %5971 = vmatprep.subr.bf16.mxu0 %v3236
    %5972 = vmatpush1.bf16.msra.mxu0 %v3235
    %5973 = vmatprep.subr.bf16.mxu0 %v3260
    %5974 = vmatpush1.bf16.msra.mxu0 %v3259
    %5975 = vmatprep.subr.bf16.mxu0 %v3284
    %5976 = vmatpush1.bf16.msra.mxu0 %v3283
    %5977 = vmatprep.subr.bf16.mxu0 %v3308
    %5978 = vmatpush1.bf16.msra.mxu0 %v3307
    %5979 = vmatprep.subr.bf16.mxu0 0
    %5980 = vmatpush1.bf16.msra.mxu0 0
    %5981 = vmatprep.subr.bf16.mxu0 0
    %5982 = vmatpush1.bf16.msra.mxu0 0
    %5983 = vmatprep.subr.bf16.mxu0 0
    %5984 = vmatpush1.bf16.msra.mxu0 0
    %5985 = vmatprep.subr.bf16.mxu0 0
    %5986 = vmatpush1.bf16.msra.mxu0 0
    %5987 = vmatprep.subr.bf16.mxu0 0
    %5988 = vmatpush1.bf16.msra.mxu0 0
    %5989 = vmatprep.subr.bf16.mxu0 0
    %5990 = vmatpush1.bf16.msra.mxu0 0
    %5991 = vmatprep.subr.bf16.mxu0 0
    %5992 = vmatpush1.bf16.msra.mxu0 0
    %5993 = vmatprep.subr.bf16.mxu0 0
    %5994 = vmatpush1.bf16.msra.mxu0 0
    %5995 = vmatprep.mubr.bf16.mxu0 0
    %5996 = vmatmul.mubr.bf16.gmra.mrb[0].mxu0 %v5919
    %v5997 = vpop.f32.mrb[0].mxu0
    %v5998 = vadd.f32 0.0, %v5997
    %v5999 = vpop.f32.mrb[0].mxu0
    %v6000 = vadd.f32 0.0, %v5999
    %v6001 = vpop.f32.mrb[0].mxu0
    %v6002 = vadd.f32 0.0, %v6001
    %v6003 = vpop.f32.mrb[0].mxu0
    %v6004 = vadd.f32 0.0, %v6003
    %6005 = vdwg.mxu0
    %6006 = vmatprep.subr.bf16.mxu0 %v3142
    %6007 = vmatpush1.bf16.msra.mxu0 %v3141
    %6008 = vmatprep.subr.bf16.mxu0 %v3166
    %6009 = vmatpush1.bf16.msra.mxu0 %v3165
    %6010 = vmatprep.subr.bf16.mxu0 %v3190
    %6011 = vmatpush1.bf16.msra.mxu0 %v3189
    %6012 = vmatprep.subr.bf16.mxu0 %v3214
    %6013 = vmatpush1.bf16.msra.mxu0 %v3213
    %6014 = vmatprep.subr.bf16.mxu0 %v3238
    %6015 = vmatpush1.bf16.msra.mxu0 %v3237
    %6016 = vmatprep.subr.bf16.mxu0 %v3262
    %6017 = vmatpush1.bf16.msra.mxu0 %v3261
    %6018 = vmatprep.subr.bf16.mxu0 %v3286
    %6019 = vmatpush1.bf16.msra.mxu0 %v3285
    %6020 = vmatprep.subr.bf16.mxu0 %v3310
    %6021 = vmatpush1.bf16.msra.mxu0 %v3309
    %6022 = vmatprep.subr.bf16.mxu0 0
    %6023 = vmatpush1.bf16.msra.mxu0 0
    %6024 = vmatprep.subr.bf16.mxu0 0
    %6025 = vmatpush1.bf16.msra.mxu0 0
    %6026 = vmatprep.subr.bf16.mxu0 0
    %6027 = vmatpush1.bf16.msra.mxu0 0
    %6028 = vmatprep.subr.bf16.mxu0 0
    %6029 = vmatpush1.bf16.msra.mxu0 0
    %6030 = vmatprep.subr.bf16.mxu0 0
    %6031 = vmatpush1.bf16.msra.mxu0 0
    %6032 = vmatprep.subr.bf16.mxu0 0
    %6033 = vmatpush1.bf16.msra.mxu0 0
    %6034 = vmatprep.subr.bf16.mxu0 0
    %6035 = vmatpush1.bf16.msra.mxu0 0
    %6036 = vmatprep.subr.bf16.mxu0 0
    %6037 = vmatpush1.bf16.msra.mxu0 0
    %6038 = vmatprep.mubr.bf16.mxu0 0
    %6039 = vmatmul.mubr.bf16.gmra.mrb[0].mxu0 %v5919
    %v6040 = vpop.f32.mrb[0].mxu0
    %v6041 = vadd.f32 0.0, %v6040
    %v6042 = vpop.f32.mrb[0].mxu0
    %v6043 = vadd.f32 0.0, %v6042
    %v6044 = vpop.f32.mrb[0].mxu0
    %v6045 = vadd.f32 0.0, %v6044
    %v6046 = vpop.f32.mrb[0].mxu0
    %v6047 = vadd.f32 0.0, %v6046
    %6048 = vdwg.mxu0
    %6049 = vmatprep.subr.bf16.mxu0 %v3144
    %6050 = vmatpush1.bf16.msra.mxu0 %v3143
    %6051 = vmatprep.subr.bf16.mxu0 %v3168
    %6052 = vmatpush1.bf16.msra.mxu0 %v3167
    %6053 = vmatprep.subr.bf16.mxu0 %v3192
    %6054 = vmatpush1.bf16.msra.mxu0 %v3191
    %6055 = vmatprep.subr.bf16.mxu0 %v3216
    %6056 = vmatpush1.bf16.msra.mxu0 %v3215
    %6057 = vmatprep.subr.bf16.mxu0 %v3240
    %6058 = vmatpush1.bf16.msra.mxu0 %v3239
    %6059 = vmatprep.subr.bf16.mxu0 %v3264
    %6060 = vmatpush1.bf16.msra.mxu0 %v3263
    %6061 = vmatprep.subr.bf16.mxu0 %v3288
    %6062 = vmatpush1.bf16.msra.mxu0 %v3287
    %6063 = vmatprep.subr.bf16.mxu0 %v3312
    %6064 = vmatpush1.bf16.msra.mxu0 %v3311
    %6065 = vmatprep.subr.bf16.mxu0 0
    %6066 = vmatpush1.bf16.msra.mxu0 0
    %6067 = vmatprep.subr.bf16.mxu0 0
    %6068 = vmatpush1.bf16.msra.mxu0 0
    %6069 = vmatprep.subr.bf16.mxu0 0
    %6070 = vmatpush1.bf16.msra.mxu0 0
    %6071 = vmatprep.subr.bf16.mxu0 0
    %6072 = vmatpush1.bf16.msra.mxu0 0
    %6073 = vmatprep.subr.bf16.mxu0 0
    %6074 = vmatpush1.bf16.msra.mxu0 0
    %6075 = vmatprep.subr.bf16.mxu0 0
    %6076 = vmatpush1.bf16.msra.mxu0 0
    %6077 = vmatprep.subr.bf16.mxu0 0
    %6078 = vmatpush1.bf16.msra.mxu0 0
    %6079 = vmatprep.subr.bf16.mxu0 0
    %6080 = vmatpush1.bf16.msra.mxu0 0
    %6081 = vmatprep.mubr.bf16.mxu0 0
    %6082 = vmatmul.mubr.bf16.gmra.mrb[0].mxu0 %v5919
    %v6083 = vpop.f32.mrb[0].mxu0
    %v6084 = vadd.f32 0.0, %v6083
    %v6085 = vpop.f32.mrb[0].mxu0
    %v6086 = vadd.f32 0.0, %v6085
    %v6087 = vpop.f32.mrb[0].mxu0
    %v6088 = vadd.f32 0.0, %v6087
    %v6089 = vpop.f32.mrb[0].mxu0
    %v6090 = vadd.f32 0.0, %v6089
    %6091 = vdwg.mxu0
    %6092 = vmatprep.subr.bf16.mxu0 %v3146
    %6093 = vmatpush1.bf16.msra.mxu0 %v3145
    %6094 = vmatprep.subr.bf16.mxu0 %v3170
    %6095 = vmatpush1.bf16.msra.mxu0 %v3169
    %6096 = vmatprep.subr.bf16.mxu0 %v3194
    %6097 = vmatpush1.bf16.msra.mxu0 %v3193
    %6098 = vmatprep.subr.bf16.mxu0 %v3218
    %6099 = vmatpush1.bf16.msra.mxu0 %v3217
    %6100 = vmatprep.subr.bf16.mxu0 %v3242
    %6101 = vmatpush1.bf16.msra.mxu0 %v3241
    %6102 = vmatprep.subr.bf16.mxu0 %v3266
    %6103 = vmatpush1.bf16.msra.mxu0 %v3265
    %6104 = vmatprep.subr.bf16.mxu0 %v3290
    %6105 = vmatpush1.bf16.msra.mxu0 %v3289
    %6106 = vmatprep.subr.bf16.mxu0 %v3314
    %6107 = vmatpush1.bf16.msra.mxu0 %v3313
    %6108 = vmatprep.subr.bf16.mxu0 0
    %6109 = vmatpush1.bf16.msra.mxu0 0
    %6110 = vmatprep.subr.bf16.mxu0 0
    %6111 = vmatpush1.bf16.msra.mxu0 0
    %6112 = vmatprep.subr.bf16.mxu0 0
    %6113 = vmatpush1.bf16.msra.mxu0 0
    %6114 = vmatprep.subr.bf16.mxu0 0
    %6115 = vmatpush1.bf16.msra.mxu0 0
    %6116 = vmatprep.subr.bf16.mxu0 0
    %6117 = vmatpush1.bf16.msra.mxu0 0
    %6118 = vmatprep.subr.bf16.mxu0 0
    %6119 = vmatpush1.bf16.msra.mxu0 0
    %6120 = vmatprep.subr.bf16.mxu0 0
    %6121 = vmatpush1.bf16.msra.mxu0 0
    %6122 = vmatprep.subr.bf16.mxu0 0
    %6123 = vmatpush1.bf16.msra.mxu0 0
    %6124 = vmatprep.mubr.bf16.mxu0 0
    %6125 = vmatmul.mubr.bf16.gmra.mrb[0].mxu0 %v5919
    %v6126 = vpop.f32.mrb[0].mxu0
    %v6127 = vadd.f32 0.0, %v6126
    %v6128 = vpop.f32.mrb[0].mxu0
    %v6129 = vadd.f32 0.0, %v6128
    %v6130 = vpop.f32.mrb[0].mxu0
    %v6131 = vadd.f32 0.0, %v6130
    %v6132 = vpop.f32.mrb[0].mxu0
    %v6133 = vadd.f32 0.0, %v6132
    %6134 = vdwg.mxu0
    %6135 = vmatprep.subr.bf16.mxu0 %v3148
    %6136 = vmatpush1.bf16.msra.mxu0 %v3147
    %6137 = vmatprep.subr.bf16.mxu0 %v3172
    %6138 = vmatpush1.bf16.msra.mxu0 %v3171
    %6139 = vmatprep.subr.bf16.mxu0 %v3196
    %6140 = vmatpush1.bf16.msra.mxu0 %v3195
    %6141 = vmatprep.subr.bf16.mxu0 %v3220
    %6142 = vmatpush1.bf16.msra.mxu0 %v3219
    %6143 = vmatprep.subr.bf16.mxu0 %v3244
    %6144 = vmatpush1.bf16.msra.mxu0 %v3243
    %6145 = vmatprep.subr.bf16.mxu0 %v3268
    %6146 = vmatpush1.bf16.msra.mxu0 %v3267
    %6147 = vmatprep.subr.bf16.mxu0 %v3292
    %6148 = vmatpush1.bf16.msra.mxu0 %v3291
    %6149 = vmatprep.subr.bf16.mxu0 %v3316
    %6150 = vmatpush1.bf16.msra.mxu0 %v3315
    %6151 = vmatprep.subr.bf16.mxu0 0
    %6152 = vmatpush1.bf16.msra.mxu0 0
    %6153 = vmatprep.subr.bf16.mxu0 0
    %6154 = vmatpush1.bf16.msra.mxu0 0
    %6155 = vmatprep.subr.bf16.mxu0 0
    %6156 = vmatpush1.bf16.msra.mxu0 0
    %6157 = vmatprep.subr.bf16.mxu0 0
    %6158 = vmatpush1.bf16.msra.mxu0 0
    %6159 = vmatprep.subr.bf16.mxu0 0
    %6160 = vmatpush1.bf16.msra.mxu0 0
    %6161 = vmatprep.subr.bf16.mxu0 0
    %6162 = vmatpush1.bf16.msra.mxu0 0
    %6163 = vmatprep.subr.bf16.mxu0 0
    %6164 = vmatpush1.bf16.msra.mxu0 0
    %6165 = vmatprep.subr.bf16.mxu0 0
    %6166 = vmatpush1.bf16.msra.mxu0 0
    %6167 = vmatprep.mubr.bf16.mxu0 0
    %6168 = vmatmul.mubr.bf16.gmra.mrb[0].mxu0 %v5919
    %v6169 = vpop.f32.mrb[0].mxu0
    %v6170 = vadd.f32 0.0, %v6169
    %v6171 = vpop.f32.mrb[0].mxu0
    %v6172 = vadd.f32 0.0, %v6171
    %v6173 = vpop.f32.mrb[0].mxu0
    %v6174 = vadd.f32 0.0, %v6173
    %v6175 = vpop.f32.mrb[0].mxu0
    %v6176 = vadd.f32 0.0, %v6175
    %6177 = vdwg.mxu0
    %6178 = vmatprep.subr.bf16.mxu0 %v3150
    %6179 = vmatpush1.bf16.msra.mxu0 %v3149
    %6180 = vmatprep.subr.bf16.mxu0 %v3174
    %6181 = vmatpush1.bf16.msra.mxu0 %v3173
    %6182 = vmatprep.subr.bf16.mxu0 %v3198
    %6183 = vmatpush1.bf16.msra.mxu0 %v3197
    %6184 = vmatprep.subr.bf16.mxu0 %v3222
    %6185 = vmatpush1.bf16.msra.mxu0 %v3221
    %6186 = vmatprep.subr.bf16.mxu0 %v3246
    %6187 = vmatpush1.bf16.msra.mxu0 %v3245
    %6188 = vmatprep.subr.bf16.mxu0 %v3270
    %6189 = vmatpush1.bf16.msra.mxu0 %v3269
    %6190 = vmatprep.subr.bf16.mxu0 %v3294
    %6191 = vmatpush1.bf16.msra.mxu0 %v3293
    %6192 = vmatprep.subr.bf16.mxu0 %v3318
    %6193 = vmatpush1.bf16.msra.mxu0 %v3317
    %6194 = vmatprep.subr.bf16.mxu0 0
    %6195 = vmatpush1.bf16.msra.mxu0 0
    %6196 = vmatprep.subr.bf16.mxu0 0
    %6197 = vmatpush1.bf16.msra.mxu0 0
    %6198 = vmatprep.subr.bf16.mxu0 0
    %6199 = vmatpush1.bf16.msra.mxu0 0
    %6200 = vmatprep.subr.bf16.mxu0 0
    %6201 = vmatpush1.bf16.msra.mxu0 0
    %6202 = vmatprep.subr.bf16.mxu0 0
    %6203 = vmatpush1.bf16.msra.mxu0 0
    %6204 = vmatprep.subr.bf16.mxu0 0
    %6205 = vmatpush1.bf16.msra.mxu0 0
    %6206 = vmatprep.subr.bf16.mxu0 0
    %6207 = vmatpush1.bf16.msra.mxu0 0
    %6208 = vmatprep.subr.bf16.mxu0 0
    %6209 = vmatpush1.bf16.msra.mxu0 0
    %6210 = vmatprep.mubr.bf16.mxu0 0
    %6211 = vmatmul.mubr.bf16.gmra.mrb[0].mxu0 %v5919
    %v6212 = vpop.f32.mrb[0].mxu0
    %v6213 = vadd.f32 0.0, %v6212
    %v6214 = vpop.f32.mrb[0].mxu0
    %v6215 = vadd.f32 0.0, %v6214
    %v6216 = vpop.f32.mrb[0].mxu0
    %v6217 = vadd.f32 0.0, %v6216
    %v6218 = vpop.f32.mrb[0].mxu0
    %v6219 = vadd.f32 0.0, %v6218
    %6220 = vdwg.mxu0
    %6221 = vmatprep.subr.bf16.mxu0 %v3152
    %6222 = vmatpush1.bf16.msra.mxu0 %v3151
    %6223 = vmatprep.subr.bf16.mxu0 %v3176
    %6224 = vmatpush1.bf16.msra.mxu0 %v3175
    %6225 = vmatprep.subr.bf16.mxu0 %v3200
    %6226 = vmatpush1.bf16.msra.mxu0 %v3199
    %6227 = vmatprep.subr.bf16.mxu0 %v3224
    %6228 = vmatpush1.bf16.msra.mxu0 %v3223
    %6229 = vmatprep.subr.bf16.mxu0 %v3248
    %6230 = vmatpush1.bf16.msra.mxu0 %v3247
    %6231 = vmatprep.subr.bf16.mxu0 %v3272
    %6232 = vmatpush1.bf16.msra.mxu0 %v3271
    %6233 = vmatprep.subr.bf16.mxu0 %v3296
    %6234 = vmatpush1.bf16.msra.mxu0 %v3295
    %6235 = vmatprep.subr.bf16.mxu0 %v3320
    %6236 = vmatpush1.bf16.msra.mxu0 %v3319
    %6237 = vmatprep.subr.bf16.mxu0 0
    %6238 = vmatpush1.bf16.msra.mxu0 0
    %6239 = vmatprep.subr.bf16.mxu0 0
    %6240 = vmatpush1.bf16.msra.mxu0 0
    %6241 = vmatprep.subr.bf16.mxu0 0
    %6242 = vmatpush1.bf16.msra.mxu0 0
    %6243 = vmatprep.subr.bf16.mxu0 0
    %6244 = vmatpush1.bf16.msra.mxu0 0
    %6245 = vmatprep.subr.bf16.mxu0 0
    %6246 = vmatpush1.bf16.msra.mxu0 0
    %6247 = vmatprep.subr.bf16.mxu0 0
    %6248 = vmatpush1.bf16.msra.mxu0 0
    %6249 = vmatprep.subr.bf16.mxu0 0
    %6250 = vmatpush1.bf16.msra.mxu0 0
    %6251 = vmatprep.subr.bf16.mxu0 0
    %6252 = vmatpush1.bf16.msra.mxu0 0
    %6253 = vmatprep.mubr.bf16.mxu0 0
    %6254 = vmatmul.mubr.bf16.gmra.mrb[0].mxu0 %v5919
    %v6255 = vpop.f32.mrb[0].mxu0
    %v6256 = vadd.f32 0.0, %v6255
    %v6257 = vpop.f32.mrb[0].mxu0
    %v6258 = vadd.f32 0.0, %v6257
    %v6259 = vpop.f32.mrb[0].mxu0
    %v6260 = vadd.f32 0.0, %v6259
    %v6261 = vpop.f32.mrb[0].mxu0
    %v6262 = vadd.f32 0.0, %v6261
    %6263 = vdwg.mxu0
    %6264 = vmatprep.subr.bf16.mxu0 %v3154
    %6265 = vmatpush1.bf16.msra.mxu0 %v3153
    %6266 = vmatprep.subr.bf16.mxu0 %v3178
    %6267 = vmatpush1.bf16.msra.mxu0 %v3177
    %6268 = vmatprep.subr.bf16.mxu0 %v3202
    %6269 = vmatpush1.bf16.msra.mxu0 %v3201
    %6270 = vmatprep.subr.bf16.mxu0 %v3226
    %6271 = vmatpush1.bf16.msra.mxu0 %v3225
    %6272 = vmatprep.subr.bf16.mxu0 %v3250
    %6273 = vmatpush1.bf16.msra.mxu0 %v3249
    %6274 = vmatprep.subr.bf16.mxu0 %v3274
    %6275 = vmatpush1.bf16.msra.mxu0 %v3273
    %6276 = vmatprep.subr.bf16.mxu0 %v3298
    %6277 = vmatpush1.bf16.msra.mxu0 %v3297
    %6278 = vmatprep.subr.bf16.mxu0 %v3322
    %6279 = vmatpush1.bf16.msra.mxu0 %v3321
    %6280 = vmatprep.subr.bf16.mxu0 0
    %6281 = vmatpush1.bf16.msra.mxu0 0
    %6282 = vmatprep.subr.bf16.mxu0 0
    %6283 = vmatpush1.bf16.msra.mxu0 0
    %6284 = vmatprep.subr.bf16.mxu0 0
    %6285 = vmatpush1.bf16.msra.mxu0 0
    %6286 = vmatprep.subr.bf16.mxu0 0
    %6287 = vmatpush1.bf16.msra.mxu0 0
    %6288 = vmatprep.subr.bf16.mxu0 0
    %6289 = vmatpush1.bf16.msra.mxu0 0
    %6290 = vmatprep.subr.bf16.mxu0 0
    %6291 = vmatpush1.bf16.msra.mxu0 0
    %6292 = vmatprep.subr.bf16.mxu0 0
    %6293 = vmatpush1.bf16.msra.mxu0 0
    %6294 = vmatprep.subr.bf16.mxu0 0
    %6295 = vmatpush1.bf16.msra.mxu0 0
    %6296 = vmatprep.mubr.bf16.mxu0 0
    %6297 = vmatmul.mubr.bf16.gmra.mrb[0].mxu0 %v5919
    %v6298 = vpop.f32.mrb[0].mxu0
    %v6299 = vadd.f32 0.0, %v6298
    %v6300 = vpop.f32.mrb[0].mxu0
    %v6301 = vadd.f32 0.0, %v6300
    %v6302 = vpop.f32.mrb[0].mxu0
    %v6303 = vadd.f32 0.0, %v6302
    %v6304 = vpop.f32.mrb[0].mxu0
    %v6305 = vadd.f32 0.0, %v6304
    %6306 = vdwg.mxu0
    %6307 = vmatprep.subr.bf16.mxu0 %v3156
    %6308 = vmatpush1.bf16.msra.mxu0 %v3155
    %6309 = vmatprep.subr.bf16.mxu0 %v3180
    %6310 = vmatpush1.bf16.msra.mxu0 %v3179
    %6311 = vmatprep.subr.bf16.mxu0 %v3204
    %6312 = vmatpush1.bf16.msra.mxu0 %v3203
    %6313 = vmatprep.subr.bf16.mxu0 %v3228
    %6314 = vmatpush1.bf16.msra.mxu0 %v3227
    %6315 = vmatprep.subr.bf16.mxu0 %v3252
    %6316 = vmatpush1.bf16.msra.mxu0 %v3251
    %6317 = vmatprep.subr.bf16.mxu0 %v3276
    %6318 = vmatpush1.bf16.msra.mxu0 %v3275
    %6319 = vmatprep.subr.bf16.mxu0 %v3300
    %6320 = vmatpush1.bf16.msra.mxu0 %v3299
    %6321 = vmatprep.subr.bf16.mxu0 %v3324
    %6322 = vmatpush1.bf16.msra.mxu0 %v3323
    %6323 = vmatprep.subr.bf16.mxu0 0
    %6324 = vmatpush1.bf16.msra.mxu0 0
    %6325 = vmatprep.subr.bf16.mxu0 0
    %6326 = vmatpush1.bf16.msra.mxu0 0
    %6327 = vmatprep.subr.bf16.mxu0 0
    %6328 = vmatpush1.bf16.msra.mxu0 0
    %6329 = vmatprep.subr.bf16.mxu0 0
    %6330 = vmatpush1.bf16.msra.mxu0 0
    %6331 = vmatprep.subr.bf16.mxu0 0
    %6332 = vmatpush1.bf16.msra.mxu0 0
    %6333 = vmatprep.subr.bf16.mxu0 0
    %6334 = vmatpush1.bf16.msra.mxu0 0
    %6335 = vmatprep.subr.bf16.mxu0 0
    %6336 = vmatpush1.bf16.msra.mxu0 0
    %6337 = vmatprep.subr.bf16.mxu0 0
    %6338 = vmatpush1.bf16.msra.mxu0 0
    %6339 = vmatprep.mubr.bf16.mxu0 0
    %6340 = vmatmul.mubr.bf16.gmra.mrb[0].mxu0 %v5919
    %v6341 = vpop.f32.mrb[0].mxu0
    %v6342 = vadd.f32 0.0, %v6341
    %v6343 = vpop.f32.mrb[0].mxu0
    %v6344 = vadd.f32 0.0, %v6343
    %v6345 = vpop.f32.mrb[0].mxu0
    %v6346 = vadd.f32 0.0, %v6345
    %v6347 = vpop.f32.mrb[0].mxu0
    %v6348 = vadd.f32 0.0, %v6347
    %6349 = vdwg.mxu0
    %6350 = vmatprep.subr.bf16.mxu0 %v3158
    %6351 = vmatpush1.bf16.msra.mxu0 %v3157
    %6352 = vmatprep.subr.bf16.mxu0 %v3182
    %6353 = vmatpush1.bf16.msra.mxu0 %v3181
    %6354 = vmatprep.subr.bf16.mxu0 %v3206
    %6355 = vmatpush1.bf16.msra.mxu0 %v3205
    %6356 = vmatprep.subr.bf16.mxu0 %v3230
    %6357 = vmatpush1.bf16.msra.mxu0 %v3229
    %6358 = vmatprep.subr.bf16.mxu0 %v3254
    %6359 = vmatpush1.bf16.msra.mxu0 %v3253
    %6360 = vmatprep.subr.bf16.mxu0 %v3278
    %6361 = vmatpush1.bf16.msra.mxu0 %v3277
    %6362 = vmatprep.subr.bf16.mxu0 %v3302
    %6363 = vmatpush1.bf16.msra.mxu0 %v3301
    %6364 = vmatprep.subr.bf16.mxu0 %v3326
    %6365 = vmatpush1.bf16.msra.mxu0 %v3325
    %6366 = vmatprep.subr.bf16.mxu0 0
    %6367 = vmatpush1.bf16.msra.mxu0 0
    %6368 = vmatprep.subr.bf16.mxu0 0
    %6369 = vmatpush1.bf16.msra.mxu0 0
    %6370 = vmatprep.subr.bf16.mxu0 0
    %6371 = vmatpush1.bf16.msra.mxu0 0
    %6372 = vmatprep.subr.bf16.mxu0 0
    %6373 = vmatpush1.bf16.msra.mxu0 0
    %6374 = vmatprep.subr.bf16.mxu0 0
    %6375 = vmatpush1.bf16.msra.mxu0 0
    %6376 = vmatprep.subr.bf16.mxu0 0
    %6377 = vmatpush1.bf16.msra.mxu0 0
    %6378 = vmatprep.subr.bf16.mxu0 0
    %6379 = vmatpush1.bf16.msra.mxu0 0
    %6380 = vmatprep.subr.bf16.mxu0 0
    %6381 = vmatpush1.bf16.msra.mxu0 0
    %6382 = vmatprep.mubr.bf16.mxu0 0
    %6383 = vmatmul.mubr.bf16.gmra.mrb[0].mxu0 %v5919
    %v6384 = vpop.f32.mrb[0].mxu0
    %v6385 = vadd.f32 0.0, %v6384
    %v6386 = vpop.f32.mrb[0].mxu0
    %v6387 = vadd.f32 0.0, %v6386
    %v6388 = vpop.f32.mrb[0].mxu0
    %v6389 = vadd.f32 0.0, %v6388
    %v6390 = vpop.f32.mrb[0].mxu0
    %v6391 = vadd.f32 0.0, %v6390
    %6392 = vdwg.mxu0
    %6393 = vmatprep.subr.bf16.mxu0 %v3160
    %6394 = vmatpush1.bf16.msra.mxu0 %v3159
    %6395 = vmatprep.subr.bf16.mxu0 %v3184
    %6396 = vmatpush1.bf16.msra.mxu0 %v3183
    %6397 = vmatprep.subr.bf16.mxu0 %v3208
    %6398 = vmatpush1.bf16.msra.mxu0 %v3207
    %6399 = vmatprep.subr.bf16.mxu0 %v3232
    %6400 = vmatpush1.bf16.msra.mxu0 %v3231
    %6401 = vmatprep.subr.bf16.mxu0 %v3256
    %6402 = vmatpush1.bf16.msra.mxu0 %v3255
    %6403 = vmatprep.subr.bf16.mxu0 %v3280
    %6404 = vmatpush1.bf16.msra.mxu0 %v3279
    %6405 = vmatprep.subr.bf16.mxu0 %v3304
    %6406 = vmatpush1.bf16.msra.mxu0 %v3303
    %6407 = vmatprep.subr.bf16.mxu0 %v3328
    %6408 = vmatpush1.bf16.msra.mxu0 %v3327
    %6409 = vmatprep.subr.bf16.mxu0 0
    %6410 = vmatpush1.bf16.msra.mxu0 0
    %6411 = vmatprep.subr.bf16.mxu0 0
    %6412 = vmatpush1.bf16.msra.mxu0 0
    %6413 = vmatprep.subr.bf16.mxu0 0
    %6414 = vmatpush1.bf16.msra.mxu0 0
    %6415 = vmatprep.subr.bf16.mxu0 0
    %6416 = vmatpush1.bf16.msra.mxu0 0
    %6417 = vmatprep.subr.bf16.mxu0 0
    %6418 = vmatpush1.bf16.msra.mxu0 0
    %6419 = vmatprep.subr.bf16.mxu0 0
    %6420 = vmatpush1.bf16.msra.mxu0 0
    %6421 = vmatprep.subr.bf16.mxu0 0
    %6422 = vmatpush1.bf16.msra.mxu0 0
    %6423 = vmatprep.subr.bf16.mxu0 0
    %6424 = vmatpush1.bf16.msra.mxu0 0
    %6425 = vmatprep.mubr.bf16.mxu0 0
    %6426 = vmatmul.mubr.bf16.gmra.mrb[0].mxu0 %v5919
    %v6427 = vpop.f32.mrb[0].mxu0
    %v6428 = vadd.f32 0.0, %v6427
    %v6429 = vpop.f32.mrb[0].mxu0
    %v6430 = vadd.f32 0.0, %v6429
    %v6431 = vpop.f32.mrb[0].mxu0
    %v6432 = vadd.f32 0.0, %v6431
    %v6433 = vpop.f32.mrb[0].mxu0
    %v6434 = vadd.f32 0.0, %v6433
    %6435 = vdwg.mxu0
    %v6436 = vadd.f32 %v5346, %v5955
    %v6437 = vadd.f32 %v5347, %v5957
    %v6438 = vadd.f32 %v5348, %v5998
    %v6439 = vadd.f32 %v5349, %v6000
    %v6440 = vadd.f32 %v5350, %v6041
    %v6441 = vadd.f32 %v5351, %v6043
    %v6442 = vadd.f32 %v5352, %v6084
    %v6443 = vadd.f32 %v5353, %v6086
    %v6444 = vadd.f32 %v5354, %v6127
    %v6445 = vadd.f32 %v5355, %v6129
    %v6446 = vadd.f32 %v5356, %v6170
    %v6447 = vadd.f32 %v5357, %v6172
    %v6448 = vadd.f32 %v5358, %v6213
    %v6449 = vadd.f32 %v5359, %v6215
    %v6450 = vadd.f32 %v5360, %v6256
    %v6451 = vadd.f32 %v5361, %v6258
    %v6452 = vadd.f32 %v5362, %v6299
    %v6453 = vadd.f32 %v5363, %v6301
    %v6454 = vadd.f32 %v5364, %v6342
    %v6455 = vadd.f32 %v5365, %v6344
    %v6456 = vadd.f32 %v5366, %v6385
    %v6457 = vadd.f32 %v5367, %v6387
    %v6458 = vadd.f32 %v5368, %v6428
    %v6459 = vadd.f32 %v5369, %v6430
    %v6460 = vadd.f32 %v5370, %v5959
    %v6461 = vadd.f32 %v5371, %v5961
    %v6462 = vadd.f32 %v5372, %v6002
    %v6463 = vadd.f32 %v5373, %v6004
    %v6464 = vadd.f32 %v5374, %v6045
    %v6465 = vadd.f32 %v5375, %v6047
    %v6466 = vadd.f32 %v5376, %v6088
    %v6467 = vadd.f32 %v5377, %v6090
    %v6468 = vadd.f32 %v5378, %v6131
    %v6469 = vadd.f32 %v5379, %v6133
    %v6470 = vadd.f32 %v5380, %v6174
    %v6471 = vadd.f32 %v5381, %v6176
    %v6472 = vadd.f32 %v5382, %v6217
    %v6473 = vadd.f32 %v5383, %v6219
    %v6474 = vadd.f32 %v5384, %v6260
    %v6475 = vadd.f32 %v5385, %v6262
    %v6476 = vadd.f32 %v5386, %v6303
    %v6477 = vadd.f32 %v5387, %v6305
    %v6478 = vadd.f32 %v5388, %v6346
    %v6479 = vadd.f32 %v5389, %v6348
    %v6480 = vadd.f32 %v5390, %v6389
    %v6481 = vadd.f32 %v5391, %v6391
    %v6482 = vadd.f32 %v5392, %v6432
    %v6483 = vadd.f32 %v5393, %v6434
    %v6484 = vadd.f32 %v6436, %v4091
    %v6485 = vadd.f32 %v6437, %v4095
    %v6486 = vadd.f32 %v6438, %v4099
    %v6487 = vadd.f32 %v6439, %v4103
    %v6488 = vadd.f32 %v6440, %v4107
    %v6489 = vadd.f32 %v6441, %v4111
    %v6490 = vadd.f32 %v6442, %v4115
    %v6491 = vadd.f32 %v6443, %v4119
    %v6492 = vadd.f32 %v6444, %v4123
    %v6493 = vadd.f32 %v6445, %v4127
    %v6494 = vadd.f32 %v6446, %v4131
    %v6495 = vadd.f32 %v6447, %v4135
    %v6496 = vadd.f32 %v6448, %v4139
    %v6497 = vadd.f32 %v6449, %v4143
    %v6498 = vadd.f32 %v6450, %v4147
    %v6499 = vadd.f32 %v6451, %v4151
    %v6500 = vadd.f32 %v6452, %v4155
    %v6501 = vadd.f32 %v6453, %v4159
    %v6502 = vadd.f32 %v6454, %v4163
    %v6503 = vadd.f32 %v6455, %v4167
    %v6504 = vadd.f32 %v6456, %v4171
    %v6505 = vadd.f32 %v6457, %v4175
    %v6506 = vadd.f32 %v6458, %v4179
    %v6507 = vadd.f32 %v6459, %v4183
    %v6508 = vadd.f32 %v6460, %v4091
    %v6509 = vadd.f32 %v6461, %v4095
    %v6510 = vadd.f32 %v6462, %v4099
    %v6511 = vadd.f32 %v6463, %v4103
    %v6512 = vadd.f32 %v6464, %v4107
    %v6513 = vadd.f32 %v6465, %v4111
    %v6514 = vadd.f32 %v6466, %v4115
    %v6515 = vadd.f32 %v6467, %v4119
    %v6516 = vadd.f32 %v6468, %v4123
    %v6517 = vadd.f32 %v6469, %v4127
    %v6518 = vadd.f32 %v6470, %v4131
    %v6519 = vadd.f32 %v6471, %v4135
    %v6520 = vadd.f32 %v6472, %v4139
    %v6521 = vadd.f32 %v6473, %v4143
    %v6522 = vadd.f32 %v6474, %v4147
    %v6523 = vadd.f32 %v6475, %v4151
    %v6524 = vadd.f32 %v6476, %v4155
    %v6525 = vadd.f32 %v6477, %v4159
    %v6526 = vadd.f32 %v6478, %v4163
    %v6527 = vadd.f32 %v6479, %v4167
    %v6528 = vadd.f32 %v6480, %v4171
    %v6529 = vadd.f32 %v6481, %v4175
    %v6530 = vadd.f32 %v6482, %v4179
    %v6531 = vadd.f32 %v6483, %v4183
    %v6532 = vadd.f32 %v687, 0.875
    %v6533 = vpack.c.bf16 %v6508, %v6484
    %v6534 = vpack.c.bf16 %v6509, %v6485
    %v6535 = vpack.c.bf16 %v6510, %v6486
    %v6536 = vpack.c.bf16 %v6511, %v6487
    %v6537 = vpack.c.bf16 %v6512, %v6488
    %v6538 = vpack.c.bf16 %v6513, %v6489
    %v6539 = vpack.c.bf16 %v6514, %v6490
    %v6540 = vpack.c.bf16 %v6515, %v6491
    %v6541 = vpack.c.bf16 %v6516, %v6492
    %v6542 = vpack.c.bf16 %v6517, %v6493
    %v6543 = vpack.c.bf16 %v6518, %v6494
    %v6544 = vpack.c.bf16 %v6519, %v6495
    %v6545 = vpack.c.bf16 %v6520, %v6496
    %v6546 = vpack.c.bf16 %v6521, %v6497
    %v6547 = vpack.c.bf16 %v6522, %v6498
    %v6548 = vpack.c.bf16 %v6523, %v6499
    %v6549 = vpack.c.bf16 %v6524, %v6500
    %v6550 = vpack.c.bf16 %v6525, %v6501
    %v6551 = vpack.c.bf16 %v6526, %v6502
    %v6552 = vpack.c.bf16 %v6527, %v6503
    %v6553 = vpack.c.bf16 %v6528, %v6504
    %v6554 = vpack.c.bf16 %v6529, %v6505
    %v6555 = vpack.c.bf16 %v6530, %v6506
    %v6556 = vpack.c.bf16 %v6531, %v6507
    %v6558 = vlaneseq
    %v6559 = vshrl.u32 %v6558, 7
    %v6560 = vsub.s32 0, %v6559
    %v6561 = vrot.slane %v6532, %v6560
    %6563 = vmatprep.subr.bf16.mxu0 0
    %6564 = vmatpush1.bf16.msra.mxu0 %v1682
    %6565 = vmatprep.subr.bf16.mxu0 0
    %6566 = vmatpush1.bf16.msra.mxu0 %v1683
    %6567 = vmatprep.subr.bf16.mxu0 0
    %6568 = vmatpush1.bf16.msra.mxu0 %v1684
    %6569 = vmatprep.subr.bf16.mxu0 0
    %6570 = vmatpush1.bf16.msra.mxu0 %v1685
    %6571 = vmatprep.subr.bf16.mxu0 0
    %6572 = vmatpush1.bf16.msra.mxu0 %v1686
    %6573 = vmatprep.subr.bf16.mxu0 0
    %6574 = vmatpush1.bf16.msra.mxu0 %v1687
    %6575 = vmatprep.subr.bf16.mxu0 0
    %6576 = vmatpush1.bf16.msra.mxu0 %v1688
    %6577 = vmatprep.subr.bf16.mxu0 0
    %6578 = vmatpush1.bf16.msra.mxu0 %v1689
    %6579 = vmatprep.subr.bf16.mxu0 0
    %6580 = vmatpush1.bf16.msra.mxu0 %v1690
    %6581 = vmatprep.subr.bf16.mxu0 0
    %6582 = vmatpush1.bf16.msra.mxu0 %v1691
    %6583 = vmatprep.subr.bf16.mxu0 0
    %6584 = vmatpush1.bf16.msra.mxu0 %v1692
    %6585 = vmatprep.subr.bf16.mxu0 0
    %6586 = vmatpush1.bf16.msra.mxu0 %v1693
    %6587 = vmatprep.subr.bf16.mxu0 0
    %6588 = vmatpush1.bf16.msra.mxu0 %v1694
    %6589 = vmatprep.subr.bf16.mxu0 0
    %6590 = vmatpush1.bf16.msra.mxu0 %v1695
    %6591 = vmatprep.subr.bf16.mxu0 0
    %6592 = vmatpush1.bf16.msra.mxu0 %v1696
    %6593 = vmatprep.subr.bf16.mxu0 0
    %6594 = vmatpush1.bf16.msra.mxu0 %v1697
    %6595 = vmatprep.mubr.bf16.mxu0 %v6534
    %6596 = vmatmul.mubr.bf16.gmra.mrb[0].mxu0 %v6533
    %v6597 = vpop.f32.mrb[0].mxu0
    %v6598 = vadd.f32 %v6561, %v6597
    %v6599 = vpop.f32.mrb[0].mxu0
    %v6600 = vpop.f32.mrb[0].mxu0
    %v6601 = vadd.f32 %v6561, %v6600
    %v6602 = vpop.f32.mrb[0].mxu0
    %6603 = vdwg.mxu0
    %6604 = vmatprep.subr.bf16.mxu0 0
    %6605 = vmatpush1.bf16.msra.mxu0 %v1698
    %6606 = vmatprep.subr.bf16.mxu0 0
    %6607 = vmatpush1.bf16.msra.mxu0 %v1699
    %6608 = vmatprep.subr.bf16.mxu0 0
    %6609 = vmatpush1.bf16.msra.mxu0 %v1700
    %6610 = vmatprep.subr.bf16.mxu0 0
    %6611 = vmatpush1.bf16.msra.mxu0 %v1701
    %6612 = vmatprep.subr.bf16.mxu0 0
    %6613 = vmatpush1.bf16.msra.mxu0 %v1702
    %6614 = vmatprep.subr.bf16.mxu0 0
    %6615 = vmatpush1.bf16.msra.mxu0 %v1703
    %6616 = vmatprep.subr.bf16.mxu0 0
    %6617 = vmatpush1.bf16.msra.mxu0 %v1704
    %6618 = vmatprep.subr.bf16.mxu0 0
    %6619 = vmatpush1.bf16.msra.mxu0 %v1705
    %6620 = vmatprep.subr.bf16.mxu0 0
    %6621 = vmatpush1.bf16.msra.mxu0 %v1706
    %6622 = vmatprep.subr.bf16.mxu0 0
    %6623 = vmatpush1.bf16.msra.mxu0 %v1707
    %6624 = vmatprep.subr.bf16.mxu0 0
    %6625 = vmatpush1.bf16.msra.mxu0 %v1708
    %6626 = vmatprep.subr.bf16.mxu0 0
    %6627 = vmatpush1.bf16.msra.mxu0 %v1709
    %6628 = vmatprep.subr.bf16.mxu0 0
    %6629 = vmatpush1.bf16.msra.mxu0 %v1710
    %6630 = vmatprep.subr.bf16.mxu0 0
    %6631 = vmatpush1.bf16.msra.mxu0 %v1711
    %6632 = vmatprep.subr.bf16.mxu0 0
    %6633 = vmatpush1.bf16.msra.mxu0 %v1712
    %6634 = vmatprep.subr.bf16.mxu0 0
    %6635 = vmatpush1.bf16.msra.mxu0 %v1713
    %6636 = vmatprep.mubr.bf16.mxu0 %v6536
    %6637 = vmatmul.mubr.bf16.gmra.mrb[0].mxu0 %v6535
    %v6638 = vpop.f32.mrb[0].mxu0
    %v6639 = vadd.f32 %v6598, %v6638
    %v6640 = vpop.f32.mrb[0].mxu0
    %v6641 = vpop.f32.mrb[0].mxu0
    %v6642 = vadd.f32 %v6601, %v6641
    %v6643 = vpop.f32.mrb[0].mxu0
    %6644 = vdwg.mxu0
    %6645 = vmatprep.subr.bf16.mxu0 0
    %6646 = vmatpush1.bf16.msra.mxu0 %v1714
    %6647 = vmatprep.subr.bf16.mxu0 0
    %6648 = vmatpush1.bf16.msra.mxu0 %v1715
    %6649 = vmatprep.subr.bf16.mxu0 0
    %6650 = vmatpush1.bf16.msra.mxu0 %v1716
    %6651 = vmatprep.subr.bf16.mxu0 0
    %6652 = vmatpush1.bf16.msra.mxu0 %v1717
    %6653 = vmatprep.subr.bf16.mxu0 0
    %6654 = vmatpush1.bf16.msra.mxu0 %v1718
    %6655 = vmatprep.subr.bf16.mxu0 0
    %6656 = vmatpush1.bf16.msra.mxu0 %v1719
    %6657 = vmatprep.subr.bf16.mxu0 0
    %6658 = vmatpush1.bf16.msra.mxu0 %v1720
    %6659 = vmatprep.subr.bf16.mxu0 0
    %6660 = vmatpush1.bf16.msra.mxu0 %v1721
    %6661 = vmatprep.subr.bf16.mxu0 0
    %6662 = vmatpush1.bf16.msra.mxu0 %v1722
    %6663 = vmatprep.subr.bf16.mxu0 0
    %6664 = vmatpush1.bf16.msra.mxu0 %v1723
    %6665 = vmatprep.subr.bf16.mxu0 0
    %6666 = vmatpush1.bf16.msra.mxu0 %v1724
    %6667 = vmatprep.subr.bf16.mxu0 0
    %6668 = vmatpush1.bf16.msra.mxu0 %v1725
    %6669 = vmatprep.subr.bf16.mxu0 0
    %6670 = vmatpush1.bf16.msra.mxu0 %v1726
    %6671 = vmatprep.subr.bf16.mxu0 0
    %6672 = vmatpush1.bf16.msra.mxu0 %v1727
    %6673 = vmatprep.subr.bf16.mxu0 0
    %6674 = vmatpush1.bf16.msra.mxu0 %v1728
    %6675 = vmatprep.subr.bf16.mxu0 0
    %6676 = vmatpush1.bf16.msra.mxu0 %v1729
    %6677 = vmatprep.mubr.bf16.mxu0 %v6538
    %6678 = vmatmul.mubr.bf16.gmra.mrb[0].mxu0 %v6537
    %v6679 = vpop.f32.mrb[0].mxu0
    %v6680 = vadd.f32 %v6639, %v6679
    %v6681 = vpop.f32.mrb[0].mxu0
    %v6682 = vpop.f32.mrb[0].mxu0
    %v6683 = vadd.f32 %v6642, %v6682
    %v6684 = vpop.f32.mrb[0].mxu0
    %6685 = vdwg.mxu0
    %6686 = vmatprep.subr.bf16.mxu0 0
    %6687 = vmatpush1.bf16.msra.mxu0 %v1730
    %6688 = vmatprep.subr.bf16.mxu0 0
    %6689 = vmatpush1.bf16.msra.mxu0 %v1731
    %6690 = vmatprep.subr.bf16.mxu0 0
    %6691 = vmatpush1.bf16.msra.mxu0 %v1732
    %6692 = vmatprep.subr.bf16.mxu0 0
    %6693 = vmatpush1.bf16.msra.mxu0 %v1733
    %6694 = vmatprep.subr.bf16.mxu0 0
    %6695 = vmatpush1.bf16.msra.mxu0 %v1734
    %6696 = vmatprep.subr.bf16.mxu0 0
    %6697 = vmatpush1.bf16.msra.mxu0 %v1735
    %6698 = vmatprep.subr.bf16.mxu0 0
    %6699 = vmatpush1.bf16.msra.mxu0 %v1736
    %6700 = vmatprep.subr.bf16.mxu0 0
    %6701 = vmatpush1.bf16.msra.mxu0 %v1737
    %6702 = vmatprep.subr.bf16.mxu0 0
    %6703 = vmatpush1.bf16.msra.mxu0 %v1738
    %6704 = vmatprep.subr.bf16.mxu0 0
    %6705 = vmatpush1.bf16.msra.mxu0 %v1739
    %6706 = vmatprep.subr.bf16.mxu0 0
    %6707 = vmatpush1.bf16.msra.mxu0 %v1740
    %6708 = vmatprep.subr.bf16.mxu0 0
    %6709 = vmatpush1.bf16.msra.mxu0 %v1741
    %6710 = vmatprep.subr.bf16.mxu0 0
    %6711 = vmatpush1.bf16.msra.mxu0 %v1742
    %6712 = vmatprep.subr.bf16.mxu0 0
    %6713 = vmatpush1.bf16.msra.mxu0 %v1743
    %6714 = vmatprep.subr.bf16.mxu0 0
    %6715 = vmatpush1.bf16.msra.mxu0 %v1744
    %6716 = vmatprep.subr.bf16.mxu0 0
    %6717 = vmatpush1.bf16.msra.mxu0 %v1745
    %6718 = vmatprep.mubr.bf16.mxu0 %v6540
    %6719 = vmatmul.mubr.bf16.gmra.mrb[0].mxu0 %v6539
    %v6720 = vpop.f32.mrb[0].mxu0
    %v6721 = vadd.f32 %v6680, %v6720
    %v6722 = vpop.f32.mrb[0].mxu0
    %v6723 = vpop.f32.mrb[0].mxu0
    %v6724 = vadd.f32 %v6683, %v6723
    %v6725 = vpop.f32.mrb[0].mxu0
    %6726 = vdwg.mxu0
    %6727 = vmatprep.subr.bf16.mxu0 0
    %6728 = vmatpush1.bf16.msra.mxu0 %v1746
    %6729 = vmatprep.subr.bf16.mxu0 0
    %6730 = vmatpush1.bf16.msra.mxu0 %v1747
    %6731 = vmatprep.subr.bf16.mxu0 0
    %6732 = vmatpush1.bf16.msra.mxu0 %v1748
    %6733 = vmatprep.subr.bf16.mxu0 0
    %6734 = vmatpush1.bf16.msra.mxu0 %v1749
    %6735 = vmatprep.subr.bf16.mxu0 0
    %6736 = vmatpush1.bf16.msra.mxu0 %v1750
    %6737 = vmatprep.subr.bf16.mxu0 0
    %6738 = vmatpush1.bf16.msra.mxu0 %v1751
    %6739 = vmatprep.subr.bf16.mxu0 0
    %6740 = vmatpush1.bf16.msra.mxu0 %v1752
    %6741 = vmatprep.subr.bf16.mxu0 0
    %6742 = vmatpush1.bf16.msra.mxu0 %v1753
    %6743 = vmatprep.subr.bf16.mxu0 0
    %6744 = vmatpush1.bf16.msra.mxu0 %v1754
    %6745 = vmatprep.subr.bf16.mxu0 0
    %6746 = vmatpush1.bf16.msra.mxu0 %v1755
    %6747 = vmatprep.subr.bf16.mxu0 0
    %6748 = vmatpush1.bf16.msra.mxu0 %v1756
    %6749 = vmatprep.subr.bf16.mxu0 0
    %6750 = vmatpush1.bf16.msra.mxu0 %v1757
    %6751 = vmatprep.subr.bf16.mxu0 0
    %6752 = vmatpush1.bf16.msra.mxu0 %v1758
    %6753 = vmatprep.subr.bf16.mxu0 0
    %6754 = vmatpush1.bf16.msra.mxu0 %v1759
    %6755 = vmatprep.subr.bf16.mxu0 0
    %6756 = vmatpush1.bf16.msra.mxu0 %v1760
    %6757 = vmatprep.subr.bf16.mxu0 0
    %6758 = vmatpush1.bf16.msra.mxu0 %v1761
    %6759 = vmatprep.mubr.bf16.mxu0 %v6542
    %6760 = vmatmul.mubr.bf16.gmra.mrb[0].mxu0 %v6541
    %v6761 = vpop.f32.mrb[0].mxu0
    %v6762 = vadd.f32 %v6721, %v6761
    %v6763 = vpop.f32.mrb[0].mxu0
    %v6764 = vpop.f32.mrb[0].mxu0
    %v6765 = vadd.f32 %v6724, %v6764
    %v6766 = vpop.f32.mrb[0].mxu0
    %6767 = vdwg.mxu0
    %6768 = vmatprep.subr.bf16.mxu0 0
    %6769 = vmatpush1.bf16.msra.mxu0 %v1762
    %6770 = vmatprep.subr.bf16.mxu0 0
    %6771 = vmatpush1.bf16.msra.mxu0 %v1763
    %6772 = vmatprep.subr.bf16.mxu0 0
    %6773 = vmatpush1.bf16.msra.mxu0 %v1764
    %6774 = vmatprep.subr.bf16.mxu0 0
    %6775 = vmatpush1.bf16.msra.mxu0 %v1765
    %6776 = vmatprep.subr.bf16.mxu0 0
    %6777 = vmatpush1.bf16.msra.mxu0 %v1766
    %6778 = vmatprep.subr.bf16.mxu0 0
    %6779 = vmatpush1.bf16.msra.mxu0 %v1767
    %6780 = vmatprep.subr.bf16.mxu0 0
    %6781 = vmatpush1.bf16.msra.mxu0 %v1768
    %6782 = vmatprep.subr.bf16.mxu0 0
    %6783 = vmatpush1.bf16.msra.mxu0 %v1769
    %6784 = vmatprep.subr.bf16.mxu0 0
    %6785 = vmatpush1.bf16.msra.mxu0 %v1770
    %6786 = vmatprep.subr.bf16.mxu0 0
    %6787 = vmatpush1.bf16.msra.mxu0 %v1771
    %6788 = vmatprep.subr.bf16.mxu0 0
    %6789 = vmatpush1.bf16.msra.mxu0 %v1772
    %6790 = vmatprep.subr.bf16.mxu0 0
    %6791 = vmatpush1.bf16.msra.mxu0 %v1773
    %6792 = vmatprep.subr.bf16.mxu0 0
    %6793 = vmatpush1.bf16.msra.mxu0 %v1774
    %6794 = vmatprep.subr.bf16.mxu0 0
    %6795 = vmatpush1.bf16.msra.mxu0 %v1775
    %6796 = vmatprep.subr.bf16.mxu0 0
    %6797 = vmatpush1.bf16.msra.mxu0 %v1776
    %6798 = vmatprep.subr.bf16.mxu0 0
    %6799 = vmatpush1.bf16.msra.mxu0 %v1777
    %6800 = vmatprep.mubr.bf16.mxu0 %v6544
    %6801 = vmatmul.mubr.bf16.gmra.mrb[0].mxu0 %v6543
    %v6802 = vpop.f32.mrb[0].mxu0
    %v6803 = vadd.f32 %v6762, %v6802
    %v6804 = vpop.f32.mrb[0].mxu0
    %v6805 = vpop.f32.mrb[0].mxu0
    %v6806 = vadd.f32 %v6765, %v6805
    %v6807 = vpop.f32.mrb[0].mxu0
    %6808 = vdwg.mxu0
    %6809 = vmatprep.subr.bf16.mxu0 0
    %6810 = vmatpush1.bf16.msra.mxu0 %v1778
    %6811 = vmatprep.subr.bf16.mxu0 0
    %6812 = vmatpush1.bf16.msra.mxu0 %v1779
    %6813 = vmatprep.subr.bf16.mxu0 0
    %6814 = vmatpush1.bf16.msra.mxu0 %v1780
    %6815 = vmatprep.subr.bf16.mxu0 0
    %6816 = vmatpush1.bf16.msra.mxu0 %v1781
    %6817 = vmatprep.subr.bf16.mxu0 0
    %6818 = vmatpush1.bf16.msra.mxu0 %v1782
    %6819 = vmatprep.subr.bf16.mxu0 0
    %6820 = vmatpush1.bf16.msra.mxu0 %v1783
    %6821 = vmatprep.subr.bf16.mxu0 0
    %6822 = vmatpush1.bf16.msra.mxu0 %v1784
    %6823 = vmatprep.subr.bf16.mxu0 0
    %6824 = vmatpush1.bf16.msra.mxu0 %v1785
    %6825 = vmatprep.subr.bf16.mxu0 0
    %6826 = vmatpush1.bf16.msra.mxu0 %v1786
    %6827 = vmatprep.subr.bf16.mxu0 0
    %6828 = vmatpush1.bf16.msra.mxu0 %v1787
    %6829 = vmatprep.subr.bf16.mxu0 0
    %6830 = vmatpush1.bf16.msra.mxu0 %v1788
    %6831 = vmatprep.subr.bf16.mxu0 0
    %6832 = vmatpush1.bf16.msra.mxu0 %v1789
    %6833 = vmatprep.subr.bf16.mxu0 0
    %6834 = vmatpush1.bf16.msra.mxu0 %v1790
    %6835 = vmatprep.subr.bf16.mxu0 0
    %6836 = vmatpush1.bf16.msra.mxu0 %v1791
    %6837 = vmatprep.subr.bf16.mxu0 0
    %6838 = vmatpush1.bf16.msra.mxu0 %v1792
    %6839 = vmatprep.subr.bf16.mxu0 0
    %6840 = vmatpush1.bf16.msra.mxu0 %v1793
    %6841 = vmatprep.mubr.bf16.mxu0 %v6546
    %6842 = vmatmul.mubr.bf16.gmra.mrb[0].mxu0 %v6545
    %v6843 = vpop.f32.mrb[0].mxu0
    %v6844 = vadd.f32 %v6803, %v6843
    %v6845 = vpop.f32.mrb[0].mxu0
    %v6846 = vpop.f32.mrb[0].mxu0
    %v6847 = vadd.f32 %v6806, %v6846
    %v6848 = vpop.f32.mrb[0].mxu0
    %6849 = vdwg.mxu0
    %6850 = vmatprep.subr.bf16.mxu0 0
    %6851 = vmatpush1.bf16.msra.mxu0 %v1794
    %6852 = vmatprep.subr.bf16.mxu0 0
    %6853 = vmatpush1.bf16.msra.mxu0 %v1795
    %6854 = vmatprep.subr.bf16.mxu0 0
    %6855 = vmatpush1.bf16.msra.mxu0 %v1796
    %6856 = vmatprep.subr.bf16.mxu0 0
    %6857 = vmatpush1.bf16.msra.mxu0 %v1797
    %6858 = vmatprep.subr.bf16.mxu0 0
    %6859 = vmatpush1.bf16.msra.mxu0 %v1798
    %6860 = vmatprep.subr.bf16.mxu0 0
    %6861 = vmatpush1.bf16.msra.mxu0 %v1799
    %6862 = vmatprep.subr.bf16.mxu0 0
    %6863 = vmatpush1.bf16.msra.mxu0 %v1800
    %6864 = vmatprep.subr.bf16.mxu0 0
    %6865 = vmatpush1.bf16.msra.mxu0 %v1801
    %6866 = vmatprep.subr.bf16.mxu0 0
    %6867 = vmatpush1.bf16.msra.mxu0 %v1802
    %6868 = vmatprep.subr.bf16.mxu0 0
    %6869 = vmatpush1.bf16.msra.mxu0 %v1803
    %6870 = vmatprep.subr.bf16.mxu0 0
    %6871 = vmatpush1.bf16.msra.mxu0 %v1804
    %6872 = vmatprep.subr.bf16.mxu0 0
    %6873 = vmatpush1.bf16.msra.mxu0 %v1805
    %6874 = vmatprep.subr.bf16.mxu0 0
    %6875 = vmatpush1.bf16.msra.mxu0 %v1806
    %6876 = vmatprep.subr.bf16.mxu0 0
    %6877 = vmatpush1.bf16.msra.mxu0 %v1807
    %6878 = vmatprep.subr.bf16.mxu0 0
    %6879 = vmatpush1.bf16.msra.mxu0 %v1808
    %6880 = vmatprep.subr.bf16.mxu0 0
    %6881 = vmatpush1.bf16.msra.mxu0 %v1809
    %6882 = vmatprep.mubr.bf16.mxu0 %v6548
    %6883 = vmatmul.mubr.bf16.gmra.mrb[0].mxu0 %v6547
    %v6884 = vpop.f32.mrb[0].mxu0
    %v6885 = vadd.f32 %v6844, %v6884
    %v6886 = vpop.f32.mrb[0].mxu0
    %v6887 = vpop.f32.mrb[0].mxu0
    %v6888 = vadd.f32 %v6847, %v6887
    %v6889 = vpop.f32.mrb[0].mxu0
    %6890 = vdwg.mxu0
    %6891 = vmatprep.subr.bf16.mxu0 0
    %6892 = vmatpush1.bf16.msra.mxu0 %v1810
    %6893 = vmatprep.subr.bf16.mxu0 0
    %6894 = vmatpush1.bf16.msra.mxu0 %v1811
    %6895 = vmatprep.subr.bf16.mxu0 0
    %6896 = vmatpush1.bf16.msra.mxu0 %v1812
    %6897 = vmatprep.subr.bf16.mxu0 0
    %6898 = vmatpush1.bf16.msra.mxu0 %v1813
    %6899 = vmatprep.subr.bf16.mxu0 0
    %6900 = vmatpush1.bf16.msra.mxu0 %v1814
    %6901 = vmatprep.subr.bf16.mxu0 0
    %6902 = vmatpush1.bf16.msra.mxu0 %v1815
    %6903 = vmatprep.subr.bf16.mxu0 0
    %6904 = vmatpush1.bf16.msra.mxu0 %v1816
    %6905 = vmatprep.subr.bf16.mxu0 0
    %6906 = vmatpush1.bf16.msra.mxu0 %v1817
    %6907 = vmatprep.subr.bf16.mxu0 0
    %6908 = vmatpush1.bf16.msra.mxu0 %v1818
    %6909 = vmatprep.subr.bf16.mxu0 0
    %6910 = vmatpush1.bf16.msra.mxu0 %v1819
    %6911 = vmatprep.subr.bf16.mxu0 0
    %6912 = vmatpush1.bf16.msra.mxu0 %v1820
    %6913 = vmatprep.subr.bf16.mxu0 0
    %6914 = vmatpush1.bf16.msra.mxu0 %v1821
    %6915 = vmatprep.subr.bf16.mxu0 0
    %6916 = vmatpush1.bf16.msra.mxu0 %v1822
    %6917 = vmatprep.subr.bf16.mxu0 0
    %6918 = vmatpush1.bf16.msra.mxu0 %v1823
    %6919 = vmatprep.subr.bf16.mxu0 0
    %6920 = vmatpush1.bf16.msra.mxu0 %v1824
    %6921 = vmatprep.subr.bf16.mxu0 0
    %6922 = vmatpush1.bf16.msra.mxu0 %v1825
    %6923 = vmatprep.mubr.bf16.mxu0 %v6550
    %6924 = vmatmul.mubr.bf16.gmra.mrb[0].mxu0 %v6549
    %v6925 = vpop.f32.mrb[0].mxu0
    %v6926 = vadd.f32 %v6885, %v6925
    %v6927 = vpop.f32.mrb[0].mxu0
    %v6928 = vpop.f32.mrb[0].mxu0
    %v6929 = vadd.f32 %v6888, %v6928
    %v6930 = vpop.f32.mrb[0].mxu0
    %6931 = vdwg.mxu0
    %6932 = vmatprep.subr.bf16.mxu0 0
    %6933 = vmatpush1.bf16.msra.mxu0 %v1826
    %6934 = vmatprep.subr.bf16.mxu0 0
    %6935 = vmatpush1.bf16.msra.mxu0 %v1827
    %6936 = vmatprep.subr.bf16.mxu0 0
    %6937 = vmatpush1.bf16.msra.mxu0 %v1828
    %6938 = vmatprep.subr.bf16.mxu0 0
    %6939 = vmatpush1.bf16.msra.mxu0 %v1829
    %6940 = vmatprep.subr.bf16.mxu0 0
    %6941 = vmatpush1.bf16.msra.mxu0 %v1830
    %6942 = vmatprep.subr.bf16.mxu0 0
    %6943 = vmatpush1.bf16.msra.mxu0 %v1831
    %6944 = vmatprep.subr.bf16.mxu0 0
    %6945 = vmatpush1.bf16.msra.mxu0 %v1832
    %6946 = vmatprep.subr.bf16.mxu0 0
    %6947 = vmatpush1.bf16.msra.mxu0 %v1833
    %6948 = vmatprep.subr.bf16.mxu0 0
    %6949 = vmatpush1.bf16.msra.mxu0 %v1834
    %6950 = vmatprep.subr.bf16.mxu0 0
    %6951 = vmatpush1.bf16.msra.mxu0 %v1835
    %6952 = vmatprep.subr.bf16.mxu0 0
    %6953 = vmatpush1.bf16.msra.mxu0 %v1836
    %6954 = vmatprep.subr.bf16.mxu0 0
    %6955 = vmatpush1.bf16.msra.mxu0 %v1837
    %6956 = vmatprep.subr.bf16.mxu0 0
    %6957 = vmatpush1.bf16.msra.mxu0 %v1838
    %6958 = vmatprep.subr.bf16.mxu0 0
    %6959 = vmatpush1.bf16.msra.mxu0 %v1839
    %6960 = vmatprep.subr.bf16.mxu0 0
    %6961 = vmatpush1.bf16.msra.mxu0 %v1840
    %6962 = vmatprep.subr.bf16.mxu0 0
    %6963 = vmatpush1.bf16.msra.mxu0 %v1841
    %6964 = vmatprep.mubr.bf16.mxu0 %v6552
    %6965 = vmatmul.mubr.bf16.gmra.mrb[0].mxu0 %v6551
    %v6966 = vpop.f32.mrb[0].mxu0
    %v6967 = vadd.f32 %v6926, %v6966
    %v6968 = vpop.f32.mrb[0].mxu0
    %v6969 = vpop.f32.mrb[0].mxu0
    %v6970 = vadd.f32 %v6929, %v6969
    %v6971 = vpop.f32.mrb[0].mxu0
    %6972 = vdwg.mxu0
    %6973 = vmatprep.subr.bf16.mxu0 0
    %6974 = vmatpush1.bf16.msra.mxu0 %v1842
    %6975 = vmatprep.subr.bf16.mxu0 0
    %6976 = vmatpush1.bf16.msra.mxu0 %v1843
    %6977 = vmatprep.subr.bf16.mxu0 0
    %6978 = vmatpush1.bf16.msra.mxu0 %v1844
    %6979 = vmatprep.subr.bf16.mxu0 0
    %6980 = vmatpush1.bf16.msra.mxu0 %v1845
    %6981 = vmatprep.subr.bf16.mxu0 0
    %6982 = vmatpush1.bf16.msra.mxu0 %v1846
    %6983 = vmatprep.subr.bf16.mxu0 0
    %6984 = vmatpush1.bf16.msra.mxu0 %v1847
    %6985 = vmatprep.subr.bf16.mxu0 0
    %6986 = vmatpush1.bf16.msra.mxu0 %v1848
    %6987 = vmatprep.subr.bf16.mxu0 0
    %6988 = vmatpush1.bf16.msra.mxu0 %v1849
    %6989 = vmatprep.subr.bf16.mxu0 0
    %6990 = vmatpush1.bf16.msra.mxu0 %v1850
    %6991 = vmatprep.subr.bf16.mxu0 0
    %6992 = vmatpush1.bf16.msra.mxu0 %v1851
    %6993 = vmatprep.subr.bf16.mxu0 0
    %6994 = vmatpush1.bf16.msra.mxu0 %v1852
    %6995 = vmatprep.subr.bf16.mxu0 0
    %6996 = vmatpush1.bf16.msra.mxu0 %v1853
    %6997 = vmatprep.subr.bf16.mxu0 0
    %6998 = vmatpush1.bf16.msra.mxu0 %v1854
    %6999 = vmatprep.subr.bf16.mxu0 0
    %7000 = vmatpush1.bf16.msra.mxu0 %v1855
    %7001 = vmatprep.subr.bf16.mxu0 0
    %7002 = vmatpush1.bf16.msra.mxu0 %v1856
    %7003 = vmatprep.subr.bf16.mxu0 0
    %7004 = vmatpush1.bf16.msra.mxu0 %v1857
    %7005 = vmatprep.mubr.bf16.mxu0 %v6554
    %7006 = vmatmul.mubr.bf16.gmra.mrb[0].mxu0 %v6553
    %v7007 = vpop.f32.mrb[0].mxu0
    %v7008 = vadd.f32 %v6967, %v7007
    %v7009 = vpop.f32.mrb[0].mxu0
    %v7010 = vpop.f32.mrb[0].mxu0
    %v7011 = vadd.f32 %v6970, %v7010
    %v7012 = vpop.f32.mrb[0].mxu0
    %7013 = vdwg.mxu0
    %7014 = vmatprep.subr.bf16.mxu0 0
    %7015 = vmatpush1.bf16.msra.mxu0 %v1858
    %7016 = vmatprep.subr.bf16.mxu0 0
    %7017 = vmatpush1.bf16.msra.mxu0 %v1859
    %7018 = vmatprep.subr.bf16.mxu0 0
    %7019 = vmatpush1.bf16.msra.mxu0 %v1860
    %7020 = vmatprep.subr.bf16.mxu0 0
    %7021 = vmatpush1.bf16.msra.mxu0 %v1861
    %7022 = vmatprep.subr.bf16.mxu0 0
    %7023 = vmatpush1.bf16.msra.mxu0 %v1862
    %7024 = vmatprep.subr.bf16.mxu0 0
    %7025 = vmatpush1.bf16.msra.mxu0 %v1863
    %7026 = vmatprep.subr.bf16.mxu0 0
    %7027 = vmatpush1.bf16.msra.mxu0 %v1864
    %7028 = vmatprep.subr.bf16.mxu0 0
    %7029 = vmatpush1.bf16.msra.mxu0 %v1865
    %7030 = vmatprep.subr.bf16.mxu0 0
    %7031 = vmatpush1.bf16.msra.mxu0 %v1866
    %7032 = vmatprep.subr.bf16.mxu0 0
    %7033 = vmatpush1.bf16.msra.mxu0 %v1867
    %7034 = vmatprep.subr.bf16.mxu0 0
    %7035 = vmatpush1.bf16.msra.mxu0 %v1868
    %7036 = vmatprep.subr.bf16.mxu0 0
    %7037 = vmatpush1.bf16.msra.mxu0 %v1869
    %7038 = vmatprep.subr.bf16.mxu0 0
    %7039 = vmatpush1.bf16.msra.mxu0 %v1870
    %7040 = vmatprep.subr.bf16.mxu0 0
    %7041 = vmatpush1.bf16.msra.mxu0 %v1871
    %7042 = vmatprep.subr.bf16.mxu0 0
    %7043 = vmatpush1.bf16.msra.mxu0 %v1872
    %7044 = vmatprep.subr.bf16.mxu0 0
    %7045 = vmatpush1.bf16.msra.mxu0 %v1873
    %7046 = vmatprep.mubr.bf16.mxu0 %v6556
    %7047 = vmatmul.mubr.bf16.gmra.mrb[0].mxu0 %v6555
    %v7048 = vpop.f32.mrb[0].mxu0
    %v7049 = vadd.f32 %v7008, %v7048
    %v7050 = vpop.f32.mrb[0].mxu0
    %v7051 = vpop.f32.mrb[0].mxu0
    %v7052 = vadd.f32 %v7011, %v7051
    %v7053 = vpop.f32.mrb[0].mxu0
    %7054 = vdwg.mxu0
    %v7055 = vmax.f32 %v7049, 0.0
    %v7056 = vmax.f32 %v7052, 0.0
    %v7057 = vpack.c.bf16 %v7056, %v7055
    %7058 = vmatprep.subr.bf16.mxu0 %v3138
    %7059 = vmatpush1.bf16.msra.mxu0 %v3137
    %7060 = vmatprep.subr.bf16.mxu0 %v3162
    %7061 = vmatpush1.bf16.msra.mxu0 %v3161
    %7062 = vmatprep.subr.bf16.mxu0 %v3186
    %7063 = vmatpush1.bf16.msra.mxu0 %v3185
    %7064 = vmatprep.subr.bf16.mxu0 %v3210
    %7065 = vmatpush1.bf16.msra.mxu0 %v3209
    %7066 = vmatprep.subr.bf16.mxu0 %v3234
    %7067 = vmatpush1.bf16.msra.mxu0 %v3233
    %7068 = vmatprep.subr.bf16.mxu0 %v3258
    %7069 = vmatpush1.bf16.msra.mxu0 %v3257
    %7070 = vmatprep.subr.bf16.mxu0 %v3282
    %7071 = vmatpush1.bf16.msra.mxu0 %v3281
    %7072 = vmatprep.subr.bf16.mxu0 %v3306
    %7073 = vmatpush1.bf16.msra.mxu0 %v3305
    %7074 = vmatprep.subr.bf16.mxu0 0
    %7075 = vmatpush1.bf16.msra.mxu0 0
    %7076 = vmatprep.subr.bf16.mxu0 0
    %7077 = vmatpush1.bf16.msra.mxu0 0
    %7078 = vmatprep.subr.bf16.mxu0 0
    %7079 = vmatpush1.bf16.msra.mxu0 0
    %7080 = vmatprep.subr.bf16.mxu0 0
    %7081 = vmatpush1.bf16.msra.mxu0 0
    %7082 = vmatprep.subr.bf16.mxu0 0
    %7083 = vmatpush1.bf16.msra.mxu0 0
    %7084 = vmatprep.subr.bf16.mxu0 0
    %7085 = vmatpush1.bf16.msra.mxu0 0
    %7086 = vmatprep.subr.bf16.mxu0 0
    %7087 = vmatpush1.bf16.msra.mxu0 0
    %7088 = vmatprep.subr.bf16.mxu0 0
    %7089 = vmatpush1.bf16.msra.mxu0 0
    %7090 = vmatprep.mubr.bf16.mxu0 0
    %7091 = vmatmul.mubr.bf16.gmra.mrb[0].mxu0 %v7057
    %v7092 = vpop.f32.mrb[0].mxu0
    %v7093 = vadd.f32 0.0, %v7092
    %v7094 = vpop.f32.mrb[0].mxu0
    %v7095 = vadd.f32 0.0, %v7094
    %v7096 = vpop.f32.mrb[0].mxu0
    %v7097 = vadd.f32 0.0, %v7096
    %v7098 = vpop.f32.mrb[0].mxu0
    %v7099 = vadd.f32 0.0, %v7098
    %7100 = vdwg.mxu0
    %7101 = vmatprep.subr.bf16.mxu0 %v3140
    %7102 = vmatpush1.bf16.msra.mxu0 %v3139
    %7103 = vmatprep.subr.bf16.mxu0 %v3164
    %7104 = vmatpush1.bf16.msra.mxu0 %v3163
    %7105 = vmatprep.subr.bf16.mxu0 %v3188
    %7106 = vmatpush1.bf16.msra.mxu0 %v3187
    %7107 = vmatprep.subr.bf16.mxu0 %v3212
    %7108 = vmatpush1.bf16.msra.mxu0 %v3211
    %7109 = vmatprep.subr.bf16.mxu0 %v3236
    %7110 = vmatpush1.bf16.msra.mxu0 %v3235
    %7111 = vmatprep.subr.bf16.mxu0 %v3260
    %7112 = vmatpush1.bf16.msra.mxu0 %v3259
    %7113 = vmatprep.subr.bf16.mxu0 %v3284
    %7114 = vmatpush1.bf16.msra.mxu0 %v3283
    %7115 = vmatprep.subr.bf16.mxu0 %v3308
    %7116 = vmatpush1.bf16.msra.mxu0 %v3307
    %7117 = vmatprep.subr.bf16.mxu0 0
    %7118 = vmatpush1.bf16.msra.mxu0 0
    %7119 = vmatprep.subr.bf16.mxu0 0
    %7120 = vmatpush1.bf16.msra.mxu0 0
    %7121 = vmatprep.subr.bf16.mxu0 0
    %7122 = vmatpush1.bf16.msra.mxu0 0
    %7123 = vmatprep.subr.bf16.mxu0 0
    %7124 = vmatpush1.bf16.msra.mxu0 0
    %7125 = vmatprep.subr.bf16.mxu0 0
    %7126 = vmatpush1.bf16.msra.mxu0 0
    %7127 = vmatprep.subr.bf16.mxu0 0
    %7128 = vmatpush1.bf16.msra.mxu0 0
    %7129 = vmatprep.subr.bf16.mxu0 0
    %7130 = vmatpush1.bf16.msra.mxu0 0
    %7131 = vmatprep.subr.bf16.mxu0 0
    %7132 = vmatpush1.bf16.msra.mxu0 0
    %7133 = vmatprep.mubr.bf16.mxu0 0
    %7134 = vmatmul.mubr.bf16.gmra.mrb[0].mxu0 %v7057
    %v7135 = vpop.f32.mrb[0].mxu0
    %v7136 = vadd.f32 0.0, %v7135
    %v7137 = vpop.f32.mrb[0].mxu0
    %v7138 = vadd.f32 0.0, %v7137
    %v7139 = vpop.f32.mrb[0].mxu0
    %v7140 = vadd.f32 0.0, %v7139
    %v7141 = vpop.f32.mrb[0].mxu0
    %v7142 = vadd.f32 0.0, %v7141
    %7143 = vdwg.mxu0
    %7144 = vmatprep.subr.bf16.mxu0 %v3142
    %7145 = vmatpush1.bf16.msra.mxu0 %v3141
    %7146 = vmatprep.subr.bf16.mxu0 %v3166
    %7147 = vmatpush1.bf16.msra.mxu0 %v3165
    %7148 = vmatprep.subr.bf16.mxu0 %v3190
    %7149 = vmatpush1.bf16.msra.mxu0 %v3189
    %7150 = vmatprep.subr.bf16.mxu0 %v3214
    %7151 = vmatpush1.bf16.msra.mxu0 %v3213
    %7152 = vmatprep.subr.bf16.mxu0 %v3238
    %7153 = vmatpush1.bf16.msra.mxu0 %v3237
    %7154 = vmatprep.subr.bf16.mxu0 %v3262
    %7155 = vmatpush1.bf16.msra.mxu0 %v3261
    %7156 = vmatprep.subr.bf16.mxu0 %v3286
    %7157 = vmatpush1.bf16.msra.mxu0 %v3285
    %7158 = vmatprep.subr.bf16.mxu0 %v3310
    %7159 = vmatpush1.bf16.msra.mxu0 %v3309
    %7160 = vmatprep.subr.bf16.mxu0 0
    %7161 = vmatpush1.bf16.msra.mxu0 0
    %7162 = vmatprep.subr.bf16.mxu0 0
    %7163 = vmatpush1.bf16.msra.mxu0 0
    %7164 = vmatprep.subr.bf16.mxu0 0
    %7165 = vmatpush1.bf16.msra.mxu0 0
    %7166 = vmatprep.subr.bf16.mxu0 0
    %7167 = vmatpush1.bf16.msra.mxu0 0
    %7168 = vmatprep.subr.bf16.mxu0 0
    %7169 = vmatpush1.bf16.msra.mxu0 0
    %7170 = vmatprep.subr.bf16.mxu0 0
    %7171 = vmatpush1.bf16.msra.mxu0 0
    %7172 = vmatprep.subr.bf16.mxu0 0
    %7173 = vmatpush1.bf16.msra.mxu0 0
    %7174 = vmatprep.subr.bf16.mxu0 0
    %7175 = vmatpush1.bf16.msra.mxu0 0
    %7176 = vmatprep.mubr.bf16.mxu0 0
    %7177 = vmatmul.mubr.bf16.gmra.mrb[0].mxu0 %v7057
    %v7178 = vpop.f32.mrb[0].mxu0
    %v7179 = vadd.f32 0.0, %v7178
    %v7180 = vpop.f32.mrb[0].mxu0
    %v7181 = vadd.f32 0.0, %v7180
    %v7182 = vpop.f32.mrb[0].mxu0
    %v7183 = vadd.f32 0.0, %v7182
    %v7184 = vpop.f32.mrb[0].mxu0
    %v7185 = vadd.f32 0.0, %v7184
    %7186 = vdwg.mxu0
    %7187 = vmatprep.subr.bf16.mxu0 %v3144
    %7188 = vmatpush1.bf16.msra.mxu0 %v3143
    %7189 = vmatprep.subr.bf16.mxu0 %v3168
    %7190 = vmatpush1.bf16.msra.mxu0 %v3167
    %7191 = vmatprep.subr.bf16.mxu0 %v3192
    %7192 = vmatpush1.bf16.msra.mxu0 %v3191
    %7193 = vmatprep.subr.bf16.mxu0 %v3216
    %7194 = vmatpush1.bf16.msra.mxu0 %v3215
    %7195 = vmatprep.subr.bf16.mxu0 %v3240
    %7196 = vmatpush1.bf16.msra.mxu0 %v3239
    %7197 = vmatprep.subr.bf16.mxu0 %v3264
    %7198 = vmatpush1.bf16.msra.mxu0 %v3263
    %7199 = vmatprep.subr.bf16.mxu0 %v3288
    %7200 = vmatpush1.bf16.msra.mxu0 %v3287
    %7201 = vmatprep.subr.bf16.mxu0 %v3312
    %7202 = vmatpush1.bf16.msra.mxu0 %v3311
    %7203 = vmatprep.subr.bf16.mxu0 0
    %7204 = vmatpush1.bf16.msra.mxu0 0
    %7205 = vmatprep.subr.bf16.mxu0 0
    %7206 = vmatpush1.bf16.msra.mxu0 0
    %7207 = vmatprep.subr.bf16.mxu0 0
    %7208 = vmatpush1.bf16.msra.mxu0 0
    %7209 = vmatprep.subr.bf16.mxu0 0
    %7210 = vmatpush1.bf16.msra.mxu0 0
    %7211 = vmatprep.subr.bf16.mxu0 0
    %7212 = vmatpush1.bf16.msra.mxu0 0
    %7213 = vmatprep.subr.bf16.mxu0 0
    %7214 = vmatpush1.bf16.msra.mxu0 0
    %7215 = vmatprep.subr.bf16.mxu0 0
    %7216 = vmatpush1.bf16.msra.mxu0 0
    %7217 = vmatprep.subr.bf16.mxu0 0
    %7218 = vmatpush1.bf16.msra.mxu0 0
    %7219 = vmatprep.mubr.bf16.mxu0 0
    %7220 = vmatmul.mubr.bf16.gmra.mrb[0].mxu0 %v7057
    %v7221 = vpop.f32.mrb[0].mxu0
    %v7222 = vadd.f32 0.0, %v7221
    %v7223 = vpop.f32.mrb[0].mxu0
    %v7224 = vadd.f32 0.0, %v7223
    %v7225 = vpop.f32.mrb[0].mxu0
    %v7226 = vadd.f32 0.0, %v7225
    %v7227 = vpop.f32.mrb[0].mxu0
    %v7228 = vadd.f32 0.0, %v7227
    %7229 = vdwg.mxu0
    %7230 = vmatprep.subr.bf16.mxu0 %v3146
    %7231 = vmatpush1.bf16.msra.mxu0 %v3145
    %7232 = vmatprep.subr.bf16.mxu0 %v3170
    %7233 = vmatpush1.bf16.msra.mxu0 %v3169
    %7234 = vmatprep.subr.bf16.mxu0 %v3194
    %7235 = vmatpush1.bf16.msra.mxu0 %v3193
    %7236 = vmatprep.subr.bf16.mxu0 %v3218
    %7237 = vmatpush1.bf16.msra.mxu0 %v3217
    %7238 = vmatprep.subr.bf16.mxu0 %v3242
    %7239 = vmatpush1.bf16.msra.mxu0 %v3241
    %7240 = vmatprep.subr.bf16.mxu0 %v3266
    %7241 = vmatpush1.bf16.msra.mxu0 %v3265
    %7242 = vmatprep.subr.bf16.mxu0 %v3290
    %7243 = vmatpush1.bf16.msra.mxu0 %v3289
    %7244 = vmatprep.subr.bf16.mxu0 %v3314
    %7245 = vmatpush1.bf16.msra.mxu0 %v3313
    %7246 = vmatprep.subr.bf16.mxu0 0
    %7247 = vmatpush1.bf16.msra.mxu0 0
    %7248 = vmatprep.subr.bf16.mxu0 0
    %7249 = vmatpush1.bf16.msra.mxu0 0
    %7250 = vmatprep.subr.bf16.mxu0 0
    %7251 = vmatpush1.bf16.msra.mxu0 0
    %7252 = vmatprep.subr.bf16.mxu0 0
    %7253 = vmatpush1.bf16.msra.mxu0 0
    %7254 = vmatprep.subr.bf16.mxu0 0
    %7255 = vmatpush1.bf16.msra.mxu0 0
    %7256 = vmatprep.subr.bf16.mxu0 0
    %7257 = vmatpush1.bf16.msra.mxu0 0
    %7258 = vmatprep.subr.bf16.mxu0 0
    %7259 = vmatpush1.bf16.msra.mxu0 0
    %7260 = vmatprep.subr.bf16.mxu0 0
    %7261 = vmatpush1.bf16.msra.mxu0 0
    %7262 = vmatprep.mubr.bf16.mxu0 0
    %7263 = vmatmul.mubr.bf16.gmra.mrb[0].mxu0 %v7057
    %v7264 = vpop.f32.mrb[0].mxu0
    %v7265 = vadd.f32 0.0, %v7264
    %v7266 = vpop.f32.mrb[0].mxu0
    %v7267 = vadd.f32 0.0, %v7266
    %v7268 = vpop.f32.mrb[0].mxu0
    %v7269 = vadd.f32 0.0, %v7268
    %v7270 = vpop.f32.mrb[0].mxu0
    %v7271 = vadd.f32 0.0, %v7270
    %7272 = vdwg.mxu0
    %7273 = vmatprep.subr.bf16.mxu0 %v3148
    %7274 = vmatpush1.bf16.msra.mxu0 %v3147
    %7275 = vmatprep.subr.bf16.mxu0 %v3172
    %7276 = vmatpush1.bf16.msra.mxu0 %v3171
    %7277 = vmatprep.subr.bf16.mxu0 %v3196
    %7278 = vmatpush1.bf16.msra.mxu0 %v3195
    %7279 = vmatprep.subr.bf16.mxu0 %v3220
    %7280 = vmatpush1.bf16.msra.mxu0 %v3219
    %7281 = vmatprep.subr.bf16.mxu0 %v3244
    %7282 = vmatpush1.bf16.msra.mxu0 %v3243
    %7283 = vmatprep.subr.bf16.mxu0 %v3268
    %7284 = vmatpush1.bf16.msra.mxu0 %v3267
    %7285 = vmatprep.subr.bf16.mxu0 %v3292
    %7286 = vmatpush1.bf16.msra.mxu0 %v3291
    %7287 = vmatprep.subr.bf16.mxu0 %v3316
    %7288 = vmatpush1.bf16.msra.mxu0 %v3315
    %7289 = vmatprep.subr.bf16.mxu0 0
    %7290 = vmatpush1.bf16.msra.mxu0 0
    %7291 = vmatprep.subr.bf16.mxu0 0
    %7292 = vmatpush1.bf16.msra.mxu0 0
    %7293 = vmatprep.subr.bf16.mxu0 0
    %7294 = vmatpush1.bf16.msra.mxu0 0
    %7295 = vmatprep.subr.bf16.mxu0 0
    %7296 = vmatpush1.bf16.msra.mxu0 0
    %7297 = vmatprep.subr.bf16.mxu0 0
    %7298 = vmatpush1.bf16.msra.mxu0 0
    %7299 = vmatprep.subr.bf16.mxu0 0
    %7300 = vmatpush1.bf16.msra.mxu0 0
    %7301 = vmatprep.subr.bf16.mxu0 0
    %7302 = vmatpush1.bf16.msra.mxu0 0
    %7303 = vmatprep.subr.bf16.mxu0 0
    %7304 = vmatpush1.bf16.msra.mxu0 0
    %7305 = vmatprep.mubr.bf16.mxu0 0
    %7306 = vmatmul.mubr.bf16.gmra.mrb[0].mxu0 %v7057
    %v7307 = vpop.f32.mrb[0].mxu0
    %v7308 = vadd.f32 0.0, %v7307
    %v7309 = vpop.f32.mrb[0].mxu0
    %v7310 = vadd.f32 0.0, %v7309
    %v7311 = vpop.f32.mrb[0].mxu0
    %v7312 = vadd.f32 0.0, %v7311
    %v7313 = vpop.f32.mrb[0].mxu0
    %v7314 = vadd.f32 0.0, %v7313
    %7315 = vdwg.mxu0
    %7316 = vmatprep.subr.bf16.mxu0 %v3150
    %7317 = vmatpush1.bf16.msra.mxu0 %v3149
    %7318 = vmatprep.subr.bf16.mxu0 %v3174
    %7319 = vmatpush1.bf16.msra.mxu0 %v3173
    %7320 = vmatprep.subr.bf16.mxu0 %v3198
    %7321 = vmatpush1.bf16.msra.mxu0 %v3197
    %7322 = vmatprep.subr.bf16.mxu0 %v3222
    %7323 = vmatpush1.bf16.msra.mxu0 %v3221
    %7324 = vmatprep.subr.bf16.mxu0 %v3246
    %7325 = vmatpush1.bf16.msra.mxu0 %v3245
    %7326 = vmatprep.subr.bf16.mxu0 %v3270
    %7327 = vmatpush1.bf16.msra.mxu0 %v3269
    %7328 = vmatprep.subr.bf16.mxu0 %v3294
    %7329 = vmatpush1.bf16.msra.mxu0 %v3293
    %7330 = vmatprep.subr.bf16.mxu0 %v3318
    %7331 = vmatpush1.bf16.msra.mxu0 %v3317
    %7332 = vmatprep.subr.bf16.mxu0 0
    %7333 = vmatpush1.bf16.msra.mxu0 0
    %7334 = vmatprep.subr.bf16.mxu0 0
    %7335 = vmatpush1.bf16.msra.mxu0 0
    %7336 = vmatprep.subr.bf16.mxu0 0
    %7337 = vmatpush1.bf16.msra.mxu0 0
    %7338 = vmatprep.subr.bf16.mxu0 0
    %7339 = vmatpush1.bf16.msra.mxu0 0
    %7340 = vmatprep.subr.bf16.mxu0 0
    %7341 = vmatpush1.bf16.msra.mxu0 0
    %7342 = vmatprep.subr.bf16.mxu0 0
    %7343 = vmatpush1.bf16.msra.mxu0 0
    %7344 = vmatprep.subr.bf16.mxu0 0
    %7345 = vmatpush1.bf16.msra.mxu0 0
    %7346 = vmatprep.subr.bf16.mxu0 0
    %7347 = vmatpush1.bf16.msra.mxu0 0
    %7348 = vmatprep.mubr.bf16.mxu0 0
    %7349 = vmatmul.mubr.bf16.gmra.mrb[0].mxu0 %v7057
    %v7350 = vpop.f32.mrb[0].mxu0
    %v7351 = vadd.f32 0.0, %v7350
    %v7352 = vpop.f32.mrb[0].mxu0
    %v7353 = vadd.f32 0.0, %v7352
    %v7354 = vpop.f32.mrb[0].mxu0
    %v7355 = vadd.f32 0.0, %v7354
    %v7356 = vpop.f32.mrb[0].mxu0
    %v7357 = vadd.f32 0.0, %v7356
    %7358 = vdwg.mxu0
    %7359 = vmatprep.subr.bf16.mxu0 %v3152
    %7360 = vmatpush1.bf16.msra.mxu0 %v3151
    %7361 = vmatprep.subr.bf16.mxu0 %v3176
    %7362 = vmatpush1.bf16.msra.mxu0 %v3175
    %7363 = vmatprep.subr.bf16.mxu0 %v3200
    %7364 = vmatpush1.bf16.msra.mxu0 %v3199
    %7365 = vmatprep.subr.bf16.mxu0 %v3224
    %7366 = vmatpush1.bf16.msra.mxu0 %v3223
    %7367 = vmatprep.subr.bf16.mxu0 %v3248
    %7368 = vmatpush1.bf16.msra.mxu0 %v3247
    %7369 = vmatprep.subr.bf16.mxu0 %v3272
    %7370 = vmatpush1.bf16.msra.mxu0 %v3271
    %7371 = vmatprep.subr.bf16.mxu0 %v3296
    %7372 = vmatpush1.bf16.msra.mxu0 %v3295
    %7373 = vmatprep.subr.bf16.mxu0 %v3320
    %7374 = vmatpush1.bf16.msra.mxu0 %v3319
    %7375 = vmatprep.subr.bf16.mxu0 0
    %7376 = vmatpush1.bf16.msra.mxu0 0
    %7377 = vmatprep.subr.bf16.mxu0 0
    %7378 = vmatpush1.bf16.msra.mxu0 0
    %7379 = vmatprep.subr.bf16.mxu0 0
    %7380 = vmatpush1.bf16.msra.mxu0 0
    %7381 = vmatprep.subr.bf16.mxu0 0
    %7382 = vmatpush1.bf16.msra.mxu0 0
    %7383 = vmatprep.subr.bf16.mxu0 0
    %7384 = vmatpush1.bf16.msra.mxu0 0
    %7385 = vmatprep.subr.bf16.mxu0 0
    %7386 = vmatpush1.bf16.msra.mxu0 0
    %7387 = vmatprep.subr.bf16.mxu0 0
    %7388 = vmatpush1.bf16.msra.mxu0 0
    %7389 = vmatprep.subr.bf16.mxu0 0
    %7390 = vmatpush1.bf16.msra.mxu0 0
    %7391 = vmatprep.mubr.bf16.mxu0 0
    %7392 = vmatmul.mubr.bf16.gmra.mrb[0].mxu0 %v7057
    %v7393 = vpop.f32.mrb[0].mxu0
    %v7394 = vadd.f32 0.0, %v7393
    %v7395 = vpop.f32.mrb[0].mxu0
    %v7396 = vadd.f32 0.0, %v7395
    %v7397 = vpop.f32.mrb[0].mxu0
    %v7398 = vadd.f32 0.0, %v7397
    %v7399 = vpop.f32.mrb[0].mxu0
    %v7400 = vadd.f32 0.0, %v7399
    %7401 = vdwg.mxu0
    %7402 = vmatprep.subr.bf16.mxu0 %v3154
    %7403 = vmatpush1.bf16.msra.mxu0 %v3153
    %7404 = vmatprep.subr.bf16.mxu0 %v3178
    %7405 = vmatpush1.bf16.msra.mxu0 %v3177
    %7406 = vmatprep.subr.bf16.mxu0 %v3202
    %7407 = vmatpush1.bf16.msra.mxu0 %v3201
    %7408 = vmatprep.subr.bf16.mxu0 %v3226
    %7409 = vmatpush1.bf16.msra.mxu0 %v3225
    %7410 = vmatprep.subr.bf16.mxu0 %v3250
    %7411 = vmatpush1.bf16.msra.mxu0 %v3249
    %7412 = vmatprep.subr.bf16.mxu0 %v3274
    %7413 = vmatpush1.bf16.msra.mxu0 %v3273
    %7414 = vmatprep.subr.bf16.mxu0 %v3298
    %7415 = vmatpush1.bf16.msra.mxu0 %v3297
    %7416 = vmatprep.subr.bf16.mxu0 %v3322
    %7417 = vmatpush1.bf16.msra.mxu0 %v3321
    %7418 = vmatprep.subr.bf16.mxu0 0
    %7419 = vmatpush1.bf16.msra.mxu0 0
    %7420 = vmatprep.subr.bf16.mxu0 0
    %7421 = vmatpush1.bf16.msra.mxu0 0
    %7422 = vmatprep.subr.bf16.mxu0 0
    %7423 = vmatpush1.bf16.msra.mxu0 0
    %7424 = vmatprep.subr.bf16.mxu0 0
    %7425 = vmatpush1.bf16.msra.mxu0 0
    %7426 = vmatprep.subr.bf16.mxu0 0
    %7427 = vmatpush1.bf16.msra.mxu0 0
    %7428 = vmatprep.subr.bf16.mxu0 0
    %7429 = vmatpush1.bf16.msra.mxu0 0
    %7430 = vmatprep.subr.bf16.mxu0 0
    %7431 = vmatpush1.bf16.msra.mxu0 0
    %7432 = vmatprep.subr.bf16.mxu0 0
    %7433 = vmatpush1.bf16.msra.mxu0 0
    %7434 = vmatprep.mubr.bf16.mxu0 0
    %7435 = vmatmul.mubr.bf16.gmra.mrb[0].mxu0 %v7057
    %v7436 = vpop.f32.mrb[0].mxu0
    %v7437 = vadd.f32 0.0, %v7436
    %v7438 = vpop.f32.mrb[0].mxu0
    %v7439 = vadd.f32 0.0, %v7438
    %v7440 = vpop.f32.mrb[0].mxu0
    %v7441 = vadd.f32 0.0, %v7440
    %v7442 = vpop.f32.mrb[0].mxu0
    %v7443 = vadd.f32 0.0, %v7442
    %7444 = vdwg.mxu0
    %7445 = vmatprep.subr.bf16.mxu0 %v3156
    %7446 = vmatpush1.bf16.msra.mxu0 %v3155
    %7447 = vmatprep.subr.bf16.mxu0 %v3180
    %7448 = vmatpush1.bf16.msra.mxu0 %v3179
    %7449 = vmatprep.subr.bf16.mxu0 %v3204
    %7450 = vmatpush1.bf16.msra.mxu0 %v3203
    %7451 = vmatprep.subr.bf16.mxu0 %v3228
    %7452 = vmatpush1.bf16.msra.mxu0 %v3227
    %7453 = vmatprep.subr.bf16.mxu0 %v3252
    %7454 = vmatpush1.bf16.msra.mxu0 %v3251
    %7455 = vmatprep.subr.bf16.mxu0 %v3276
    %7456 = vmatpush1.bf16.msra.mxu0 %v3275
    %7457 = vmatprep.subr.bf16.mxu0 %v3300
    %7458 = vmatpush1.bf16.msra.mxu0 %v3299
    %7459 = vmatprep.subr.bf16.mxu0 %v3324
    %7460 = vmatpush1.bf16.msra.mxu0 %v3323
    %7461 = vmatprep.subr.bf16.mxu0 0
    %7462 = vmatpush1.bf16.msra.mxu0 0
    %7463 = vmatprep.subr.bf16.mxu0 0
    %7464 = vmatpush1.bf16.msra.mxu0 0
    %7465 = vmatprep.subr.bf16.mxu0 0
    %7466 = vmatpush1.bf16.msra.mxu0 0
    %7467 = vmatprep.subr.bf16.mxu0 0
    %7468 = vmatpush1.bf16.msra.mxu0 0
    %7469 = vmatprep.subr.bf16.mxu0 0
    %7470 = vmatpush1.bf16.msra.mxu0 0
    %7471 = vmatprep.subr.bf16.mxu0 0
    %7472 = vmatpush1.bf16.msra.mxu0 0
    %7473 = vmatprep.subr.bf16.mxu0 0
    %7474 = vmatpush1.bf16.msra.mxu0 0
    %7475 = vmatprep.subr.bf16.mxu0 0
    %7476 = vmatpush1.bf16.msra.mxu0 0
    %7477 = vmatprep.mubr.bf16.mxu0 0
    %7478 = vmatmul.mubr.bf16.gmra.mrb[0].mxu0 %v7057
    %v7479 = vpop.f32.mrb[0].mxu0
    %v7480 = vadd.f32 0.0, %v7479
    %v7481 = vpop.f32.mrb[0].mxu0
    %v7482 = vadd.f32 0.0, %v7481
    %v7483 = vpop.f32.mrb[0].mxu0
    %v7484 = vadd.f32 0.0, %v7483
    %v7485 = vpop.f32.mrb[0].mxu0
    %v7486 = vadd.f32 0.0, %v7485
    %7487 = vdwg.mxu0
    %7488 = vmatprep.subr.bf16.mxu0 %v3158
    %7489 = vmatpush1.bf16.msra.mxu0 %v3157
    %7490 = vmatprep.subr.bf16.mxu0 %v3182
    %7491 = vmatpush1.bf16.msra.mxu0 %v3181
    %7492 = vmatprep.subr.bf16.mxu0 %v3206
    %7493 = vmatpush1.bf16.msra.mxu0 %v3205
    %7494 = vmatprep.subr.bf16.mxu0 %v3230
    %7495 = vmatpush1.bf16.msra.mxu0 %v3229
    %7496 = vmatprep.subr.bf16.mxu0 %v3254
    %7497 = vmatpush1.bf16.msra.mxu0 %v3253
    %7498 = vmatprep.subr.bf16.mxu0 %v3278
    %7499 = vmatpush1.bf16.msra.mxu0 %v3277
    %7500 = vmatprep.subr.bf16.mxu0 %v3302
    %7501 = vmatpush1.bf16.msra.mxu0 %v3301
    %7502 = vmatprep.subr.bf16.mxu0 %v3326
    %7503 = vmatpush1.bf16.msra.mxu0 %v3325
    %7504 = vmatprep.subr.bf16.mxu0 0
    %7505 = vmatpush1.bf16.msra.mxu0 0
    %7506 = vmatprep.subr.bf16.mxu0 0
    %7507 = vmatpush1.bf16.msra.mxu0 0
    %7508 = vmatprep.subr.bf16.mxu0 0
    %7509 = vmatpush1.bf16.msra.mxu0 0
    %7510 = vmatprep.subr.bf16.mxu0 0
    %7511 = vmatpush1.bf16.msra.mxu0 0
    %7512 = vmatprep.subr.bf16.mxu0 0
    %7513 = vmatpush1.bf16.msra.mxu0 0
    %7514 = vmatprep.subr.bf16.mxu0 0
    %7515 = vmatpush1.bf16.msra.mxu0 0
    %7516 = vmatprep.subr.bf16.mxu0 0
    %7517 = vmatpush1.bf16.msra.mxu0 0
    %7518 = vmatprep.subr.bf16.mxu0 0
    %7519 = vmatpush1.bf16.msra.mxu0 0
    %7520 = vmatprep.mubr.bf16.mxu0 0
    %7521 = vmatmul.mubr.bf16.gmra.mrb[0].mxu0 %v7057
    %v7522 = vpop.f32.mrb[0].mxu0
    %v7523 = vadd.f32 0.0, %v7522
    %v7524 = vpop.f32.mrb[0].mxu0
    %v7525 = vadd.f32 0.0, %v7524
    %v7526 = vpop.f32.mrb[0].mxu0
    %v7527 = vadd.f32 0.0, %v7526
    %v7528 = vpop.f32.mrb[0].mxu0
    %v7529 = vadd.f32 0.0, %v7528
    %7530 = vdwg.mxu0
    %7531 = vmatprep.subr.bf16.mxu0 %v3160
    %7532 = vmatpush1.bf16.msra.mxu0 %v3159
    %7533 = vmatprep.subr.bf16.mxu0 %v3184
    %7534 = vmatpush1.bf16.msra.mxu0 %v3183
    %7535 = vmatprep.subr.bf16.mxu0 %v3208
    %7536 = vmatpush1.bf16.msra.mxu0 %v3207
    %7537 = vmatprep.subr.bf16.mxu0 %v3232
    %7538 = vmatpush1.bf16.msra.mxu0 %v3231
    %7539 = vmatprep.subr.bf16.mxu0 %v3256
    %7540 = vmatpush1.bf16.msra.mxu0 %v3255
    %7541 = vmatprep.subr.bf16.mxu0 %v3280
    %7542 = vmatpush1.bf16.msra.mxu0 %v3279
    %7543 = vmatprep.subr.bf16.mxu0 %v3304
    %7544 = vmatpush1.bf16.msra.mxu0 %v3303
    %7545 = vmatprep.subr.bf16.mxu0 %v3328
    %7546 = vmatpush1.bf16.msra.mxu0 %v3327
    %7547 = vmatprep.subr.bf16.mxu0 0
    %7548 = vmatpush1.bf16.msra.mxu0 0
    %7549 = vmatprep.subr.bf16.mxu0 0
    %7550 = vmatpush1.bf16.msra.mxu0 0
    %7551 = vmatprep.subr.bf16.mxu0 0
    %7552 = vmatpush1.bf16.msra.mxu0 0
    %7553 = vmatprep.subr.bf16.mxu0 0
    %7554 = vmatpush1.bf16.msra.mxu0 0
    %7555 = vmatprep.subr.bf16.mxu0 0
    %7556 = vmatpush1.bf16.msra.mxu0 0
    %7557 = vmatprep.subr.bf16.mxu0 0
    %7558 = vmatpush1.bf16.msra.mxu0 0
    %7559 = vmatprep.subr.bf16.mxu0 0
    %7560 = vmatpush1.bf16.msra.mxu0 0
    %7561 = vmatprep.subr.bf16.mxu0 0
    %7562 = vmatpush1.bf16.msra.mxu0 0
    %7563 = vmatprep.mubr.bf16.mxu0 0
    %7564 = vmatmul.mubr.bf16.gmra.mrb[0].mxu0 %v7057
    %v7565 = vpop.f32.mrb[0].mxu0
    %v7566 = vadd.f32 0.0, %v7565
    %v7567 = vpop.f32.mrb[0].mxu0
    %v7568 = vadd.f32 0.0, %v7567
    %v7569 = vpop.f32.mrb[0].mxu0
    %v7570 = vadd.f32 0.0, %v7569
    %v7571 = vpop.f32.mrb[0].mxu0
    %v7572 = vadd.f32 0.0, %v7571
    %7573 = vdwg.mxu0
    %v7574 = vadd.f32 %v6484, %v7093
    %v7575 = vadd.f32 %v6485, %v7095
    %v7576 = vadd.f32 %v6486, %v7136
    %v7577 = vadd.f32 %v6487, %v7138
    %v7578 = vadd.f32 %v6488, %v7179
    %v7579 = vadd.f32 %v6489, %v7181
    %v7580 = vadd.f32 %v6490, %v7222
    %v7581 = vadd.f32 %v6491, %v7224
    %v7582 = vadd.f32 %v6492, %v7265
    %v7583 = vadd.f32 %v6493, %v7267
    %v7584 = vadd.f32 %v6494, %v7308
    %v7585 = vadd.f32 %v6495, %v7310
    %v7586 = vadd.f32 %v6496, %v7351
    %v7587 = vadd.f32 %v6497, %v7353
    %v7588 = vadd.f32 %v6498, %v7394
    %v7589 = vadd.f32 %v6499, %v7396
    %v7590 = vadd.f32 %v6500, %v7437
    %v7591 = vadd.f32 %v6501, %v7439
    %v7592 = vadd.f32 %v6502, %v7480
    %v7593 = vadd.f32 %v6503, %v7482
    %v7594 = vadd.f32 %v6504, %v7523
    %v7595 = vadd.f32 %v6505, %v7525
    %v7596 = vadd.f32 %v6506, %v7566
    %v7597 = vadd.f32 %v6507, %v7568
    %v7598 = vadd.f32 %v6508, %v7097
    %v7599 = vadd.f32 %v6509, %v7099
    %v7600 = vadd.f32 %v6510, %v7140
    %v7601 = vadd.f32 %v6511, %v7142
    %v7602 = vadd.f32 %v6512, %v7183
    %v7603 = vadd.f32 %v6513, %v7185
    %v7604 = vadd.f32 %v6514, %v7226
    %v7605 = vadd.f32 %v6515, %v7228
    %v7606 = vadd.f32 %v6516, %v7269
    %v7607 = vadd.f32 %v6517, %v7271
    %v7608 = vadd.f32 %v6518, %v7312
    %v7609 = vadd.f32 %v6519, %v7314
    %v7610 = vadd.f32 %v6520, %v7355
    %v7611 = vadd.f32 %v6521, %v7357
    %v7612 = vadd.f32 %v6522, %v7398
    %v7613 = vadd.f32 %v6523, %v7400
    %v7614 = vadd.f32 %v6524, %v7441
    %v7615 = vadd.f32 %v6525, %v7443
    %v7616 = vadd.f32 %v6526, %v7484
    %v7617 = vadd.f32 %v6527, %v7486
    %v7618 = vadd.f32 %v6528, %v7527
    %v7619 = vadd.f32 %v6529, %v7529
    %v7620 = vadd.f32 %v6530, %v7570
    %v7621 = vadd.f32 %v6531, %v7572
    %v7622 = vadd.f32 %v7574, %v4091
    %v7623 = vadd.f32 %v7575, %v4095
    %v7624 = vadd.f32 %v7576, %v4099
    %v7625 = vadd.f32 %v7577, %v4103
    %v7626 = vadd.f32 %v7578, %v4107
    %v7627 = vadd.f32 %v7579, %v4111
    %v7628 = vadd.f32 %v7580, %v4115
    %v7629 = vadd.f32 %v7581, %v4119
    %v7630 = vadd.f32 %v7582, %v4123
    %v7631 = vadd.f32 %v7583, %v4127
    %v7632 = vadd.f32 %v7584, %v4131
    %v7633 = vadd.f32 %v7585, %v4135
    %v7634 = vadd.f32 %v7586, %v4139
    %v7635 = vadd.f32 %v7587, %v4143
    %v7636 = vadd.f32 %v7588, %v4147
    %v7637 = vadd.f32 %v7589, %v4151
    %v7638 = vadd.f32 %v7590, %v4155
    %v7639 = vadd.f32 %v7591, %v4159
    %v7640 = vadd.f32 %v7592, %v4163
    %v7641 = vadd.f32 %v7593, %v4167
    %v7642 = vadd.f32 %v7594, %v4171
    %v7643 = vadd.f32 %v7595, %v4175
    %v7644 = vadd.f32 %v7596, %v4179
    %v7645 = vadd.f32 %v7597, %v4183
    %v7646 = vadd.f32 %v7598, %v4091
    %v7647 = vadd.f32 %v7599, %v4095
    %v7648 = vadd.f32 %v7600, %v4099
    %v7649 = vadd.f32 %v7601, %v4103
    %v7650 = vadd.f32 %v7602, %v4107
    %v7651 = vadd.f32 %v7603, %v4111
    %v7652 = vadd.f32 %v7604, %v4115
    %v7653 = vadd.f32 %v7605, %v4119
    %v7654 = vadd.f32 %v7606, %v4123
    %v7655 = vadd.f32 %v7607, %v4127
    %v7656 = vadd.f32 %v7608, %v4131
    %v7657 = vadd.f32 %v7609, %v4135
    %v7658 = vadd.f32 %v7610, %v4139
    %v7659 = vadd.f32 %v7611, %v4143
    %v7660 = vadd.f32 %v7612, %v4147
    %v7661 = vadd.f32 %v7613, %v4151
    %v7662 = vadd.f32 %v7614, %v4155
    %v7663 = vadd.f32 %v7615, %v4159
    %v7664 = vadd.f32 %v7616, %v4163
    %v7665 = vadd.f32 %v7617, %v4167
    %v7666 = vadd.f32 %v7618, %v4171
    %v7667 = vadd.f32 %v7619, %v4175
    %v7668 = vadd.f32 %v7620, %v4179
    %v7669 = vadd.f32 %v7621, %v4183
    %v7670 = vpack.c.bf16 %v7646, %v7622
    %v7671 = vpack.c.bf16 %v7647, %v7623
    %v7672 = vpack.c.bf16 %v7648, %v7624
    %v7673 = vpack.c.bf16 %v7649, %v7625
    %v7674 = vpack.c.bf16 %v7650, %v7626
    %v7675 = vpack.c.bf16 %v7651, %v7627
    %v7676 = vpack.c.bf16 %v7652, %v7628
    %v7677 = vpack.c.bf16 %v7653, %v7629
    %v7678 = vpack.c.bf16 %v7654, %v7630
    %v7679 = vpack.c.bf16 %v7655, %v7631
    %v7680 = vpack.c.bf16 %v7656, %v7632
    %v7681 = vpack.c.bf16 %v7657, %v7633
    %v7682 = vpack.c.bf16 %v7658, %v7634
    %v7683 = vpack.c.bf16 %v7659, %v7635
    %v7684 = vpack.c.bf16 %v7660, %v7636
    %v7685 = vpack.c.bf16 %v7661, %v7637
    %v7686 = vpack.c.bf16 %v7662, %v7638
    %v7687 = vpack.c.bf16 %v7663, %v7639
    %v7688 = vpack.c.bf16 %v7664, %v7640
    %v7689 = vpack.c.bf16 %v7665, %v7641
    %v7690 = vpack.c.bf16 %v7666, %v7642
    %v7691 = vpack.c.bf16 %v7667, %v7643
    %v7692 = vpack.c.bf16 %v7668, %v7644
    %v7693 = vpack.c.bf16 %v7669, %v7645
    %v7694 = vld [vmem:[#allocation11] sm:$0xf]
    %v7695 = vld [vmem:[#allocation11 + $0x4] sm:$0xf]
    %v7696 = vld [vmem:[#allocation11 + $0x8] sm:$0xf]
    %v7697 = vld [vmem:[#allocation11 + $0xc] sm:$0xf]
    %v7698 = vld [vmem:[#allocation11 + $0x10] sm:$0xf]
    %v7699 = vld [vmem:[#allocation11 + $0x14] sm:$0xf]
    %v7700 = vld [vmem:[#allocation11 + $0x18] sm:$0xf]
    %v7701 = vld [vmem:[#allocation11 + $0x1c] sm:$0xf]
    %v7702 = vld [vmem:[#allocation11 + $0x20] sm:$0xf]
    %v7703 = vld [vmem:[#allocation11 + $0x24] sm:$0xf]
    %v7704 = vld [vmem:[#allocation11 + $0x28] sm:$0xf]
    %v7705 = vld [vmem:[#allocation11 + $0x2c] sm:$0xf]
    %v7706 = vld [vmem:[#allocation11 + $0x30] sm:$0xf]
    %v7707 = vld [vmem:[#allocation11 + $0x34] sm:$0xf]
    %v7708 = vld [vmem:[#allocation11 + $0x38] sm:$0xf]
    %v7709 = vld [vmem:[#allocation11 + $0x3c] sm:$0xf]
    %v7710 = vld [vmem:[#allocation11 + $0x40] sm:$0xf]
    %v7711 = vld [vmem:[#allocation11 + $0x44] sm:$0xf]
    %v7712 = vld [vmem:[#allocation11 + $0x48] sm:$0xf]
    %v7713 = vld [vmem:[#allocation11 + $0x4c] sm:$0xf]
    %v7714 = vld [vmem:[#allocation11 + $0x50] sm:$0xf]
    %v7715 = vld [vmem:[#allocation11 + $0x54] sm:$0xf]
    %v7716 = vld [vmem:[#allocation11 + $0x58] sm:$0xf]
    %v7717 = vld [vmem:[#allocation11 + $0x5c] sm:$0xf]
    %v7718 = vld [vmem:[#allocation11 + $0x60] sm:$0xf]
    %v7719 = vld [vmem:[#allocation11 + $0x64] sm:$0xf]
    %v7720 = vld [vmem:[#allocation11 + $0x68] sm:$0xf]
    %v7721 = vld [vmem:[#allocation11 + $0x6c] sm:$0xf]
    %v7722 = vld [vmem:[#allocation11 + $0x70] sm:$0xf]
    %v7723 = vld [vmem:[#allocation11 + $0x74] sm:$0xf]
    %v7724 = vld [vmem:[#allocation11 + $0x78] sm:$0xf]
    %v7725 = vld [vmem:[#allocation11 + $0x7c] sm:$0xf]
    %v7726 = vld [vmem:[#allocation11 + $0x80] sm:$0xf]
    %v7727 = vld [vmem:[#allocation11 + $0x84] sm:$0xf]
    %v7728 = vld [vmem:[#allocation11 + $0x88] sm:$0xf]
    %v7729 = vld [vmem:[#allocation11 + $0x8c] sm:$0xf]
    %v7730 = vld [vmem:[#allocation11 + $0x90] sm:$0xf]
    %v7731 = vld [vmem:[#allocation11 + $0x94] sm:$0xf]
    %v7732 = vld [vmem:[#allocation11 + $0x98] sm:$0xf]
    %v7733 = vld [vmem:[#allocation11 + $0x9c] sm:$0xf]
    %v7734 = vld [vmem:[#allocation11 + $0xa0] sm:$0xf]
    %v7735 = vld [vmem:[#allocation11 + $0xa4] sm:$0xf]
    %v7736 = vld [vmem:[#allocation11 + $0xa8] sm:$0xf]
    %v7737 = vld [vmem:[#allocation11 + $0xac] sm:$0xf]
    %v7738 = vld [vmem:[#allocation11 + $0xb0] sm:$0xf]
    %v7739 = vld [vmem:[#allocation11 + $0xb4] sm:$0xf]
    %v7740 = vld [vmem:[#allocation11 + $0xb8] sm:$0xf]
    %v7741 = vld [vmem:[#allocation11 + $0xbc] sm:$0xf]
    %v7742 = vld [vmem:[#allocation11 + $0xc0] sm:$0xf]
    %v7743 = vld [vmem:[#allocation11 + $0xc4] sm:$0xf]
    %v7744 = vld [vmem:[#allocation11 + $0xc8] sm:$0xf]
    %v7745 = vld [vmem:[#allocation11 + $0xcc] sm:$0xf]
    %v7746 = vld [vmem:[#allocation11 + $0xd0] sm:$0xf]
    %v7747 = vld [vmem:[#allocation11 + $0xd4] sm:$0xf]
    %v7748 = vld [vmem:[#allocation11 + $0xd8] sm:$0xf]
    %v7749 = vld [vmem:[#allocation11 + $0xdc] sm:$0xf]
    %v7750 = vld [vmem:[#allocation11 + $0xe0] sm:$0xf]
    %v7751 = vld [vmem:[#allocation11 + $0xe4] sm:$0xf]
    %v7752 = vld [vmem:[#allocation11 + $0xe8] sm:$0xf]
    %v7753 = vld [vmem:[#allocation11 + $0xec] sm:$0xf]
    %v7754 = vld [vmem:[#allocation11 + $0xf0] sm:$0xf]
    %v7755 = vld [vmem:[#allocation11 + $0xf4] sm:$0xf]
    %v7756 = vld [vmem:[#allocation11 + $0xf8] sm:$0xf]
    %v7757 = vld [vmem:[#allocation11 + $0xfc] sm:$0xf]
    %v7758 = vld [vmem:[#allocation11 + $0x100] sm:$0xf]
    %v7759 = vld [vmem:[#allocation11 + $0x104] sm:$0xf]
    %v7760 = vld [vmem:[#allocation11 + $0x108] sm:$0xf]
    %v7761 = vld [vmem:[#allocation11 + $0x10c] sm:$0xf]
    %v7762 = vld [vmem:[#allocation11 + $0x110] sm:$0xf]
    %v7763 = vld [vmem:[#allocation11 + $0x114] sm:$0xf]
    %v7764 = vld [vmem:[#allocation11 + $0x118] sm:$0xf]
    %v7765 = vld [vmem:[#allocation11 + $0x11c] sm:$0xf]
    %v7766 = vld [vmem:[#allocation11 + $0x120] sm:$0xf]
    %v7767 = vld [vmem:[#allocation11 + $0x124] sm:$0xf]
    %v7768 = vld [vmem:[#allocation11 + $0x128] sm:$0xf]
    %v7769 = vld [vmem:[#allocation11 + $0x12c] sm:$0xf]
    %v7770 = vld [vmem:[#allocation11 + $0x130] sm:$0xf]
    %v7771 = vld [vmem:[#allocation11 + $0x134] sm:$0xf]
    %v7772 = vld [vmem:[#allocation11 + $0x138] sm:$0xf]
    %v7773 = vld [vmem:[#allocation11 + $0x13c] sm:$0xf]
    %v7774 = vld [vmem:[#allocation11 + $0x140] sm:$0xf]
    %v7775 = vld [vmem:[#allocation11 + $0x144] sm:$0xf]
    %v7776 = vld [vmem:[#allocation11 + $0x148] sm:$0xf]
    %v7777 = vld [vmem:[#allocation11 + $0x14c] sm:$0xf]
    %v7778 = vld [vmem:[#allocation11 + $0x150] sm:$0xf]
    %v7779 = vld [vmem:[#allocation11 + $0x154] sm:$0xf]
    %v7780 = vld [vmem:[#allocation11 + $0x158] sm:$0xf]
    %v7781 = vld [vmem:[#allocation11 + $0x15c] sm:$0xf]
    %v7782 = vld [vmem:[#allocation11 + $0x160] sm:$0xf]
    %v7783 = vld [vmem:[#allocation11 + $0x164] sm:$0xf]
    %v7784 = vld [vmem:[#allocation11 + $0x168] sm:$0xf]
    %v7785 = vld [vmem:[#allocation11 + $0x16c] sm:$0xf]
    %v7786 = vld [vmem:[#allocation11 + $0x170] sm:$0xf]
    %v7787 = vld [vmem:[#allocation11 + $0x174] sm:$0xf]
    %v7788 = vld [vmem:[#allocation11 + $0x178] sm:$0xf]
    %v7789 = vld [vmem:[#allocation11 + $0x17c] sm:$0xf]
    %v7790 = vld [vmem:[#allocation11 + $0x180] sm:$0xf]
    %v7791 = vld [vmem:[#allocation11 + $0x184] sm:$0xf]
    %v7792 = vld [vmem:[#allocation11 + $0x188] sm:$0xf]
    %v7793 = vld [vmem:[#allocation11 + $0x18c] sm:$0xf]
    %v7794 = vld [vmem:[#allocation11 + $0x190] sm:$0xf]
    %v7795 = vld [vmem:[#allocation11 + $0x194] sm:$0xf]
    %v7796 = vld [vmem:[#allocation11 + $0x198] sm:$0xf]
    %v7797 = vld [vmem:[#allocation11 + $0x19c] sm:$0xf]
    %v7798 = vld [vmem:[#allocation11 + $0x1a0] sm:$0xf]
    %v7799 = vld [vmem:[#allocation11 + $0x1a4] sm:$0xf]
    %v7800 = vld [vmem:[#allocation11 + $0x1a8] sm:$0xf]
    %v7801 = vld [vmem:[#allocation11 + $0x1ac] sm:$0xf]
    %v7802 = vld [vmem:[#allocation11 + $0x1b0] sm:$0xf]
    %v7803 = vld [vmem:[#allocation11 + $0x1b4] sm:$0xf]
    %v7804 = vld [vmem:[#allocation11 + $0x1b8] sm:$0xf]
    %v7805 = vld [vmem:[#allocation11 + $0x1bc] sm:$0xf]
    %v7806 = vld [vmem:[#allocation11 + $0x1c0] sm:$0xf]
    %v7807 = vld [vmem:[#allocation11 + $0x1c4] sm:$0xf]
    %v7808 = vld [vmem:[#allocation11 + $0x1c8] sm:$0xf]
    %v7809 = vld [vmem:[#allocation11 + $0x1cc] sm:$0xf]
    %v7810 = vld [vmem:[#allocation11 + $0x1d0] sm:$0xf]
    %v7811 = vld [vmem:[#allocation11 + $0x1d4] sm:$0xf]
    %v7812 = vld [vmem:[#allocation11 + $0x1d8] sm:$0xf]
    %v7813 = vld [vmem:[#allocation11 + $0x1dc] sm:$0xf]
    %v7814 = vld [vmem:[#allocation11 + $0x1e0] sm:$0xf]
    %v7815 = vld [vmem:[#allocation11 + $0x1e4] sm:$0xf]
    %v7816 = vld [vmem:[#allocation11 + $0x1e8] sm:$0xf]
    %v7817 = vld [vmem:[#allocation11 + $0x1ec] sm:$0xf]
    %v7818 = vld [vmem:[#allocation11 + $0x1f0] sm:$0xf]
    %v7819 = vld [vmem:[#allocation11 + $0x1f4] sm:$0xf]
    %v7820 = vld [vmem:[#allocation11 + $0x1f8] sm:$0xf]
    %v7821 = vld [vmem:[#allocation11 + $0x1fc] sm:$0xf]
    %v7822 = vld [vmem:[#allocation11 + $0x200] sm:$0xf]
    %v7823 = vld [vmem:[#allocation11 + $0x204] sm:$0xf]
    %v7824 = vld [vmem:[#allocation11 + $0x208] sm:$0xf]
    %v7825 = vld [vmem:[#allocation11 + $0x20c] sm:$0xf]
    %v7826 = vld [vmem:[#allocation11 + $0x210] sm:$0xf]
    %v7827 = vld [vmem:[#allocation11 + $0x214] sm:$0xf]
    %v7828 = vld [vmem:[#allocation11 + $0x218] sm:$0xf]
    %v7829 = vld [vmem:[#allocation11 + $0x21c] sm:$0xf]
    %v7830 = vld [vmem:[#allocation11 + $0x220] sm:$0xf]
    %v7831 = vld [vmem:[#allocation11 + $0x224] sm:$0xf]
    %v7832 = vld [vmem:[#allocation11 + $0x228] sm:$0xf]
    %v7833 = vld [vmem:[#allocation11 + $0x22c] sm:$0xf]
    %v7834 = vld [vmem:[#allocation11 + $0x230] sm:$0xf]
    %v7835 = vld [vmem:[#allocation11 + $0x234] sm:$0xf]
    %v7836 = vld [vmem:[#allocation11 + $0x238] sm:$0xf]
    %v7837 = vld [vmem:[#allocation11 + $0x23c] sm:$0xf]
    %v7838 = vld [vmem:[#allocation11 + $0x240] sm:$0xf]
    %v7839 = vld [vmem:[#allocation11 + $0x244] sm:$0xf]
    %v7840 = vld [vmem:[#allocation11 + $0x248] sm:$0xf]
    %v7841 = vld [vmem:[#allocation11 + $0x24c] sm:$0xf]
    %v7842 = vld [vmem:[#allocation11 + $0x250] sm:$0xf]
    %v7843 = vld [vmem:[#allocation11 + $0x254] sm:$0xf]
    %v7844 = vld [vmem:[#allocation11 + $0x258] sm:$0xf]
    %v7845 = vld [vmem:[#allocation11 + $0x25c] sm:$0xf]
    %v7846 = vld [vmem:[#allocation11 + $0x260] sm:$0xf]
    %v7847 = vld [vmem:[#allocation11 + $0x264] sm:$0xf]
    %v7848 = vld [vmem:[#allocation11 + $0x268] sm:$0xf]
    %v7849 = vld [vmem:[#allocation11 + $0x26c] sm:$0xf]
    %v7850 = vld [vmem:[#allocation11 + $0x270] sm:$0xf]
    %v7851 = vld [vmem:[#allocation11 + $0x274] sm:$0xf]
    %v7852 = vld [vmem:[#allocation11 + $0x278] sm:$0xf]
    %v7853 = vld [vmem:[#allocation11 + $0x27c] sm:$0xf]
    %v7854 = vld [vmem:[#allocation11 + $0x280] sm:$0xf]
    %v7855 = vld [vmem:[#allocation11 + $0x284] sm:$0xf]
    %v7856 = vld [vmem:[#allocation11 + $0x288] sm:$0xf]
    %v7857 = vld [vmem:[#allocation11 + $0x28c] sm:$0xf]
    %v7858 = vld [vmem:[#allocation11 + $0x290] sm:$0xf]
    %v7859 = vld [vmem:[#allocation11 + $0x294] sm:$0xf]
    %v7860 = vld [vmem:[#allocation11 + $0x298] sm:$0xf]
    %v7861 = vld [vmem:[#allocation11 + $0x29c] sm:$0xf]
    %v7862 = vld [vmem:[#allocation11 + $0x2a0] sm:$0xf]
    %v7863 = vld [vmem:[#allocation11 + $0x2a4] sm:$0xf]
    %v7864 = vld [vmem:[#allocation11 + $0x2a8] sm:$0xf]
    %v7865 = vld [vmem:[#allocation11 + $0x2ac] sm:$0xf]
    %v7866 = vld [vmem:[#allocation11 + $0x2b0] sm:$0xf]
    %v7867 = vld [vmem:[#allocation11 + $0x2b4] sm:$0xf]
    %v7868 = vld [vmem:[#allocation11 + $0x2b8] sm:$0xf]
    %v7869 = vld [vmem:[#allocation11 + $0x2bc] sm:$0xf]
    %v7870 = vld [vmem:[#allocation11 + $0x2c0] sm:$0xf]
    %v7871 = vld [vmem:[#allocation11 + $0x2c4] sm:$0xf]
    %v7872 = vld [vmem:[#allocation11 + $0x2c8] sm:$0xf]
    %v7873 = vld [vmem:[#allocation11 + $0x2cc] sm:$0xf]
    %v7874 = vld [vmem:[#allocation11 + $0x2d0] sm:$0xf]
    %v7875 = vld [vmem:[#allocation11 + $0x2d4] sm:$0xf]
    %v7876 = vld [vmem:[#allocation11 + $0x2d8] sm:$0xf]
    %v7877 = vld [vmem:[#allocation11 + $0x2dc] sm:$0xf]
    %v7878 = vld [vmem:[#allocation11 + $0x2e0] sm:$0xf]
    %v7879 = vld [vmem:[#allocation11 + $0x2e4] sm:$0xf]
    %v7880 = vld [vmem:[#allocation11 + $0x2e8] sm:$0xf]
    %v7881 = vld [vmem:[#allocation11 + $0x2ec] sm:$0xf]
    %v7882 = vld [vmem:[#allocation11 + $0x2f0] sm:$0xf]
    %v7883 = vld [vmem:[#allocation11 + $0x2f4] sm:$0xf]
    %v7884 = vld [vmem:[#allocation11 + $0x2f8] sm:$0xf]
    %v7885 = vld [vmem:[#allocation11 + $0x2fc] sm:$0xf]
    %v7886 = vld [vmem:[#allocation11 + $0x300] sm:$0xf]
    %v7887 = vld [vmem:[#allocation11 + $0x304] sm:$0xf]
    %v7888 = vld [vmem:[#allocation11 + $0x308] sm:$0xf]
    %v7889 = vld [vmem:[#allocation11 + $0x30c] sm:$0xf]
    %v7890 = vld [vmem:[#allocation11 + $0x310] sm:$0xf]
    %v7891 = vld [vmem:[#allocation11 + $0x314] sm:$0xf]
    %v7892 = vld [vmem:[#allocation11 + $0x318] sm:$0xf]
    %v7893 = vld [vmem:[#allocation11 + $0x31c] sm:$0xf]
    %v7894 = vld [vmem:[#allocation11 + $0x320] sm:$0xf]
    %v7895 = vld [vmem:[#allocation11 + $0x324] sm:$0xf]
    %v7896 = vld [vmem:[#allocation11 + $0x328] sm:$0xf]
    %v7897 = vld [vmem:[#allocation11 + $0x32c] sm:$0xf]
    %v7898 = vld [vmem:[#allocation11 + $0x330] sm:$0xf]
    %v7899 = vld [vmem:[#allocation11 + $0x334] sm:$0xf]
    %v7900 = vld [vmem:[#allocation11 + $0x338] sm:$0xf]
    %v7901 = vld [vmem:[#allocation11 + $0x33c] sm:$0xf]
    %v7902 = vld [vmem:[#allocation11 + $0x340] sm:$0xf]
    %v7903 = vld [vmem:[#allocation11 + $0x344] sm:$0xf]
    %v7904 = vld [vmem:[#allocation11 + $0x348] sm:$0xf]
    %v7905 = vld [vmem:[#allocation11 + $0x34c] sm:$0xf]
    %v7906 = vld [vmem:[#allocation11 + $0x350] sm:$0xf]
    %v7907 = vld [vmem:[#allocation11 + $0x354] sm:$0xf]
    %v7908 = vld [vmem:[#allocation11 + $0x358] sm:$0xf]
    %v7909 = vld [vmem:[#allocation11 + $0x35c] sm:$0xf]
    %v7910 = vld [vmem:[#allocation11 + $0x360] sm:$0xf]
    %v7911 = vld [vmem:[#allocation11 + $0x364] sm:$0xf]
    %v7912 = vld [vmem:[#allocation11 + $0x368] sm:$0xf]
    %v7913 = vld [vmem:[#allocation11 + $0x36c] sm:$0xf]
    %v7914 = vld [vmem:[#allocation11 + $0x370] sm:$0xf]
    %v7915 = vld [vmem:[#allocation11 + $0x374] sm:$0xf]
    %v7916 = vld [vmem:[#allocation11 + $0x378] sm:$0xf]
    %v7917 = vld [vmem:[#allocation11 + $0x37c] sm:$0xf]
    %v7918 = vld [vmem:[#allocation11 + $0x380] sm:$0xf]
    %v7919 = vld [vmem:[#allocation11 + $0x384] sm:$0xf]
    %v7920 = vld [vmem:[#allocation11 + $0x388] sm:$0xf]
    %v7921 = vld [vmem:[#allocation11 + $0x38c] sm:$0xf]
    %v7922 = vld [vmem:[#allocation11 + $0x390] sm:$0xf]
    %v7923 = vld [vmem:[#allocation11 + $0x394] sm:$0xf]
    %v7924 = vld [vmem:[#allocation11 + $0x398] sm:$0xf]
    %v7925 = vld [vmem:[#allocation11 + $0x39c] sm:$0xf]
    %v7926 = vld [vmem:[#allocation11 + $0x3a0] sm:$0xf]
    %v7927 = vld [vmem:[#allocation11 + $0x3a4] sm:$0xf]
    %v7928 = vld [vmem:[#allocation11 + $0x3a8] sm:$0xf]
    %v7929 = vld [vmem:[#allocation11 + $0x3ac] sm:$0xf]
    %v7930 = vld [vmem:[#allocation11 + $0x3b0] sm:$0xf]
    %v7931 = vld [vmem:[#allocation11 + $0x3b4] sm:$0xf]
    %v7932 = vld [vmem:[#allocation11 + $0x3b8] sm:$0xf]
    %v7933 = vld [vmem:[#allocation11 + $0x3bc] sm:$0xf]
    %v7934 = vld [vmem:[#allocation11 + $0x3c0] sm:$0xf]
    %v7935 = vld [vmem:[#allocation11 + $0x3c4] sm:$0xf]
    %v7936 = vld [vmem:[#allocation11 + $0x3c8] sm:$0xf]
    %v7937 = vld [vmem:[#allocation11 + $0x3cc] sm:$0xf]
    %v7938 = vld [vmem:[#allocation11 + $0x3d0] sm:$0xf]
    %v7939 = vld [vmem:[#allocation11 + $0x3d4] sm:$0xf]
    %v7940 = vld [vmem:[#allocation11 + $0x3d8] sm:$0xf]
    %v7941 = vld [vmem:[#allocation11 + $0x3dc] sm:$0xf]
    %v7942 = vld [vmem:[#allocation11 + $0x3e0] sm:$0xf]
    %v7943 = vld [vmem:[#allocation11 + $0x3e4] sm:$0xf]
    %v7944 = vld [vmem:[#allocation11 + $0x3e8] sm:$0xf]
    %v7945 = vld [vmem:[#allocation11 + $0x3ec] sm:$0xf]
    %v7946 = vld [vmem:[#allocation11 + $0x3f0] sm:$0xf]
    %v7947 = vld [vmem:[#allocation11 + $0x3f4] sm:$0xf]
    %v7948 = vld [vmem:[#allocation11 + $0x3f8] sm:$0xf]
    %v7949 = vld [vmem:[#allocation11 + $0x3fc] sm:$0xf]
    %v7950 = vld [vmem:[#allocation11 + $0x400] sm:$0xf]
    %v7951 = vld [vmem:[#allocation11 + $0x404] sm:$0xf]
    %v7952 = vld [vmem:[#allocation11 + $0x408] sm:$0xf]
    %v7953 = vld [vmem:[#allocation11 + $0x40c] sm:$0xf]
    %v7954 = vld [vmem:[#allocation11 + $0x410] sm:$0xf]
    %v7955 = vld [vmem:[#allocation11 + $0x414] sm:$0xf]
    %v7956 = vld [vmem:[#allocation11 + $0x418] sm:$0xf]
    %v7957 = vld [vmem:[#allocation11 + $0x41c] sm:$0xf]
    %v7958 = vld [vmem:[#allocation11 + $0x420] sm:$0xf]
    %v7959 = vld [vmem:[#allocation11 + $0x424] sm:$0xf]
    %v7960 = vld [vmem:[#allocation11 + $0x428] sm:$0xf]
    %v7961 = vld [vmem:[#allocation11 + $0x42c] sm:$0xf]
    %v7962 = vld [vmem:[#allocation11 + $0x430] sm:$0xf]
    %v7963 = vld [vmem:[#allocation11 + $0x434] sm:$0xf]
    %v7964 = vld [vmem:[#allocation11 + $0x438] sm:$0xf]
    %v7965 = vld [vmem:[#allocation11 + $0x43c] sm:$0xf]
    %v7966 = vld [vmem:[#allocation11 + $0x440] sm:$0xf]
    %v7967 = vld [vmem:[#allocation11 + $0x444] sm:$0xf]
    %v7968 = vld [vmem:[#allocation11 + $0x448] sm:$0xf]
    %v7969 = vld [vmem:[#allocation11 + $0x44c] sm:$0xf]
    %v7970 = vld [vmem:[#allocation11 + $0x450] sm:$0xf]
    %v7971 = vld [vmem:[#allocation11 + $0x454] sm:$0xf]
    %v7972 = vld [vmem:[#allocation11 + $0x458] sm:$0xf]
    %v7973 = vld [vmem:[#allocation11 + $0x45c] sm:$0xf]
    %v7974 = vld [vmem:[#allocation11 + $0x460] sm:$0xf]
    %v7975 = vld [vmem:[#allocation11 + $0x464] sm:$0xf]
    %v7976 = vld [vmem:[#allocation11 + $0x468] sm:$0xf]
    %v7977 = vld [vmem:[#allocation11 + $0x46c] sm:$0xf]
    %v7978 = vld [vmem:[#allocation11 + $0x470] sm:$0xf]
    %v7979 = vld [vmem:[#allocation11 + $0x474] sm:$0xf]
    %v7980 = vld [vmem:[#allocation11 + $0x478] sm:$0xf]
    %v7981 = vld [vmem:[#allocation11 + $0x47c] sm:$0xf]
    %v7982 = vld [vmem:[#allocation11 + $0x480] sm:$0xf]
    %v7983 = vld [vmem:[#allocation11 + $0x484] sm:$0xf]
    %v7984 = vld [vmem:[#allocation11 + $0x488] sm:$0xf]
    %v7985 = vld [vmem:[#allocation11 + $0x48c] sm:$0xf]
    %v7986 = vld [vmem:[#allocation11 + $0x490] sm:$0xf]
    %v7987 = vld [vmem:[#allocation11 + $0x494] sm:$0xf]
    %v7988 = vld [vmem:[#allocation11 + $0x498] sm:$0xf]
    %v7989 = vld [vmem:[#allocation11 + $0x49c] sm:$0xf]
    %v7990 = vld [vmem:[#allocation11 + $0x4a0] sm:$0xf]
    %v7991 = vld [vmem:[#allocation11 + $0x4a4] sm:$0xf]
    %v7992 = vld [vmem:[#allocation11 + $0x4a8] sm:$0xf]
    %v7993 = vld [vmem:[#allocation11 + $0x4ac] sm:$0xf]
    %v7994 = vld [vmem:[#allocation11 + $0x4b0] sm:$0xf]
    %v7995 = vld [vmem:[#allocation11 + $0x4b4] sm:$0xf]
    %v7996 = vld [vmem:[#allocation11 + $0x4b8] sm:$0xf]
    %v7997 = vld [vmem:[#allocation11 + $0x4bc] sm:$0xf]
    %v7998 = vld [vmem:[#allocation11 + $0x4c0] sm:$0xf]
    %v7999 = vld [vmem:[#allocation11 + $0x4c4] sm:$0xf]
    %v8000 = vld [vmem:[#allocation11 + $0x4c8] sm:$0xf]
    %v8001 = vld [vmem:[#allocation11 + $0x4cc] sm:$0xf]
    %v8002 = vld [vmem:[#allocation11 + $0x4d0] sm:$0xf]
    %v8003 = vld [vmem:[#allocation11 + $0x4d4] sm:$0xf]
    %v8004 = vld [vmem:[#allocation11 + $0x4d8] sm:$0xf]
    %v8005 = vld [vmem:[#allocation11 + $0x4dc] sm:$0xf]
    %v8006 = vld [vmem:[#allocation11 + $0x4e0] sm:$0xf]
    %v8007 = vld [vmem:[#allocation11 + $0x4e4] sm:$0xf]
    %v8008 = vld [vmem:[#allocation11 + $0x4e8] sm:$0xf]
    %v8009 = vld [vmem:[#allocation11 + $0x4ec] sm:$0xf]
    %v8010 = vld [vmem:[#allocation11 + $0x4f0] sm:$0xf]
    %v8011 = vld [vmem:[#allocation11 + $0x4f4] sm:$0xf]
    %v8012 = vld [vmem:[#allocation11 + $0x4f8] sm:$0xf]
    %v8013 = vld [vmem:[#allocation11 + $0x4fc] sm:$0xf]
    %v8014 = vld [vmem:[#allocation11 + $0x500] sm:$0xf]
    %v8015 = vld [vmem:[#allocation11 + $0x504] sm:$0xf]
    %v8016 = vld [vmem:[#allocation11 + $0x508] sm:$0xf]
    %v8017 = vld [vmem:[#allocation11 + $0x50c] sm:$0xf]
    %v8018 = vld [vmem:[#allocation11 + $0x510] sm:$0xf]
    %v8019 = vld [vmem:[#allocation11 + $0x514] sm:$0xf]
    %v8020 = vld [vmem:[#allocation11 + $0x518] sm:$0xf]
    %v8021 = vld [vmem:[#allocation11 + $0x51c] sm:$0xf]
    %v8022 = vld [vmem:[#allocation11 + $0x520] sm:$0xf]
    %v8023 = vld [vmem:[#allocation11 + $0x524] sm:$0xf]
    %v8024 = vld [vmem:[#allocation11 + $0x528] sm:$0xf]
    %v8025 = vld [vmem:[#allocation11 + $0x52c] sm:$0xf]
    %v8026 = vld [vmem:[#allocation11 + $0x530] sm:$0xf]
    %v8027 = vld [vmem:[#allocation11 + $0x534] sm:$0xf]
    %v8028 = vld [vmem:[#allocation11 + $0x538] sm:$0xf]
    %v8029 = vld [vmem:[#allocation11 + $0x53c] sm:$0xf]
    %v8030 = vld [vmem:[#allocation11 + $0x540] sm:$0xf]
    %v8031 = vld [vmem:[#allocation11 + $0x544] sm:$0xf]
    %v8032 = vld [vmem:[#allocation11 + $0x548] sm:$0xf]
    %v8033 = vld [vmem:[#allocation11 + $0x54c] sm:$0xf]
    %v8034 = vld [vmem:[#allocation11 + $0x550] sm:$0xf]
    %v8035 = vld [vmem:[#allocation11 + $0x554] sm:$0xf]
    %v8036 = vld [vmem:[#allocation11 + $0x558] sm:$0xf]
    %v8037 = vld [vmem:[#allocation11 + $0x55c] sm:$0xf]
    %v8038 = vld [vmem:[#allocation11 + $0x560] sm:$0xf]
    %v8039 = vld [vmem:[#allocation11 + $0x564] sm:$0xf]
    %v8040 = vld [vmem:[#allocation11 + $0x568] sm:$0xf]
    %v8041 = vld [vmem:[#allocation11 + $0x56c] sm:$0xf]
    %v8042 = vld [vmem:[#allocation11 + $0x570] sm:$0xf]
    %v8043 = vld [vmem:[#allocation11 + $0x574] sm:$0xf]
    %v8044 = vld [vmem:[#allocation11 + $0x578] sm:$0xf]
    %v8045 = vld [vmem:[#allocation11 + $0x57c] sm:$0xf]
    %v8046 = vld [vmem:[#allocation11 + $0x580] sm:$0xf]
    %v8047 = vld [vmem:[#allocation11 + $0x584] sm:$0xf]
    %v8048 = vld [vmem:[#allocation11 + $0x588] sm:$0xf]
    %v8049 = vld [vmem:[#allocation11 + $0x58c] sm:$0xf]
    %v8050 = vld [vmem:[#allocation11 + $0x590] sm:$0xf]
    %v8051 = vld [vmem:[#allocation11 + $0x594] sm:$0xf]
    %v8052 = vld [vmem:[#allocation11 + $0x598] sm:$0xf]
    %v8053 = vld [vmem:[#allocation11 + $0x59c] sm:$0xf]
    %v8054 = vld [vmem:[#allocation11 + $0x5a0] sm:$0xf]
    %v8055 = vld [vmem:[#allocation11 + $0x5a4] sm:$0xf]
    %v8056 = vld [vmem:[#allocation11 + $0x5a8] sm:$0xf]
    %v8057 = vld [vmem:[#allocation11 + $0x5ac] sm:$0xf]
    %v8058 = vld [vmem:[#allocation11 + $0x5b0] sm:$0xf]
    %v8059 = vld [vmem:[#allocation11 + $0x5b4] sm:$0xf]
    %v8060 = vld [vmem:[#allocation11 + $0x5b8] sm:$0xf]
    %v8061 = vld [vmem:[#allocation11 + $0x5bc] sm:$0xf]
    %v8062 = vld [vmem:[#allocation11 + $0x5c0] sm:$0xf]
    %v8063 = vld [vmem:[#allocation11 + $0x5c4] sm:$0xf]
    %v8064 = vld [vmem:[#allocation11 + $0x5c8] sm:$0xf]
    %v8065 = vld [vmem:[#allocation11 + $0x5cc] sm:$0xf]
    %v8066 = vld [vmem:[#allocation11 + $0x5d0] sm:$0xf]
    %v8067 = vld [vmem:[#allocation11 + $0x5d4] sm:$0xf]
    %v8068 = vld [vmem:[#allocation11 + $0x5d8] sm:$0xf]
    %v8069 = vld [vmem:[#allocation11 + $0x5dc] sm:$0xf]
    %v8070 = vld [vmem:[#allocation11 + $0x5e0] sm:$0xf]
    %v8071 = vld [vmem:[#allocation11 + $0x5e4] sm:$0xf]
    %v8072 = vld [vmem:[#allocation11 + $0x5e8] sm:$0xf]
    %v8073 = vld [vmem:[#allocation11 + $0x5ec] sm:$0xf]
    %v8074 = vld [vmem:[#allocation11 + $0x5f0] sm:$0xf]
    %v8075 = vld [vmem:[#allocation11 + $0x5f4] sm:$0xf]
    %v8076 = vld [vmem:[#allocation11 + $0x5f8] sm:$0xf]
    %v8077 = vld [vmem:[#allocation11 + $0x5fc] sm:$0xf]
    %v8078 = vld [vmem:[%s7] sm:$0x1]
    %v8080 = vlaneseq
    %v8081 = vshrl.u32 %v8080, 7
    %v8082 = vsub.s32 0, %v8081
    %v8083 = vrot.slane %v8078, %v8082
    %v8469 = vunpack.c.l.b16 %v7694
    %v8470 = vunpack.c.l.b16 %v7695
    %v8471 = vunpack.c.l.b16 %v7696
    %v8472 = vunpack.c.l.b16 %v7697
    %v8473 = vunpack.c.l.b16 %v7698
    %v8474 = vunpack.c.l.b16 %v7699
    %v8475 = vunpack.c.l.b16 %v7700
    %v8476 = vunpack.c.l.b16 %v7701
    %v8477 = vunpack.c.l.b16 %v7702
    %v8478 = vunpack.c.l.b16 %v7703
    %v8479 = vunpack.c.l.b16 %v7704
    %v8480 = vunpack.c.l.b16 %v7705
    %v8481 = vunpack.c.l.b16 %v7706
    %v8482 = vunpack.c.l.b16 %v7707
    %v8483 = vunpack.c.l.b16 %v7708
    %v8484 = vunpack.c.l.b16 %v7709
    %v8485 = vunpack.c.l.b16 %v7710
    %v8486 = vunpack.c.l.b16 %v7711
    %v8487 = vunpack.c.l.b16 %v7712
    %v8488 = vunpack.c.l.b16 %v7713
    %v8489 = vunpack.c.l.b16 %v7714
    %v8490 = vunpack.c.l.b16 %v7715
    %v8491 = vunpack.c.l.b16 %v7716
    %v8492 = vunpack.c.l.b16 %v7717
    %v8493 = vunpack.c.l.b16 %v7718
    %v8494 = vunpack.c.l.b16 %v7719
    %v8495 = vunpack.c.l.b16 %v7720
    %v8496 = vunpack.c.l.b16 %v7721
    %v8497 = vunpack.c.l.b16 %v7722
    %v8498 = vunpack.c.l.b16 %v7723
    %v8499 = vunpack.c.l.b16 %v7724
    %v8500 = vunpack.c.l.b16 %v7725
    %v8501 = vunpack.c.l.b16 %v7726
    %v8502 = vunpack.c.l.b16 %v7727
    %v8503 = vunpack.c.l.b16 %v7728
    %v8504 = vunpack.c.l.b16 %v7729
    %v8505 = vunpack.c.l.b16 %v7730
    %v8506 = vunpack.c.l.b16 %v7731
    %v8507 = vunpack.c.l.b16 %v7732
    %v8508 = vunpack.c.l.b16 %v7733
    %v8509 = vunpack.c.l.b16 %v7734
    %v8510 = vunpack.c.l.b16 %v7735
    %v8511 = vunpack.c.l.b16 %v7736
    %v8512 = vunpack.c.l.b16 %v7737
    %v8513 = vunpack.c.l.b16 %v7738
    %v8514 = vunpack.c.l.b16 %v7739
    %v8515 = vunpack.c.l.b16 %v7740
    %v8516 = vunpack.c.l.b16 %v7741
    %v8517 = vunpack.c.l.b16 %v7742
    %v8518 = vunpack.c.l.b16 %v7743
    %v8519 = vunpack.c.l.b16 %v7744
    %v8520 = vunpack.c.l.b16 %v7745
    %v8521 = vunpack.c.l.b16 %v7746
    %v8522 = vunpack.c.l.b16 %v7747
    %v8523 = vunpack.c.l.b16 %v7748
    %v8524 = vunpack.c.l.b16 %v7749
    %v8525 = vunpack.c.l.b16 %v7750
    %v8526 = vunpack.c.l.b16 %v7751
    %v8527 = vunpack.c.l.b16 %v7752
    %v8528 = vunpack.c.l.b16 %v7753
    %v8529 = vunpack.c.l.b16 %v7754
    %v8530 = vunpack.c.l.b16 %v7755
    %v8531 = vunpack.c.l.b16 %v7756
    %v8532 = vunpack.c.l.b16 %v7757
    %v8533 = vunpack.c.l.b16 %v7758
    %v8534 = vunpack.c.l.b16 %v7759
    %v8535 = vunpack.c.l.b16 %v7760
    %v8536 = vunpack.c.l.b16 %v7761
    %v8537 = vunpack.c.l.b16 %v7762
    %v8538 = vunpack.c.l.b16 %v7763
    %v8539 = vunpack.c.l.b16 %v7764
    %v8540 = vunpack.c.l.b16 %v7765
    %v8541 = vunpack.c.l.b16 %v7766
    %v8542 = vunpack.c.l.b16 %v7767
    %v8543 = vunpack.c.l.b16 %v7768
    %v8544 = vunpack.c.l.b16 %v7769
    %v8545 = vunpack.c.l.b16 %v7770
    %v8546 = vunpack.c.l.b16 %v7771
    %v8547 = vunpack.c.l.b16 %v7772
    %v8548 = vunpack.c.l.b16 %v7773
    %v8549 = vunpack.c.l.b16 %v7774
    %v8550 = vunpack.c.l.b16 %v7775
    %v8551 = vunpack.c.l.b16 %v7776
    %v8552 = vunpack.c.l.b16 %v7777
    %v8553 = vunpack.c.l.b16 %v7778
    %v8554 = vunpack.c.l.b16 %v7779
    %v8555 = vunpack.c.l.b16 %v7780
    %v8556 = vunpack.c.l.b16 %v7781
    %v8557 = vunpack.c.l.b16 %v7782
    %v8558 = vunpack.c.l.b16 %v7783
    %v8559 = vunpack.c.l.b16 %v7784
    %v8560 = vunpack.c.l.b16 %v7785
    %v8561 = vunpack.c.l.b16 %v7786
    %v8562 = vunpack.c.l.b16 %v7787
    %v8563 = vunpack.c.l.b16 %v7788
    %v8564 = vunpack.c.l.b16 %v7789
    %v8565 = vunpack.c.l.b16 %v7790
    %v8566 = vunpack.c.l.b16 %v7791
    %v8567 = vunpack.c.l.b16 %v7792
    %v8568 = vunpack.c.l.b16 %v7793
    %v8569 = vunpack.c.l.b16 %v7794
    %v8570 = vunpack.c.l.b16 %v7795
    %v8571 = vunpack.c.l.b16 %v7796
    %v8572 = vunpack.c.l.b16 %v7797
    %v8573 = vunpack.c.l.b16 %v7798
    %v8574 = vunpack.c.l.b16 %v7799
    %v8575 = vunpack.c.l.b16 %v7800
    %v8576 = vunpack.c.l.b16 %v7801
    %v8577 = vunpack.c.l.b16 %v7802
    %v8578 = vunpack.c.l.b16 %v7803
    %v8579 = vunpack.c.l.b16 %v7804
    %v8580 = vunpack.c.l.b16 %v7805
    %v8581 = vunpack.c.l.b16 %v7806
    %v8582 = vunpack.c.l.b16 %v7807
    %v8583 = vunpack.c.l.b16 %v7808
    %v8584 = vunpack.c.l.b16 %v7809
    %v8585 = vunpack.c.l.b16 %v7810
    %v8586 = vunpack.c.l.b16 %v7811
    %v8587 = vunpack.c.l.b16 %v7812
    %v8588 = vunpack.c.l.b16 %v7813
    %v8589 = vunpack.c.l.b16 %v7814
    %v8590 = vunpack.c.l.b16 %v7815
    %v8591 = vunpack.c.l.b16 %v7816
    %v8592 = vunpack.c.l.b16 %v7817
    %v8593 = vunpack.c.l.b16 %v7818
    %v8594 = vunpack.c.l.b16 %v7819
    %v8595 = vunpack.c.l.b16 %v7820
    %v8596 = vunpack.c.l.b16 %v7821
    %v8597 = vunpack.c.l.b16 %v7822
    %v8598 = vunpack.c.l.b16 %v7823
    %v8599 = vunpack.c.l.b16 %v7824
    %v8600 = vunpack.c.l.b16 %v7825
    %v8601 = vunpack.c.l.b16 %v7826
    %v8602 = vunpack.c.l.b16 %v7827
    %v8603 = vunpack.c.l.b16 %v7828
    %v8604 = vunpack.c.l.b16 %v7829
    %v8605 = vunpack.c.l.b16 %v7830
    %v8606 = vunpack.c.l.b16 %v7831
    %v8607 = vunpack.c.l.b16 %v7832
    %v8608 = vunpack.c.l.b16 %v7833
    %v8609 = vunpack.c.l.b16 %v7834
    %v8610 = vunpack.c.l.b16 %v7835
    %v8611 = vunpack.c.l.b16 %v7836
    %v8612 = vunpack.c.l.b16 %v7837
    %v8613 = vunpack.c.l.b16 %v7838
    %v8614 = vunpack.c.l.b16 %v7839
    %v8615 = vunpack.c.l.b16 %v7840
    %v8616 = vunpack.c.l.b16 %v7841
    %v8617 = vunpack.c.l.b16 %v7842
    %v8618 = vunpack.c.l.b16 %v7843
    %v8619 = vunpack.c.l.b16 %v7844
    %v8620 = vunpack.c.l.b16 %v7845
    %v8621 = vunpack.c.l.b16 %v7846
    %v8622 = vunpack.c.l.b16 %v7847
    %v8623 = vunpack.c.l.b16 %v7848
    %v8624 = vunpack.c.l.b16 %v7849
    %v8625 = vunpack.c.l.b16 %v7850
    %v8626 = vunpack.c.l.b16 %v7851
    %v8627 = vunpack.c.l.b16 %v7852
    %v8628 = vunpack.c.l.b16 %v7853
    %v8629 = vunpack.c.l.b16 %v7854
    %v8630 = vunpack.c.l.b16 %v7855
    %v8631 = vunpack.c.l.b16 %v7856
    %v8632 = vunpack.c.l.b16 %v7857
    %v8633 = vunpack.c.l.b16 %v7858
    %v8634 = vunpack.c.l.b16 %v7859
    %v8635 = vunpack.c.l.b16 %v7860
    %v8636 = vunpack.c.l.b16 %v7861
    %v8637 = vunpack.c.l.b16 %v7862
    %v8638 = vunpack.c.l.b16 %v7863
    %v8639 = vunpack.c.l.b16 %v7864
    %v8640 = vunpack.c.l.b16 %v7865
    %v8641 = vunpack.c.l.b16 %v7866
    %v8642 = vunpack.c.l.b16 %v7867
    %v8643 = vunpack.c.l.b16 %v7868
    %v8644 = vunpack.c.l.b16 %v7869
    %v8645 = vunpack.c.l.b16 %v7870
    %v8646 = vunpack.c.l.b16 %v7871
    %v8647 = vunpack.c.l.b16 %v7872
    %v8648 = vunpack.c.l.b16 %v7873
    %v8649 = vunpack.c.l.b16 %v7874
    %v8650 = vunpack.c.l.b16 %v7875
    %v8651 = vunpack.c.l.b16 %v7876
    %v8652 = vunpack.c.l.b16 %v7877
    %v8653 = vunpack.c.l.b16 %v7878
    %v8654 = vunpack.c.l.b16 %v7879
    %v8655 = vunpack.c.l.b16 %v7880
    %v8656 = vunpack.c.l.b16 %v7881
    %v8657 = vunpack.c.l.b16 %v7882
    %v8658 = vunpack.c.l.b16 %v7883
    %v8659 = vunpack.c.l.b16 %v7884
    %v8660 = vunpack.c.l.b16 %v7885
    %v8661 = vunpack.c.l.b16 %v7886
    %v8662 = vunpack.c.l.b16 %v7887
    %v8663 = vunpack.c.l.b16 %v7888
    %v8664 = vunpack.c.l.b16 %v7889
    %v8665 = vunpack.c.l.b16 %v7890
    %v8666 = vunpack.c.l.b16 %v7891
    %v8667 = vunpack.c.l.b16 %v7892
    %v8668 = vunpack.c.l.b16 %v7893
    %v8669 = vunpack.c.l.b16 %v7894
    %v8670 = vunpack.c.l.b16 %v7895
    %v8671 = vunpack.c.l.b16 %v7896
    %v8672 = vunpack.c.l.b16 %v7897
    %v8673 = vunpack.c.l.b16 %v7898
    %v8674 = vunpack.c.l.b16 %v7899
    %v8675 = vunpack.c.l.b16 %v7900
    %v8676 = vunpack.c.l.b16 %v7901
    %v8677 = vunpack.c.l.b16 %v7902
    %v8678 = vunpack.c.l.b16 %v7903
    %v8679 = vunpack.c.l.b16 %v7904
    %v8680 = vunpack.c.l.b16 %v7905
    %v8681 = vunpack.c.l.b16 %v7906
    %v8682 = vunpack.c.l.b16 %v7907
    %v8683 = vunpack.c.l.b16 %v7908
    %v8684 = vunpack.c.l.b16 %v7909
    %v8685 = vunpack.c.l.b16 %v7910
    %v8686 = vunpack.c.l.b16 %v7911
    %v8687 = vunpack.c.l.b16 %v7912
    %v8688 = vunpack.c.l.b16 %v7913
    %v8689 = vunpack.c.l.b16 %v7914
    %v8690 = vunpack.c.l.b16 %v7915
    %v8691 = vunpack.c.l.b16 %v7916
    %v8692 = vunpack.c.l.b16 %v7917
    %v8693 = vunpack.c.l.b16 %v7918
    %v8694 = vunpack.c.l.b16 %v7919
    %v8695 = vunpack.c.l.b16 %v7920
    %v8696 = vunpack.c.l.b16 %v7921
    %v8697 = vunpack.c.l.b16 %v7922
    %v8698 = vunpack.c.l.b16 %v7923
    %v8699 = vunpack.c.l.b16 %v7924
    %v8700 = vunpack.c.l.b16 %v7925
    %v8701 = vunpack.c.l.b16 %v7926
    %v8702 = vunpack.c.l.b16 %v7927
    %v8703 = vunpack.c.l.b16 %v7928
    %v8704 = vunpack.c.l.b16 %v7929
    %v8705 = vunpack.c.l.b16 %v7930
    %v8706 = vunpack.c.l.b16 %v7931
    %v8707 = vunpack.c.l.b16 %v7932
    %v8708 = vunpack.c.l.b16 %v7933
    %v8709 = vunpack.c.l.b16 %v7934
    %v8710 = vunpack.c.l.b16 %v7935
    %v8711 = vunpack.c.l.b16 %v7936
    %v8712 = vunpack.c.l.b16 %v7937
    %v8713 = vunpack.c.l.b16 %v7938
    %v8714 = vunpack.c.l.b16 %v7939
    %v8715 = vunpack.c.l.b16 %v7940
    %v8716 = vunpack.c.l.b16 %v7941
    %v8717 = vunpack.c.l.b16 %v7942
    %v8718 = vunpack.c.l.b16 %v7943
    %v8719 = vunpack.c.l.b16 %v7944
    %v8720 = vunpack.c.l.b16 %v7945
    %v8721 = vunpack.c.l.b16 %v7946
    %v8722 = vunpack.c.l.b16 %v7947
    %v8723 = vunpack.c.l.b16 %v7948
    %v8724 = vunpack.c.l.b16 %v7949
    %v8725 = vunpack.c.l.b16 %v7950
    %v8726 = vunpack.c.l.b16 %v7951
    %v8727 = vunpack.c.l.b16 %v7952
    %v8728 = vunpack.c.l.b16 %v7953
    %v8729 = vunpack.c.l.b16 %v7954
    %v8730 = vunpack.c.l.b16 %v7955
    %v8731 = vunpack.c.l.b16 %v7956
    %v8732 = vunpack.c.l.b16 %v7957
    %v8733 = vunpack.c.l.b16 %v7958
    %v8734 = vunpack.c.l.b16 %v7959
    %v8735 = vunpack.c.l.b16 %v7960
    %v8736 = vunpack.c.l.b16 %v7961
    %v8737 = vunpack.c.l.b16 %v7962
    %v8738 = vunpack.c.l.b16 %v7963
    %v8739 = vunpack.c.l.b16 %v7964
    %v8740 = vunpack.c.l.b16 %v7965
    %v8741 = vunpack.c.l.b16 %v7966
    %v8742 = vunpack.c.l.b16 %v7967
    %v8743 = vunpack.c.l.b16 %v7968
    %v8744 = vunpack.c.l.b16 %v7969
    %v8745 = vunpack.c.l.b16 %v7970
    %v8746 = vunpack.c.l.b16 %v7971
    %v8747 = vunpack.c.l.b16 %v7972
    %v8748 = vunpack.c.l.b16 %v7973
    %v8749 = vunpack.c.l.b16 %v7974
    %v8750 = vunpack.c.l.b16 %v7975
    %v8751 = vunpack.c.l.b16 %v7976
    %v8752 = vunpack.c.l.b16 %v7977
    %v8753 = vunpack.c.l.b16 %v7978
    %v8754 = vunpack.c.l.b16 %v7979
    %v8755 = vunpack.c.l.b16 %v7980
    %v8756 = vunpack.c.l.b16 %v7981
    %v8757 = vunpack.c.l.b16 %v7982
    %v8758 = vunpack.c.l.b16 %v7983
    %v8759 = vunpack.c.l.b16 %v7984
    %v8760 = vunpack.c.l.b16 %v7985
    %v8761 = vunpack.c.l.b16 %v7986
    %v8762 = vunpack.c.l.b16 %v7987
    %v8763 = vunpack.c.l.b16 %v7988
    %v8764 = vunpack.c.l.b16 %v7989
    %v8765 = vunpack.c.l.b16 %v7990
    %v8766 = vunpack.c.l.b16 %v7991
    %v8767 = vunpack.c.l.b16 %v7992
    %v8768 = vunpack.c.l.b16 %v7993
    %v8769 = vunpack.c.l.b16 %v7994
    %v8770 = vunpack.c.l.b16 %v7995
    %v8771 = vunpack.c.l.b16 %v7996
    %v8772 = vunpack.c.l.b16 %v7997
    %v8773 = vunpack.c.l.b16 %v7998
    %v8774 = vunpack.c.l.b16 %v7999
    %v8775 = vunpack.c.l.b16 %v8000
    %v8776 = vunpack.c.l.b16 %v8001
    %v8777 = vunpack.c.l.b16 %v8002
    %v8778 = vunpack.c.l.b16 %v8003
    %v8779 = vunpack.c.l.b16 %v8004
    %v8780 = vunpack.c.l.b16 %v8005
    %v8781 = vunpack.c.l.b16 %v8006
    %v8782 = vunpack.c.l.b16 %v8007
    %v8783 = vunpack.c.l.b16 %v8008
    %v8784 = vunpack.c.l.b16 %v8009
    %v8785 = vunpack.c.l.b16 %v8010
    %v8786 = vunpack.c.l.b16 %v8011
    %v8787 = vunpack.c.l.b16 %v8012
    %v8788 = vunpack.c.l.b16 %v8013
    %v8789 = vunpack.c.l.b16 %v8014
    %v8790 = vunpack.c.l.b16 %v8015
    %v8791 = vunpack.c.l.b16 %v8016
    %v8792 = vunpack.c.l.b16 %v8017
    %v8793 = vunpack.c.l.b16 %v8018
    %v8794 = vunpack.c.l.b16 %v8019
    %v8795 = vunpack.c.l.b16 %v8020
    %v8796 = vunpack.c.l.b16 %v8021
    %v8797 = vunpack.c.l.b16 %v8022
    %v8798 = vunpack.c.l.b16 %v8023
    %v8799 = vunpack.c.l.b16 %v8024
    %v8800 = vunpack.c.l.b16 %v8025
    %v8801 = vunpack.c.l.b16 %v8026
    %v8802 = vunpack.c.l.b16 %v8027
    %v8803 = vunpack.c.l.b16 %v8028
    %v8804 = vunpack.c.l.b16 %v8029
    %v8805 = vunpack.c.l.b16 %v8030
    %v8806 = vunpack.c.l.b16 %v8031
    %v8807 = vunpack.c.l.b16 %v8032
    %v8808 = vunpack.c.l.b16 %v8033
    %v8809 = vunpack.c.l.b16 %v8034
    %v8810 = vunpack.c.l.b16 %v8035
    %v8811 = vunpack.c.l.b16 %v8036
    %v8812 = vunpack.c.l.b16 %v8037
    %v8813 = vunpack.c.l.b16 %v8038
    %v8814 = vunpack.c.l.b16 %v8039
    %v8815 = vunpack.c.l.b16 %v8040
    %v8816 = vunpack.c.l.b16 %v8041
    %v8817 = vunpack.c.l.b16 %v8042
    %v8818 = vunpack.c.l.b16 %v8043
    %v8819 = vunpack.c.l.b16 %v8044
    %v8820 = vunpack.c.l.b16 %v8045
    %v8821 = vunpack.c.l.b16 %v8046
    %v8822 = vunpack.c.l.b16 %v8047
    %v8823 = vunpack.c.l.b16 %v8048
    %v8824 = vunpack.c.l.b16 %v8049
    %v8825 = vunpack.c.l.b16 %v8050
    %v8826 = vunpack.c.l.b16 %v8051
    %v8827 = vunpack.c.l.b16 %v8052
    %v8828 = vunpack.c.l.b16 %v8053
    %v8829 = vunpack.c.l.b16 %v8054
    %v8830 = vunpack.c.l.b16 %v8055
    %v8831 = vunpack.c.l.b16 %v8056
    %v8832 = vunpack.c.l.b16 %v8057
    %v8833 = vunpack.c.l.b16 %v8058
    %v8834 = vunpack.c.l.b16 %v8059
    %v8835 = vunpack.c.l.b16 %v8060
    %v8836 = vunpack.c.l.b16 %v8061
    %v8837 = vunpack.c.l.b16 %v8062
    %v8838 = vunpack.c.l.b16 %v8063
    %v8839 = vunpack.c.l.b16 %v8064
    %v8840 = vunpack.c.l.b16 %v8065
    %v8841 = vunpack.c.l.b16 %v8066
    %v8842 = vunpack.c.l.b16 %v8067
    %v8843 = vunpack.c.l.b16 %v8068
    %v8844 = vunpack.c.l.b16 %v8069
    %v8845 = vunpack.c.l.b16 %v8070
    %v8846 = vunpack.c.l.b16 %v8071
    %v8847 = vunpack.c.l.b16 %v8072
    %v8848 = vunpack.c.l.b16 %v8073
    %v8849 = vunpack.c.l.b16 %v8074
    %v8850 = vunpack.c.l.b16 %v8075
    %v8851 = vunpack.c.l.b16 %v8076
    %v8852 = vunpack.c.l.b16 %v8077
    %v8853 = vpack.c.b16 %v8470, %v8469
    %v8854 = vpack.c.b16 %v8472, %v8471
    %v8855 = vpack.c.b16 %v8474, %v8473
    %v8856 = vpack.c.b16 %v8476, %v8475
    %v8857 = vpack.c.b16 %v8478, %v8477
    %v8858 = vpack.c.b16 %v8480, %v8479
    %v8859 = vpack.c.b16 %v8482, %v8481
    %v8860 = vpack.c.b16 %v8484, %v8483
    %v8861 = vpack.c.b16 %v8486, %v8485
    %v8862 = vpack.c.b16 %v8488, %v8487
    %v8863 = vpack.c.b16 %v8490, %v8489
    %v8864 = vpack.c.b16 %v8492, %v8491
    %v8865 = vpack.c.b16 %v8494, %v8493
    %v8866 = vpack.c.b16 %v8496, %v8495
    %v8867 = vpack.c.b16 %v8498, %v8497
    %v8868 = vpack.c.b16 %v8500, %v8499
    %v8869 = vpack.c.b16 %v8502, %v8501
    %v8870 = vpack.c.b16 %v8504, %v8503
    %v8871 = vpack.c.b16 %v8506, %v8505
    %v8872 = vpack.c.b16 %v8508, %v8507
    %v8873 = vpack.c.b16 %v8510, %v8509
    %v8874 = vpack.c.b16 %v8512, %v8511
    %v8875 = vpack.c.b16 %v8514, %v8513
    %v8876 = vpack.c.b16 %v8516, %v8515
    %v8877 = vpack.c.b16 %v8518, %v8517
    %v8878 = vpack.c.b16 %v8520, %v8519
    %v8879 = vpack.c.b16 %v8522, %v8521
    %v8880 = vpack.c.b16 %v8524, %v8523
    %v8881 = vpack.c.b16 %v8526, %v8525
    %v8882 = vpack.c.b16 %v8528, %v8527
    %v8883 = vpack.c.b16 %v8530, %v8529
    %v8884 = vpack.c.b16 %v8532, %v8531
    %v8885 = vpack.c.b16 %v8534, %v8533
    %v8886 = vpack.c.b16 %v8536, %v8535
    %v8887 = vpack.c.b16 %v8538, %v8537
    %v8888 = vpack.c.b16 %v8540, %v8539
    %v8889 = vpack.c.b16 %v8542, %v8541
    %v8890 = vpack.c.b16 %v8544, %v8543
    %v8891 = vpack.c.b16 %v8546, %v8545
    %v8892 = vpack.c.b16 %v8548, %v8547
    %v8893 = vpack.c.b16 %v8550, %v8549
    %v8894 = vpack.c.b16 %v8552, %v8551
    %v8895 = vpack.c.b16 %v8554, %v8553
    %v8896 = vpack.c.b16 %v8556, %v8555
    %v8897 = vpack.c.b16 %v8558, %v8557
    %v8898 = vpack.c.b16 %v8560, %v8559
    %v8899 = vpack.c.b16 %v8562, %v8561
    %v8900 = vpack.c.b16 %v8564, %v8563
    %v8901 = vpack.c.b16 %v8566, %v8565
    %v8902 = vpack.c.b16 %v8568, %v8567
    %v8903 = vpack.c.b16 %v8570, %v8569
    %v8904 = vpack.c.b16 %v8572, %v8571
    %v8905 = vpack.c.b16 %v8574, %v8573
    %v8906 = vpack.c.b16 %v8576, %v8575
    %v8907 = vpack.c.b16 %v8578, %v8577
    %v8908 = vpack.c.b16 %v8580, %v8579
    %v8909 = vpack.c.b16 %v8582, %v8581
    %v8910 = vpack.c.b16 %v8584, %v8583
    %v8911 = vpack.c.b16 %v8586, %v8585
    %v8912 = vpack.c.b16 %v8588, %v8587
    %v8913 = vpack.c.b16 %v8590, %v8589
    %v8914 = vpack.c.b16 %v8592, %v8591
    %v8915 = vpack.c.b16 %v8594, %v8593
    %v8916 = vpack.c.b16 %v8596, %v8595
    %v8917 = vpack.c.b16 %v8598, %v8597
    %v8918 = vpack.c.b16 %v8600, %v8599
    %v8919 = vpack.c.b16 %v8602, %v8601
    %v8920 = vpack.c.b16 %v8604, %v8603
    %v8921 = vpack.c.b16 %v8606, %v8605
    %v8922 = vpack.c.b16 %v8608, %v8607
    %v8923 = vpack.c.b16 %v8610, %v8609
    %v8924 = vpack.c.b16 %v8612, %v8611
    %v8925 = vpack.c.b16 %v8614, %v8613
    %v8926 = vpack.c.b16 %v8616, %v8615
    %v8927 = vpack.c.b16 %v8618, %v8617
    %v8928 = vpack.c.b16 %v8620, %v8619
    %v8929 = vpack.c.b16 %v8622, %v8621
    %v8930 = vpack.c.b16 %v8624, %v8623
    %v8931 = vpack.c.b16 %v8626, %v8625
    %v8932 = vpack.c.b16 %v8628, %v8627
    %v8933 = vpack.c.b16 %v8630, %v8629
    %v8934 = vpack.c.b16 %v8632, %v8631
    %v8935 = vpack.c.b16 %v8634, %v8633
    %v8936 = vpack.c.b16 %v8636, %v8635
    %v8937 = vpack.c.b16 %v8638, %v8637
    %v8938 = vpack.c.b16 %v8640, %v8639
    %v8939 = vpack.c.b16 %v8642, %v8641
    %v8940 = vpack.c.b16 %v8644, %v8643
    %v8941 = vpack.c.b16 %v8646, %v8645
    %v8942 = vpack.c.b16 %v8648, %v8647
    %v8943 = vpack.c.b16 %v8650, %v8649
    %v8944 = vpack.c.b16 %v8652, %v8651
    %v8945 = vpack.c.b16 %v8654, %v8653
    %v8946 = vpack.c.b16 %v8656, %v8655
    %v8947 = vpack.c.b16 %v8658, %v8657
    %v8948 = vpack.c.b16 %v8660, %v8659
    %v8949 = vpack.c.b16 %v8662, %v8661
    %v8950 = vpack.c.b16 %v8664, %v8663
    %v8951 = vpack.c.b16 %v8666, %v8665
    %v8952 = vpack.c.b16 %v8668, %v8667
    %v8953 = vpack.c.b16 %v8670, %v8669
    %v8954 = vpack.c.b16 %v8672, %v8671
    %v8955 = vpack.c.b16 %v8674, %v8673
    %v8956 = vpack.c.b16 %v8676, %v8675
    %v8957 = vpack.c.b16 %v8678, %v8677
    %v8958 = vpack.c.b16 %v8680, %v8679
    %v8959 = vpack.c.b16 %v8682, %v8681
    %v8960 = vpack.c.b16 %v8684, %v8683
    %v8961 = vpack.c.b16 %v8686, %v8685
    %v8962 = vpack.c.b16 %v8688, %v8687
    %v8963 = vpack.c.b16 %v8690, %v8689
    %v8964 = vpack.c.b16 %v8692, %v8691
    %v8965 = vpack.c.b16 %v8694, %v8693
    %v8966 = vpack.c.b16 %v8696, %v8695
    %v8967 = vpack.c.b16 %v8698, %v8697
    %v8968 = vpack.c.b16 %v8700, %v8699
    %v8969 = vpack.c.b16 %v8702, %v8701
    %v8970 = vpack.c.b16 %v8704, %v8703
    %v8971 = vpack.c.b16 %v8706, %v8705
    %v8972 = vpack.c.b16 %v8708, %v8707
    %v8973 = vpack.c.b16 %v8710, %v8709
    %v8974 = vpack.c.b16 %v8712, %v8711
    %v8975 = vpack.c.b16 %v8714, %v8713
    %v8976 = vpack.c.b16 %v8716, %v8715
    %v8977 = vpack.c.b16 %v8718, %v8717
    %v8978 = vpack.c.b16 %v8720, %v8719
    %v8979 = vpack.c.b16 %v8722, %v8721
    %v8980 = vpack.c.b16 %v8724, %v8723
    %v8981 = vpack.c.b16 %v8726, %v8725
    %v8982 = vpack.c.b16 %v8728, %v8727
    %v8983 = vpack.c.b16 %v8730, %v8729
    %v8984 = vpack.c.b16 %v8732, %v8731
    %v8985 = vpack.c.b16 %v8734, %v8733
    %v8986 = vpack.c.b16 %v8736, %v8735
    %v8987 = vpack.c.b16 %v8738, %v8737
    %v8988 = vpack.c.b16 %v8740, %v8739
    %v8989 = vpack.c.b16 %v8742, %v8741
    %v8990 = vpack.c.b16 %v8744, %v8743
    %v8991 = vpack.c.b16 %v8746, %v8745
    %v8992 = vpack.c.b16 %v8748, %v8747
    %v8993 = vpack.c.b16 %v8750, %v8749
    %v8994 = vpack.c.b16 %v8752, %v8751
    %v8995 = vpack.c.b16 %v8754, %v8753
    %v8996 = vpack.c.b16 %v8756, %v8755
    %v8997 = vpack.c.b16 %v8758, %v8757
    %v8998 = vpack.c.b16 %v8760, %v8759
    %v8999 = vpack.c.b16 %v8762, %v8761
    %v9000 = vpack.c.b16 %v8764, %v8763
    %v9001 = vpack.c.b16 %v8766, %v8765
    %v9002 = vpack.c.b16 %v8768, %v8767
    %v9003 = vpack.c.b16 %v8770, %v8769
    %v9004 = vpack.c.b16 %v8772, %v8771
    %v9005 = vpack.c.b16 %v8774, %v8773
    %v9006 = vpack.c.b16 %v8776, %v8775
    %v9007 = vpack.c.b16 %v8778, %v8777
    %v9008 = vpack.c.b16 %v8780, %v8779
    %v9009 = vpack.c.b16 %v8782, %v8781
    %v9010 = vpack.c.b16 %v8784, %v8783
    %v9011 = vpack.c.b16 %v8786, %v8785
    %v9012 = vpack.c.b16 %v8788, %v8787
    %v9013 = vpack.c.b16 %v8790, %v8789
    %v9014 = vpack.c.b16 %v8792, %v8791
    %v9015 = vpack.c.b16 %v8794, %v8793
    %v9016 = vpack.c.b16 %v8796, %v8795
    %v9017 = vpack.c.b16 %v8798, %v8797
    %v9018 = vpack.c.b16 %v8800, %v8799
    %v9019 = vpack.c.b16 %v8802, %v8801
    %v9020 = vpack.c.b16 %v8804, %v8803
    %v9021 = vpack.c.b16 %v8806, %v8805
    %v9022 = vpack.c.b16 %v8808, %v8807
    %v9023 = vpack.c.b16 %v8810, %v8809
    %v9024 = vpack.c.b16 %v8812, %v8811
    %v9025 = vpack.c.b16 %v8814, %v8813
    %v9026 = vpack.c.b16 %v8816, %v8815
    %v9027 = vpack.c.b16 %v8818, %v8817
    %v9028 = vpack.c.b16 %v8820, %v8819
    %v9029 = vpack.c.b16 %v8822, %v8821
    %v9030 = vpack.c.b16 %v8824, %v8823
    %v9031 = vpack.c.b16 %v8826, %v8825
    %v9032 = vpack.c.b16 %v8828, %v8827
    %v9033 = vpack.c.b16 %v8830, %v8829
    %v9034 = vpack.c.b16 %v8832, %v8831
    %v9035 = vpack.c.b16 %v8834, %v8833
    %v9036 = vpack.c.b16 %v8836, %v8835
    %v9037 = vpack.c.b16 %v8838, %v8837
    %v9038 = vpack.c.b16 %v8840, %v8839
    %v9039 = vpack.c.b16 %v8842, %v8841
    %v9040 = vpack.c.b16 %v8844, %v8843
    %v9041 = vpack.c.b16 %v8846, %v8845
    %v9042 = vpack.c.b16 %v8848, %v8847
    %v9043 = vpack.c.b16 %v8850, %v8849
    %v9044 = vpack.c.b16 %v8852, %v8851
    %9237 = vmatprep.subr.bf16.mxu0 0
    %9238 = vmatpush1.bf16.msra.mxu0 %v8853
    %9239 = vmatprep.subr.bf16.mxu0 0
    %9240 = vmatpush1.bf16.msra.mxu0 %v8854
    %9241 = vmatprep.subr.bf16.mxu0 0
    %9242 = vmatpush1.bf16.msra.mxu0 %v8855
    %9243 = vmatprep.subr.bf16.mxu0 0
    %9244 = vmatpush1.bf16.msra.mxu0 %v8856
    %9245 = vmatprep.subr.bf16.mxu0 0
    %9246 = vmatpush1.bf16.msra.mxu0 %v8857
    %9247 = vmatprep.subr.bf16.mxu0 0
    %9248 = vmatpush1.bf16.msra.mxu0 %v8858
    %9249 = vmatprep.subr.bf16.mxu0 0
    %9250 = vmatpush1.bf16.msra.mxu0 %v8859
    %9251 = vmatprep.subr.bf16.mxu0 0
    %9252 = vmatpush1.bf16.msra.mxu0 %v8860
    %9253 = vmatprep.subr.bf16.mxu0 0
    %9254 = vmatpush1.bf16.msra.mxu0 %v8861
    %9255 = vmatprep.subr.bf16.mxu0 0
    %9256 = vmatpush1.bf16.msra.mxu0 %v8862
    %9257 = vmatprep.subr.bf16.mxu0 0
    %9258 = vmatpush1.bf16.msra.mxu0 %v8863
    %9259 = vmatprep.subr.bf16.mxu0 0
    %9260 = vmatpush1.bf16.msra.mxu0 %v8864
    %9261 = vmatprep.subr.bf16.mxu0 0
    %9262 = vmatpush1.bf16.msra.mxu0 %v8865
    %9263 = vmatprep.subr.bf16.mxu0 0
    %9264 = vmatpush1.bf16.msra.mxu0 %v8866
    %9265 = vmatprep.subr.bf16.mxu0 0
    %9266 = vmatpush1.bf16.msra.mxu0 %v8867
    %9267 = vmatprep.subr.bf16.mxu0 0
    %9268 = vmatpush1.bf16.msra.mxu0 %v8868
    %9269 = vmatprep.mubr.bf16.mxu0 %v7671
    %9270 = vmatmul.mubr.bf16.gmra.mrb[0].mxu0 %v7670
    %v9271 = vpop.f32.mrb[0].mxu0
    %v9272 = vadd.f32 %v8083, %v9271
    %v9273 = vpop.f32.mrb[0].mxu0
    %v9274 = vpop.f32.mrb[0].mxu0
    %v9275 = vadd.f32 %v8083, %v9274
    %v9276 = vpop.f32.mrb[0].mxu0
    %9277 = vdwg.mxu0
    %9278 = vmatprep.subr.bf16.mxu0 0
    %9279 = vmatpush1.bf16.msra.mxu0 %v8869
    %9280 = vmatprep.subr.bf16.mxu0 0
    %9281 = vmatpush1.bf16.msra.mxu0 %v8870
    %9282 = vmatprep.subr.bf16.mxu0 0
    %9283 = vmatpush1.bf16.msra.mxu0 %v8871
    %9284 = vmatprep.subr.bf16.mxu0 0
    %9285 = vmatpush1.bf16.msra.mxu0 %v8872
    %9286 = vmatprep.subr.bf16.mxu0 0
    %9287 = vmatpush1.bf16.msra.mxu0 %v8873
    %9288 = vmatprep.subr.bf16.mxu0 0
    %9289 = vmatpush1.bf16.msra.mxu0 %v8874
    %9290 = vmatprep.subr.bf16.mxu0 0
    %9291 = vmatpush1.bf16.msra.mxu0 %v8875
    %9292 = vmatprep.subr.bf16.mxu0 0
    %9293 = vmatpush1.bf16.msra.mxu0 %v8876
    %9294 = vmatprep.subr.bf16.mxu0 0
    %9295 = vmatpush1.bf16.msra.mxu0 %v8877
    %9296 = vmatprep.subr.bf16.mxu0 0
    %9297 = vmatpush1.bf16.msra.mxu0 %v8878
    %9298 = vmatprep.subr.bf16.mxu0 0
    %9299 = vmatpush1.bf16.msra.mxu0 %v8879
    %9300 = vmatprep.subr.bf16.mxu0 0
    %9301 = vmatpush1.bf16.msra.mxu0 %v8880
    %9302 = vmatprep.subr.bf16.mxu0 0
    %9303 = vmatpush1.bf16.msra.mxu0 %v8881
    %9304 = vmatprep.subr.bf16.mxu0 0
    %9305 = vmatpush1.bf16.msra.mxu0 %v8882
    %9306 = vmatprep.subr.bf16.mxu0 0
    %9307 = vmatpush1.bf16.msra.mxu0 %v8883
    %9308 = vmatprep.subr.bf16.mxu0 0
    %9309 = vmatpush1.bf16.msra.mxu0 %v8884
    %9310 = vmatprep.mubr.bf16.mxu0 %v7673
    %9311 = vmatmul.mubr.bf16.gmra.mrb[0].mxu0 %v7672
    %v9312 = vpop.f32.mrb[0].mxu0
    %v9313 = vadd.f32 %v9272, %v9312
    %v9314 = vpop.f32.mrb[0].mxu0
    %v9315 = vpop.f32.mrb[0].mxu0
    %v9316 = vadd.f32 %v9275, %v9315
    %v9317 = vpop.f32.mrb[0].mxu0
    %9318 = vdwg.mxu0
    %9319 = vmatprep.subr.bf16.mxu0 0
    %9320 = vmatpush1.bf16.msra.mxu0 %v8885
    %9321 = vmatprep.subr.bf16.mxu0 0
    %9322 = vmatpush1.bf16.msra.mxu0 %v8886
    %9323 = vmatprep.subr.bf16.mxu0 0
    %9324 = vmatpush1.bf16.msra.mxu0 %v8887
    %9325 = vmatprep.subr.bf16.mxu0 0
    %9326 = vmatpush1.bf16.msra.mxu0 %v8888
    %9327 = vmatprep.subr.bf16.mxu0 0
    %9328 = vmatpush1.bf16.msra.mxu0 %v8889
    %9329 = vmatprep.subr.bf16.mxu0 0
    %9330 = vmatpush1.bf16.msra.mxu0 %v8890
    %9331 = vmatprep.subr.bf16.mxu0 0
    %9332 = vmatpush1.bf16.msra.mxu0 %v8891
    %9333 = vmatprep.subr.bf16.mxu0 0
    %9334 = vmatpush1.bf16.msra.mxu0 %v8892
    %9335 = vmatprep.subr.bf16.mxu0 0
    %9336 = vmatpush1.bf16.msra.mxu0 %v8893
    %9337 = vmatprep.subr.bf16.mxu0 0
    %9338 = vmatpush1.bf16.msra.mxu0 %v8894
    %9339 = vmatprep.subr.bf16.mxu0 0
    %9340 = vmatpush1.bf16.msra.mxu0 %v8895
    %9341 = vmatprep.subr.bf16.mxu0 0
    %9342 = vmatpush1.bf16.msra.mxu0 %v8896
    %9343 = vmatprep.subr.bf16.mxu0 0
    %9344 = vmatpush1.bf16.msra.mxu0 %v8897
    %9345 = vmatprep.subr.bf16.mxu0 0
    %9346 = vmatpush1.bf16.msra.mxu0 %v8898
    %9347 = vmatprep.subr.bf16.mxu0 0
    %9348 = vmatpush1.bf16.msra.mxu0 %v8899
    %9349 = vmatprep.subr.bf16.mxu0 0
    %9350 = vmatpush1.bf16.msra.mxu0 %v8900
    %9351 = vmatprep.mubr.bf16.mxu0 %v7675
    %9352 = vmatmul.mubr.bf16.gmra.mrb[0].mxu0 %v7674
    %v9353 = vpop.f32.mrb[0].mxu0
    %v9354 = vadd.f32 %v9313, %v9353
    %v9355 = vpop.f32.mrb[0].mxu0
    %v9356 = vpop.f32.mrb[0].mxu0
    %v9357 = vadd.f32 %v9316, %v9356
    %v9358 = vpop.f32.mrb[0].mxu0
    %9359 = vdwg.mxu0
    %9360 = vmatprep.subr.bf16.mxu0 0
    %9361 = vmatpush1.bf16.msra.mxu0 %v8901
    %9362 = vmatprep.subr.bf16.mxu0 0
    %9363 = vmatpush1.bf16.msra.mxu0 %v8902
    %9364 = vmatprep.subr.bf16.mxu0 0
    %9365 = vmatpush1.bf16.msra.mxu0 %v8903
    %9366 = vmatprep.subr.bf16.mxu0 0
    %9367 = vmatpush1.bf16.msra.mxu0 %v8904
    %9368 = vmatprep.subr.bf16.mxu0 0
    %9369 = vmatpush1.bf16.msra.mxu0 %v8905
    %9370 = vmatprep.subr.bf16.mxu0 0
    %9371 = vmatpush1.bf16.msra.mxu0 %v8906
    %9372 = vmatprep.subr.bf16.mxu0 0
    %9373 = vmatpush1.bf16.msra.mxu0 %v8907
    %9374 = vmatprep.subr.bf16.mxu0 0
    %9375 = vmatpush1.bf16.msra.mxu0 %v8908
    %9376 = vmatprep.subr.bf16.mxu0 0
    %9377 = vmatpush1.bf16.msra.mxu0 %v8909
    %9378 = vmatprep.subr.bf16.mxu0 0
    %9379 = vmatpush1.bf16.msra.mxu0 %v8910
    %9380 = vmatprep.subr.bf16.mxu0 0
    %9381 = vmatpush1.bf16.msra.mxu0 %v8911
    %9382 = vmatprep.subr.bf16.mxu0 0
    %9383 = vmatpush1.bf16.msra.mxu0 %v8912
    %9384 = vmatprep.subr.bf16.mxu0 0
    %9385 = vmatpush1.bf16.msra.mxu0 %v8913
    %9386 = vmatprep.subr.bf16.mxu0 0
    %9387 = vmatpush1.bf16.msra.mxu0 %v8914
    %9388 = vmatprep.subr.bf16.mxu0 0
    %9389 = vmatpush1.bf16.msra.mxu0 %v8915
    %9390 = vmatprep.subr.bf16.mxu0 0
    %9391 = vmatpush1.bf16.msra.mxu0 %v8916
    %9392 = vmatprep.mubr.bf16.mxu0 %v7677
    %9393 = vmatmul.mubr.bf16.gmra.mrb[0].mxu0 %v7676
    %v9394 = vpop.f32.mrb[0].mxu0
    %v9395 = vadd.f32 %v9354, %v9394
    %v9396 = vpop.f32.mrb[0].mxu0
    %v9397 = vpop.f32.mrb[0].mxu0
    %v9398 = vadd.f32 %v9357, %v9397
    %v9399 = vpop.f32.mrb[0].mxu0
    %9400 = vdwg.mxu0
    %9401 = vmatprep.subr.bf16.mxu0 0
    %9402 = vmatpush1.bf16.msra.mxu0 %v8917
    %9403 = vmatprep.subr.bf16.mxu0 0
    %9404 = vmatpush1.bf16.msra.mxu0 %v8918
    %9405 = vmatprep.subr.bf16.mxu0 0
    %9406 = vmatpush1.bf16.msra.mxu0 %v8919
    %9407 = vmatprep.subr.bf16.mxu0 0
    %9408 = vmatpush1.bf16.msra.mxu0 %v8920
    %9409 = vmatprep.subr.bf16.mxu0 0
    %9410 = vmatpush1.bf16.msra.mxu0 %v8921
    %9411 = vmatprep.subr.bf16.mxu0 0
    %9412 = vmatpush1.bf16.msra.mxu0 %v8922
    %9413 = vmatprep.subr.bf16.mxu0 0
    %9414 = vmatpush1.bf16.msra.mxu0 %v8923
    %9415 = vmatprep.subr.bf16.mxu0 0
    %9416 = vmatpush1.bf16.msra.mxu0 %v8924
    %9417 = vmatprep.subr.bf16.mxu0 0
    %9418 = vmatpush1.bf16.msra.mxu0 %v8925
    %9419 = vmatprep.subr.bf16.mxu0 0
    %9420 = vmatpush1.bf16.msra.mxu0 %v8926
    %9421 = vmatprep.subr.bf16.mxu0 0
    %9422 = vmatpush1.bf16.msra.mxu0 %v8927
    %9423 = vmatprep.subr.bf16.mxu0 0
    %9424 = vmatpush1.bf16.msra.mxu0 %v8928
    %9425 = vmatprep.subr.bf16.mxu0 0
    %9426 = vmatpush1.bf16.msra.mxu0 %v8929
    %9427 = vmatprep.subr.bf16.mxu0 0
    %9428 = vmatpush1.bf16.msra.mxu0 %v8930
    %9429 = vmatprep.subr.bf16.mxu0 0
    %9430 = vmatpush1.bf16.msra.mxu0 %v8931
    %9431 = vmatprep.subr.bf16.mxu0 0
    %9432 = vmatpush1.bf16.msra.mxu0 %v8932
    %9433 = vmatprep.mubr.bf16.mxu0 %v7679
    %9434 = vmatmul.mubr.bf16.gmra.mrb[0].mxu0 %v7678
    %v9435 = vpop.f32.mrb[0].mxu0
    %v9436 = vadd.f32 %v9395, %v9435
    %v9437 = vpop.f32.mrb[0].mxu0
    %v9438 = vpop.f32.mrb[0].mxu0
    %v9439 = vadd.f32 %v9398, %v9438
    %v9440 = vpop.f32.mrb[0].mxu0
    %9441 = vdwg.mxu0
    %9442 = vmatprep.subr.bf16.mxu0 0
    %9443 = vmatpush1.bf16.msra.mxu0 %v8933
    %9444 = vmatprep.subr.bf16.mxu0 0
    %9445 = vmatpush1.bf16.msra.mxu0 %v8934
    %9446 = vmatprep.subr.bf16.mxu0 0
    %9447 = vmatpush1.bf16.msra.mxu0 %v8935
    %9448 = vmatprep.subr.bf16.mxu0 0
    %9449 = vmatpush1.bf16.msra.mxu0 %v8936
    %9450 = vmatprep.subr.bf16.mxu0 0
    %9451 = vmatpush1.bf16.msra.mxu0 %v8937
    %9452 = vmatprep.subr.bf16.mxu0 0
    %9453 = vmatpush1.bf16.msra.mxu0 %v8938
    %9454 = vmatprep.subr.bf16.mxu0 0
    %9455 = vmatpush1.bf16.msra.mxu0 %v8939
    %9456 = vmatprep.subr.bf16.mxu0 0
    %9457 = vmatpush1.bf16.msra.mxu0 %v8940
    %9458 = vmatprep.subr.bf16.mxu0 0
    %9459 = vmatpush1.bf16.msra.mxu0 %v8941
    %9460 = vmatprep.subr.bf16.mxu0 0
    %9461 = vmatpush1.bf16.msra.mxu0 %v8942
    %9462 = vmatprep.subr.bf16.mxu0 0
    %9463 = vmatpush1.bf16.msra.mxu0 %v8943
    %9464 = vmatprep.subr.bf16.mxu0 0
    %9465 = vmatpush1.bf16.msra.mxu0 %v8944
    %9466 = vmatprep.subr.bf16.mxu0 0
    %9467 = vmatpush1.bf16.msra.mxu0 %v8945
    %9468 = vmatprep.subr.bf16.mxu0 0
    %9469 = vmatpush1.bf16.msra.mxu0 %v8946
    %9470 = vmatprep.subr.bf16.mxu0 0
    %9471 = vmatpush1.bf16.msra.mxu0 %v8947
    %9472 = vmatprep.subr.bf16.mxu0 0
    %9473 = vmatpush1.bf16.msra.mxu0 %v8948
    %9474 = vmatprep.mubr.bf16.mxu0 %v7681
    %9475 = vmatmul.mubr.bf16.gmra.mrb[0].mxu0 %v7680
    %v9476 = vpop.f32.mrb[0].mxu0
    %v9477 = vadd.f32 %v9436, %v9476
    %v9478 = vpop.f32.mrb[0].mxu0
    %v9479 = vpop.f32.mrb[0].mxu0
    %v9480 = vadd.f32 %v9439, %v9479
    %v9481 = vpop.f32.mrb[0].mxu0
    %9482 = vdwg.mxu0
    %9483 = vmatprep.subr.bf16.mxu0 0
    %9484 = vmatpush1.bf16.msra.mxu0 %v8949
    %9485 = vmatprep.subr.bf16.mxu0 0
    %9486 = vmatpush1.bf16.msra.mxu0 %v8950
    %9487 = vmatprep.subr.bf16.mxu0 0
    %9488 = vmatpush1.bf16.msra.mxu0 %v8951
    %9489 = vmatprep.subr.bf16.mxu0 0
    %9490 = vmatpush1.bf16.msra.mxu0 %v8952
    %9491 = vmatprep.subr.bf16.mxu0 0
    %9492 = vmatpush1.bf16.msra.mxu0 %v8953
    %9493 = vmatprep.subr.bf16.mxu0 0
    %9494 = vmatpush1.bf16.msra.mxu0 %v8954
    %9495 = vmatprep.subr.bf16.mxu0 0
    %9496 = vmatpush1.bf16.msra.mxu0 %v8955
    %9497 = vmatprep.subr.bf16.mxu0 0
    %9498 = vmatpush1.bf16.msra.mxu0 %v8956
    %9499 = vmatprep.subr.bf16.mxu0 0
    %9500 = vmatpush1.bf16.msra.mxu0 %v8957
    %9501 = vmatprep.subr.bf16.mxu0 0
    %9502 = vmatpush1.bf16.msra.mxu0 %v8958
    %9503 = vmatprep.subr.bf16.mxu0 0
    %9504 = vmatpush1.bf16.msra.mxu0 %v8959
    %9505 = vmatprep.subr.bf16.mxu0 0
    %9506 = vmatpush1.bf16.msra.mxu0 %v8960
    %9507 = vmatprep.subr.bf16.mxu0 0
    %9508 = vmatpush1.bf16.msra.mxu0 %v8961
    %9509 = vmatprep.subr.bf16.mxu0 0
    %9510 = vmatpush1.bf16.msra.mxu0 %v8962
    %9511 = vmatprep.subr.bf16.mxu0 0
    %9512 = vmatpush1.bf16.msra.mxu0 %v8963
    %9513 = vmatprep.subr.bf16.mxu0 0
    %9514 = vmatpush1.bf16.msra.mxu0 %v8964
    %9515 = vmatprep.mubr.bf16.mxu0 %v7683
    %9516 = vmatmul.mubr.bf16.gmra.mrb[0].mxu0 %v7682
    %v9517 = vpop.f32.mrb[0].mxu0
    %v9518 = vadd.f32 %v9477, %v9517
    %v9519 = vpop.f32.mrb[0].mxu0
    %v9520 = vpop.f32.mrb[0].mxu0
    %v9521 = vadd.f32 %v9480, %v9520
    %v9522 = vpop.f32.mrb[0].mxu0
    %9523 = vdwg.mxu0
    %9524 = vmatprep.subr.bf16.mxu0 0
    %9525 = vmatpush1.bf16.msra.mxu0 %v8965
    %9526 = vmatprep.subr.bf16.mxu0 0
    %9527 = vmatpush1.bf16.msra.mxu0 %v8966
    %9528 = vmatprep.subr.bf16.mxu0 0
    %9529 = vmatpush1.bf16.msra.mxu0 %v8967
    %9530 = vmatprep.subr.bf16.mxu0 0
    %9531 = vmatpush1.bf16.msra.mxu0 %v8968
    %9532 = vmatprep.subr.bf16.mxu0 0
    %9533 = vmatpush1.bf16.msra.mxu0 %v8969
    %9534 = vmatprep.subr.bf16.mxu0 0
    %9535 = vmatpush1.bf16.msra.mxu0 %v8970
    %9536 = vmatprep.subr.bf16.mxu0 0
    %9537 = vmatpush1.bf16.msra.mxu0 %v8971
    %9538 = vmatprep.subr.bf16.mxu0 0
    %9539 = vmatpush1.bf16.msra.mxu0 %v8972
    %9540 = vmatprep.subr.bf16.mxu0 0
    %9541 = vmatpush1.bf16.msra.mxu0 %v8973
    %9542 = vmatprep.subr.bf16.mxu0 0
    %9543 = vmatpush1.bf16.msra.mxu0 %v8974
    %9544 = vmatprep.subr.bf16.mxu0 0
    %9545 = vmatpush1.bf16.msra.mxu0 %v8975
    %9546 = vmatprep.subr.bf16.mxu0 0
    %9547 = vmatpush1.bf16.msra.mxu0 %v8976
    %9548 = vmatprep.subr.bf16.mxu0 0
    %9549 = vmatpush1.bf16.msra.mxu0 %v8977
    %9550 = vmatprep.subr.bf16.mxu0 0
    %9551 = vmatpush1.bf16.msra.mxu0 %v8978
    %9552 = vmatprep.subr.bf16.mxu0 0
    %9553 = vmatpush1.bf16.msra.mxu0 %v8979
    %9554 = vmatprep.subr.bf16.mxu0 0
    %9555 = vmatpush1.bf16.msra.mxu0 %v8980
    %9556 = vmatprep.mubr.bf16.mxu0 %v7685
    %9557 = vmatmul.mubr.bf16.gmra.mrb[0].mxu0 %v7684
    %v9558 = vpop.f32.mrb[0].mxu0
    %v9559 = vadd.f32 %v9518, %v9558
    %v9560 = vpop.f32.mrb[0].mxu0
    %v9561 = vpop.f32.mrb[0].mxu0
    %v9562 = vadd.f32 %v9521, %v9561
    %v9563 = vpop.f32.mrb[0].mxu0
    %9564 = vdwg.mxu0
    %9565 = vmatprep.subr.bf16.mxu0 0
    %9566 = vmatpush1.bf16.msra.mxu0 %v8981
    %9567 = vmatprep.subr.bf16.mxu0 0
    %9568 = vmatpush1.bf16.msra.mxu0 %v8982
    %9569 = vmatprep.subr.bf16.mxu0 0
    %9570 = vmatpush1.bf16.msra.mxu0 %v8983
    %9571 = vmatprep.subr.bf16.mxu0 0
    %9572 = vmatpush1.bf16.msra.mxu0 %v8984
    %9573 = vmatprep.subr.bf16.mxu0 0
    %9574 = vmatpush1.bf16.msra.mxu0 %v8985
    %9575 = vmatprep.subr.bf16.mxu0 0
    %9576 = vmatpush1.bf16.msra.mxu0 %v8986
    %9577 = vmatprep.subr.bf16.mxu0 0
    %9578 = vmatpush1.bf16.msra.mxu0 %v8987
    %9579 = vmatprep.subr.bf16.mxu0 0
    %9580 = vmatpush1.bf16.msra.mxu0 %v8988
    %9581 = vmatprep.subr.bf16.mxu0 0
    %9582 = vmatpush1.bf16.msra.mxu0 %v8989
    %9583 = vmatprep.subr.bf16.mxu0 0
    %9584 = vmatpush1.bf16.msra.mxu0 %v8990
    %9585 = vmatprep.subr.bf16.mxu0 0
    %9586 = vmatpush1.bf16.msra.mxu0 %v8991
    %9587 = vmatprep.subr.bf16.mxu0 0
    %9588 = vmatpush1.bf16.msra.mxu0 %v8992
    %9589 = vmatprep.subr.bf16.mxu0 0
    %9590 = vmatpush1.bf16.msra.mxu0 %v8993
    %9591 = vmatprep.subr.bf16.mxu0 0
    %9592 = vmatpush1.bf16.msra.mxu0 %v8994
    %9593 = vmatprep.subr.bf16.mxu0 0
    %9594 = vmatpush1.bf16.msra.mxu0 %v8995
    %9595 = vmatprep.subr.bf16.mxu0 0
    %9596 = vmatpush1.bf16.msra.mxu0 %v8996
    %9597 = vmatprep.mubr.bf16.mxu0 %v7687
    %9598 = vmatmul.mubr.bf16.gmra.mrb[0].mxu0 %v7686
    %v9599 = vpop.f32.mrb[0].mxu0
    %v9600 = vadd.f32 %v9559, %v9599
    %v9601 = vpop.f32.mrb[0].mxu0
    %v9602 = vpop.f32.mrb[0].mxu0
    %v9603 = vadd.f32 %v9562, %v9602
    %v9604 = vpop.f32.mrb[0].mxu0
    %9605 = vdwg.mxu0
    %9606 = vmatprep.subr.bf16.mxu0 0
    %9607 = vmatpush1.bf16.msra.mxu0 %v8997
    %9608 = vmatprep.subr.bf16.mxu0 0
    %9609 = vmatpush1.bf16.msra.mxu0 %v8998
    %9610 = vmatprep.subr.bf16.mxu0 0
    %9611 = vmatpush1.bf16.msra.mxu0 %v8999
    %9612 = vmatprep.subr.bf16.mxu0 0
    %9613 = vmatpush1.bf16.msra.mxu0 %v9000
    %9614 = vmatprep.subr.bf16.mxu0 0
    %9615 = vmatpush1.bf16.msra.mxu0 %v9001
    %9616 = vmatprep.subr.bf16.mxu0 0
    %9617 = vmatpush1.bf16.msra.mxu0 %v9002
    %9618 = vmatprep.subr.bf16.mxu0 0
    %9619 = vmatpush1.bf16.msra.mxu0 %v9003
    %9620 = vmatprep.subr.bf16.mxu0 0
    %9621 = vmatpush1.bf16.msra.mxu0 %v9004
    %9622 = vmatprep.subr.bf16.mxu0 0
    %9623 = vmatpush1.bf16.msra.mxu0 %v9005
    %9624 = vmatprep.subr.bf16.mxu0 0
    %9625 = vmatpush1.bf16.msra.mxu0 %v9006
    %9626 = vmatprep.subr.bf16.mxu0 0
    %9627 = vmatpush1.bf16.msra.mxu0 %v9007
    %9628 = vmatprep.subr.bf16.mxu0 0
    %9629 = vmatpush1.bf16.msra.mxu0 %v9008
    %9630 = vmatprep.subr.bf16.mxu0 0
    %9631 = vmatpush1.bf16.msra.mxu0 %v9009
    %9632 = vmatprep.subr.bf16.mxu0 0
    %9633 = vmatpush1.bf16.msra.mxu0 %v9010
    %9634 = vmatprep.subr.bf16.mxu0 0
    %9635 = vmatpush1.bf16.msra.mxu0 %v9011
    %9636 = vmatprep.subr.bf16.mxu0 0
    %9637 = vmatpush1.bf16.msra.mxu0 %v9012
    %9638 = vmatprep.mubr.bf16.mxu0 %v7689
    %9639 = vmatmul.mubr.bf16.gmra.mrb[0].mxu0 %v7688
    %v9640 = vpop.f32.mrb[0].mxu0
    %v9641 = vadd.f32 %v9600, %v9640
    %v9642 = vpop.f32.mrb[0].mxu0
    %v9643 = vpop.f32.mrb[0].mxu0
    %v9644 = vadd.f32 %v9603, %v9643
    %v9645 = vpop.f32.mrb[0].mxu0
    %9646 = vdwg.mxu0
    %9647 = vmatprep.subr.bf16.mxu0 0
    %9648 = vmatpush1.bf16.msra.mxu0 %v9013
    %9649 = vmatprep.subr.bf16.mxu0 0
    %9650 = vmatpush1.bf16.msra.mxu0 %v9014
    %9651 = vmatprep.subr.bf16.mxu0 0
    %9652 = vmatpush1.bf16.msra.mxu0 %v9015
    %9653 = vmatprep.subr.bf16.mxu0 0
    %9654 = vmatpush1.bf16.msra.mxu0 %v9016
    %9655 = vmatprep.subr.bf16.mxu0 0
    %9656 = vmatpush1.bf16.msra.mxu0 %v9017
    %9657 = vmatprep.subr.bf16.mxu0 0
    %9658 = vmatpush1.bf16.msra.mxu0 %v9018
    %9659 = vmatprep.subr.bf16.mxu0 0
    %9660 = vmatpush1.bf16.msra.mxu0 %v9019
    %9661 = vmatprep.subr.bf16.mxu0 0
    %9662 = vmatpush1.bf16.msra.mxu0 %v9020
    %9663 = vmatprep.subr.bf16.mxu0 0
    %9664 = vmatpush1.bf16.msra.mxu0 %v9021
    %9665 = vmatprep.subr.bf16.mxu0 0
    %9666 = vmatpush1.bf16.msra.mxu0 %v9022
    %9667 = vmatprep.subr.bf16.mxu0 0
    %9668 = vmatpush1.bf16.msra.mxu0 %v9023
    %9669 = vmatprep.subr.bf16.mxu0 0
    %9670 = vmatpush1.bf16.msra.mxu0 %v9024
    %9671 = vmatprep.subr.bf16.mxu0 0
    %9672 = vmatpush1.bf16.msra.mxu0 %v9025
    %9673 = vmatprep.subr.bf16.mxu0 0
    %9674 = vmatpush1.bf16.msra.mxu0 %v9026
    %9675 = vmatprep.subr.bf16.mxu0 0
    %9676 = vmatpush1.bf16.msra.mxu0 %v9027
    %9677 = vmatprep.subr.bf16.mxu0 0
    %9678 = vmatpush1.bf16.msra.mxu0 %v9028
    %9679 = vmatprep.mubr.bf16.mxu0 %v7691
    %9680 = vmatmul.mubr.bf16.gmra.mrb[0].mxu0 %v7690
    %v9681 = vpop.f32.mrb[0].mxu0
    %v9682 = vadd.f32 %v9641, %v9681
    %v9683 = vpop.f32.mrb[0].mxu0
    %v9684 = vpop.f32.mrb[0].mxu0
    %v9685 = vadd.f32 %v9644, %v9684
    %v9686 = vpop.f32.mrb[0].mxu0
    %9687 = vdwg.mxu0
    %9688 = vmatprep.subr.bf16.mxu0 0
    %9689 = vmatpush1.bf16.msra.mxu0 %v9029
    %9690 = vmatprep.subr.bf16.mxu0 0
    %9691 = vmatpush1.bf16.msra.mxu0 %v9030
    %9692 = vmatprep.subr.bf16.mxu0 0
    %9693 = vmatpush1.bf16.msra.mxu0 %v9031
    %9694 = vmatprep.subr.bf16.mxu0 0
    %9695 = vmatpush1.bf16.msra.mxu0 %v9032
    %9696 = vmatprep.subr.bf16.mxu0 0
    %9697 = vmatpush1.bf16.msra.mxu0 %v9033
    %9698 = vmatprep.subr.bf16.mxu0 0
    %9699 = vmatpush1.bf16.msra.mxu0 %v9034
    %9700 = vmatprep.subr.bf16.mxu0 0
    %9701 = vmatpush1.bf16.msra.mxu0 %v9035
    %9702 = vmatprep.subr.bf16.mxu0 0
    %9703 = vmatpush1.bf16.msra.mxu0 %v9036
    %9704 = vmatprep.subr.bf16.mxu0 0
    %9705 = vmatpush1.bf16.msra.mxu0 %v9037
    %9706 = vmatprep.subr.bf16.mxu0 0
    %9707 = vmatpush1.bf16.msra.mxu0 %v9038
    %9708 = vmatprep.subr.bf16.mxu0 0
    %9709 = vmatpush1.bf16.msra.mxu0 %v9039
    %9710 = vmatprep.subr.bf16.mxu0 0
    %9711 = vmatpush1.bf16.msra.mxu0 %v9040
    %9712 = vmatprep.subr.bf16.mxu0 0
    %9713 = vmatpush1.bf16.msra.mxu0 %v9041
    %9714 = vmatprep.subr.bf16.mxu0 0
    %9715 = vmatpush1.bf16.msra.mxu0 %v9042
    %9716 = vmatprep.subr.bf16.mxu0 0
    %9717 = vmatpush1.bf16.msra.mxu0 %v9043
    %9718 = vmatprep.subr.bf16.mxu0 0
    %9719 = vmatpush1.bf16.msra.mxu0 %v9044
    %9720 = vmatprep.mubr.bf16.mxu0 %v7693
    %9721 = vmatmul.mubr.bf16.gmra.mrb[0].mxu0 %v7692
    %v9722 = vpop.f32.mrb[0].mxu0
    %v9723 = vadd.f32 %v9682, %v9722
    %v9724 = vpop.f32.mrb[0].mxu0
    %v9725 = vpop.f32.mrb[0].mxu0
    %v9726 = vadd.f32 %v9685, %v9725
    %v9727 = vpop.f32.mrb[0].mxu0
    %9728 = vdwg.mxu0
    %9729 = vst [vmem:[#allocation13] sm:$0xff] %v9723
    %9730 = vst [vmem:[#allocation13 + $0x8] sm:$0xff] %v9726
    // Predicated region
    $region58: #{tpu_custom_call.1} parent=1 // pred_check
      _
    $region59: #{tpu_custom_call.1} parent=1 // pred_check_branch
      %9732 = sbr.rel (0) target = $region61
    $region60: #{tpu_custom_call.1} parent=1 // pred_region
      %s9734 = ssub.s32 256, 256
      %9735 = vsyncadd [#allocation4], %s9734
      %s9736 = sshll.u32 [#allocation13], 4
      %s9737 = int_to_ptr.vmem [resolvable:$true] %s9736
      %9742 = dma.vmem_to_hbm [thread:$0]  %s9737, 256, %s8, [#allocation4], 128, 128, 8
    $region61: #{tpu_custom_call.1} parent=1 // pred_fallthru
      _
    // Predicated region
    $region62: #{tpu_custom_call.1} parent=1 // pred_check
      _
    $region63: #{tpu_custom_call.1} parent=1 // pred_check_branch
      %9744 = sbr.rel (0) target = $region65
    $region64: #{tpu_custom_call.1} parent=1 // pred_region
      %9745 = dma.done [#allocation4], 256
    $region65: #{tpu_custom_call.1} parent=1 // pred_fallthru
      _
    %9746 = vsyncpa [#allocation3], 1
    %9747 = vsyncpa [#allocation6], 1
    %9748 = vsyncpa [#allocation9], 1
    %9749 = vsyncpa [#allocation12], 1
    %9750 = vsyncpa [#allocation4], 1

</llo_original>
